<compile_context>
chip_gen: v7x
topology: tpu7x:2x2x1
jax: 0.10.0
libtpu: 0.0.40
codegen_flags: <defaults>
</compile_context>

<pallas_src>
import jax
import jax.numpy as jnp
from jax import lax
from jax.experimental import pallas as pl
from jax.experimental.pallas import tpu as pltpu

# ----------------------------- config constants ------------------------------
B_SZ = 2
IMG = 16                      # cfg.img_size (must be divisible by 16)
NIN = 3                       # cfg.input_channels
CIN = NIN + 1                 # log_mask + RGB
CIN_PAD = 8                   # conv1 contraction dim padded 4 -> 8 (zero cols)
C_ENC = 32                    # cfg.comp_enc_channels
LDIM = 16                     # cfg.comp_ldim
NHID = max(256, 2 * LDIM)     # encoder MLP hidden
DEC_CH = 32                   # cfg.comp_dec_channels
DEC_LAYERS = 2                # cfg.comp_dec_layers
NOUT = 4                      # 3 RGB + 1 mask logit
PIXEL_BOUND = True
BROAD_DIM = IMG + 2 * DEC_LAYERS          # 20
MID_DIM = BROAD_DIM - 2                   # 18 (after first 3x3 valid conv)
HW = IMG * IMG                            # 256 pixels
NPATCH = (IMG // 2) * (IMG // 2)          # 64 output pixels of conv4
C4 = 2 * C_ENC                            # 64 channels after conv4/conv5
FLAT = C4 * NPATCH                        # 4096 = flattened conv4 output

assert DEC_LAYERS == 2 and IMG == 16


# ------------------------------ Pallas kernels -------------------------------
def _enc_front_kernel(x_ref, w1_ref, b1_ref, w2_ref, b2_ref, w3_ref, b3_ref,
                      w4_ref, b4_ref, o_ref):
    """Encoder conv1..conv4 for one batch element.

    Transposed layout (channels on sublanes, the 256 pixels on lanes) so every
    activation is lane-dense.  The pixel axis is pre-permuted (in the wrapper)
    so the 4 positions of each 2x2/stride-2 patch occupy 4 contiguous 64-lane
    blocks -> conv4 becomes 4 accumulated plain matmuls (no im2col).
    """
    f32 = jnp.float32
    h = x_ref[0]                                                      # (8, 256)
    h = jnp.maximum(jnp.dot(w1_ref[...], h, preferred_element_type=f32)
                    + b1_ref[...], 0.0)                               # (32, 256)
    h = jnp.maximum(jnp.dot(w2_ref[...], h, preferred_element_type=f32)
                    + b2_ref[...], 0.0)
    h = jnp.maximum(jnp.dot(w3_ref[...], h, preferred_element_type=f32)
                    + b3_ref[...], 0.0)
    acc = jnp.zeros((C4, NPATCH), f32)
    for k in range(4):                      # 2x2 stride-2 conv, 4 patch offsets
        acc = acc + jnp.dot(w4_ref[k], h[:, k * NPATCH:(k + 1) * NPATCH],
                            preferred_element_type=f32)
    o_ref[0] = jnp.maximum(acc + b4_ref[...], 0.0)                    # (64, 64)


def _tail_decoder_kernel(h4_ref, eps_ref, w5_ref, b5_ref, wf1_ref, bf1_ref,
                         wf2_ref, bf2_ref, wz_ref, cf_ref, wd1_ref, bd1_ref,
                         wo_ref, bo_ref,
                         xr_ref, mu_ref, sg_ref, z_ref, h1_scr):
    """conv5 (== Linear 4096->64) + fc1 + fc2 + reparameterize + decoder."""
    f32 = jnp.float32
    # ---------------- encoder tail ----------------
    v = h4_ref[0]                                                     # (1, 4096)
    h = jnp.maximum(jnp.dot(v, w5_ref[...], preferred_element_type=f32)
                    + b5_ref[...], 0.0)                               # (1, 64)
    h = jnp.maximum(jnp.dot(h, wf1_ref[...], preferred_element_type=f32)
                    + bf1_ref[...], 0.0)                              # (1, 256)
    e = jnp.dot(h, wf2_ref[...], preferred_element_type=f32) + bf2_ref[...]
    mu = e[:, :LDIM]                                                  # (1, 16)
    # B.to_sigma: softplus(x + 0.5) + 1e-8   (numerically-stable softplus)
    sp = e[:, LDIM:] + 0.5
    sigma = jnp.maximum(sp, 0.0) + jnp.log(1.0 + jnp.exp(-jnp.abs(sp))) + 1e-8
    z = mu + sigma * eps_ref[0]                                       # rsample
    mu_ref[0] = mu
    sg_ref[0] = sigma
    z_ref[0] = z
    # ---------------- decoder layer 0 ----------------
    # BroadcastLayer + first 3x3 conv folded into weight prep: z is spatially
    # constant and the coordinate channels depend on a single axis each, so
    # layer 0 == relu(z @ Wz_sum + Cfull) with Cfull precomputed from weights.
    zw = jnp.dot(z, wz_ref[...], preferred_element_type=f32)          # (1, 32)
    h1_scr[...] = jnp.maximum(cf_ref[...] + zw.reshape(1, 1, DEC_CH), 0.0)
    # ---------------- decoder layer 1: 3x3 valid conv ----------------
    acc = jnp.zeros((HW, DEC_CH), f32)
    for di in range(3):
        for dj in range(3):
            xs = h1_scr[pl.ds(di, IMG), pl.ds(dj, IMG), :]            # (16,16,32)
            acc = acc + jnp.dot(xs.reshape(HW, DEC_CH),
                                wd1_ref[3 * di + dj],
                                preferred_element_type=f32)
    h2 = jnp.maximum(acc + bd1_ref[...], 0.0)                         # (256, 32)
    # ---------------- output 1x1 conv (transposed => lane-dense store) -------
    yt = lax.dot_general(wo_ref[...], h2, (((1,), (1,)), ((), ())),
                         preferred_element_type=f32)                  # (4, 256)
    yt = yt + bo_ref[...]
    if PIXEL_BOUND:
        yt = 1.0 / (1.0 + jnp.exp(-yt))                               # sigmoid
    xr_ref[0] = yt


# ------------------------------ pallas wrappers -------------------------------
def encoder_front(params, inp_cm):
    KB = inp_cm.shape[0]

    def _wspec(shape):
        if len(shape) == 2:
            return pl.BlockSpec(shape, lambda b: (0, 0))
        return pl.BlockSpec(shape, lambda b: (0, 0, 0))

    return pl.pallas_call(
        _enc_front_kernel,
        out_shape=jax.ShapeDtypeStruct((KB, C4, NPATCH), jnp.float32),
        grid=(KB,),
        in_specs=[
            pl.BlockSpec((1, CIN_PAD, HW), lambda b: (b, 0, 0)),
            _wspec((C_ENC, CIN_PAD)), _wspec((C_ENC, 1)),
            _wspec((C_ENC, C_ENC)), _wspec((C_ENC, 1)),
            _wspec((C_ENC, C_ENC)), _wspec((C_ENC, 1)),
            _wspec((4, C4, C_ENC)), _wspec((C4, 1)),
        ],
        out_specs=pl.BlockSpec((1, C4, NPATCH), lambda b: (b, 0, 0)),
        compiler_params=pltpu.CompilerParams(
            dimension_semantics=("parallel",)),
    )(inp_cm, params["w1"], params["b1"], params["w2"], params["b2"],
      params["w3"], params["b3"], params["w4"], params["b4"])


def tail_and_decoder(params, h4_flat, eps):
    KB = h4_flat.shape[0]
    h4_3d = h4_flat.reshape(KB, 1, FLAT)       # keep batch out of last-2 dims
    eps_3d = eps.reshape(KB, 1, LDIM)

    def _wspec(shape):
        if len(shape) == 2:
            return pl.BlockSpec(shape, lambda b: (0, 0))
        return pl.BlockSpec(shape, lambda b: (0, 0, 0))

    out_shape = (
        jax.ShapeDtypeStruct((KB, NOUT, HW), jnp.float32),
        jax.ShapeDtypeStruct((KB, 1, LDIM), jnp.float32),
        jax.ShapeDtypeStruct((KB, 1, LDIM), jnp.float32),
        jax.ShapeDtypeStruct((KB, 1, LDIM), jnp.float32),
    )
    out_specs = (
        pl.BlockSpec((1, NOUT, HW), lambda b: (b, 0, 0)),
        pl.BlockSpec((1, 1, LDIM), lambda b: (b, 0, 0)),
        pl.BlockSpec((1, 1, LDIM), lambda b: (b, 0, 0)),
        pl.BlockSpec((1, 1, LDIM), lambda b: (b, 0, 0)),
    )
    xr, mu, sigma, z = pl.pallas_call(
        _tail_decoder_kernel,
        out_shape=out_shape,
        grid=(KB,),
        in_specs=[
            pl.BlockSpec((1, 1, FLAT), lambda b: (b, 0, 0)),
            pl.BlockSpec((1, 1, LDIM), lambda b: (b, 0, 0)),
            _wspec((FLAT, C4)), _wspec((1, C4)),
            _wspec((C4, NHID)), _wspec((1, NHID)),
            _wspec((NHID, 2 * LDIM)), _wspec((1, 2 * LDIM)),
            _wspec((LDIM, DEC_CH)),
            _wspec((MID_DIM, MID_DIM, DEC_CH)),
            _wspec((9, DEC_CH, DEC_CH)), _wspec((1, DEC_CH)),
            _wspec((NOUT, DEC_CH)), _wspec((NOUT, 1)),
        ],
        out_specs=out_specs,
        scratch_shapes=[pltpu.VMEM((MID_DIM, MID_DIM, DEC_CH), jnp.float32)],
        compiler_params=pltpu.CompilerParams(
            dimension_semantics=("parallel",)),
    )(h4_3d, eps_3d, params["w5"], params["b5"], params["wf1"], params["bf1"],
      params["wf2"], params["bf2"], params["wz"], params["cfull"],
      params["wd1"], params["bd1"], params["wo"], params["bo"])
    return xr, mu[:, 0, :], sigma[:, 0, :], z[:, 0, :]


# ------------------------------ parameter init --------------------------------
def _uniform(key, shape, fan_in):
    scale = 1.0 / jnp.sqrt(jnp.float32(fan_in))
    return jax.random.uniform(key, shape, jnp.float32, -scale, scale)


def make_params(key):
    """Weights stored in kernel-ready (pre-transposed / pre-flattened) layouts.

    Random init matches PyTorch's default U(+-1/sqrt(fan_in)); the patch / conv
    weight flattening is self-consistent with the kernels (importing real
    PyTorch weights would require the matching reordering).
    """
    ks = list(jax.random.split(key, 20))
    p = {}
    # ----- MONetCompEncoder -----
    w1 = _uniform(ks[0], (C_ENC, CIN), CIN)                   # 1x1 conv, fan_in 4
    p["w1"] = jnp.pad(w1, ((0, 0), (0, CIN_PAD - CIN)))       # pad K to 8 (zeros)
    p["b1"] = _uniform(ks[1], (C_ENC, 1), CIN)
    p["w2"] = _uniform(ks[2], (C_ENC, C_ENC), C_ENC)
    p["b2"] = _uniform(ks[3], (C_ENC, 1), C_ENC)
    p["w3"] = _uniform(ks[4], (C_ENC, C_ENC), C_ENC)
    p["b3"] = _uniform(ks[5], (C_ENC, 1), C_ENC)
    p["w4"] = _uniform(ks[6], (4, C4, C_ENC), 4 * C_ENC)      # 2x2/s2, fan_in 128
    p["b4"] = _uniform(ks[7], (C4, 1), 4 * C_ENC)
    p["w5"] = _uniform(ks[8], (FLAT, C4), FLAT)               # 8x8/s8 == Linear
    p["b5"] = _uniform(ks[9], (1, C4), FLAT)
    p["wf1"] = _uniform(ks[10], (C4, NHID), C4)               # nin_mlp = 64
    p["bf1"] = _uniform(ks[11], (1, NHID), C4)
    p["wf2"] = _uniform(ks[12], (NHID, 2 * LDIM), NHID)
    p["bf2"] = _uniform(ks[13], (1, 2 * LDIM), NHID)
    # ----- BroadcastDecoder (decoder_module: in=LDIM, out=NOUT) -----
    fan0 = 9 * (LDIM + 2)
    w0 = _uniform(ks[14], (3, 3, LDIM + 2, DEC_CH), fan0)     # first 3x3 conv
    b0 = _uniform(ks[15], (DEC_CH,), fan0)
    # Fold BroadcastLayer + first conv:  out0[i,j] = z@Wz_sum + Ci[i] + Cj[j] + b0
    p["wz"] = w0[:, :, :LDIM, :].sum(axis=(0, 1))             # (16, 32)
    lin = jnp.linspace(-1.0, 1.0, BROAD_DIM)                  # coordinate channel
    cmat = jnp.stack([lin[d:d + MID_DIM] for d in range(3)], axis=1)   # (18, 3)
    wg1 = w0[:, :, LDIM, :].sum(axis=1)                       # coord varying on H
    wg2 = w0[:, :, LDIM + 1, :].sum(axis=0)                   # coord varying on W
    ci = cmat @ wg1                                           # (18, 32)
    cjb = cmat @ wg2 + b0[None, :]                            # (18, 32)
    p["cfull"] = ci[:, None, :] + cjb[None, :, :]             # (18, 18, 32)
    fan1 = 9 * DEC_CH
    p["wd1"] = _uniform(ks[16], (9, DEC_CH, DEC_CH), fan1)    # second 3x3 conv
    p["bd1"] = _uniform(ks[17], (1, DEC_CH), fan1)
    p["wo"] = _uniform(ks[18], (NOUT, DEC_CH), DEC_CH)        # output 1x1 conv
    p["bo"] = _uniform(ks[19], (NOUT, 1), DEC_CH)
    return p


# ------------------------------- model forward --------------------------------
def component_vae_forward(params, x, log_mask, eps):
    """x: (B,3,H,W); log_mask: (B,1,H,W) or list/tuple thereof; eps: (K*B, LDIM)."""
    K = 1
    if isinstance(log_mask, (list, tuple)):
        K = len(log_mask)
        x = jnp.tile(x, (K, 1, 1, 1))
        log_mask = jnp.concatenate(log_mask, axis=0)
    inp = jnp.concatenate([log_mask, x], axis=1)              # (K*B, 4, H, W)
    KB = inp.shape[0]
    assert eps.shape == (KB, LDIM), "eps must be (K*B, LDIM)"
    # Pad channels 4->8 and permute pixels so every 2x2/stride-2 patch position
    # of conv4 is a contiguous 64-pixel lane block (done once at the boundary).
    inp = jnp.pad(inp, ((0, 0), (0, CIN_PAD - CIN), (0, 0), (0, 0)))
    inp = inp.reshape(KB, CIN_PAD, IMG // 2, 2, IMG // 2, 2)
    inp = inp.transpose(0, 1, 3, 5, 2, 4).reshape(KB, CIN_PAD, HW)

    h4 = encoder_front(params, inp)                           # (KB, 64, 64)
    h4_flat = h4.reshape(KB, FLAT)                            # free reshape
    x_r_flat, mu, sigma, z = tail_and_decoder(params, h4_flat, eps)
    x_r = x_r_flat.reshape(KB, NOUT, IMG, IMG)                # already NCHW

    # TODO(synk): seperate_latent_code=True branch (texture/shape decoders) not
    # implemented; this config sets cfg.seperate_latent_code=False.
    x_r_k = tuple(jnp.split(x_r, K, axis=0))
    stats = {
        "mu_k": tuple(jnp.split(mu, K, axis=0)),
        "sigma_k": tuple(jnp.split(sigma, K, axis=0)),
        "z_k": tuple(jnp.split(z, K, axis=0)),
    }
    return x_r_k, stats


# ------------------------------------ main -------------------------------------
if __name__ == "__main__":
    key = jax.random.PRNGKey(0)
    kp, kx, km, ke = jax.random.split(key, 4)
    params = make_params(kp)

    x = jax.random.normal(kx, (B_SZ, NIN, IMG, IMG), jnp.float32)
    log_mask = jax.nn.log_sigmoid(
        jax.random.normal(km, (B_SZ, 1, IMG, IMG), jnp.float32))
    eps = jax.random.normal(ke, (B_SZ, LDIM), jnp.float32)    # rsample noise

    fwd = jax.jit(lambda xx, mm, ee: component_vae_forward(params, xx, mm, ee))
    x_r_k, stats = fwd(x, log_mask, eps)
    jax.block_until_ready(x_r_k)

    assert x_r_k[0].shape == (B_SZ, NOUT, IMG, IMG)
    assert stats["mu_k"][0].shape == (B_SZ, LDIM)
    assert stats["sigma_k"][0].shape == (B_SZ, LDIM)
    assert stats["z_k"][0].shape == (B_SZ, LDIM)
    assert bool(jnp.all(jnp.isfinite(x_r_k[0])))
    assert bool(jnp.all(stats["sigma_k"][0] > 0))
    if PIXEL_BOUND:
        assert bool(jnp.all(x_r_k[0] >= 0)) and bool(jnp.all(x_r_k[0] <= 1))
    print("KERNEL_OK")
</pallas_src>

<mosaic_0001>
module attributes {stable_mosaic.version = 11 : i64} {
  func.func @_enc_front_kernel(%arg0: i32, %arg1: memref<1x8x256xf32, #tpu.memory_space<vmem>>, %arg2: memref<32x8xf32, #tpu.memory_space<vmem>>, %arg3: memref<32x1xf32, #tpu.memory_space<vmem>>, %arg4: memref<32x32xf32, #tpu.memory_space<vmem>>, %arg5: memref<32x1xf32, #tpu.memory_space<vmem>>, %arg6: memref<32x32xf32, #tpu.memory_space<vmem>>, %arg7: memref<32x1xf32, #tpu.memory_space<vmem>>, %arg8: memref<4x64x32xf32, #tpu.memory_space<vmem>>, %arg9: memref<64x1xf32, #tpu.memory_space<vmem>>, %arg10: memref<1x64x64xf32, #tpu.memory_space<vmem>>) attributes {dimension_semantics = [#tpu.dimension_semantics<parallel>], iteration_bounds = array<i64: 2>, scalar_prefetch = 0 : i64, scratch_operands = 0 : i64, tpu.core_type = #tpu.core_type<tc>, window_params = [{transform_indices = @transform_0, window_bounds = array<i64: 1, 8, 256>}, {pipeline_mode = #tpu.pipeline_mode<synchronous>, transform_indices = @transform_1, window_bounds = array<i64: 32, 8>}, {pipeline_mode = #tpu.pipeline_mode<synchronous>, transform_indices = @transform_2, window_bounds = array<i64: 32, 1>}, {pipeline_mode = #tpu.pipeline_mode<synchronous>, transform_indices = @transform_3, window_bounds = array<i64: 32, 32>}, {pipeline_mode = #tpu.pipeline_mode<synchronous>, transform_indices = @transform_4, window_bounds = array<i64: 32, 1>}, {pipeline_mode = #tpu.pipeline_mode<synchronous>, transform_indices = @transform_5, window_bounds = array<i64: 32, 32>}, {pipeline_mode = #tpu.pipeline_mode<synchronous>, transform_indices = @transform_6, window_bounds = array<i64: 32, 1>}, {pipeline_mode = #tpu.pipeline_mode<synchronous>, transform_indices = @transform_7, window_bounds = array<i64: 4, 64, 32>}, {pipeline_mode = #tpu.pipeline_mode<synchronous>, transform_indices = @transform_8, window_bounds = array<i64: 64, 1>}, {transform_indices = @transform_9, window_bounds = array<i64: 1, 64, 64>}]} {
    %c0 = arith.constant 0 : index
    %c0_0 = arith.constant 0 : index
    %c0_1 = arith.constant 0 : index
    %0 = vector.load %arg1[%c0, %c0_0, %c0_1] : memref<1x8x256xf32, #tpu.memory_space<vmem>>, vector<1x8x256xf32>
    %1 = vector.shape_cast %0 : vector<1x8x256xf32> to vector<8x256xf32>
    %c0_2 = arith.constant 0 : index
    %c0_3 = arith.constant 0 : index
    %2 = vector.load %arg2[%c0_2, %c0_3] : memref<32x8xf32, #tpu.memory_space<vmem>>, vector<32x8xf32>
    %cst = arith.constant dense<0.000000e+00> : vector<32x256xf32>
    %3 = tpu.matmul %2, %1, %cst {dimension_numbers = #tpu.dot_dimension_numbers<[1], [0], [0], [1], [0, 0, 1, 1], [], []>} : vector<32x8xf32>, vector<8x256xf32>, vector<32x256xf32> -> vector<32x256xf32>
    %c0_4 = arith.constant 0 : index
    %c0_5 = arith.constant 0 : index
    %4 = vector.load %arg3[%c0_4, %c0_5] : memref<32x1xf32, #tpu.memory_space<vmem>>, vector<32x1xf32>
    %5 = vector.broadcast %4 : vector<32x1xf32> to vector<32x256xf32>
    %6 = arith.addf %3, %5 : vector<32x256xf32>
    %cst_6 = arith.constant 0.000000e+00 : f32
    %7 = vector.broadcast %cst_6 : f32 to vector<32x256xf32>
    %8 = arith.maximumf %6, %7 : vector<32x256xf32>
    %c0_7 = arith.constant 0 : index
    %c0_8 = arith.constant 0 : index
    %9 = vector.load %arg4[%c0_7, %c0_8] : memref<32x32xf32, #tpu.memory_space<vmem>>, vector<32x32xf32>
    %cst_9 = arith.constant dense<0.000000e+00> : vector<32x256xf32>
    %10 = tpu.matmul %9, %8, %cst_9 {dimension_numbers = #tpu.dot_dimension_numbers<[1], [0], [0], [1], [0, 0, 1, 1], [], []>} : vector<32x32xf32>, vector<32x256xf32>, vector<32x256xf32> -> vector<32x256xf32>
    %c0_10 = arith.constant 0 : index
    %c0_11 = arith.constant 0 : index
    %11 = vector.load %arg5[%c0_10, %c0_11] : memref<32x1xf32, #tpu.memory_space<vmem>>, vector<32x1xf32>
    %12 = vector.broadcast %11 : vector<32x1xf32> to vector<32x256xf32>
    %13 = arith.addf %10, %12 : vector<32x256xf32>
    %cst_12 = arith.constant 0.000000e+00 : f32
    %14 = vector.broadcast %cst_12 : f32 to vector<32x256xf32>
    %15 = arith.maximumf %13, %14 : vector<32x256xf32>
    %c0_13 = arith.constant 0 : index
    %c0_14 = arith.constant 0 : index
    %16 = vector.load %arg6[%c0_13, %c0_14] : memref<32x32xf32, #tpu.memory_space<vmem>>, vector<32x32xf32>
    %cst_15 = arith.constant dense<0.000000e+00> : vector<32x256xf32>
    %17 = tpu.matmul %16, %15, %cst_15 {dimension_numbers = #tpu.dot_dimension_numbers<[1], [0], [0], [1], [0, 0, 1, 1], [], []>} : vector<32x32xf32>, vector<32x256xf32>, vector<32x256xf32> -> vector<32x256xf32>
    %c0_16 = arith.constant 0 : index
    %c0_17 = arith.constant 0 : index
    %18 = vector.load %arg7[%c0_16, %c0_17] : memref<32x1xf32, #tpu.memory_space<vmem>>, vector<32x1xf32>
    %19 = vector.broadcast %18 : vector<32x1xf32> to vector<32x256xf32>
    %20 = arith.addf %17, %19 : vector<32x256xf32>
    %cst_18 = arith.constant 0.000000e+00 : f32
    %21 = vector.broadcast %cst_18 : f32 to vector<32x256xf32>
    %22 = arith.maximumf %20, %21 : vector<32x256xf32>
    %cst_19 = arith.constant 0.000000e+00 : f32
    %23 = vector.broadcast %cst_19 : f32 to vector<64x64xf32>
    %c0_20 = arith.constant 0 : index
    %c0_21 = arith.constant 0 : index
    %c0_22 = arith.constant 0 : index
    %24 = vector.load %arg8[%c0_20, %c0_21, %c0_22] : memref<4x64x32xf32, #tpu.memory_space<vmem>>, vector<1x64x32xf32>
    %25 = vector.shape_cast %24 : vector<1x64x32xf32> to vector<64x32xf32>
    %26 = vector.extract_strided_slice %22 {offsets = [0, 0], sizes = [32, 64], strides = [1, 1]} : vector<32x256xf32> to vector<32x64xf32>
    %cst_23 = arith.constant dense<0.000000e+00> : vector<64x64xf32>
    %27 = tpu.matmul %25, %26, %cst_23 {dimension_numbers = #tpu.dot_dimension_numbers<[1], [0], [0], [1], [0, 0, 1, 1], [], []>} : vector<64x32xf32>, vector<32x64xf32>, vector<64x64xf32> -> vector<64x64xf32>
    %28 = arith.addf %23, %27 : vector<64x64xf32>
    %c1 = arith.constant 1 : index
    %c0_24 = arith.constant 0 : index
    %c0_25 = arith.constant 0 : index
    %29 = vector.load %arg8[%c1, %c0_24, %c0_25] : memref<4x64x32xf32, #tpu.memory_space<vmem>>, vector<1x64x32xf32>
    %30 = vector.shape_cast %29 : vector<1x64x32xf32> to vector<64x32xf32>
    %31 = vector.extract_strided_slice %22 {offsets = [0, 64], sizes = [32, 64], strides = [1, 1]} : vector<32x256xf32> to vector<32x64xf32>
    %cst_26 = arith.constant dense<0.000000e+00> : vector<64x64xf32>
    %32 = tpu.matmul %30, %31, %cst_26 {dimension_numbers = #tpu.dot_dimension_numbers<[1], [0], [0], [1], [0, 0, 1, 1], [], []>} : vector<64x32xf32>, vector<32x64xf32>, vector<64x64xf32> -> vector<64x64xf32>
    %33 = arith.addf %28, %32 : vector<64x64xf32>
    %c2 = arith.constant 2 : index
    %c0_27 = arith.constant 0 : index
    %c0_28 = arith.constant 0 : index
    %34 = vector.load %arg8[%c2, %c0_27, %c0_28] : memref<4x64x32xf32, #tpu.memory_space<vmem>>, vector<1x64x32xf32>
    %35 = vector.shape_cast %34 : vector<1x64x32xf32> to vector<64x32xf32>
    %36 = vector.extract_strided_slice %22 {offsets = [0, 128], sizes = [32, 64], strides = [1, 1]} : vector<32x256xf32> to vector<32x64xf32>
    %cst_29 = arith.constant dense<0.000000e+00> : vector<64x64xf32>
    %37 = tpu.matmul %35, %36, %cst_29 {dimension_numbers = #tpu.dot_dimension_numbers<[1], [0], [0], [1], [0, 0, 1, 1], [], []>} : vector<64x32xf32>, vector<32x64xf32>, vector<64x64xf32> -> vector<64x64xf32>
    %38 = arith.addf %33, %37 : vector<64x64xf32>
    %c3 = arith.constant 3 : index
    %c0_30 = arith.constant 0 : index
    %c0_31 = arith.constant 0 : index
    %39 = vector.load %arg8[%c3, %c0_30, %c0_31] : memref<4x64x32xf32, #tpu.memory_space<vmem>>, vector<1x64x32xf32>
    %40 = vector.shape_cast %39 : vector<1x64x32xf32> to vector<64x32xf32>
    %41 = vector.extract_strided_slice %22 {offsets = [0, 192], sizes = [32, 64], strides = [1, 1]} : vector<32x256xf32> to vector<32x64xf32>
    %cst_32 = arith.constant dense<0.000000e+00> : vector<64x64xf32>
    %42 = tpu.matmul %40, %41, %cst_32 {dimension_numbers = #tpu.dot_dimension_numbers<[1], [0], [0], [1], [0, 0, 1, 1], [], []>} : vector<64x32xf32>, vector<32x64xf32>, vector<64x64xf32> -> vector<64x64xf32>
    %43 = arith.addf %38, %42 : vector<64x64xf32>
    %c0_33 = arith.constant 0 : index
    %c0_34 = arith.constant 0 : index
    %44 = vector.load %arg9[%c0_33, %c0_34] : memref<64x1xf32, #tpu.memory_space<vmem>>, vector<64x1xf32>
    %45 = vector.broadcast %44 : vector<64x1xf32> to vector<64x64xf32>
    %46 = arith.addf %43, %45 : vector<64x64xf32>
    %cst_35 = arith.constant 0.000000e+00 : f32
    %47 = vector.broadcast %cst_35 : f32 to vector<64x64xf32>
    %48 = arith.maximumf %46, %47 : vector<64x64xf32>
    %c0_36 = arith.constant 0 : index
    %c0_37 = arith.constant 0 : index
    %c0_38 = arith.constant 0 : index
    %49 = vector.load %arg10[%c0_36, %c0_37, %c0_38] : memref<1x64x64xf32, #tpu.memory_space<vmem>>, vector<1x64x64xf32>
    %50 = vector.shape_cast %49 : vector<1x64x64xf32> to vector<64x64xf32>
    %51 = vector.shape_cast %48 : vector<64x64xf32> to vector<1x64x64xf32>
    tpu.vector_store %arg10[%c0_36, %c0_37, %c0_38], %51 {strides = array<i32>} : memref<1x64x64xf32, #tpu.memory_space<vmem>>, vector<1x64x64xf32>,
    return
  }
  func.func @transform_0(%arg0: i32) -> (i32, i32, i32) {
    %c0_i32 = arith.constant 0 : i32
    %c0_i32_0 = arith.constant 0 : i32
    %c0_i32_1 = arith.constant 0 : i32
    return %arg0, %c0_i32, %c0_i32_0 : i32, i32, i32
  }
  func.func @transform_1(%arg0: i32) -> (i32, i32) {
    %c0_i32 = arith.constant 0 : i32
    %c0_i32_0 = arith.constant 0 : i32
    %c0_i32_1 = arith.constant 0 : i32
    return %c0_i32, %c0_i32_0 : i32, i32
  }
  func.func @transform_2(%arg0: i32) -> (i32, i32) {
    %c0_i32 = arith.constant 0 : i32
    %c0_i32_0 = arith.constant 0 : i32
    %c0_i32_1 = arith.constant 0 : i32
    return %c0_i32, %c0_i32_0 : i32, i32
  }
  func.func @transform_3(%arg0: i32) -> (i32, i32) {
    %c0_i32 = arith.constant 0 : i32
    %c0_i32_0 = arith.constant 0 : i32
    %c0_i32_1 = arith.constant 0 : i32
    return %c0_i32, %c0_i32_0 : i32, i32
  }
  func.func @transform_4(%arg0: i32) -> (i32, i32) {
    %c0_i32 = arith.constant 0 : i32
    %c0_i32_0 = arith.constant 0 : i32
    %c0_i32_1 = arith.constant 0 : i32
    return %c0_i32, %c0_i32_0 : i32, i32
  }
  func.func @transform_5(%arg0: i32) -> (i32, i32) {
    %c0_i32 = arith.constant 0 : i32
    %c0_i32_0 = arith.constant 0 : i32
    %c0_i32_1 = arith.constant 0 : i32
    return %c0_i32, %c0_i32_0 : i32, i32
  }
  func.func @transform_6(%arg0: i32) -> (i32, i32) {
    %c0_i32 = arith.constant 0 : i32
    %c0_i32_0 = arith.constant 0 : i32
    %c0_i32_1 = arith.constant 0 : i32
    return %c0_i32, %c0_i32_0 : i32, i32
  }
  func.func @transform_7(%arg0: i32) -> (i32, i32, i32) {
    %c0_i32 = arith.constant 0 : i32
    %c0_i32_0 = arith.constant 0 : i32
    %c0_i32_1 = arith.constant 0 : i32
    %c0_i32_2 = arith.constant 0 : i32
    return %c0_i32, %c0_i32_0, %c0_i32_1 : i32, i32, i32
  }
  func.func @transform_8(%arg0: i32) -> (i32, i32) {
    %c0_i32 = arith.constant 0 : i32
    %c0_i32_0 = arith.constant 0 : i32
    %c0_i32_1 = arith.constant 0 : i32
    return %c0_i32, %c0_i32_0 : i32, i32
  }
  func.func @transform_9(%arg0: i32) -> (i32, i32, i32) {
    %c0_i32 = arith.constant 0 : i32
    %c0_i32_0 = arith.constant 0 : i32
    %c0_i32_1 = arith.constant 0 : i32
    return %arg0, %c0_i32, %c0_i32_0 : i32, i32, i32
  }
}

module attributes {stable_mosaic.version = 11 : i64} {
  func.func @_tail_decoder_kernel(%arg0: i32, %arg1: memref<1x1x4096xf32, #tpu.memory_space<vmem>>, %arg2: memref<1x1x16xf32, #tpu.memory_space<vmem>>, %arg3: memref<4096x64xf32, #tpu.memory_space<vmem>>, %arg4: memref<1x64xf32, #tpu.memory_space<vmem>>, %arg5: memref<64x256xf32, #tpu.memory_space<vmem>>, %arg6: memref<1x256xf32, #tpu.memory_space<vmem>>, %arg7: memref<256x32xf32, #tpu.memory_space<vmem>>, %arg8: memref<1x32xf32, #tpu.memory_space<vmem>>, %arg9: memref<16x32xf32, #tpu.memory_space<vmem>>, %arg10: memref<18x18x32xf32, #tpu.memory_space<vmem>>, %arg11: memref<9x32x32xf32, #tpu.memory_space<vmem>>, %arg12: memref<1x32xf32, #tpu.memory_space<vmem>>, %arg13: memref<4x32xf32, #tpu.memory_space<vmem>>, %arg14: memref<4x1xf32, #tpu.memory_space<vmem>>, %arg15: memref<1x4x256xf32, #tpu.memory_space<vmem>>, %arg16: memref<1x1x16xf32, #tpu.memory_space<vmem>>, %arg17: memref<1x1x16xf32, #tpu.memory_space<vmem>>, %arg18: memref<1x1x16xf32, #tpu.memory_space<vmem>>, %arg19: memref<18x18x32xf32, #tpu.memory_space<vmem>>) attributes {dimension_semantics = [#tpu.dimension_semantics<parallel>], iteration_bounds = array<i64: 2>, scalar_prefetch = 0 : i64, scratch_operands = 1 : i64, tpu.core_type = #tpu.core_type<tc>, window_params = [{transform_indices = @transform_0, window_bounds = array<i64: 1, 1, 4096>}, {transform_indices = @transform_1, window_bounds = array<i64: 1, 1, 16>}, {pipeline_mode = #tpu.pipeline_mode<synchronous>, transform_indices = @transform_2, window_bounds = array<i64: 4096, 64>}, {pipeline_mode = #tpu.pipeline_mode<synchronous>, transform_indices = @transform_3, window_bounds = array<i64: 1, 64>}, {pipeline_mode = #tpu.pipeline_mode<synchronous>, transform_indices = @transform_4, window_bounds = array<i64: 64, 256>}, {pipeline_mode = #tpu.pipeline_mode<synchronous>, transform_indices = @transform_5, window_bounds = array<i64: 1, 256>}, {pipeline_mode = #tpu.pipeline_mode<synchronous>, transform_indices = @transform_6, window_bounds = array<i64: 256, 32>}, {pipeline_mode = #tpu.pipeline_mode<synchronous>, transform_indices = @transform_7, window_bounds = array<i64: 1, 32>}, {pipeline_mode = #tpu.pipeline_mode<synchronous>, transform_indices = @transform_8, window_bounds = array<i64: 16, 32>}, {pipeline_mode = #tpu.pipeline_mode<synchronous>, transform_indices = @transform_9, window_bounds = array<i64: 18, 18, 32>}, {pipeline_mode = #tpu.pipeline_mode<synchronous>, transform_indices = @transform_10, window_bounds = array<i64: 9, 32, 32>}, {pipeline_mode = #tpu.pipeline_mode<synchronous>, transform_indices = @transform_11, window_bounds = array<i64: 1, 32>}, {pipeline_mode = #tpu.pipeline_mode<synchronous>, transform_indices = @transform_12, window_bounds = array<i64: 4, 32>}, {pipeline_mode = #tpu.pipeline_mode<synchronous>, transform_indices = @transform_13, window_bounds = array<i64: 4, 1>}, {transform_indices = @transform_14, window_bounds = array<i64: 1, 4, 256>}, {transform_indices = @transform_15, window_bounds = array<i64: 1, 1, 16>}, {transform_indices = @transform_16, window_bounds = array<i64: 1, 1, 16>}, {transform_indices = @transform_17, window_bounds = array<i64: 1, 1, 16>}]} {
    %c0 = arith.constant 0 : index
    %c0_0 = arith.constant 0 : index
    %c0_1 = arith.constant 0 : index
    %0 = vector.load %arg1[%c0, %c0_0, %c0_1] : memref<1x1x4096xf32, #tpu.memory_space<vmem>>, vector<1x1x4096xf32>
    %1 = vector.shape_cast %0 : vector<1x1x4096xf32> to vector<1x4096xf32>
    %c0_2 = arith.constant 0 : index
    %c0_3 = arith.constant 0 : index
    %2 = vector.load %arg3[%c0_2, %c0_3] : memref<4096x64xf32, #tpu.memory_space<vmem>>, vector<4096x64xf32>
    %cst = arith.constant dense<0.000000e+00> : vector<1x64xf32>
    %3 = tpu.matmul %1, %2, %cst {dimension_numbers = #tpu.dot_dimension_numbers<[1], [0], [0], [1], [0, 0, 1, 1], [], []>} : vector<1x4096xf32>, vector<4096x64xf32>, vector<1x64xf32> -> vector<1x64xf32>
    %c0_4 = arith.constant 0 : index
    %c0_5 = arith.constant 0 : index
    %4 = vector.load %arg4[%c0_4, %c0_5] : memref<1x64xf32, #tpu.memory_space<vmem>>, vector<1x64xf32>
    %5 = arith.addf %3, %4 : vector<1x64xf32>
    %cst_6 = arith.constant 0.000000e+00 : f32
    %6 = vector.broadcast %cst_6 : f32 to vector<1x64xf32>
    %7 = arith.maximumf %5, %6 : vector<1x64xf32>
    %c0_7 = arith.constant 0 : index
    %c0_8 = arith.constant 0 : index
    %8 = vector.load %arg5[%c0_7, %c0_8] : memref<64x256xf32, #tpu.memory_space<vmem>>, vector<64x256xf32>
    %cst_9 = arith.constant dense<0.000000e+00> : vector<1x256xf32>
    %9 = tpu.matmul %7, %8, %cst_9 {dimension_numbers = #tpu.dot_dimension_numbers<[1], [0], [0], [1], [0, 0, 1, 1], [], []>} : vector<1x64xf32>, vector<64x256xf32>, vector<1x256xf32> -> vector<1x256xf32>
    %c0_10 = arith.constant 0 : index
    %c0_11 = arith.constant 0 : index
    %10 = vector.load %arg6[%c0_10, %c0_11] : memref<1x256xf32, #tpu.memory_space<vmem>>, vector<1x256xf32>
    %11 = arith.addf %9, %10 : vector<1x256xf32>
    %cst_12 = arith.constant 0.000000e+00 : f32
    %12 = vector.broadcast %cst_12 : f32 to vector<1x256xf32>
    %13 = arith.maximumf %11, %12 : vector<1x256xf32>
    %c0_13 = arith.constant 0 : index
    %c0_14 = arith.constant 0 : index
    %14 = vector.load %arg7[%c0_13, %c0_14] : memref<256x32xf32, #tpu.memory_space<vmem>>, vector<256x32xf32>
    %cst_15 = arith.constant dense<0.000000e+00> : vector<1x32xf32>
    %15 = tpu.matmul %13, %14, %cst_15 {dimension_numbers = #tpu.dot_dimension_numbers<[1], [0], [0], [1], [0, 0, 1, 1], [], []>} : vector<1x256xf32>, vector<256x32xf32>, vector<1x32xf32> -> vector<1x32xf32>
    %c0_16 = arith.constant 0 : index
    %c0_17 = arith.constant 0 : index
    %16 = vector.load %arg8[%c0_16, %c0_17] : memref<1x32xf32, #tpu.memory_space<vmem>>, vector<1x32xf32>
    %17 = arith.addf %15, %16 : vector<1x32xf32>
    %18 = vector.extract_strided_slice %17 {offsets = [0, 0], sizes = [1, 16], strides = [1, 1]} : vector<1x32xf32> to vector<1x16xf32>
    %19 = vector.extract_strided_slice %17 {offsets = [0, 16], sizes = [1, 16], strides = [1, 1]} : vector<1x32xf32> to vector<1x16xf32>
    %cst_18 = arith.constant 5.000000e-01 : f32
    %20 = vector.broadcast %cst_18 : f32 to vector<1x16xf32>
    %21 = arith.addf %19, %20 : vector<1x16xf32>
    %cst_19 = arith.constant 0.000000e+00 : f32
    %22 = vector.broadcast %cst_19 : f32 to vector<1x16xf32>
    %23 = arith.maximumf %21, %22 : vector<1x16xf32>
    %24 = math.absf %21 : vector<1x16xf32>
    %cst_20 = arith.constant 0.000000e+00 : f32
    %25 = vector.broadcast %cst_20 : f32 to vector<1x16xf32>
    %26 = arith.subf %25, %24 : vector<1x16xf32>
    %27 = math.exp %26 : vector<1x16xf32>
    %cst_21 = arith.constant 1.000000e+00 : f32
    %28 = vector.broadcast %cst_21 : f32 to vector<1x16xf32>
    %29 = arith.addf %28, %27 : vector<1x16xf32>
    %30 = math.log %29 : vector<1x16xf32>
    %31 = arith.addf %23, %30 : vector<1x16xf32>
    %cst_22 = arith.constant 9.99999993E-9 : f32
    %32 = vector.broadcast %cst_22 : f32 to vector<1x16xf32>
    %33 = arith.addf %31, %32 : vector<1x16xf32>
    %c0_23 = arith.constant 0 : index
    %c0_24 = arith.constant 0 : index
    %c0_25 = arith.constant 0 : index
    %34 = vector.load %arg2[%c0_23, %c0_24, %c0_25] : memref<1x1x16xf32, #tpu.memory_space<vmem>>, vector<1x1x16xf32>
    %35 = vector.shape_cast %34 : vector<1x1x16xf32> to vector<1x16xf32>
    %36 = arith.mulf %33, %35 : vector<1x16xf32>
    %37 = arith.addf %18, %36 : vector<1x16xf32>
    %c0_26 = arith.constant 0 : index
    %c0_27 = arith.constant 0 : index
    %c0_28 = arith.constant 0 : index
    %38 = vector.load %arg16[%c0_26, %c0_27, %c0_28] : memref<1x1x16xf32, #tpu.memory_space<vmem>>, vector<1x1x16xf32>
    %39 = vector.shape_cast %38 : vector<1x1x16xf32> to vector<1x16xf32>
    %40 = vector.shape_cast %18 : vector<1x16xf32> to vector<1x1x16xf32>
    tpu.vector_store %arg16[%c0_26, %c0_27, %c0_28], %40 {strides = array<i32>} : memref<1x1x16xf32, #tpu.memory_space<vmem>>, vector<1x1x16xf32>,
    %c0_29 = arith.constant 0 : index
    %c0_30 = arith.constant 0 : index
    %c0_31 = arith.constant 0 : index
    %41 = vector.load %arg17[%c0_29, %c0_30, %c0_31] : memref<1x1x16xf32, #tpu.memory_space<vmem>>, vector<1x1x16xf32>
    %42 = vector.shape_cast %41 : vector<1x1x16xf32> to vector<1x16xf32>
    %43 = vector.shape_cast %33 : vector<1x16xf32> to vector<1x1x16xf32>
    tpu.vector_store %arg17[%c0_29, %c0_30, %c0_31], %43 {strides = array<i32>} : memref<1x1x16xf32, #tpu.memory_space<vmem>>, vector<1x1x16xf32>,
    %c0_32 = arith.constant 0 : index
    %c0_33 = arith.constant 0 : index
    %c0_34 = arith.constant 0 : index
    %44 = vector.load %arg18[%c0_32, %c0_33, %c0_34] : memref<1x1x16xf32, #tpu.memory_space<vmem>>, vector<1x1x16xf32>
    %45 = vector.shape_cast %44 : vector<1x1x16xf32> to vector<1x16xf32>
    %46 = vector.shape_cast %37 : vector<1x16xf32> to vector<1x1x16xf32>
    tpu.vector_store %arg18[%c0_32, %c0_33, %c0_34], %46 {strides = array<i32>} : memref<1x1x16xf32, #tpu.memory_space<vmem>>, vector<1x1x16xf32>,
    %c0_35 = arith.constant 0 : index
    %c0_36 = arith.constant 0 : index
    %47 = vector.load %arg9[%c0_35, %c0_36] : memref<16x32xf32, #tpu.memory_space<vmem>>, vector<16x32xf32>
    %cst_37 = arith.constant dense<0.000000e+00> : vector<1x32xf32>
    %48 = tpu.matmul %37, %47, %cst_37 {dimension_numbers = #tpu.dot_dimension_numbers<[1], [0], [0], [1], [0, 0, 1, 1], [], []>} : vector<1x16xf32>, vector<16x32xf32>, vector<1x32xf32> -> vector<1x32xf32>
    %c0_38 = arith.constant 0 : index
    %c0_39 = arith.constant 0 : index
    %c0_40 = arith.constant 0 : index
    %49 = vector.load %arg10[%c0_38, %c0_39, %c0_40] : memref<18x18x32xf32, #tpu.memory_space<vmem>>, vector<18x18x32xf32>
    %50 = vector.shape_cast %48 : vector<1x32xf32> to vector<1x1x32xf32>
    %51 = vector.broadcast %50 : vector<1x1x32xf32> to vector<18x18x32xf32>
    %52 = arith.addf %49, %51 : vector<18x18x32xf32>
    %cst_41 = arith.constant 0.000000e+00 : f32
    %53 = vector.broadcast %cst_41 : f32 to vector<18x18x32xf32>
    %54 = arith.maximumf %52, %53 : vector<18x18x32xf32>
    %c0_42 = arith.constant 0 : index
    %c0_43 = arith.constant 0 : index
    %c0_44 = arith.constant 0 : index
    %55 = vector.load %arg19[%c0_42, %c0_43, %c0_44] : memref<18x18x32xf32, #tpu.memory_space<vmem>>, vector<18x18x32xf32>
    tpu.vector_store %arg19[%c0_42, %c0_43, %c0_44], %54 {strides = array<i32>} : memref<18x18x32xf32, #tpu.memory_space<vmem>>, vector<18x18x32xf32>,
    %cst_45 = arith.constant 0.000000e+00 : f32
    %56 = vector.broadcast %cst_45 : f32 to vector<256x32xf32>
    %c0_46 = arith.constant 0 : index
    %c0_47 = arith.constant 0 : index
    %c0_48 = arith.constant 0 : index
    %57 = vector.load %arg19[%c0_46, %c0_47, %c0_48] : memref<18x18x32xf32, #tpu.memory_space<vmem>>, vector<16x16x32xf32>
    %58 = vector.shape_cast %57 : vector<16x16x32xf32> to vector<256x32xf32>
    %c0_49 = arith.constant 0 : index
    %c0_50 = arith.constant 0 : index
    %c0_51 = arith.constant 0 : index
    %59 = vector.load %arg11[%c0_49, %c0_50, %c0_51] : memref<9x32x32xf32, #tpu.memory_space<vmem>>, vector<1x32x32xf32>
    %60 = vector.shape_cast %59 : vector<1x32x32xf32> to vector<32x32xf32>
    %cst_52 = arith.constant dense<0.000000e+00> : vector<256x32xf32>
    %61 = tpu.matmul %58, %60, %cst_52 {dimension_numbers = #tpu.dot_dimension_numbers<[1], [0], [0], [1], [0, 0, 1, 1], [], []>} : vector<256x32xf32>, vector<32x32xf32>, vector<256x32xf32> -> vector<256x32xf32>
    %62 = arith.addf %56, %61 : vector<256x32xf32>
    %c0_53 = arith.constant 0 : index
    %c1 = arith.constant 1 : index
    %c0_54 = arith.constant 0 : index
    %63 = vector.load %arg19[%c0_53, %c1, %c0_54] : memref<18x18x32xf32, #tpu.memory_space<vmem>>, vector<16x16x32xf32>
    %64 = vector.shape_cast %63 : vector<16x16x32xf32> to vector<256x32xf32>
    %c1_55 = arith.constant 1 : index
    %c0_56 = arith.constant 0 : index
    %c0_57 = arith.constant 0 : index
    %65 = vector.load %arg11[%c1_55, %c0_56, %c0_57] : memref<9x32x32xf32, #tpu.memory_space<vmem>>, vector<1x32x32xf32>
    %66 = vector.shape_cast %65 : vector<1x32x32xf32> to vector<32x32xf32>
    %cst_58 = arith.constant dense<0.000000e+00> : vector<256x32xf32>
    %67 = tpu.matmul %64, %66, %cst_58 {dimension_numbers = #tpu.dot_dimension_numbers<[1], [0], [0], [1], [0, 0, 1, 1], [], []>} : vector<256x32xf32>, vector<32x32xf32>, vector<256x32xf32> -> vector<256x32xf32>
    %68 = arith.addf %62, %67 : vector<256x32xf32>
    %c0_59 = arith.constant 0 : index
    %c2 = arith.constant 2 : index
    %c0_60 = arith.constant 0 : index
    %69 = vector.load %arg19[%c0_59, %c2, %c0_60] : memref<18x18x32xf32, #tpu.memory_space<vmem>>, vector<16x16x32xf32>
    %70 = vector.shape_cast %69 : vector<16x16x32xf32> to vector<256x32xf32>
    %c2_61 = arith.constant 2 : index
    %c0_62 = arith.constant 0 : index
    %c0_63 = arith.constant 0 : index
    %71 = vector.load %arg11[%c2_61, %c0_62, %c0_63] : memref<9x32x32xf32, #tpu.memory_space<vmem>>, vector<1x32x32xf32>
    %72 = vector.shape_cast %71 : vector<1x32x32xf32> to vector<32x32xf32>
    %cst_64 = arith.constant dense<0.000000e+00> : vector<256x32xf32>
    %73 = tpu.matmul %70, %72, %cst_64 {dimension_numbers = #tpu.dot_dimension_numbers<[1], [0], [0], [1], [0, 0, 1, 1], [], []>} : vector<256x32xf32>, vector<32x32xf32>, vector<256x32xf32> -> vector<256x32xf32>
    %74 = arith.addf %68, %73 : vector<256x32xf32>
    %c1_65 = arith.constant 1 : index
    %c0_66 = arith.constant 0 : index
    %c0_67 = arith.constant 0 : index
    %75 = vector.load %arg19[%c1_65, %c0_66, %c0_67] : memref<18x18x32xf32, #tpu.memory_space<vmem>>, vector<16x16x32xf32>
    %76 = vector.shape_cast %75 : vector<16x16x32xf32> to vector<256x32xf32>
    %c3 = arith.constant 3 : index
    %c0_68 = arith.constant 0 : index
    %c0_69 = arith.constant 0 : index
    %77 = vector.load %arg11[%c3, %c0_68, %c0_69] : memref<9x32x32xf32, #tpu.memory_space<vmem>>, vector<1x32x32xf32>
    %78 = vector.shape_cast %77 : vector<1x32x32xf32> to vector<32x32xf32>
    %cst_70 = arith.constant dense<0.000000e+00> : vector<256x32xf32>
    %79 = tpu.matmul %76, %78, %cst_70 {dimension_numbers = #tpu.dot_dimension_numbers<[1], [0], [0], [1], [0, 0, 1, 1], [], []>} : vector<256x32xf32>, vector<32x32xf32>, vector<256x32xf32> -> vector<256x32xf32>
    %80 = arith.addf %74, %79 : vector<256x32xf32>
    %c1_71 = arith.constant 1 : index
    %c1_72 = arith.constant 1 : index
    %c0_73 = arith.constant 0 : index
    %81 = vector.load %arg19[%c1_71, %c1_72, %c0_73] : memref<18x18x32xf32, #tpu.memory_space<vmem>>, vector<16x16x32xf32>
    %82 = vector.shape_cast %81 : vector<16x16x32xf32> to vector<256x32xf32>
    %c4 = arith.constant 4 : index
    %c0_74 = arith.constant 0 : index
    %c0_75 = arith.constant 0 : index
    %83 = vector.load %arg11[%c4, %c0_74, %c0_75] : memref<9x32x32xf32, #tpu.memory_space<vmem>>, vector<1x32x32xf32>
    %84 = vector.shape_cast %83 : vector<1x32x32xf32> to vector<32x32xf32>
    %cst_76 = arith.constant dense<0.000000e+00> : vector<256x32xf32>
    %85 = tpu.matmul %82, %84, %cst_76 {dimension_numbers = #tpu.dot_dimension_numbers<[1], [0], [0], [1], [0, 0, 1, 1], [], []>} : vector<256x32xf32>, vector<32x32xf32>, vector<256x32xf32> -> vector<256x32xf32>
    %86 = arith.addf %80, %85 : vector<256x32xf32>
    %c1_77 = arith.constant 1 : index
    %c2_78 = arith.constant 2 : index
    %c0_79 = arith.constant 0 : index
    %87 = vector.load %arg19[%c1_77, %c2_78, %c0_79] : memref<18x18x32xf32, #tpu.memory_space<vmem>>, vector<16x16x32xf32>
    %88 = vector.shape_cast %87 : vector<16x16x32xf32> to vector<256x32xf32>
    %c5 = arith.constant 5 : index
    %c0_80 = arith.constant 0 : index
    %c0_81 = arith.constant 0 : index
    %89 = vector.load %arg11[%c5, %c0_80, %c0_81] : memref<9x32x32xf32, #tpu.memory_space<vmem>>, vector<1x32x32xf32>
    %90 = vector.shape_cast %89 : vector<1x32x32xf32> to vector<32x32xf32>
    %cst_82 = arith.constant dense<0.000000e+00> : vector<256x32xf32>
    %91 = tpu.matmul %88, %90, %cst_82 {dimension_numbers = #tpu.dot_dimension_numbers<[1], [0], [0], [1], [0, 0, 1, 1], [], []>} : vector<256x32xf32>, vector<32x32xf32>, vector<256x32xf32> -> vector<256x32xf32>
    %92 = arith.addf %86, %91 : vector<256x32xf32>
    %c2_83 = arith.constant 2 : index
    %c0_84 = arith.constant 0 : index
    %c0_85 = arith.constant 0 : index
    %93 = vector.load %arg19[%c2_83, %c0_84, %c0_85] : memref<18x18x32xf32, #tpu.memory_space<vmem>>, vector<16x16x32xf32>
    %94 = vector.shape_cast %93 : vector<16x16x32xf32> to vector<256x32xf32>
    %c6 = arith.constant 6 : index
    %c0_86 = arith.constant 0 : index
    %c0_87 = arith.constant 0 : index
    %95 = vector.load %arg11[%c6, %c0_86, %c0_87] : memref<9x32x32xf32, #tpu.memory_space<vmem>>, vector<1x32x32xf32>
    %96 = vector.shape_cast %95 : vector<1x32x32xf32> to vector<32x32xf32>
    %cst_88 = arith.constant dense<0.000000e+00> : vector<256x32xf32>
    %97 = tpu.matmul %94, %96, %cst_88 {dimension_numbers = #tpu.dot_dimension_numbers<[1], [0], [0], [1], [0, 0, 1, 1], [], []>} : vector<256x32xf32>, vector<32x32xf32>, vector<256x32xf32> -> vector<256x32xf32>
    %98 = arith.addf %92, %97 : vector<256x32xf32>
    %c2_89 = arith.constant 2 : index
    %c1_90 = arith.constant 1 : index
    %c0_91 = arith.constant 0 : index
    %99 = vector.load %arg19[%c2_89, %c1_90, %c0_91] : memref<18x18x32xf32, #tpu.memory_space<vmem>>, vector<16x16x32xf32>
    %100 = vector.shape_cast %99 : vector<16x16x32xf32> to vector<256x32xf32>
    %c7 = arith.constant 7 : index
    %c0_92 = arith.constant 0 : index
    %c0_93 = arith.constant 0 : index
    %101 = vector.load %arg11[%c7, %c0_92, %c0_93] : memref<9x32x32xf32, #tpu.memory_space<vmem>>, vector<1x32x32xf32>
    %102 = vector.shape_cast %101 : vector<1x32x32xf32> to vector<32x32xf32>
    %cst_94 = arith.constant dense<0.000000e+00> : vector<256x32xf32>
    %103 = tpu.matmul %100, %102, %cst_94 {dimension_numbers = #tpu.dot_dimension_numbers<[1], [0], [0], [1], [0, 0, 1, 1], [], []>} : vector<256x32xf32>, vector<32x32xf32>, vector<256x32xf32> -> vector<256x32xf32>
    %104 = arith.addf %98, %103 : vector<256x32xf32>
    %c2_95 = arith.constant 2 : index
    %c2_96 = arith.constant 2 : index
    %c0_97 = arith.constant 0 : index
    %105 = vector.load %arg19[%c2_95, %c2_96, %c0_97] : memref<18x18x32xf32, #tpu.memory_space<vmem>>, vector<16x16x32xf32>
    %106 = vector.shape_cast %105 : vector<16x16x32xf32> to vector<256x32xf32>
    %c8 = arith.constant 8 : index
    %c0_98 = arith.constant 0 : index
    %c0_99 = arith.constant 0 : index
    %107 = vector.load %arg11[%c8, %c0_98, %c0_99] : memref<9x32x32xf32, #tpu.memory_space<vmem>>, vector<1x32x32xf32>
    %108 = vector.shape_cast %107 : vector<1x32x32xf32> to vector<32x32xf32>
    %cst_100 = arith.constant dense<0.000000e+00> : vector<256x32xf32>
    %109 = tpu.matmul %106, %108, %cst_100 {dimension_numbers = #tpu.dot_dimension_numbers<[1], [0], [0], [1], [0, 0, 1, 1], [], []>} : vector<256x32xf32>, vector<32x32xf32>, vector<256x32xf32> -> vector<256x32xf32>
    %110 = arith.addf %104, %109 : vector<256x32xf32>
    %c0_101 = arith.constant 0 : index
    %c0_102 = arith.constant 0 : index
    %111 = vector.load %arg12[%c0_101, %c0_102] : memref<1x32xf32, #tpu.memory_space<vmem>>, vector<1x32xf32>
    %112 = vector.broadcast %111 : vector<1x32xf32> to vector<256x32xf32>
    %113 = arith.addf %110, %112 : vector<256x32xf32>
    %cst_103 = arith.constant 0.000000e+00 : f32
    %114 = vector.broadcast %cst_103 : f32 to vector<256x32xf32>
    %115 = arith.maximumf %113, %114 : vector<256x32xf32>
    %c0_104 = arith.constant 0 : index
    %c0_105 = arith.constant 0 : index
    %116 = vector.load %arg13[%c0_104, %c0_105] : memref<4x32xf32, #tpu.memory_space<vmem>>, vector<4x32xf32>
    %cst_106 = arith.constant dense<0.000000e+00> : vector<4x256xf32>
    %117 = tpu.matmul %116, %115, %cst_106 {dimension_numbers = #tpu.dot_dimension_numbers<[1], [1], [0], [0], [0, 0, 1, 0], [], []>} : vector<4x32xf32>, vector<256x32xf32>, vector<4x256xf32> -> vector<4x256xf32>
    %c0_107 = arith.constant 0 : index
    %c0_108 = arith.constant 0 : index
    %118 = vector.load %arg14[%c0_107, %c0_108] : memref<4x1xf32, #tpu.memory_space<vmem>>, vector<4x1xf32>
    %119 = vector.broadcast %118 : vector<4x1xf32> to vector<4x256xf32>
    %120 = arith.addf %117, %119 : vector<4x256xf32>
    %cst_109 = arith.constant 0.000000e+00 : f32
    %121 = vector.broadcast %cst_109 : f32 to vector<4x256xf32>
    %122 = arith.subf %121, %120 : vector<4x256xf32>
    %123 = math.exp %122 : vector<4x256xf32>
    %cst_110 = arith.constant 1.000000e+00 : f32
    %124 = vector.broadcast %cst_110 : f32 to vector<4x256xf32>
    %125 = arith.addf %124, %123 : vector<4x256xf32>
    %cst_111 = arith.constant 1.000000e+00 : f32
    %126 = vector.broadcast %cst_111 : f32 to vector<4x256xf32>
    %127 = arith.divf %126, %125 : vector<4x256xf32>
    %c0_112 = arith.constant 0 : index
    %c0_113 = arith.constant 0 : index
    %c0_114 = arith.constant 0 : index
    %128 = vector.load %arg15[%c0_112, %c0_113, %c0_114] : memref<1x4x256xf32, #tpu.memory_space<vmem>>, vector<1x4x256xf32>
    %129 = vector.shape_cast %128 : vector<1x4x256xf32> to vector<4x256xf32>
    %130 = vector.shape_cast %127 : vector<4x256xf32> to vector<1x4x256xf32>
    tpu.vector_store %arg15[%c0_112, %c0_113, %c0_114], %130 {strides = array<i32>} : memref<1x4x256xf32, #tpu.memory_space<vmem>>, vector<1x4x256xf32>,
    return
  }
  func.func @transform_0(%arg0: i32) -> (i32, i32, i32) {
    %c0_i32 = arith.constant 0 : i32
    %c0_i32_0 = arith.constant 0 : i32
    %c0_i32_1 = arith.constant 0 : i32
    return %arg0, %c0_i32, %c0_i32_0 : i32, i32, i32
  }
  func.func @transform_1(%arg0: i32) -> (i32, i32, i32) {
    %c0_i32 = arith.constant 0 : i32
    %c0_i32_0 = arith.constant 0 : i32
    %c0_i32_1 = arith.constant 0 : i32
    return %arg0, %c0_i32, %c0_i32_0 : i32, i32, i32
  }
  func.func @transform_2(%arg0: i32) -> (i32, i32) {
    %c0_i32 = arith.constant 0 : i32
    %c0_i32_0 = arith.constant 0 : i32
    %c0_i32_1 = arith.constant 0 : i32
    return %c0_i32, %c0_i32_0 : i32, i32
  }
  func.func @transform_3(%arg0: i32) -> (i32, i32) {
    %c0_i32 = arith.constant 0 : i32
    %c0_i32_0 = arith.constant 0 : i32
    %c0_i32_1 = arith.constant 0 : i32
    return %c0_i32, %c0_i32_0 : i32, i32
  }
  func.func @transform_4(%arg0: i32) -> (i32, i32) {
    %c0_i32 = arith.constant 0 : i32
    %c0_i32_0 = arith.constant 0 : i32
    %c0_i32_1 = arith.constant 0 : i32
    return %c0_i32, %c0_i32_0 : i32, i32
  }
  func.func @transform_5(%arg0: i32) -> (i32, i32) {
    %c0_i32 = arith.constant 0 : i32
    %c0_i32_0 = arith.constant 0 : i32
    %c0_i32_1 = arith.constant 0 : i32
    return %c0_i32, %c0_i32_0 : i32, i32
  }
  func.func @transform_6(%arg0: i32) -> (i32, i32) {
    %c0_i32 = arith.constant 0 : i32
    %c0_i32_0 = arith.constant 0 : i32
    %c0_i32_1 = arith.constant 0 : i32
    return %c0_i32, %c0_i32_0 : i32, i32
  }
  func.func @transform_7(%arg0: i32) -> (i32, i32) {
    %c0_i32 = arith.constant 0 : i32
    %c0_i32_0 = arith.constant 0 : i32
    %c0_i32_1 = arith.constant 0 : i32
    return %c0_i32, %c0_i32_0 : i32, i32
  }
  func.func @transform_8(%arg0: i32) -> (i32, i32) {
    %c0_i32 = arith.constant 0 : i32
    %c0_i32_0 = arith.constant 0 : i32
    %c0_i32_1 = arith.constant 0 : i32
    return %c0_i32, %c0_i32_0 : i32, i32
  }
  func.func @transform_9(%arg0: i32) -> (i32, i32, i32) {
    %c0_i32 = arith.constant 0 : i32
    %c0_i32_0 = arith.constant 0 : i32
    %c0_i32_1 = arith.constant 0 : i32
    %c0_i32_2 = arith.constant 0 : i32
    return %c0_i32, %c0_i32_0, %c0_i32_1 : i32, i32, i32
  }
  func.func @transform_10(%arg0: i32) -> (i32, i32, i32) {
    %c0_i32 = arith.constant 0 : i32
    %c0_i32_0 = arith.constant 0 : i32
    %c0_i32_1 = arith.constant 0 : i32
    %c0_i32_2 = arith.constant 0 : i32
    return %c0_i32, %c0_i32_0, %c0_i32_1 : i32, i32, i32
  }
  func.func @transform_11(%arg0: i32) -> (i32, i32) {
    %c0_i32 = arith.constant 0 : i32
    %c0_i32_0 = arith.constant 0 : i32
    %c0_i32_1 = arith.constant 0 : i32
    return %c0_i32, %c0_i32_0 : i32, i32
  }
  func.func @transform_12(%arg0: i32) -> (i32, i32) {
    %c0_i32 = arith.constant 0 : i32
    %c0_i32_0 = arith.constant 0 : i32
    %c0_i32_1 = arith.constant 0 : i32
    return %c0_i32, %c0_i32_0 : i32, i32
  }
  func.func @transform_13(%arg0: i32) -> (i32, i32) {
    %c0_i32 = arith.constant 0 : i32
    %c0_i32_0 = arith.constant 0 : i32
    %c0_i32_1 = arith.constant 0 : i32
    return %c0_i32, %c0_i32_0 : i32, i32
  }
  func.func @transform_14(%arg0: i32) -> (i32, i32, i32) {
    %c0_i32 = arith.constant 0 : i32
    %c0_i32_0 = arith.constant 0 : i32
    %c0_i32_1 = arith.constant 0 : i32
    return %arg0, %c0_i32, %c0_i32_0 : i32, i32, i32
  }
  func.func @transform_15(%arg0: i32) -> (i32, i32, i32) {
    %c0_i32 = arith.constant 0 : i32
    %c0_i32_0 = arith.constant 0 : i32
    %c0_i32_1 = arith.constant 0 : i32
    return %arg0, %c0_i32, %c0_i32_0 : i32, i32, i32
  }
  func.func @transform_16(%arg0: i32) -> (i32, i32, i32) {
    %c0_i32 = arith.constant 0 : i32
    %c0_i32_0 = arith.constant 0 : i32
    %c0_i32_1 = arith.constant 0 : i32
    return %arg0, %c0_i32, %c0_i32_0 : i32, i32, i32
  }
  func.func @transform_17(%arg0: i32) -> (i32, i32, i32) {
    %c0_i32 = arith.constant 0 : i32
    %c0_i32_0 = arith.constant 0 : i32
    %c0_i32_1 = arith.constant 0 : i32
    return %arg0, %c0_i32, %c0_i32_0 : i32, i32, i32
  }
}

</mosaic_0001>

<llo_original>
// kernel: _lambda_.2
$region0: #{_lambda_.2}
  #allocation0 [shape = 'u32[]', space=smem, size = 0x4, offset = 0x4, fixed_abs, tag = 'smem constant byte address 0x4 - core index']
  #allocation1 [shape = 'u32[144,128]{1,0:T(1,128)}', space=vmem, size = 0x12000, scoped, tag = 'internal scratch']
  %s0 = inlined_call_operand.vmem [shape: f32[2,8,256], index: 0, kind: input, shape index: {}]
  %s1 = inlined_call_operand.hbm [shape: f32[32,8], index: 1, kind: input, shape index: {}]
  %s2 = inlined_call_operand.hbm [shape: f32[32,1], index: 2, kind: input, shape index: {}]
  %s3 = inlined_call_operand.hbm [shape: f32[32,32], index: 3, kind: input, shape index: {}]
  %s4 = inlined_call_operand.hbm [shape: f32[32,1], index: 4, kind: input, shape index: {}]
  %s5 = inlined_call_operand.hbm [shape: f32[32,32], index: 5, kind: input, shape index: {}]
  %s6 = inlined_call_operand.hbm [shape: f32[32,1], index: 6, kind: input, shape index: {}]
  %s7 = inlined_call_operand.hbm [shape: f32[4,64,32], index: 7, kind: input, shape index: {}]
  %s8 = inlined_call_operand.hbm [shape: f32[64,1], index: 8, kind: input, shape index: {}]
  %s9 = inlined_call_operand.vmem [shape: f32[2,64,64], index: 9, kind: output, shape index: {}]
  %s10 = sld [smem:[#allocation0]]
  $region101: #{_lambda_.2} parent=0
    _
  %s12 = ssub.s32 1, %s10
  %s13 = scalar_select 0, %s12, %s10
  $region1: #{_lambda_.2} parent=0
    #allocation2 [shape = 'u8[16384]{0}', space=vmem, size = 0x4000, scoped, tag = 'input window, operand 1, single buffered']
    #allocation3 [shape = 's32[2]{0}', space=sflag, size = 0x8, scoped, tag = 'scoped memory for _lambda_.2']
    #allocation4 [shape = 'u8[16384]{0}', space=vmem, size = 0x4000, scoped, tag = 'input window, operand 2, single buffered']
    #allocation5 [shape = 's32[1]{0}', space=sflag, size = 0x4, scoped, tag = 'scoped memory for _lambda_.2']
    #allocation6 [shape = 'u8[16384]{0}', space=vmem, size = 0x4000, scoped, tag = 'input window, operand 3, single buffered']
    #allocation7 [shape = 'u8[16384]{0}', space=vmem, size = 0x4000, scoped, tag = 'input window, operand 4, single buffered']
    #allocation8 [shape = 's32[1]{0}', space=sflag, size = 0x4, scoped, tag = 'scoped memory for _lambda_.2']
    #allocation9 [shape = 'u8[16384]{0}', space=vmem, size = 0x4000, scoped, tag = 'input window, operand 5, single buffered']
    #allocation10 [shape = 'u8[16384]{0}', space=vmem, size = 0x4000, scoped, tag = 'input window, operand 6, single buffered']
    #allocation11 [shape = 's32[1]{0}', space=sflag, size = 0x4, scoped, tag = 'scoped memory for _lambda_.2']
    #allocation12 [shape = 'u8[131072]{0}', space=vmem, size = 0x20000, scoped, tag = 'input window, operand 7, single buffered']
    #allocation13 [shape = 'u8[32768]{0}', space=vmem, size = 0x8000, scoped, tag = 'input window, operand 8, single buffered']
    #allocation14 [shape = 's32[1]{0}', space=sflag, size = 0x4, scoped, tag = 'scoped memory for _lambda_.2']
    %14 = vsyncpa [#allocation3], 0
    %15 = vsyncpa [#allocation5], 0
    %16 = vsyncpa [#allocation8], 0
    %17 = vsyncpa [#allocation11], 0
    %18 = vsyncpa [#allocation14], 0
    loop: start=0, step=1, limit=4
    $region2: #{_lambda_.2} parent=1 // loop_pre_header
      _
    $region3: #{_lambda_.2} parent=1 // loop_header
      %s20 = sphi 0, %s24
      %p21 = scmp.ge.s32.totalorder %s20, 4
      %s30 = sphi 0, %s32
      %s33 = sphi 0, %s30
      %s34 = sphi 0, %s33
      %s50 = sphi 0, %s34
      %s54 = sphi 0, %s54
      %s56 = sphi 0, %s54
      %s57 = sphi 0, %s56
      %s71 = sphi 0, %s57
      %s75 = sphi 0, %s75
      %s77 = sphi 0, %s75
      %s78 = sphi 0, %s77
      %s92 = sphi 0, %s78
      %s96 = sphi 0, %s96
      %s98 = sphi 0, %s96
      %s99 = sphi 0, %s98
      %s113 = sphi 0, %s99
      %s117 = sphi 0, %s117
      %s119 = sphi 0, %s117
      %s120 = sphi 0, %s119
      %s134 = sphi 0, %s120
      %s138 = sphi 0, %s138
      %s140 = sphi 0, %s138
      %s141 = sphi 0, %s140
      %s155 = sphi 0, %s141
      %s159 = sphi 0, %s159
      %s161 = sphi 0, %s159
      %s162 = sphi 0, %s161
      %s176 = sphi 0, %s162
      %s180 = sphi 0, %s180
      %s182 = sphi 0, %s180
      %s183 = sphi 0, %s182
      %s197 = sphi 0, %s183
      %s201 = sphi 0, %s201
      %s203 = sphi 0, %s201
      %s204 = sphi 0, %s203
      %s218 = sphi 0, %s204
      %s224 = sphi 0, %s226
      %s227 = sphi 0, %s224
      %s228 = sphi 0, %s227
      %s244 = sphi 0, %s228
    $region4: #{_lambda_.2} parent=1 // loop_header_branch
      %23 = sbr.rel (%p21) target = $region8
    $region5: #{_lambda_.2} parent=1 // loop_body
      %s25 = ssub.s32 %s20, 1
      %s26 = ssub.s32 %s20, 2
      %s27 = sadd.s32 %s20, 1
      %s28 = ssub.s32 %s20, %s27
      %p29 = scmp.eq.s32.totalorder %s28, 0
      %s31 = sadd.s32 %s30, 1
      %s32 = scalar_select %p29, %s30, %s31
      %p35 = pneg %p29
      %p36 = scmp.eq.s32.totalorder %s20, 1
      %p37 = por %p35, %p36
      %p38 = scmp.ne.s32.totalorder %s30, %s33
      %p39 = scmp.eq.s32.totalorder %s20, 0
      %p40 = por %p38, %p39
      %p41 = scmp.ne.s32.totalorder %s30, %s33
      %p42 = scmp.eq.s32.totalorder %s25, 1
      %p43 = por %p41, %p42
      %p44 = scmp.ne.s32.totalorder %s33, %s34
      %p45 = scmp.eq.s32.totalorder %s25, 0
      %p46 = por %p44, %p45
      %p47 = scmp.ne.s32.totalorder %s33, %s34
      %p48 = scmp.eq.s32.totalorder %s26, 1
      %p49 = por %p47, %p48
      %p51 = scmp.ne.s32.totalorder %s34, %s50
      %p52 = scmp.eq.s32.totalorder %s26, 0
      %p53 = por %p51, %p52
      %s55 = sadd.s32 %s54, 1
      %p58 = scmp.eq.s32.totalorder %s20, 1
      %p59 = scmp.ne.s32.totalorder %s54, %s56
      %p60 = scmp.eq.s32.totalorder %s20, 0
      %p61 = por %p59, %p60
      %p62 = scmp.ne.s32.totalorder %s54, %s56
      %p63 = scmp.eq.s32.totalorder %s25, 1
      %p64 = por %p62, %p63
      %p65 = scmp.ne.s32.totalorder %s56, %s57
      %p66 = scmp.eq.s32.totalorder %s25, 0
      %p67 = por %p65, %p66
      %p68 = scmp.ne.s32.totalorder %s56, %s57
      %p69 = scmp.eq.s32.totalorder %s26, 1
      %p70 = por %p68, %p69
      %p72 = scmp.ne.s32.totalorder %s57, %s71
      %p73 = scmp.eq.s32.totalorder %s26, 0
      %p74 = por %p72, %p73
      %s76 = sadd.s32 %s75, 1
      %p79 = scmp.eq.s32.totalorder %s20, 1
      %p80 = scmp.ne.s32.totalorder %s75, %s77
      %p81 = scmp.eq.s32.totalorder %s20, 0
      %p82 = por %p80, %p81
      %p83 = scmp.ne.s32.totalorder %s75, %s77
      %p84 = scmp.eq.s32.totalorder %s25, 1
      %p85 = por %p83, %p84
      %p86 = scmp.ne.s32.totalorder %s77, %s78
      %p87 = scmp.eq.s32.totalorder %s25, 0
      %p88 = por %p86, %p87
      %p89 = scmp.ne.s32.totalorder %s77, %s78
      %p90 = scmp.eq.s32.totalorder %s26, 1
      %p91 = por %p89, %p90
      %p93 = scmp.ne.s32.totalorder %s78, %s92
      %p94 = scmp.eq.s32.totalorder %s26, 0
      %p95 = por %p93, %p94
      %s97 = sadd.s32 %s96, 1
      %p100 = scmp.eq.s32.totalorder %s20, 1
      %p101 = scmp.ne.s32.totalorder %s96, %s98
      %p102 = scmp.eq.s32.totalorder %s20, 0
      %p103 = por %p101, %p102
      %p104 = scmp.ne.s32.totalorder %s96, %s98
      %p105 = scmp.eq.s32.totalorder %s25, 1
      %p106 = por %p104, %p105
      %p107 = scmp.ne.s32.totalorder %s98, %s99
      %p108 = scmp.eq.s32.totalorder %s25, 0
      %p109 = por %p107, %p108
      %p110 = scmp.ne.s32.totalorder %s98, %s99
      %p111 = scmp.eq.s32.totalorder %s26, 1
      %p112 = por %p110, %p111
      %p114 = scmp.ne.s32.totalorder %s99, %s113
      %p115 = scmp.eq.s32.totalorder %s26, 0
      %p116 = por %p114, %p115
      %s118 = sadd.s32 %s117, 1
      %p121 = scmp.eq.s32.totalorder %s20, 1
      %p122 = scmp.ne.s32.totalorder %s117, %s119
      %p123 = scmp.eq.s32.totalorder %s20, 0
      %p124 = por %p122, %p123
      %p125 = scmp.ne.s32.totalorder %s117, %s119
      %p126 = scmp.eq.s32.totalorder %s25, 1
      %p127 = por %p125, %p126
      %p128 = scmp.ne.s32.totalorder %s119, %s120
      %p129 = scmp.eq.s32.totalorder %s25, 0
      %p130 = por %p128, %p129
      %p131 = scmp.ne.s32.totalorder %s119, %s120
      %p132 = scmp.eq.s32.totalorder %s26, 1
      %p133 = por %p131, %p132
      %p135 = scmp.ne.s32.totalorder %s120, %s134
      %p136 = scmp.eq.s32.totalorder %s26, 0
      %p137 = por %p135, %p136
      %s139 = sadd.s32 %s138, 1
      %p142 = scmp.eq.s32.totalorder %s20, 1
      %p143 = scmp.ne.s32.totalorder %s138, %s140
      %p144 = scmp.eq.s32.totalorder %s20, 0
      %p145 = por %p143, %p144
      %p146 = scmp.ne.s32.totalorder %s138, %s140
      %p147 = scmp.eq.s32.totalorder %s25, 1
      %p148 = por %p146, %p147
      %p149 = scmp.ne.s32.totalorder %s140, %s141
      %p150 = scmp.eq.s32.totalorder %s25, 0
      %p151 = por %p149, %p150
      %p152 = scmp.ne.s32.totalorder %s140, %s141
      %p153 = scmp.eq.s32.totalorder %s26, 1
      %p154 = por %p152, %p153
      %p156 = scmp.ne.s32.totalorder %s141, %s155
      %p157 = scmp.eq.s32.totalorder %s26, 0
      %p158 = por %p156, %p157
      %s160 = sadd.s32 %s159, 1
      %p163 = scmp.eq.s32.totalorder %s20, 1
      %p164 = scmp.ne.s32.totalorder %s159, %s161
      %p165 = scmp.eq.s32.totalorder %s20, 0
      %p166 = por %p164, %p165
      %p167 = scmp.ne.s32.totalorder %s159, %s161
      %p168 = scmp.eq.s32.totalorder %s25, 1
      %p169 = por %p167, %p168
      %p170 = scmp.ne.s32.totalorder %s161, %s162
      %p171 = scmp.eq.s32.totalorder %s25, 0
      %p172 = por %p170, %p171
      %p173 = scmp.ne.s32.totalorder %s161, %s162
      %p174 = scmp.eq.s32.totalorder %s26, 1
      %p175 = por %p173, %p174
      %p177 = scmp.ne.s32.totalorder %s162, %s176
      %p178 = scmp.eq.s32.totalorder %s26, 0
      %p179 = por %p177, %p178
      %s181 = sadd.s32 %s180, 1
      %p184 = scmp.eq.s32.totalorder %s20, 1
      %p185 = scmp.ne.s32.totalorder %s180, %s182
      %p186 = scmp.eq.s32.totalorder %s20, 0
      %p187 = por %p185, %p186
      %p188 = scmp.ne.s32.totalorder %s180, %s182
      %p189 = scmp.eq.s32.totalorder %s25, 1
      %p190 = por %p188, %p189
      %p191 = scmp.ne.s32.totalorder %s182, %s183
      %p192 = scmp.eq.s32.totalorder %s25, 0
      %p193 = por %p191, %p192
      %p194 = scmp.ne.s32.totalorder %s182, %s183
      %p195 = scmp.eq.s32.totalorder %s26, 1
      %p196 = por %p194, %p195
      %p198 = scmp.ne.s32.totalorder %s183, %s197
      %p199 = scmp.eq.s32.totalorder %s26, 0
      %p200 = por %p198, %p199
      %s202 = sadd.s32 %s201, 1
      %p205 = scmp.eq.s32.totalorder %s20, 1
      %p206 = scmp.ne.s32.totalorder %s201, %s203
      %p207 = scmp.eq.s32.totalorder %s20, 0
      %p208 = por %p206, %p207
      %p209 = scmp.ne.s32.totalorder %s201, %s203
      %p210 = scmp.eq.s32.totalorder %s25, 1
      %p211 = por %p209, %p210
      %p212 = scmp.ne.s32.totalorder %s203, %s204
      %p213 = scmp.eq.s32.totalorder %s25, 0
      %p214 = por %p212, %p213
      %p215 = scmp.ne.s32.totalorder %s203, %s204
      %p216 = scmp.eq.s32.totalorder %s26, 1
      %p217 = por %p215, %p216
      %p219 = scmp.ne.s32.totalorder %s204, %s218
      %p220 = scmp.eq.s32.totalorder %s26, 0
      %p221 = por %p219, %p220
      %s222 = ssub.s32 %s20, %s27
      %p223 = scmp.eq.s32.totalorder %s222, 0
      %s225 = sadd.s32 %s224, 1
      %s226 = scalar_select %p223, %s224, %s225
      %p229 = pneg %p223
      %p230 = scmp.eq.s32.totalorder %s20, 1
      %p231 = por %p229, %p230
      %p232 = scmp.ne.s32.totalorder %s224, %s227
      %p233 = scmp.eq.s32.totalorder %s20, 0
      %p234 = por %p232, %p233
      %p235 = scmp.ne.s32.totalorder %s224, %s227
      %p236 = scmp.eq.s32.totalorder %s25, 1
      %p237 = por %p235, %p236
      %p238 = scmp.ne.s32.totalorder %s227, %s228
      %p239 = scmp.eq.s32.totalorder %s25, 0
      %p240 = por %p238, %p239
      %p241 = scmp.ne.s32.totalorder %s227, %s228
      %p242 = scmp.eq.s32.totalorder %s26, 1
      %p243 = por %p241, %p242
      %p245 = scmp.ne.s32.totalorder %s228, %s244
      %p246 = scmp.eq.s32.totalorder %s26, 0
      %p247 = por %p245, %p246
      %p248 = scmp.le.s32.totalorder 1, %s20
      %p249 = scmp.lt.s32.totalorder %s20, 3
      %p250 = pnand %p248, %p249
      %p251 = pneg %p250
      // Predicated region
      $region9: #{_lambda_.2} parent=5 // pred_check
        _
      $region10: #{_lambda_.2} parent=5 // pred_check_branch
        %253 = sbr.rel (%p250) target = $region12
      $region11: #{_lambda_.2} parent=5 // pred_region
        %s254 = ssub.s32 %s20, 1
        // Predicated region
        $region13: #{_lambda_.2} parent=11 // pred_check
          %p255 = pneg %p67
        $region14: #{_lambda_.2} parent=11 // pred_check_branch
          %257 = sbr.rel (%p255) target = $region16
        $region15: #{_lambda_.2} parent=11 // pred_region
          %s259 = ssub.s32 512, 512
          %260 = vsyncadd [#allocation3], %s259
          %s261 = sshll.u32 [#allocation2], 4
          %s262 = int_to_ptr.vmem [resolvable:$true] %s261
          %267 = dma.hbm_to_vmem [thread:$0]  %s1, 512, %s262, [#allocation3], 128, 128, 8
        $region16: #{_lambda_.2} parent=11 // pred_fallthru
          _
        // Predicated region
        $region17: #{_lambda_.2} parent=11 // pred_check
          %p268 = pneg %p88
        $region18: #{_lambda_.2} parent=11 // pred_check_branch
          %270 = sbr.rel (%p268) target = $region20
        $region19: #{_lambda_.2} parent=11 // pred_region
          %s272 = ssub.s32 512, 512
          %273 = vsyncadd [#allocation5], %s272
          %s274 = sshll.u32 [#allocation4], 4
          %s275 = int_to_ptr.vmem [resolvable:$true] %s274
          %280 = dma.hbm_to_vmem [thread:$0]  %s2, 512, %s275, [#allocation5], 128, 128, 8
        $region20: #{_lambda_.2} parent=11 // pred_fallthru
          _
        // Predicated region
        $region21: #{_lambda_.2} parent=11 // pred_check
          %p281 = pneg %p109
        $region22: #{_lambda_.2} parent=11 // pred_check_branch
          %283 = sbr.rel (%p281) target = $region24
        $region23: #{_lambda_.2} parent=11 // pred_region
          %s285 = ssub.s32 512, 512
          %286 = vsyncadd [#allocation5], %s285
          %s287 = sshll.u32 [#allocation6], 4
          %s288 = int_to_ptr.vmem [resolvable:$true] %s287
          %293 = dma.hbm_to_vmem [thread:$0]  %s3, 512, %s288, [#allocation5], 128, 128, 8
        $region24: #{_lambda_.2} parent=11 // pred_fallthru
          _
        // Predicated region
        $region25: #{_lambda_.2} parent=11 // pred_check
          %p294 = pneg %p130
        $region26: #{_lambda_.2} parent=11 // pred_check_branch
          %296 = sbr.rel (%p294) target = $region28
        $region27: #{_lambda_.2} parent=11 // pred_region
          %s298 = ssub.s32 512, 512
          %299 = vsyncadd [#allocation8], %s298
          %s300 = sshll.u32 [#allocation7], 4
          %s301 = int_to_ptr.vmem [resolvable:$true] %s300
          %306 = dma.hbm_to_vmem [thread:$0]  %s4, 512, %s301, [#allocation8], 128, 128, 8
        $region28: #{_lambda_.2} parent=11 // pred_fallthru
          _
        // Predicated region
        $region29: #{_lambda_.2} parent=11 // pred_check
          %p307 = pneg %p151
        $region30: #{_lambda_.2} parent=11 // pred_check_branch
          %309 = sbr.rel (%p307) target = $region32
        $region31: #{_lambda_.2} parent=11 // pred_region
          %s311 = ssub.s32 512, 512
          %312 = vsyncadd [#allocation8], %s311
          %s313 = sshll.u32 [#allocation9], 4
          %s314 = int_to_ptr.vmem [resolvable:$true] %s313
          %319 = dma.hbm_to_vmem [thread:$0]  %s5, 512, %s314, [#allocation8], 128, 128, 8
        $region32: #{_lambda_.2} parent=11 // pred_fallthru
          _
        // Predicated region
        $region33: #{_lambda_.2} parent=11 // pred_check
          %p320 = pneg %p172
        $region34: #{_lambda_.2} parent=11 // pred_check_branch
          %322 = sbr.rel (%p320) target = $region36
        $region35: #{_lambda_.2} parent=11 // pred_region
          %s324 = ssub.s32 512, 512
          %325 = vsyncadd [#allocation11], %s324
          %s326 = sshll.u32 [#allocation10], 4
          %s327 = int_to_ptr.vmem [resolvable:$true] %s326
          %332 = dma.hbm_to_vmem [thread:$0]  %s6, 512, %s327, [#allocation11], 128, 128, 8
        $region36: #{_lambda_.2} parent=11 // pred_fallthru
          _
        // Predicated region
        $region37: #{_lambda_.2} parent=11 // pred_check
          %p333 = pneg %p193
        $region38: #{_lambda_.2} parent=11 // pred_check_branch
          %335 = sbr.rel (%p333) target = $region40
        $region39: #{_lambda_.2} parent=11 // pred_region
          %s337 = ssub.s32 4096, 4096
          %338 = vsyncadd [#allocation11], %s337
          %s339 = sshll.u32 [#allocation12], 4
          %s340 = int_to_ptr.vmem [resolvable:$true] %s339
          %345 = dma.hbm_to_vmem [thread:$0]  %s7, 4096, %s340, [#allocation11], 128, 128, 8
        $region40: #{_lambda_.2} parent=11 // pred_fallthru
          _
        // Predicated region
        $region41: #{_lambda_.2} parent=11 // pred_check
          %p346 = pneg %p214
        $region42: #{_lambda_.2} parent=11 // pred_check_branch
          %348 = sbr.rel (%p346) target = $region44
        $region43: #{_lambda_.2} parent=11 // pred_region
          %s350 = ssub.s32 1024, 1024
          %351 = vsyncadd [#allocation14], %s350
          %s352 = sshll.u32 [#allocation13], 4
          %s353 = int_to_ptr.vmem [resolvable:$true] %s352
          %358 = dma.hbm_to_vmem [thread:$0]  %s8, 1024, %s353, [#allocation14], 128, 128, 8
        $region44: #{_lambda_.2} parent=11 // pred_fallthru
          _
      $region12: #{_lambda_.2} parent=5 // pred_fallthru
        _
      %p359 = scmp.lt.s32.totalorder %s20, 2
      // Predicated region
      $region45: #{_lambda_.2} parent=5 // pred_check
        %p360 = pneg %p359
      $region46: #{_lambda_.2} parent=5 // pred_check_branch
        %362 = sbr.rel (%p360) target = $region48
      $region47: #{_lambda_.2} parent=5 // pred_region
        // Predicated region
        $region49: #{_lambda_.2} parent=47 // pred_check
          %p363 = pneg %p40
        $region50: #{_lambda_.2} parent=47 // pred_check_branch
          %365 = sbr.rel (%p363) target = $region52
        $region51: #{_lambda_.2} parent=47 // pred_region
          %p366 = scmp.lt.s32.totalorder %s20, 1
          %s367 = scalar_select %p366, %s20, 1
          %s368 = smul.addr %s367, 2
          %s369 = smul.addr %s368, 8
          %s370 = scalar_lea.vmem %s0, %s369
        $region52: #{_lambda_.2} parent=47 // pred_fallthru
          _
      $region48: #{_lambda_.2} parent=5 // pred_fallthru
        _
      %p371 = scmp.le.s32.totalorder 1, %s20
      %p372 = scmp.lt.s32.totalorder %s20, 3
      %p373 = pnand %p371, %p372
      %p374 = pneg %p373
      // Predicated region
      $region53: #{_lambda_.2} parent=5 // pred_check
        _
      $region54: #{_lambda_.2} parent=5 // pred_check_branch
        %376 = sbr.rel (%p373) target = $region56
      $region55: #{_lambda_.2} parent=5 // pred_region
        %s377 = ssub.s32 %s20, 1
        // Predicated region
        $region57: #{_lambda_.2} parent=55 // pred_check
          %p378 = pneg %p67
        $region58: #{_lambda_.2} parent=55 // pred_check_branch
          %380 = sbr.rel (%p378) target = $region60
        $region59: #{_lambda_.2} parent=55 // pred_region
          %381 = dma.done [#allocation3], 512
        $region60: #{_lambda_.2} parent=55 // pred_fallthru
          _
        // Predicated region
        $region61: #{_lambda_.2} parent=55 // pred_check
          %p382 = pneg %p88
        $region62: #{_lambda_.2} parent=55 // pred_check_branch
          %384 = sbr.rel (%p382) target = $region64
        $region63: #{_lambda_.2} parent=55 // pred_region
          %385 = dma.done [#allocation5], 512
        $region64: #{_lambda_.2} parent=55 // pred_fallthru
          _
        // Predicated region
        $region65: #{_lambda_.2} parent=55 // pred_check
          %p386 = pneg %p109
        $region66: #{_lambda_.2} parent=55 // pred_check_branch
          %388 = sbr.rel (%p386) target = $region68
        $region67: #{_lambda_.2} parent=55 // pred_region
          %389 = dma.done [#allocation5], 512
        $region68: #{_lambda_.2} parent=55 // pred_fallthru
          _
        // Predicated region
        $region69: #{_lambda_.2} parent=55 // pred_check
          %p390 = pneg %p130
        $region70: #{_lambda_.2} parent=55 // pred_check_branch
          %392 = sbr.rel (%p390) target = $region72
        $region71: #{_lambda_.2} parent=55 // pred_region
          %393 = dma.done [#allocation8], 512
        $region72: #{_lambda_.2} parent=55 // pred_fallthru
          _
        // Predicated region
        $region73: #{_lambda_.2} parent=55 // pred_check
          %p394 = pneg %p151
        $region74: #{_lambda_.2} parent=55 // pred_check_branch
          %396 = sbr.rel (%p394) target = $region76
        $region75: #{_lambda_.2} parent=55 // pred_region
          %397 = dma.done [#allocation8], 512
        $region76: #{_lambda_.2} parent=55 // pred_fallthru
          _
        // Predicated region
        $region77: #{_lambda_.2} parent=55 // pred_check
          %p398 = pneg %p172
        $region78: #{_lambda_.2} parent=55 // pred_check_branch
          %400 = sbr.rel (%p398) target = $region80
        $region79: #{_lambda_.2} parent=55 // pred_region
          %401 = dma.done [#allocation11], 512
        $region80: #{_lambda_.2} parent=55 // pred_fallthru
          _
        // Predicated region
        $region81: #{_lambda_.2} parent=55 // pred_check
          %p402 = pneg %p193
        $region82: #{_lambda_.2} parent=55 // pred_check_branch
          %404 = sbr.rel (%p402) target = $region84
        $region83: #{_lambda_.2} parent=55 // pred_region
          %405 = dma.done [#allocation11], 4096
        $region84: #{_lambda_.2} parent=55 // pred_fallthru
          _
        // Predicated region
        $region85: #{_lambda_.2} parent=55 // pred_check
          %p406 = pneg %p214
        $region86: #{_lambda_.2} parent=55 // pred_check_branch
          %408 = sbr.rel (%p406) target = $region88
        $region87: #{_lambda_.2} parent=55 // pred_region
          %409 = dma.done [#allocation14], 1024
        $region88: #{_lambda_.2} parent=55 // pred_fallthru
          _
        %p410 = scmp.lt.s32.totalorder %s25, 1
        %s411 = scalar_select %p410, %s25, 1
        %s412 = smul.addr %s411, 2
        %s413 = smul.addr %s412, 8
        %s414 = scalar_lea.vmem %s0, %s413
        %p415 = pneg %p46
        %p416 = pneg %p43
        %p417 = pneg %p67
        %p418 = pneg %p64
        %p419 = pneg %p88
        %p420 = pneg %p85
        %p421 = pneg %p109
        %p422 = pneg %p106
        %p423 = pneg %p130
        %p424 = pneg %p127
        %p425 = pneg %p151
        %p426 = pneg %p148
        %p427 = pneg %p172
        %p428 = pneg %p169
        %p429 = pneg %p193
        %p430 = pneg %p190
        %p431 = pneg %p214
        %p432 = pneg %p211
        %p433 = pneg %p240
        %p434 = pneg %p237
        %p435 = scmp.lt.s32.totalorder %s25, 1
        %s436 = scalar_select %p435, %s25, 1
        %s437 = smul.addr %s436, 8
        %s438 = smul.addr %s437, 8
        %s439 = scalar_lea.vmem %s9, %s438
        %p440 = scmp.lt.s32.totalorder %s25, 1
        %s441 = scalar_select %p440, %s25, 1
        %s442 = smul.addr %s441, 2
        %s443 = smul.addr %s442, 8
        %s444 = scalar_lea.vmem %s0, %s443
        %p445 = scmp.lt.s32.totalorder %s25, 1
        %s446 = scalar_select %p445, %s25, 1
        %s447 = smul.addr %s446, 8
        %s448 = smul.addr %s447, 8
        %s449 = scalar_lea.vmem %s9, %s448
        %v450 = vld [vmem:[%s444] sm:$0xff]
        %v451 = vld [vmem:[%s444 + $0x8] sm:$0xff]
        %v452 = vld [vmem:[#allocation2] sm:$0xff]
        %v453 = vld [vmem:[#allocation2 + $0x8] sm:$0xff]
        %v454 = vld [vmem:[#allocation2 + $0x10] sm:$0xff]
        %v455 = vld [vmem:[#allocation2 + $0x18] sm:$0xff]
        %v456 = vld [vmem:[#allocation4] sm:$0xff]
        %v457 = vld [vmem:[#allocation4 + $0x8] sm:$0xff]
        %v458 = vld [vmem:[#allocation4 + $0x10] sm:$0xff]
        %v459 = vld [vmem:[#allocation4 + $0x18] sm:$0xff]
        %461 = vset.pattern.permute.xlu0 0
        %462 = vperm.xlu0 %461, %v456
        %v463 = vpop.permute.xlu0 %462
        %466 = vset.pattern.permute.xlu0 0
        %467 = vperm.xlu0 %466, %v457
        %v468 = vpop.permute.xlu0 %467
        %471 = vset.pattern.permute.xlu0 0
        %472 = vperm.xlu0 %471, %v458
        %v473 = vpop.permute.xlu0 %472
        %476 = vset.pattern.permute.xlu0 0
        %477 = vperm.xlu0 %476, %v459
        %v478 = vpop.permute.xlu0 %477
        %vm480 = vcmask 64512
        %v482 = vsel %vm480, %v452, 0
        %v485 = vsel %vm480, %v453, 0
        %v488 = vsel %vm480, %v454, 0
        %v491 = vsel %vm480, %v455, 0
        %493 = vmatprep.subr.mxu0 %v451
        %494 = vmatpush1.msra.mxu0 %v450
        %495 = vmatprep.subr.mxu0 0.0
        %496 = vmatpush1.msra.mxu0 0.0
        %497 = vmatprep.subr.mxu0 0.0
        %498 = vmatpush1.msra.mxu0 0.0
        %499 = vmatprep.subr.mxu0 0.0
        %500 = vmatpush1.msra.mxu0 0.0
        %501 = vmatprep.subr.mxu0 0.0
        %502 = vmatpush1.msra.mxu0 0.0
        %503 = vmatprep.subr.mxu0 0.0
        %504 = vmatpush1.msra.mxu0 0.0
        %505 = vmatprep.subr.mxu0 0.0
        %506 = vmatpush1.msra.mxu0 0.0
        %507 = vmatprep.subr.mxu0 0.0
        %508 = vmatpush1.msra.mxu0 0.0
        %509 = vmatprep.subr.mxu0 0.0
        %510 = vmatpush1.msra.mxu0 0.0
        %511 = vmatprep.subr.mxu0 0.0
        %512 = vmatpush1.msra.mxu0 0.0
        %513 = vmatprep.subr.mxu0 0.0
        %514 = vmatpush1.msra.mxu0 0.0
        %515 = vmatprep.subr.mxu0 0.0
        %516 = vmatpush1.msra.mxu0 0.0
        %517 = vmatprep.subr.mxu0 0.0
        %518 = vmatpush1.msra.mxu0 0.0
        %519 = vmatprep.subr.mxu0 0.0
        %520 = vmatpush1.msra.mxu0 0.0
        %521 = vmatprep.subr.mxu0 0.0
        %522 = vmatpush1.msra.mxu0 0.0
        %523 = vmatprep.subr.mxu0 0.0
        %524 = vmatpush1.msra.mxu0 0.0
        %525 = vmatprep.subr.mxu0 0.0
        %526 = vmatpush1.msra.mxu0 0.0
        %527 = vmatprep.subr.mxu0 0.0
        %528 = vmatpush1.msra.mxu0 0.0
        %529 = vmatprep.subr.mxu0 0.0
        %530 = vmatpush1.msra.mxu0 0.0
        %531 = vmatprep.subr.mxu0 0.0
        %532 = vmatpush1.msra.mxu0 0.0
        %533 = vmatprep.subr.mxu0 0.0
        %534 = vmatpush1.msra.mxu0 0.0
        %535 = vmatprep.subr.mxu0 0.0
        %536 = vmatpush1.msra.mxu0 0.0
        %537 = vmatprep.subr.mxu0 0.0
        %538 = vmatpush1.msra.mxu0 0.0
        %539 = vmatprep.subr.mxu0 0.0
        %540 = vmatpush1.msra.mxu0 0.0
        %541 = vmatprep.subr.mxu0 0.0
        %542 = vmatpush1.msra.mxu0 0.0
        %543 = vmatprep.subr.mxu0 0.0
        %544 = vmatpush1.msra.mxu0 0.0
        %545 = vmatprep.subr.mxu0 0.0
        %546 = vmatpush1.msra.mxu0 0.0
        %547 = vmatprep.subr.mxu0 0.0
        %548 = vmatpush1.msra.mxu0 0.0
        %549 = vmatprep.subr.mxu0 0.0
        %550 = vmatpush1.msra.mxu0 0.0
        %551 = vmatprep.subr.mxu0 0.0
        %552 = vmatpush1.msra.mxu0 0.0
        %553 = vmatprep.subr.mxu0 0.0
        %554 = vmatpush1.msra.mxu0 0.0
        %555 = vmatprep.subr.mxu0 0.0
        %556 = vmatpush1.msra.mxu0 0.0
        %557 = vmatprep.mubr.f32.mxu0 0.0
        %558 = vmatmul.mubr.f32.gmra.mrb[0].mxu0 %v482
        %v559 = vpop.f32.mrb[0].mxu0
        %v560 = vadd.f32 %v463, %v559
        %v561 = vpop.f32.mrb[0].mxu0
        %v562 = vadd.f32 %v463, %v561
        %563 = vmatprep.mubr.f32.mxu0 0.0
        %564 = vmatmul.mubr.f32.gmra.mrb[0].mxu0 %v485
        %v565 = vpop.f32.mrb[0].mxu0
        %v566 = vadd.f32 %v468, %v565
        %v567 = vpop.f32.mrb[0].mxu0
        %v568 = vadd.f32 %v468, %v567
        %569 = vmatprep.mubr.f32.mxu0 0.0
        %570 = vmatmul.mubr.f32.gmra.mrb[0].mxu0 %v488
        %v571 = vpop.f32.mrb[0].mxu0
        %v572 = vadd.f32 %v473, %v571
        %v573 = vpop.f32.mrb[0].mxu0
        %v574 = vadd.f32 %v473, %v573
        %575 = vmatprep.mubr.f32.mxu0 0.0
        %576 = vmatmul.mubr.f32.gmra.mrb[0].mxu0 %v491
        %v577 = vpop.f32.mrb[0].mxu0
        %v578 = vadd.f32 %v478, %v577
        %v579 = vpop.f32.mrb[0].mxu0
        %v580 = vadd.f32 %v478, %v579
        %581 = vdwg.mxu0
        %v582 = vmax.f32 %v560, 0.0
        %v583 = vmax.f32 %v562, 0.0
        %v584 = vmax.f32 %v566, 0.0
        %v585 = vmax.f32 %v568, 0.0
        %v586 = vmax.f32 %v572, 0.0
        %v587 = vmax.f32 %v574, 0.0
        %v588 = vmax.f32 %v578, 0.0
        %v589 = vmax.f32 %v580, 0.0
        %v590 = vld [vmem:[#allocation6] sm:$0xff]
        %v591 = vld [vmem:[#allocation6 + $0x8] sm:$0xff]
        %v592 = vld [vmem:[#allocation6 + $0x10] sm:$0xff]
        %v593 = vld [vmem:[#allocation6 + $0x18] sm:$0xff]
        %v594 = vld [vmem:[#allocation7] sm:$0xff]
        %v595 = vld [vmem:[#allocation7 + $0x8] sm:$0xff]
        %v596 = vld [vmem:[#allocation7 + $0x10] sm:$0xff]
        %v597 = vld [vmem:[#allocation7 + $0x18] sm:$0xff]
        %599 = vset.pattern.permute.xlu0 0
        %600 = vperm.xlu0 %599, %v594
        %v601 = vpop.permute.xlu0 %600
        %604 = vset.pattern.permute.xlu0 0
        %605 = vperm.xlu0 %604, %v595
        %v606 = vpop.permute.xlu0 %605
        %609 = vset.pattern.permute.xlu0 0
        %610 = vperm.xlu0 %609, %v596
        %v611 = vpop.permute.xlu0 %610
        %614 = vset.pattern.permute.xlu0 0
        %615 = vperm.xlu0 %614, %v597
        %v616 = vpop.permute.xlu0 %615
        %vm618 = vcmask 261120
        %v620 = vsel %vm618, %v590, 0
        %v623 = vsel %vm618, %v591, 0
        %v626 = vsel %vm618, %v592, 0
        %v629 = vsel %vm618, %v593, 0
        %631 = vmatprep.subr.mxu0 %v583
        %632 = vmatpush1.msra.mxu0 %v582
        %633 = vmatprep.subr.mxu0 %v585
        %634 = vmatpush1.msra.mxu0 %v584
        %635 = vmatprep.subr.mxu0 %v587
        %636 = vmatpush1.msra.mxu0 %v586
        %637 = vmatprep.subr.mxu0 %v589
        %638 = vmatpush1.msra.mxu0 %v588
        %639 = vmatprep.subr.mxu0 0.0
        %640 = vmatpush1.msra.mxu0 0.0
        %641 = vmatprep.subr.mxu0 0.0
        %642 = vmatpush1.msra.mxu0 0.0
        %643 = vmatprep.subr.mxu0 0.0
        %644 = vmatpush1.msra.mxu0 0.0
        %645 = vmatprep.subr.mxu0 0.0
        %646 = vmatpush1.msra.mxu0 0.0
        %647 = vmatprep.subr.mxu0 0.0
        %648 = vmatpush1.msra.mxu0 0.0
        %649 = vmatprep.subr.mxu0 0.0
        %650 = vmatpush1.msra.mxu0 0.0
        %651 = vmatprep.subr.mxu0 0.0
        %652 = vmatpush1.msra.mxu0 0.0
        %653 = vmatprep.subr.mxu0 0.0
        %654 = vmatpush1.msra.mxu0 0.0
        %655 = vmatprep.subr.mxu0 0.0
        %656 = vmatpush1.msra.mxu0 0.0
        %657 = vmatprep.subr.mxu0 0.0
        %658 = vmatpush1.msra.mxu0 0.0
        %659 = vmatprep.subr.mxu0 0.0
        %660 = vmatpush1.msra.mxu0 0.0
        %661 = vmatprep.subr.mxu0 0.0
        %662 = vmatpush1.msra.mxu0 0.0
        %663 = vmatprep.subr.mxu0 0.0
        %664 = vmatpush1.msra.mxu0 0.0
        %665 = vmatprep.subr.mxu0 0.0
        %666 = vmatpush1.msra.mxu0 0.0
        %667 = vmatprep.subr.mxu0 0.0
        %668 = vmatpush1.msra.mxu0 0.0
        %669 = vmatprep.subr.mxu0 0.0
        %670 = vmatpush1.msra.mxu0 0.0
        %671 = vmatprep.subr.mxu0 0.0
        %672 = vmatpush1.msra.mxu0 0.0
        %673 = vmatprep.subr.mxu0 0.0
        %674 = vmatpush1.msra.mxu0 0.0
        %675 = vmatprep.subr.mxu0 0.0
        %676 = vmatpush1.msra.mxu0 0.0
        %677 = vmatprep.subr.mxu0 0.0
        %678 = vmatpush1.msra.mxu0 0.0
        %679 = vmatprep.subr.mxu0 0.0
        %680 = vmatpush1.msra.mxu0 0.0
        %681 = vmatprep.subr.mxu0 0.0
        %682 = vmatpush1.msra.mxu0 0.0
        %683 = vmatprep.subr.mxu0 0.0
        %684 = vmatpush1.msra.mxu0 0.0
        %685 = vmatprep.subr.mxu0 0.0
        %686 = vmatpush1.msra.mxu0 0.0
        %687 = vmatprep.subr.mxu0 0.0
        %688 = vmatpush1.msra.mxu0 0.0
        %689 = vmatprep.subr.mxu0 0.0
        %690 = vmatpush1.msra.mxu0 0.0
        %691 = vmatprep.subr.mxu0 0.0
        %692 = vmatpush1.msra.mxu0 0.0
        %693 = vmatprep.subr.mxu0 0.0
        %694 = vmatpush1.msra.mxu0 0.0
        %695 = vmatprep.mubr.f32.mxu0 0.0
        %696 = vmatmul.mubr.f32.gmra.mrb[0].mxu0 %v620
        %v697 = vpop.f32.mrb[0].mxu0
        %v698 = vadd.f32 %v601, %v697
        %v699 = vpop.f32.mrb[0].mxu0
        %v700 = vadd.f32 %v601, %v699
        %701 = vmatprep.mubr.f32.mxu0 0.0
        %702 = vmatmul.mubr.f32.gmra.mrb[0].mxu0 %v623
        %v703 = vpop.f32.mrb[0].mxu0
        %v704 = vadd.f32 %v606, %v703
        %v705 = vpop.f32.mrb[0].mxu0
        %v706 = vadd.f32 %v606, %v705
        %707 = vmatprep.mubr.f32.mxu0 0.0
        %708 = vmatmul.mubr.f32.gmra.mrb[0].mxu0 %v626
        %v709 = vpop.f32.mrb[0].mxu0
        %v710 = vadd.f32 %v611, %v709
        %v711 = vpop.f32.mrb[0].mxu0
        %v712 = vadd.f32 %v611, %v711
        %713 = vmatprep.mubr.f32.mxu0 0.0
        %714 = vmatmul.mubr.f32.gmra.mrb[0].mxu0 %v629
        %v715 = vpop.f32.mrb[0].mxu0
        %v716 = vadd.f32 %v616, %v715
        %v717 = vpop.f32.mrb[0].mxu0
        %v718 = vadd.f32 %v616, %v717
        %719 = vdwg.mxu0
        %v720 = vmax.f32 %v698, 0.0
        %v721 = vmax.f32 %v700, 0.0
        %v722 = vmax.f32 %v704, 0.0
        %v723 = vmax.f32 %v706, 0.0
        %v724 = vmax.f32 %v710, 0.0
        %v725 = vmax.f32 %v712, 0.0
        %v726 = vmax.f32 %v716, 0.0
        %v727 = vmax.f32 %v718, 0.0
        %v728 = vld [vmem:[#allocation9] sm:$0xff]
        %v729 = vld [vmem:[#allocation9 + $0x8] sm:$0xff]
        %v730 = vld [vmem:[#allocation9 + $0x10] sm:$0xff]
        %v731 = vld [vmem:[#allocation9 + $0x18] sm:$0xff]
        %v732 = vld [vmem:[#allocation10] sm:$0xff]
        %v733 = vld [vmem:[#allocation10 + $0x8] sm:$0xff]
        %v734 = vld [vmem:[#allocation10 + $0x10] sm:$0xff]
        %v735 = vld [vmem:[#allocation10 + $0x18] sm:$0xff]
        %737 = vset.pattern.permute.xlu0 0
        %738 = vperm.xlu0 %737, %v732
        %v739 = vpop.permute.xlu0 %738
        %742 = vset.pattern.permute.xlu0 0
        %743 = vperm.xlu0 %742, %v733
        %v744 = vpop.permute.xlu0 %743
        %747 = vset.pattern.permute.xlu0 0
        %748 = vperm.xlu0 %747, %v734
        %v749 = vpop.permute.xlu0 %748
        %752 = vset.pattern.permute.xlu0 0
        %753 = vperm.xlu0 %752, %v735
        %v754 = vpop.permute.xlu0 %753
        %v757 = vsel %vm618, %v728, 0
        %v760 = vsel %vm618, %v729, 0
        %v763 = vsel %vm618, %v730, 0
        %v766 = vsel %vm618, %v731, 0
        %768 = vmatprep.subr.mxu0 %v721
        %769 = vmatpush1.msra.mxu0 %v720
        %770 = vmatprep.subr.mxu0 %v723
        %771 = vmatpush1.msra.mxu0 %v722
        %772 = vmatprep.subr.mxu0 %v725
        %773 = vmatpush1.msra.mxu0 %v724
        %774 = vmatprep.subr.mxu0 %v727
        %775 = vmatpush1.msra.mxu0 %v726
        %776 = vmatprep.subr.mxu0 0.0
        %777 = vmatpush1.msra.mxu0 0.0
        %778 = vmatprep.subr.mxu0 0.0
        %779 = vmatpush1.msra.mxu0 0.0
        %780 = vmatprep.subr.mxu0 0.0
        %781 = vmatpush1.msra.mxu0 0.0
        %782 = vmatprep.subr.mxu0 0.0
        %783 = vmatpush1.msra.mxu0 0.0
        %784 = vmatprep.subr.mxu0 0.0
        %785 = vmatpush1.msra.mxu0 0.0
        %786 = vmatprep.subr.mxu0 0.0
        %787 = vmatpush1.msra.mxu0 0.0
        %788 = vmatprep.subr.mxu0 0.0
        %789 = vmatpush1.msra.mxu0 0.0
        %790 = vmatprep.subr.mxu0 0.0
        %791 = vmatpush1.msra.mxu0 0.0
        %792 = vmatprep.subr.mxu0 0.0
        %793 = vmatpush1.msra.mxu0 0.0
        %794 = vmatprep.subr.mxu0 0.0
        %795 = vmatpush1.msra.mxu0 0.0
        %796 = vmatprep.subr.mxu0 0.0
        %797 = vmatpush1.msra.mxu0 0.0
        %798 = vmatprep.subr.mxu0 0.0
        %799 = vmatpush1.msra.mxu0 0.0
        %800 = vmatprep.subr.mxu0 0.0
        %801 = vmatpush1.msra.mxu0 0.0
        %802 = vmatprep.subr.mxu0 0.0
        %803 = vmatpush1.msra.mxu0 0.0
        %804 = vmatprep.subr.mxu0 0.0
        %805 = vmatpush1.msra.mxu0 0.0
        %806 = vmatprep.subr.mxu0 0.0
        %807 = vmatpush1.msra.mxu0 0.0
        %808 = vmatprep.subr.mxu0 0.0
        %809 = vmatpush1.msra.mxu0 0.0
        %810 = vmatprep.subr.mxu0 0.0
        %811 = vmatpush1.msra.mxu0 0.0
        %812 = vmatprep.subr.mxu0 0.0
        %813 = vmatpush1.msra.mxu0 0.0
        %814 = vmatprep.subr.mxu0 0.0
        %815 = vmatpush1.msra.mxu0 0.0
        %816 = vmatprep.subr.mxu0 0.0
        %817 = vmatpush1.msra.mxu0 0.0
        %818 = vmatprep.subr.mxu0 0.0
        %819 = vmatpush1.msra.mxu0 0.0
        %820 = vmatprep.subr.mxu0 0.0
        %821 = vmatpush1.msra.mxu0 0.0
        %822 = vmatprep.subr.mxu0 0.0
        %823 = vmatpush1.msra.mxu0 0.0
        %824 = vmatprep.subr.mxu0 0.0
        %825 = vmatpush1.msra.mxu0 0.0
        %826 = vmatprep.subr.mxu0 0.0
        %827 = vmatpush1.msra.mxu0 0.0
        %828 = vmatprep.subr.mxu0 0.0
        %829 = vmatpush1.msra.mxu0 0.0
        %830 = vmatprep.subr.mxu0 0.0
        %831 = vmatpush1.msra.mxu0 0.0
        %832 = vmatprep.mubr.f32.mxu0 0.0
        %833 = vmatmul.mubr.f32.gmra.mrb[0].mxu0 %v757
        %v834 = vpop.f32.mrb[0].mxu0
        %v835 = vadd.f32 %v739, %v834
        %v836 = vpop.f32.mrb[0].mxu0
        %v837 = vadd.f32 %v739, %v836
        %838 = vmatprep.mubr.f32.mxu0 0.0
        %839 = vmatmul.mubr.f32.gmra.mrb[0].mxu0 %v760
        %v840 = vpop.f32.mrb[0].mxu0
        %v841 = vadd.f32 %v744, %v840
        %v842 = vpop.f32.mrb[0].mxu0
        %v843 = vadd.f32 %v744, %v842
        %844 = vmatprep.mubr.f32.mxu0 0.0
        %845 = vmatmul.mubr.f32.gmra.mrb[0].mxu0 %v763
        %v846 = vpop.f32.mrb[0].mxu0
        %v847 = vadd.f32 %v749, %v846
        %v848 = vpop.f32.mrb[0].mxu0
        %v849 = vadd.f32 %v749, %v848
        %850 = vmatprep.mubr.f32.mxu0 0.0
        %851 = vmatmul.mubr.f32.gmra.mrb[0].mxu0 %v766
        %v852 = vpop.f32.mrb[0].mxu0
        %v853 = vadd.f32 %v754, %v852
        %v854 = vpop.f32.mrb[0].mxu0
        %v855 = vadd.f32 %v754, %v854
        %856 = vdwg.mxu0
        %v857 = vmax.f32 %v835, 0.0
        %v858 = vmax.f32 %v837, 0.0
        %v859 = vmax.f32 %v841, 0.0
        %v860 = vmax.f32 %v843, 0.0
        %v861 = vmax.f32 %v847, 0.0
        %v862 = vmax.f32 %v849, 0.0
        %v863 = vmax.f32 %v853, 0.0
        %v864 = vmax.f32 %v855, 0.0
        %v865 = vld [vmem:[#allocation12] sm:$0xff]
        %v866 = vld [vmem:[#allocation12 + $0x8] sm:$0xff]
        %v867 = vld [vmem:[#allocation12 + $0x10] sm:$0xff]
        %v868 = vld [vmem:[#allocation12 + $0x18] sm:$0xff]
        %v869 = vld [vmem:[#allocation12 + $0x20] sm:$0xff]
        %v870 = vld [vmem:[#allocation12 + $0x28] sm:$0xff]
        %v871 = vld [vmem:[#allocation12 + $0x30] sm:$0xff]
        %v872 = vld [vmem:[#allocation12 + $0x38] sm:$0xff]
        %s873 = scalar_lea.vmem [#allocation12], 64
        %v874 = vld [vmem:[%s873] sm:$0xff]
        %v875 = vld [vmem:[%s873 + $0x8] sm:$0xff]
        %v876 = vld [vmem:[%s873 + $0x10] sm:$0xff]
        %v877 = vld [vmem:[%s873 + $0x18] sm:$0xff]
        %v878 = vld [vmem:[%s873 + $0x20] sm:$0xff]
        %v879 = vld [vmem:[%s873 + $0x28] sm:$0xff]
        %v880 = vld [vmem:[%s873 + $0x30] sm:$0xff]
        %v881 = vld [vmem:[%s873 + $0x38] sm:$0xff]
        %886 = vrot.lane.b32.xlu0 %v857, 64
        %v887 = vpop.permute.xlu0 %886
        %888 = vrot.lane.b32.xlu0 %v859, 64
        %v889 = vpop.permute.xlu0 %888
        %890 = vrot.lane.b32.xlu0 %v861, 64
        %v891 = vpop.permute.xlu0 %890
        %892 = vrot.lane.b32.xlu0 %v863, 64
        %v893 = vpop.permute.xlu0 %892
        %v899 = vsel %vm618, %v874, 0
        %v902 = vsel %vm618, %v875, 0
        %v905 = vsel %vm618, %v876, 0
        %v908 = vsel %vm618, %v877, 0
        %v911 = vsel %vm618, %v878, 0
        %v914 = vsel %vm618, %v879, 0
        %v917 = vsel %vm618, %v880, 0
        %v920 = vsel %vm618, %v881, 0
        %922 = vmatprep.subr.mxu0 0.0
        %923 = vmatpush1.msra.mxu0 %v887
        %924 = vmatprep.subr.mxu0 0.0
        %925 = vmatpush1.msra.mxu0 %v889
        %926 = vmatprep.subr.mxu0 0.0
        %927 = vmatpush1.msra.mxu0 %v891
        %928 = vmatprep.subr.mxu0 0.0
        %929 = vmatpush1.msra.mxu0 %v893
        %930 = vmatprep.subr.mxu0 0.0
        %931 = vmatpush1.msra.mxu0 0.0
        %932 = vmatprep.subr.mxu0 0.0
        %933 = vmatpush1.msra.mxu0 0.0
        %934 = vmatprep.subr.mxu0 0.0
        %935 = vmatpush1.msra.mxu0 0.0
        %936 = vmatprep.subr.mxu0 0.0
        %937 = vmatpush1.msra.mxu0 0.0
        %938 = vmatprep.subr.mxu0 0.0
        %939 = vmatpush1.msra.mxu0 0.0
        %940 = vmatprep.subr.mxu0 0.0
        %941 = vmatpush1.msra.mxu0 0.0
        %942 = vmatprep.subr.mxu0 0.0
        %943 = vmatpush1.msra.mxu0 0.0
        %944 = vmatprep.subr.mxu0 0.0
        %945 = vmatpush1.msra.mxu0 0.0
        %946 = vmatprep.subr.mxu0 0.0
        %947 = vmatpush1.msra.mxu0 0.0
        %948 = vmatprep.subr.mxu0 0.0
        %949 = vmatpush1.msra.mxu0 0.0
        %950 = vmatprep.subr.mxu0 0.0
        %951 = vmatpush1.msra.mxu0 0.0
        %952 = vmatprep.subr.mxu0 0.0
        %953 = vmatpush1.msra.mxu0 0.0
        %954 = vmatprep.subr.mxu0 0.0
        %955 = vmatpush1.msra.mxu0 0.0
        %956 = vmatprep.subr.mxu0 0.0
        %957 = vmatpush1.msra.mxu0 0.0
        %958 = vmatprep.subr.mxu0 0.0
        %959 = vmatpush1.msra.mxu0 0.0
        %960 = vmatprep.subr.mxu0 0.0
        %961 = vmatpush1.msra.mxu0 0.0
        %962 = vmatprep.subr.mxu0 0.0
        %963 = vmatpush1.msra.mxu0 0.0
        %964 = vmatprep.subr.mxu0 0.0
        %965 = vmatpush1.msra.mxu0 0.0
        %966 = vmatprep.subr.mxu0 0.0
        %967 = vmatpush1.msra.mxu0 0.0
        %968 = vmatprep.subr.mxu0 0.0
        %969 = vmatpush1.msra.mxu0 0.0
        %970 = vmatprep.subr.mxu0 0.0
        %971 = vmatpush1.msra.mxu0 0.0
        %972 = vmatprep.subr.mxu0 0.0
        %973 = vmatpush1.msra.mxu0 0.0
        %974 = vmatprep.subr.mxu0 0.0
        %975 = vmatpush1.msra.mxu0 0.0
        %976 = vmatprep.subr.mxu0 0.0
        %977 = vmatpush1.msra.mxu0 0.0
        %978 = vmatprep.subr.mxu0 0.0
        %979 = vmatpush1.msra.mxu0 0.0
        %980 = vmatprep.subr.mxu0 0.0
        %981 = vmatpush1.msra.mxu0 0.0
        %982 = vmatprep.subr.mxu0 0.0
        %983 = vmatpush1.msra.mxu0 0.0
        %984 = vmatprep.subr.mxu0 0.0
        %985 = vmatpush1.msra.mxu0 0.0
        %986 = vmatprep.mubr.f32.mxu0 0.0
        %987 = vmatmul.mubr.f32.gmra.mrb[0].mxu0 %v899
        %v988 = vpop.f32.mrb[0].mxu0
        %v989 = vadd.f32 0.0, %v988
        %v990 = vpop.f32.mrb[0].mxu0
        %991 = vmatprep.mubr.f32.mxu0 0.0
        %992 = vmatmul.mubr.f32.gmra.mrb[0].mxu0 %v902
        %v993 = vpop.f32.mrb[0].mxu0
        %v994 = vadd.f32 0.0, %v993
        %v995 = vpop.f32.mrb[0].mxu0
        %996 = vmatprep.mubr.f32.mxu0 0.0
        %997 = vmatmul.mubr.f32.gmra.mrb[0].mxu0 %v905
        %v998 = vpop.f32.mrb[0].mxu0
        %v999 = vadd.f32 0.0, %v998
        %v1000 = vpop.f32.mrb[0].mxu0
        %1001 = vmatprep.mubr.f32.mxu0 0.0
        %1002 = vmatmul.mubr.f32.gmra.mrb[0].mxu0 %v908
        %v1003 = vpop.f32.mrb[0].mxu0
        %v1004 = vadd.f32 0.0, %v1003
        %v1005 = vpop.f32.mrb[0].mxu0
        %1006 = vmatprep.mubr.f32.mxu0 0.0
        %1007 = vmatmul.mubr.f32.gmra.mrb[0].mxu0 %v911
        %v1008 = vpop.f32.mrb[0].mxu0
        %v1009 = vadd.f32 0.0, %v1008
        %v1010 = vpop.f32.mrb[0].mxu0
        %1011 = vmatprep.mubr.f32.mxu0 0.0
        %1012 = vmatmul.mubr.f32.gmra.mrb[0].mxu0 %v914
        %v1013 = vpop.f32.mrb[0].mxu0
        %v1014 = vadd.f32 0.0, %v1013
        %v1015 = vpop.f32.mrb[0].mxu0
        %1016 = vmatprep.mubr.f32.mxu0 0.0
        %1017 = vmatmul.mubr.f32.gmra.mrb[0].mxu0 %v917
        %v1018 = vpop.f32.mrb[0].mxu0
        %v1019 = vadd.f32 0.0, %v1018
        %v1020 = vpop.f32.mrb[0].mxu0
        %1021 = vmatprep.mubr.f32.mxu0 0.0
        %1022 = vmatmul.mubr.f32.gmra.mrb[0].mxu0 %v920
        %v1023 = vpop.f32.mrb[0].mxu0
        %v1024 = vadd.f32 0.0, %v1023
        %v1025 = vpop.f32.mrb[0].mxu0
        %1026 = vdwg.mxu0
        %v1028 = vsel %vm618, %v865, 0
        %v1031 = vsel %vm618, %v866, 0
        %v1034 = vsel %vm618, %v867, 0
        %v1037 = vsel %vm618, %v868, 0
        %v1040 = vsel %vm618, %v869, 0
        %v1043 = vsel %vm618, %v870, 0
        %v1046 = vsel %vm618, %v871, 0
        %v1049 = vsel %vm618, %v872, 0
        %1051 = vmatprep.subr.mxu0 0.0
        %1052 = vmatpush1.msra.mxu0 %v857
        %1053 = vmatprep.subr.mxu0 0.0
        %1054 = vmatpush1.msra.mxu0 %v859
        %1055 = vmatprep.subr.mxu0 0.0
        %1056 = vmatpush1.msra.mxu0 %v861
        %1057 = vmatprep.subr.mxu0 0.0
        %1058 = vmatpush1.msra.mxu0 %v863
        %1059 = vmatprep.subr.mxu0 0.0
        %1060 = vmatpush1.msra.mxu0 0.0
        %1061 = vmatprep.subr.mxu0 0.0
        %1062 = vmatpush1.msra.mxu0 0.0
        %1063 = vmatprep.subr.mxu0 0.0
        %1064 = vmatpush1.msra.mxu0 0.0
        %1065 = vmatprep.subr.mxu0 0.0
        %1066 = vmatpush1.msra.mxu0 0.0
        %1067 = vmatprep.subr.mxu0 0.0
        %1068 = vmatpush1.msra.mxu0 0.0
        %1069 = vmatprep.subr.mxu0 0.0
        %1070 = vmatpush1.msra.mxu0 0.0
        %1071 = vmatprep.subr.mxu0 0.0
        %1072 = vmatpush1.msra.mxu0 0.0
        %1073 = vmatprep.subr.mxu0 0.0
        %1074 = vmatpush1.msra.mxu0 0.0
        %1075 = vmatprep.subr.mxu0 0.0
        %1076 = vmatpush1.msra.mxu0 0.0
        %1077 = vmatprep.subr.mxu0 0.0
        %1078 = vmatpush1.msra.mxu0 0.0
        %1079 = vmatprep.subr.mxu0 0.0
        %1080 = vmatpush1.msra.mxu0 0.0
        %1081 = vmatprep.subr.mxu0 0.0
        %1082 = vmatpush1.msra.mxu0 0.0
        %1083 = vmatprep.subr.mxu0 0.0
        %1084 = vmatpush1.msra.mxu0 0.0
        %1085 = vmatprep.subr.mxu0 0.0
        %1086 = vmatpush1.msra.mxu0 0.0
        %1087 = vmatprep.subr.mxu0 0.0
        %1088 = vmatpush1.msra.mxu0 0.0
        %1089 = vmatprep.subr.mxu0 0.0
        %1090 = vmatpush1.msra.mxu0 0.0
        %1091 = vmatprep.subr.mxu0 0.0
        %1092 = vmatpush1.msra.mxu0 0.0
        %1093 = vmatprep.subr.mxu0 0.0
        %1094 = vmatpush1.msra.mxu0 0.0
        %1095 = vmatprep.subr.mxu0 0.0
        %1096 = vmatpush1.msra.mxu0 0.0
        %1097 = vmatprep.subr.mxu0 0.0
        %1098 = vmatpush1.msra.mxu0 0.0
        %1099 = vmatprep.subr.mxu0 0.0
        %1100 = vmatpush1.msra.mxu0 0.0
        %1101 = vmatprep.subr.mxu0 0.0
        %1102 = vmatpush1.msra.mxu0 0.0
        %1103 = vmatprep.subr.mxu0 0.0
        %1104 = vmatpush1.msra.mxu0 0.0
        %1105 = vmatprep.subr.mxu0 0.0
        %1106 = vmatpush1.msra.mxu0 0.0
        %1107 = vmatprep.subr.mxu0 0.0
        %1108 = vmatpush1.msra.mxu0 0.0
        %1109 = vmatprep.subr.mxu0 0.0
        %1110 = vmatpush1.msra.mxu0 0.0
        %1111 = vmatprep.subr.mxu0 0.0
        %1112 = vmatpush1.msra.mxu0 0.0
        %1113 = vmatprep.subr.mxu0 0.0
        %1114 = vmatpush1.msra.mxu0 0.0
        %1115 = vmatprep.mubr.f32.mxu0 0.0
        %1116 = vmatmul.mubr.f32.gmra.mrb[0].mxu0 %v1028
        %v1117 = vpop.f32.mrb[0].mxu0
        %v1118 = vadd.f32 %v989, %v1117
        %v1119 = vpop.f32.mrb[0].mxu0
        %1120 = vmatprep.mubr.f32.mxu0 0.0
        %1121 = vmatmul.mubr.f32.gmra.mrb[0].mxu0 %v1031
        %v1122 = vpop.f32.mrb[0].mxu0
        %v1123 = vadd.f32 %v994, %v1122
        %v1124 = vpop.f32.mrb[0].mxu0
        %1125 = vmatprep.mubr.f32.mxu0 0.0
        %1126 = vmatmul.mubr.f32.gmra.mrb[0].mxu0 %v1034
        %v1127 = vpop.f32.mrb[0].mxu0
        %v1128 = vadd.f32 %v999, %v1127
        %v1129 = vpop.f32.mrb[0].mxu0
        %1130 = vmatprep.mubr.f32.mxu0 0.0
        %1131 = vmatmul.mubr.f32.gmra.mrb[0].mxu0 %v1037
        %v1132 = vpop.f32.mrb[0].mxu0
        %v1133 = vadd.f32 %v1004, %v1132
        %v1134 = vpop.f32.mrb[0].mxu0
        %1135 = vmatprep.mubr.f32.mxu0 0.0
        %1136 = vmatmul.mubr.f32.gmra.mrb[0].mxu0 %v1040
        %v1137 = vpop.f32.mrb[0].mxu0
        %v1138 = vadd.f32 %v1009, %v1137
        %v1139 = vpop.f32.mrb[0].mxu0
        %1140 = vmatprep.mubr.f32.mxu0 0.0
        %1141 = vmatmul.mubr.f32.gmra.mrb[0].mxu0 %v1043
        %v1142 = vpop.f32.mrb[0].mxu0
        %v1143 = vadd.f32 %v1014, %v1142
        %v1144 = vpop.f32.mrb[0].mxu0
        %1145 = vmatprep.mubr.f32.mxu0 0.0
        %1146 = vmatmul.mubr.f32.gmra.mrb[0].mxu0 %v1046
        %v1147 = vpop.f32.mrb[0].mxu0
        %v1148 = vadd.f32 %v1019, %v1147
        %v1149 = vpop.f32.mrb[0].mxu0
        %1150 = vmatprep.mubr.f32.mxu0 0.0
        %1151 = vmatmul.mubr.f32.gmra.mrb[0].mxu0 %v1049
        %v1152 = vpop.f32.mrb[0].mxu0
        %v1153 = vadd.f32 %v1024, %v1152
        %v1154 = vpop.f32.mrb[0].mxu0
        %1155 = vdwg.mxu0
        %s1156 = scalar_lea.vmem [#allocation12], 128
        %v1157 = vld [vmem:[%s1156] sm:$0xff]
        %v1158 = vld [vmem:[%s1156 + $0x8] sm:$0xff]
        %v1159 = vld [vmem:[%s1156 + $0x10] sm:$0xff]
        %v1160 = vld [vmem:[%s1156 + $0x18] sm:$0xff]
        %v1161 = vld [vmem:[%s1156 + $0x20] sm:$0xff]
        %v1162 = vld [vmem:[%s1156 + $0x28] sm:$0xff]
        %v1163 = vld [vmem:[%s1156 + $0x30] sm:$0xff]
        %v1164 = vld [vmem:[%s1156 + $0x38] sm:$0xff]
        %v1166 = vsel %vm618, %v1157, 0
        %v1169 = vsel %vm618, %v1158, 0
        %v1172 = vsel %vm618, %v1159, 0
        %v1175 = vsel %vm618, %v1160, 0
        %v1178 = vsel %vm618, %v1161, 0
        %v1181 = vsel %vm618, %v1162, 0
        %v1184 = vsel %vm618, %v1163, 0
        %v1187 = vsel %vm618, %v1164, 0
        %1189 = vmatprep.subr.mxu0 0.0
        %1190 = vmatpush1.msra.mxu0 %v858
        %1191 = vmatprep.subr.mxu0 0.0
        %1192 = vmatpush1.msra.mxu0 %v860
        %1193 = vmatprep.subr.mxu0 0.0
        %1194 = vmatpush1.msra.mxu0 %v862
        %1195 = vmatprep.subr.mxu0 0.0
        %1196 = vmatpush1.msra.mxu0 %v864
        %1197 = vmatprep.subr.mxu0 0.0
        %1198 = vmatpush1.msra.mxu0 0.0
        %1199 = vmatprep.subr.mxu0 0.0
        %1200 = vmatpush1.msra.mxu0 0.0
        %1201 = vmatprep.subr.mxu0 0.0
        %1202 = vmatpush1.msra.mxu0 0.0
        %1203 = vmatprep.subr.mxu0 0.0
        %1204 = vmatpush1.msra.mxu0 0.0
        %1205 = vmatprep.subr.mxu0 0.0
        %1206 = vmatpush1.msra.mxu0 0.0
        %1207 = vmatprep.subr.mxu0 0.0
        %1208 = vmatpush1.msra.mxu0 0.0
        %1209 = vmatprep.subr.mxu0 0.0
        %1210 = vmatpush1.msra.mxu0 0.0
        %1211 = vmatprep.subr.mxu0 0.0
        %1212 = vmatpush1.msra.mxu0 0.0
        %1213 = vmatprep.subr.mxu0 0.0
        %1214 = vmatpush1.msra.mxu0 0.0
        %1215 = vmatprep.subr.mxu0 0.0
        %1216 = vmatpush1.msra.mxu0 0.0
        %1217 = vmatprep.subr.mxu0 0.0
        %1218 = vmatpush1.msra.mxu0 0.0
        %1219 = vmatprep.subr.mxu0 0.0
        %1220 = vmatpush1.msra.mxu0 0.0
        %1221 = vmatprep.subr.mxu0 0.0
        %1222 = vmatpush1.msra.mxu0 0.0
        %1223 = vmatprep.subr.mxu0 0.0
        %1224 = vmatpush1.msra.mxu0 0.0
        %1225 = vmatprep.subr.mxu0 0.0
        %1226 = vmatpush1.msra.mxu0 0.0
        %1227 = vmatprep.subr.mxu0 0.0
        %1228 = vmatpush1.msra.mxu0 0.0
        %1229 = vmatprep.subr.mxu0 0.0
        %1230 = vmatpush1.msra.mxu0 0.0
        %1231 = vmatprep.subr.mxu0 0.0
        %1232 = vmatpush1.msra.mxu0 0.0
        %1233 = vmatprep.subr.mxu0 0.0
        %1234 = vmatpush1.msra.mxu0 0.0
        %1235 = vmatprep.subr.mxu0 0.0
        %1236 = vmatpush1.msra.mxu0 0.0
        %1237 = vmatprep.subr.mxu0 0.0
        %1238 = vmatpush1.msra.mxu0 0.0
        %1239 = vmatprep.subr.mxu0 0.0
        %1240 = vmatpush1.msra.mxu0 0.0
        %1241 = vmatprep.subr.mxu0 0.0
        %1242 = vmatpush1.msra.mxu0 0.0
        %1243 = vmatprep.subr.mxu0 0.0
        %1244 = vmatpush1.msra.mxu0 0.0
        %1245 = vmatprep.subr.mxu0 0.0
        %1246 = vmatpush1.msra.mxu0 0.0
        %1247 = vmatprep.subr.mxu0 0.0
        %1248 = vmatpush1.msra.mxu0 0.0
        %1249 = vmatprep.subr.mxu0 0.0
        %1250 = vmatpush1.msra.mxu0 0.0
        %1251 = vmatprep.subr.mxu0 0.0
        %1252 = vmatpush1.msra.mxu0 0.0
        %1253 = vmatprep.mubr.f32.mxu0 0.0
        %1254 = vmatmul.mubr.f32.gmra.mrb[0].mxu0 %v1166
        %v1255 = vpop.f32.mrb[0].mxu0
        %v1256 = vadd.f32 0.0, %v1255
        %v1257 = vpop.f32.mrb[0].mxu0
        %1258 = vmatprep.mubr.f32.mxu0 0.0
        %1259 = vmatmul.mubr.f32.gmra.mrb[0].mxu0 %v1169
        %v1260 = vpop.f32.mrb[0].mxu0
        %v1261 = vadd.f32 0.0, %v1260
        %v1262 = vpop.f32.mrb[0].mxu0
        %1263 = vmatprep.mubr.f32.mxu0 0.0
        %1264 = vmatmul.mubr.f32.gmra.mrb[0].mxu0 %v1172
        %v1265 = vpop.f32.mrb[0].mxu0
        %v1266 = vadd.f32 0.0, %v1265
        %v1267 = vpop.f32.mrb[0].mxu0
        %1268 = vmatprep.mubr.f32.mxu0 0.0
        %1269 = vmatmul.mubr.f32.gmra.mrb[0].mxu0 %v1175
        %v1270 = vpop.f32.mrb[0].mxu0
        %v1271 = vadd.f32 0.0, %v1270
        %v1272 = vpop.f32.mrb[0].mxu0
        %1273 = vmatprep.mubr.f32.mxu0 0.0
        %1274 = vmatmul.mubr.f32.gmra.mrb[0].mxu0 %v1178
        %v1275 = vpop.f32.mrb[0].mxu0
        %v1276 = vadd.f32 0.0, %v1275
        %v1277 = vpop.f32.mrb[0].mxu0
        %1278 = vmatprep.mubr.f32.mxu0 0.0
        %1279 = vmatmul.mubr.f32.gmra.mrb[0].mxu0 %v1181
        %v1280 = vpop.f32.mrb[0].mxu0
        %v1281 = vadd.f32 0.0, %v1280
        %v1282 = vpop.f32.mrb[0].mxu0
        %1283 = vmatprep.mubr.f32.mxu0 0.0
        %1284 = vmatmul.mubr.f32.gmra.mrb[0].mxu0 %v1184
        %v1285 = vpop.f32.mrb[0].mxu0
        %v1286 = vadd.f32 0.0, %v1285
        %v1287 = vpop.f32.mrb[0].mxu0
        %1288 = vmatprep.mubr.f32.mxu0 0.0
        %1289 = vmatmul.mubr.f32.gmra.mrb[0].mxu0 %v1187
        %v1290 = vpop.f32.mrb[0].mxu0
        %v1291 = vadd.f32 0.0, %v1290
        %v1292 = vpop.f32.mrb[0].mxu0
        %1293 = vdwg.mxu0
        %v1294 = vadd.f32 %v1118, %v1256
        %v1295 = vadd.f32 %v1123, %v1261
        %v1296 = vadd.f32 %v1128, %v1266
        %v1297 = vadd.f32 %v1133, %v1271
        %v1298 = vadd.f32 %v1138, %v1276
        %v1299 = vadd.f32 %v1143, %v1281
        %v1300 = vadd.f32 %v1148, %v1286
        %v1301 = vadd.f32 %v1153, %v1291
        %s1302 = scalar_lea.vmem [#allocation12], 192
        %v1303 = vld [vmem:[%s1302] sm:$0xff]
        %v1304 = vld [vmem:[%s1302 + $0x8] sm:$0xff]
        %v1305 = vld [vmem:[%s1302 + $0x10] sm:$0xff]
        %v1306 = vld [vmem:[%s1302 + $0x18] sm:$0xff]
        %v1307 = vld [vmem:[%s1302 + $0x20] sm:$0xff]
        %v1308 = vld [vmem:[%s1302 + $0x28] sm:$0xff]
        %v1309 = vld [vmem:[%s1302 + $0x30] sm:$0xff]
        %v1310 = vld [vmem:[%s1302 + $0x38] sm:$0xff]
        %1315 = vrot.lane.b32.xlu0 %v858, 64
        %v1316 = vpop.permute.xlu0 %1315
        %1317 = vrot.lane.b32.xlu0 %v860, 64
        %v1318 = vpop.permute.xlu0 %1317
        %1319 = vrot.lane.b32.xlu0 %v862, 64
        %v1320 = vpop.permute.xlu0 %1319
        %1321 = vrot.lane.b32.xlu0 %v864, 64
        %v1322 = vpop.permute.xlu0 %1321
        %v1328 = vsel %vm618, %v1303, 0
        %v1331 = vsel %vm618, %v1304, 0
        %v1334 = vsel %vm618, %v1305, 0
        %v1337 = vsel %vm618, %v1306, 0
        %v1340 = vsel %vm618, %v1307, 0
        %v1343 = vsel %vm618, %v1308, 0
        %v1346 = vsel %vm618, %v1309, 0
        %v1349 = vsel %vm618, %v1310, 0
        %1351 = vmatprep.subr.mxu0 0.0
        %1352 = vmatpush1.msra.mxu0 %v1316
        %1353 = vmatprep.subr.mxu0 0.0
        %1354 = vmatpush1.msra.mxu0 %v1318
        %1355 = vmatprep.subr.mxu0 0.0
        %1356 = vmatpush1.msra.mxu0 %v1320
        %1357 = vmatprep.subr.mxu0 0.0
        %1358 = vmatpush1.msra.mxu0 %v1322
        %1359 = vmatprep.subr.mxu0 0.0
        %1360 = vmatpush1.msra.mxu0 0.0
        %1361 = vmatprep.subr.mxu0 0.0
        %1362 = vmatpush1.msra.mxu0 0.0
        %1363 = vmatprep.subr.mxu0 0.0
        %1364 = vmatpush1.msra.mxu0 0.0
        %1365 = vmatprep.subr.mxu0 0.0
        %1366 = vmatpush1.msra.mxu0 0.0
        %1367 = vmatprep.subr.mxu0 0.0
        %1368 = vmatpush1.msra.mxu0 0.0
        %1369 = vmatprep.subr.mxu0 0.0
        %1370 = vmatpush1.msra.mxu0 0.0
        %1371 = vmatprep.subr.mxu0 0.0
        %1372 = vmatpush1.msra.mxu0 0.0
        %1373 = vmatprep.subr.mxu0 0.0
        %1374 = vmatpush1.msra.mxu0 0.0
        %1375 = vmatprep.subr.mxu0 0.0
        %1376 = vmatpush1.msra.mxu0 0.0
        %1377 = vmatprep.subr.mxu0 0.0
        %1378 = vmatpush1.msra.mxu0 0.0
        %1379 = vmatprep.subr.mxu0 0.0
        %1380 = vmatpush1.msra.mxu0 0.0
        %1381 = vmatprep.subr.mxu0 0.0
        %1382 = vmatpush1.msra.mxu0 0.0
        %1383 = vmatprep.subr.mxu0 0.0
        %1384 = vmatpush1.msra.mxu0 0.0
        %1385 = vmatprep.subr.mxu0 0.0
        %1386 = vmatpush1.msra.mxu0 0.0
        %1387 = vmatprep.subr.mxu0 0.0
        %1388 = vmatpush1.msra.mxu0 0.0
        %1389 = vmatprep.subr.mxu0 0.0
        %1390 = vmatpush1.msra.mxu0 0.0
        %1391 = vmatprep.subr.mxu0 0.0
        %1392 = vmatpush1.msra.mxu0 0.0
        %1393 = vmatprep.subr.mxu0 0.0
        %1394 = vmatpush1.msra.mxu0 0.0
        %1395 = vmatprep.subr.mxu0 0.0
        %1396 = vmatpush1.msra.mxu0 0.0
        %1397 = vmatprep.subr.mxu0 0.0
        %1398 = vmatpush1.msra.mxu0 0.0
        %1399 = vmatprep.subr.mxu0 0.0
        %1400 = vmatpush1.msra.mxu0 0.0
        %1401 = vmatprep.subr.mxu0 0.0
        %1402 = vmatpush1.msra.mxu0 0.0
        %1403 = vmatprep.subr.mxu0 0.0
        %1404 = vmatpush1.msra.mxu0 0.0
        %1405 = vmatprep.subr.mxu0 0.0
        %1406 = vmatpush1.msra.mxu0 0.0
        %1407 = vmatprep.subr.mxu0 0.0
        %1408 = vmatpush1.msra.mxu0 0.0
        %1409 = vmatprep.subr.mxu0 0.0
        %1410 = vmatpush1.msra.mxu0 0.0
        %1411 = vmatprep.subr.mxu0 0.0
        %1412 = vmatpush1.msra.mxu0 0.0
        %1413 = vmatprep.subr.mxu0 0.0
        %1414 = vmatpush1.msra.mxu0 0.0
        %1415 = vmatprep.mubr.f32.mxu0 0.0
        %1416 = vmatmul.mubr.f32.gmra.mrb[0].mxu0 %v1328
        %v1417 = vpop.f32.mrb[0].mxu0
        %v1418 = vadd.f32 0.0, %v1417
        %v1419 = vpop.f32.mrb[0].mxu0
        %1420 = vmatprep.mubr.f32.mxu0 0.0
        %1421 = vmatmul.mubr.f32.gmra.mrb[0].mxu0 %v1331
        %v1422 = vpop.f32.mrb[0].mxu0
        %v1423 = vadd.f32 0.0, %v1422
        %v1424 = vpop.f32.mrb[0].mxu0
        %1425 = vmatprep.mubr.f32.mxu0 0.0
        %1426 = vmatmul.mubr.f32.gmra.mrb[0].mxu0 %v1334
        %v1427 = vpop.f32.mrb[0].mxu0
        %v1428 = vadd.f32 0.0, %v1427
        %v1429 = vpop.f32.mrb[0].mxu0
        %1430 = vmatprep.mubr.f32.mxu0 0.0
        %1431 = vmatmul.mubr.f32.gmra.mrb[0].mxu0 %v1337
        %v1432 = vpop.f32.mrb[0].mxu0
        %v1433 = vadd.f32 0.0, %v1432
        %v1434 = vpop.f32.mrb[0].mxu0
        %1435 = vmatprep.mubr.f32.mxu0 0.0
        %1436 = vmatmul.mubr.f32.gmra.mrb[0].mxu0 %v1340
        %v1437 = vpop.f32.mrb[0].mxu0
        %v1438 = vadd.f32 0.0, %v1437
        %v1439 = vpop.f32.mrb[0].mxu0
        %1440 = vmatprep.mubr.f32.mxu0 0.0
        %1441 = vmatmul.mubr.f32.gmra.mrb[0].mxu0 %v1343
        %v1442 = vpop.f32.mrb[0].mxu0
        %v1443 = vadd.f32 0.0, %v1442
        %v1444 = vpop.f32.mrb[0].mxu0
        %1445 = vmatprep.mubr.f32.mxu0 0.0
        %1446 = vmatmul.mubr.f32.gmra.mrb[0].mxu0 %v1346
        %v1447 = vpop.f32.mrb[0].mxu0
        %v1448 = vadd.f32 0.0, %v1447
        %v1449 = vpop.f32.mrb[0].mxu0
        %1450 = vmatprep.mubr.f32.mxu0 0.0
        %1451 = vmatmul.mubr.f32.gmra.mrb[0].mxu0 %v1349
        %v1452 = vpop.f32.mrb[0].mxu0
        %v1453 = vadd.f32 0.0, %v1452
        %v1454 = vpop.f32.mrb[0].mxu0
        %1455 = vdwg.mxu0
        %v1456 = vadd.f32 %v1294, %v1418
        %v1457 = vadd.f32 %v1295, %v1423
        %v1458 = vadd.f32 %v1296, %v1428
        %v1459 = vadd.f32 %v1297, %v1433
        %v1460 = vadd.f32 %v1298, %v1438
        %v1461 = vadd.f32 %v1299, %v1443
        %v1462 = vadd.f32 %v1300, %v1448
        %v1463 = vadd.f32 %v1301, %v1453
        %v1464 = vld [vmem:[#allocation13] sm:$0xff]
        %v1465 = vld [vmem:[#allocation13 + $0x8] sm:$0xff]
        %v1466 = vld [vmem:[#allocation13 + $0x10] sm:$0xff]
        %v1467 = vld [vmem:[#allocation13 + $0x18] sm:$0xff]
        %v1468 = vld [vmem:[#allocation13 + $0x20] sm:$0xff]
        %v1469 = vld [vmem:[#allocation13 + $0x28] sm:$0xff]
        %v1470 = vld [vmem:[#allocation13 + $0x30] sm:$0xff]
        %v1471 = vld [vmem:[#allocation13 + $0x38] sm:$0xff]
        %1473 = vset.pattern.permute.xlu0 0
        %1474 = vperm.xlu0 %1473, %v1464
        %v1475 = vpop.permute.xlu0 %1474
        %1478 = vset.pattern.permute.xlu0 0
        %1479 = vperm.xlu0 %1478, %v1465
        %v1480 = vpop.permute.xlu0 %1479
        %1483 = vset.pattern.permute.xlu0 0
        %1484 = vperm.xlu0 %1483, %v1466
        %v1485 = vpop.permute.xlu0 %1484
        %1488 = vset.pattern.permute.xlu0 0
        %1489 = vperm.xlu0 %1488, %v1467
        %v1490 = vpop.permute.xlu0 %1489
        %1493 = vset.pattern.permute.xlu0 0
        %1494 = vperm.xlu0 %1493, %v1468
        %v1495 = vpop.permute.xlu0 %1494
        %1498 = vset.pattern.permute.xlu0 0
        %1499 = vperm.xlu0 %1498, %v1469
        %v1500 = vpop.permute.xlu0 %1499
        %1503 = vset.pattern.permute.xlu0 0
        %1504 = vperm.xlu0 %1503, %v1470
        %v1505 = vpop.permute.xlu0 %1504
        %1508 = vset.pattern.permute.xlu0 0
        %1509 = vperm.xlu0 %1508, %v1471
        %v1510 = vpop.permute.xlu0 %1509
        %v1512 = vadd.f32 %v1456, %v1475
        %v1513 = vadd.f32 %v1457, %v1480
        %v1514 = vadd.f32 %v1458, %v1485
        %v1515 = vadd.f32 %v1459, %v1490
        %v1516 = vadd.f32 %v1460, %v1495
        %v1517 = vadd.f32 %v1461, %v1500
        %v1518 = vadd.f32 %v1462, %v1505
        %v1519 = vadd.f32 %v1463, %v1510
        %v1520 = vmax.f32 %v1512, 0.0
        %v1521 = vmax.f32 %v1513, 0.0
        %v1522 = vmax.f32 %v1514, 0.0
        %v1523 = vmax.f32 %v1515, 0.0
        %v1524 = vmax.f32 %v1516, 0.0
        %v1525 = vmax.f32 %v1517, 0.0
        %v1526 = vmax.f32 %v1518, 0.0
        %v1527 = vmax.f32 %v1519, 0.0
        %vm1528 = vcmask 523264
        %1529 = vst.msk [vmem:[%s449] sm:$0xff] %vm1528, %v1520
        %1530 = vst.msk [vmem:[%s449 + $0x8] sm:$0xff] %vm1528, %v1521
        %1531 = vst.msk [vmem:[%s449 + $0x10] sm:$0xff] %vm1528, %v1522
        %1532 = vst.msk [vmem:[%s449 + $0x18] sm:$0xff] %vm1528, %v1523
        %1533 = vst.msk [vmem:[%s449 + $0x20] sm:$0xff] %vm1528, %v1524
        %1534 = vst.msk [vmem:[%s449 + $0x28] sm:$0xff] %vm1528, %v1525
        %1535 = vst.msk [vmem:[%s449 + $0x30] sm:$0xff] %vm1528, %v1526
        %1536 = vst.msk [vmem:[%s449 + $0x38] sm:$0xff] %vm1528, %v1527
        %p1537 = scmp.lt.s32.totalorder %s25, 1
        %s1538 = scalar_select %p1537, %s25, 1
        %s1539 = smul.addr %s1538, 8
        %s1540 = smul.addr %s1539, 8
        %s1541 = scalar_lea.vmem %s9, %s1540
        // Predicated region
        $region89: #{_lambda_.2} parent=55 // pred_check
          %p1542 = pneg %p237
        $region90: #{_lambda_.2} parent=55 // pred_check_branch
          %1544 = sbr.rel (%p1542) target = $region92
        $region91: #{_lambda_.2} parent=55 // pred_region
          _
        $region92: #{_lambda_.2} parent=55 // pred_fallthru
          _
      $region56: #{_lambda_.2} parent=5 // pred_fallthru
        _
      %p1545 = scmp.le.s32.totalorder 2, %s20
      // Predicated region
      $region93: #{_lambda_.2} parent=5 // pred_check
        %p1546 = pneg %p1545
      $region94: #{_lambda_.2} parent=5 // pred_check_branch
        %1548 = sbr.rel (%p1546) target = $region96
      $region95: #{_lambda_.2} parent=5 // pred_region
        %s1549 = ssub.s32 %s20, 2
        // Predicated region
        $region97: #{_lambda_.2} parent=95 // pred_check
          %p1550 = pneg %p243
        $region98: #{_lambda_.2} parent=95 // pred_check_branch
          %1552 = sbr.rel (%p1550) target = $region100
        $region99: #{_lambda_.2} parent=95 // pred_region
          %p1553 = scmp.lt.s32.totalorder %s26, 1
          %s1554 = scalar_select %p1553, %s26, 1
          %s1555 = smul.addr %s1554, 8
          %s1556 = smul.addr %s1555, 8
          %s1557 = scalar_lea.vmem %s9, %s1556
        $region100: #{_lambda_.2} parent=95 // pred_fallthru
          _
      $region96: #{_lambda_.2} parent=5 // pred_fallthru
        _
    $region6: #{_lambda_.2} parent=1 // loop_footer
      %s24 = sadd.s32 1, %s20
    $region7: #{_lambda_.2} parent=1 // loop_footer_branch
      %19 = sbr.rel target = $region3
    $region8: #{_lambda_.2} parent=1 // loop_exit
      _
    %1558 = vsyncpa [#allocation3], 1
    %s1559 = scalar_lea.sflag [#allocation3], 1
    %1560 = vsyncpa %s1559, 1
    %1561 = vsyncpa [#allocation5], 1
    %1562 = vsyncpa [#allocation8], 1
    %1563 = vsyncpa [#allocation11], 1
    %1564 = vsyncpa [#allocation14], 1

// kernel: _lambda_.3
$region0: #{_lambda_.3}
  #allocation0 [shape = 'u32[]', space=smem, size = 0x4, offset = 0x4, fixed_abs, tag = 'smem constant byte address 0x4 - core index']
  #allocation1 [shape = 'u32[144,128]{1,0:T(1,128)}', space=vmem, size = 0x12000, scoped, tag = 'internal scratch']
  #allocation2 [shape = 'f32[18,18,32]{2,1,0:T(8,128)}', space=vmem, size = 0x36000, scoped, tag = 'scratch operand']
  %s0 = inlined_call_operand.vmem [shape: f32[2,1,4096], index: 0, kind: input, shape index: {}]
  %s1 = inlined_call_operand.vmem [shape: f32[2,1,16], index: 1, kind: input, shape index: {}]
  %s2 = inlined_call_operand.vmem [shape: f32[4096,64], index: 2, kind: input, shape index: {}]
  %s3 = inlined_call_operand.hbm [shape: f32[1,64], index: 3, kind: input, shape index: {}]
  %s4 = inlined_call_operand.hbm [shape: f32[64,256], index: 4, kind: input, shape index: {}]
  %s5 = inlined_call_operand.hbm [shape: f32[1,256], index: 5, kind: input, shape index: {}]
  %s6 = inlined_call_operand.hbm [shape: f32[256,32], index: 6, kind: input, shape index: {}]
  %s7 = inlined_call_operand.hbm [shape: f32[1,32], index: 7, kind: input, shape index: {}]
  %s8 = inlined_call_operand.vmem [shape: f32[16,32], index: 8, kind: input, shape index: {}]
  %s9 = inlined_call_operand.hbm [shape: f32[18,18,32], index: 9, kind: input, shape index: {}]
  %s10 = inlined_call_operand.vmem [shape: f32[9,32,32], index: 10, kind: input, shape index: {}]
  %s11 = inlined_call_operand.vmem [shape: f32[1,32], index: 11, kind: input, shape index: {}]
  %s12 = inlined_call_operand.vmem [shape: f32[4,32], index: 12, kind: input, shape index: {}]
  %s13 = inlined_call_operand.vmem [shape: f32[4,1], index: 13, kind: input, shape index: {}]
  %s14 = inlined_call_operand.vmem [shape: f32[2,4,256], index: 14, kind: output, shape index: {0}]
  %s15 = inlined_call_operand.hbm [shape: f32[2,1,16], index: 15, kind: output, shape index: {1}]
  %s16 = inlined_call_operand.hbm [shape: f32[2,1,16], index: 16, kind: output, shape index: {2}]
  %s17 = inlined_call_operand.hbm [shape: f32[2,1,16], index: 17, kind: output, shape index: {3}]
  %18 = xla_tuple %s14, %s15, %s16, %s17
  %s19 = sld [smem:[#allocation0]]
  $region137: #{_lambda_.3} parent=0
    _
  %s21 = ssub.s32 1, %s19
  %s22 = scalar_select 0, %s21, %s19
  $region1: #{_lambda_.3} parent=0
    #allocation3 [shape = 'u8[512]{0}', space=vmem, size = 0x400, scoped, tag = 'input window, operand 3, single buffered']
    #allocation4 [shape = 's32[2]{0}', space=sflag, size = 0x8, scoped, tag = 'scoped memory for _lambda_.3']
    #allocation5 [shape = 's32[2]{0}', space=sflag, size = 0x8, scoped, tag = 'scoped memory for _lambda_.3']
    #allocation6 [shape = 'u8[65536]{0}', space=vmem, size = 0x10000, scoped, tag = 'input window, operand 4, single buffered']
    #allocation7 [shape = 's32[1]{0}', space=sflag, size = 0x4, scoped, tag = 'scoped memory for _lambda_.3']
    #allocation8 [shape = 'u8[1024]{0}', space=vmem, size = 0x400, scoped, tag = 'input window, operand 5, single buffered']
    #allocation9 [shape = 'u8[131072]{0}', space=vmem, size = 0x20000, scoped, tag = 'input window, operand 6, single buffered']
    #allocation10 [shape = 's32[1]{0}', space=sflag, size = 0x4, scoped, tag = 'scoped memory for _lambda_.3']
    #allocation11 [shape = 'u8[512]{0}', space=vmem, size = 0x400, scoped, tag = 'input window, operand 7, single buffered']
    #allocation12 [shape = 'u8[221184]{0}', space=vmem, size = 0x36000, scoped, tag = 'input window, operand 9, single buffered']
    #allocation13 [shape = 's32[1]{0}', space=sflag, size = 0x4, scoped, tag = 'scoped memory for _lambda_.3']
    #allocation14 [shape = 'u8[1024]{0}', space=vmem, size = 0x400, scoped, tag = 'output window, operand 1']
    #allocation15 [shape = 'u8[1024]{0}', space=vmem, size = 0x400, scoped, tag = 'output window, operand 2']
    #allocation16 [shape = 's32[2]{0}', space=sflag, size = 0x8, scoped, tag = 'scoped memory for _lambda_.3']
    #allocation17 [shape = 'u8[1024]{0}', space=vmem, size = 0x400, scoped, tag = 'output window, operand 3']
    %23 = vsyncpa [#allocation4], 0
    %24 = vsyncpa [#allocation7], 0
    %25 = vsyncpa [#allocation10], 0
    %26 = vsyncpa [#allocation13], 0
    %27 = vsyncpa [#allocation5], 0
    %s28 = scalar_lea.sflag [#allocation5], 1
    %29 = vsyncpa %s28, 0
    %30 = vsyncpa [#allocation16], 0
    %s31 = scalar_lea.sflag [#allocation16], 1
    %32 = vsyncpa %s31, 0
    loop: start=0, step=1, limit=4
    $region2: #{_lambda_.3} parent=1 // loop_pre_header
      _
    $region3: #{_lambda_.3} parent=1 // loop_header
      %s34 = sphi 0, %s38
      %p35 = scmp.ge.s32.totalorder %s34, 4
      %s44 = sphi 0, %s46
      %s47 = sphi 0, %s44
      %s48 = sphi 0, %s47
      %s64 = sphi 0, %s48
      %s70 = sphi 0, %s72
      %s73 = sphi 0, %s70
      %s74 = sphi 0, %s73
      %s90 = sphi 0, %s74
      %s94 = sphi 0, %s94
      %s96 = sphi 0, %s94
      %s97 = sphi 0, %s96
      %s111 = sphi 0, %s97
      %s115 = sphi 0, %s115
      %s117 = sphi 0, %s115
      %s118 = sphi 0, %s117
      %s132 = sphi 0, %s118
      %s136 = sphi 0, %s136
      %s138 = sphi 0, %s136
      %s139 = sphi 0, %s138
      %s153 = sphi 0, %s139
      %s157 = sphi 0, %s157
      %s159 = sphi 0, %s157
      %s160 = sphi 0, %s159
      %s174 = sphi 0, %s160
      %s178 = sphi 0, %s178
      %s180 = sphi 0, %s178
      %s181 = sphi 0, %s180
      %s195 = sphi 0, %s181
      %s199 = sphi 0, %s199
      %s201 = sphi 0, %s199
      %s202 = sphi 0, %s201
      %s216 = sphi 0, %s202
      %s220 = sphi 0, %s220
      %s222 = sphi 0, %s220
      %s223 = sphi 0, %s222
      %s237 = sphi 0, %s223
      %s241 = sphi 0, %s241
      %s243 = sphi 0, %s241
      %s244 = sphi 0, %s243
      %s258 = sphi 0, %s244
      %s262 = sphi 0, %s262
      %s264 = sphi 0, %s262
      %s265 = sphi 0, %s264
      %s279 = sphi 0, %s265
      %s283 = sphi 0, %s283
      %s285 = sphi 0, %s283
      %s286 = sphi 0, %s285
      %s300 = sphi 0, %s286
      %s304 = sphi 0, %s304
      %s306 = sphi 0, %s304
      %s307 = sphi 0, %s306
      %s321 = sphi 0, %s307
      %s325 = sphi 0, %s325
      %s327 = sphi 0, %s325
      %s328 = sphi 0, %s327
      %s342 = sphi 0, %s328
      %s348 = sphi 0, %s350
      %s351 = sphi 0, %s348
      %s352 = sphi 0, %s351
      %s368 = sphi 0, %s352
      %s374 = sphi 0, %s376
      %s377 = sphi 0, %s374
      %s378 = sphi 0, %s377
      %s394 = sphi 0, %s378
      %s400 = sphi 0, %s402
      %s403 = sphi 0, %s400
      %s404 = sphi 0, %s403
      %s420 = sphi 0, %s404
      %s426 = sphi 0, %s428
      %s429 = sphi 0, %s426
      %s430 = sphi 0, %s429
      %s446 = sphi 0, %s430
    $region4: #{_lambda_.3} parent=1 // loop_header_branch
      %37 = sbr.rel (%p35) target = $region8
    $region5: #{_lambda_.3} parent=1 // loop_body
      %s39 = ssub.s32 %s34, 1
      %s40 = ssub.s32 %s34, 2
      %s41 = sadd.s32 %s34, 1
      %s42 = ssub.s32 %s34, %s41
      %p43 = scmp.eq.s32.totalorder %s42, 0
      %s45 = sadd.s32 %s44, 1
      %s46 = scalar_select %p43, %s44, %s45
      %p49 = pneg %p43
      %p50 = scmp.eq.s32.totalorder %s34, 1
      %p51 = por %p49, %p50
      %p52 = scmp.ne.s32.totalorder %s44, %s47
      %p53 = scmp.eq.s32.totalorder %s34, 0
      %p54 = por %p52, %p53
      %p55 = scmp.ne.s32.totalorder %s44, %s47
      %p56 = scmp.eq.s32.totalorder %s39, 1
      %p57 = por %p55, %p56
      %p58 = scmp.ne.s32.totalorder %s47, %s48
      %p59 = scmp.eq.s32.totalorder %s39, 0
      %p60 = por %p58, %p59
      %p61 = scmp.ne.s32.totalorder %s47, %s48
      %p62 = scmp.eq.s32.totalorder %s40, 1
      %p63 = por %p61, %p62
      %p65 = scmp.ne.s32.totalorder %s48, %s64
      %p66 = scmp.eq.s32.totalorder %s40, 0
      %p67 = por %p65, %p66
      %s68 = ssub.s32 %s34, %s41
      %p69 = scmp.eq.s32.totalorder %s68, 0
      %s71 = sadd.s32 %s70, 1
      %s72 = scalar_select %p69, %s70, %s71
      %p75 = pneg %p69
      %p76 = scmp.eq.s32.totalorder %s34, 1
      %p77 = por %p75, %p76
      %p78 = scmp.ne.s32.totalorder %s70, %s73
      %p79 = scmp.eq.s32.totalorder %s34, 0
      %p80 = por %p78, %p79
      %p81 = scmp.ne.s32.totalorder %s70, %s73
      %p82 = scmp.eq.s32.totalorder %s39, 1
      %p83 = por %p81, %p82
      %p84 = scmp.ne.s32.totalorder %s73, %s74
      %p85 = scmp.eq.s32.totalorder %s39, 0
      %p86 = por %p84, %p85
      %p87 = scmp.ne.s32.totalorder %s73, %s74
      %p88 = scmp.eq.s32.totalorder %s40, 1
      %p89 = por %p87, %p88
      %p91 = scmp.ne.s32.totalorder %s74, %s90
      %p92 = scmp.eq.s32.totalorder %s40, 0
      %p93 = por %p91, %p92
      %s95 = sadd.s32 %s94, 1
      %p98 = scmp.eq.s32.totalorder %s34, 1
      %p99 = scmp.ne.s32.totalorder %s94, %s96
      %p100 = scmp.eq.s32.totalorder %s34, 0
      %p101 = por %p99, %p100
      %p102 = scmp.ne.s32.totalorder %s94, %s96
      %p103 = scmp.eq.s32.totalorder %s39, 1
      %p104 = por %p102, %p103
      %p105 = scmp.ne.s32.totalorder %s96, %s97
      %p106 = scmp.eq.s32.totalorder %s39, 0
      %p107 = por %p105, %p106
      %p108 = scmp.ne.s32.totalorder %s96, %s97
      %p109 = scmp.eq.s32.totalorder %s40, 1
      %p110 = por %p108, %p109
      %p112 = scmp.ne.s32.totalorder %s97, %s111
      %p113 = scmp.eq.s32.totalorder %s40, 0
      %p114 = por %p112, %p113
      %s116 = sadd.s32 %s115, 1
      %p119 = scmp.eq.s32.totalorder %s34, 1
      %p120 = scmp.ne.s32.totalorder %s115, %s117
      %p121 = scmp.eq.s32.totalorder %s34, 0
      %p122 = por %p120, %p121
      %p123 = scmp.ne.s32.totalorder %s115, %s117
      %p124 = scmp.eq.s32.totalorder %s39, 1
      %p125 = por %p123, %p124
      %p126 = scmp.ne.s32.totalorder %s117, %s118
      %p127 = scmp.eq.s32.totalorder %s39, 0
      %p128 = por %p126, %p127
      %p129 = scmp.ne.s32.totalorder %s117, %s118
      %p130 = scmp.eq.s32.totalorder %s40, 1
      %p131 = por %p129, %p130
      %p133 = scmp.ne.s32.totalorder %s118, %s132
      %p134 = scmp.eq.s32.totalorder %s40, 0
      %p135 = por %p133, %p134
      %s137 = sadd.s32 %s136, 1
      %p140 = scmp.eq.s32.totalorder %s34, 1
      %p141 = scmp.ne.s32.totalorder %s136, %s138
      %p142 = scmp.eq.s32.totalorder %s34, 0
      %p143 = por %p141, %p142
      %p144 = scmp.ne.s32.totalorder %s136, %s138
      %p145 = scmp.eq.s32.totalorder %s39, 1
      %p146 = por %p144, %p145
      %p147 = scmp.ne.s32.totalorder %s138, %s139
      %p148 = scmp.eq.s32.totalorder %s39, 0
      %p149 = por %p147, %p148
      %p150 = scmp.ne.s32.totalorder %s138, %s139
      %p151 = scmp.eq.s32.totalorder %s40, 1
      %p152 = por %p150, %p151
      %p154 = scmp.ne.s32.totalorder %s139, %s153
      %p155 = scmp.eq.s32.totalorder %s40, 0
      %p156 = por %p154, %p155
      %s158 = sadd.s32 %s157, 1
      %p161 = scmp.eq.s32.totalorder %s34, 1
      %p162 = scmp.ne.s32.totalorder %s157, %s159
      %p163 = scmp.eq.s32.totalorder %s34, 0
      %p164 = por %p162, %p163
      %p165 = scmp.ne.s32.totalorder %s157, %s159
      %p166 = scmp.eq.s32.totalorder %s39, 1
      %p167 = por %p165, %p166
      %p168 = scmp.ne.s32.totalorder %s159, %s160
      %p169 = scmp.eq.s32.totalorder %s39, 0
      %p170 = por %p168, %p169
      %p171 = scmp.ne.s32.totalorder %s159, %s160
      %p172 = scmp.eq.s32.totalorder %s40, 1
      %p173 = por %p171, %p172
      %p175 = scmp.ne.s32.totalorder %s160, %s174
      %p176 = scmp.eq.s32.totalorder %s40, 0
      %p177 = por %p175, %p176
      %s179 = sadd.s32 %s178, 1
      %p182 = scmp.eq.s32.totalorder %s34, 1
      %p183 = scmp.ne.s32.totalorder %s178, %s180
      %p184 = scmp.eq.s32.totalorder %s34, 0
      %p185 = por %p183, %p184
      %p186 = scmp.ne.s32.totalorder %s178, %s180
      %p187 = scmp.eq.s32.totalorder %s39, 1
      %p188 = por %p186, %p187
      %p189 = scmp.ne.s32.totalorder %s180, %s181
      %p190 = scmp.eq.s32.totalorder %s39, 0
      %p191 = por %p189, %p190
      %p192 = scmp.ne.s32.totalorder %s180, %s181
      %p193 = scmp.eq.s32.totalorder %s40, 1
      %p194 = por %p192, %p193
      %p196 = scmp.ne.s32.totalorder %s181, %s195
      %p197 = scmp.eq.s32.totalorder %s40, 0
      %p198 = por %p196, %p197
      %s200 = sadd.s32 %s199, 1
      %p203 = scmp.eq.s32.totalorder %s34, 1
      %p204 = scmp.ne.s32.totalorder %s199, %s201
      %p205 = scmp.eq.s32.totalorder %s34, 0
      %p206 = por %p204, %p205
      %p207 = scmp.ne.s32.totalorder %s199, %s201
      %p208 = scmp.eq.s32.totalorder %s39, 1
      %p209 = por %p207, %p208
      %p210 = scmp.ne.s32.totalorder %s201, %s202
      %p211 = scmp.eq.s32.totalorder %s39, 0
      %p212 = por %p210, %p211
      %p213 = scmp.ne.s32.totalorder %s201, %s202
      %p214 = scmp.eq.s32.totalorder %s40, 1
      %p215 = por %p213, %p214
      %p217 = scmp.ne.s32.totalorder %s202, %s216
      %p218 = scmp.eq.s32.totalorder %s40, 0
      %p219 = por %p217, %p218
      %s221 = sadd.s32 %s220, 1
      %p224 = scmp.eq.s32.totalorder %s34, 1
      %p225 = scmp.ne.s32.totalorder %s220, %s222
      %p226 = scmp.eq.s32.totalorder %s34, 0
      %p227 = por %p225, %p226
      %p228 = scmp.ne.s32.totalorder %s220, %s222
      %p229 = scmp.eq.s32.totalorder %s39, 1
      %p230 = por %p228, %p229
      %p231 = scmp.ne.s32.totalorder %s222, %s223
      %p232 = scmp.eq.s32.totalorder %s39, 0
      %p233 = por %p231, %p232
      %p234 = scmp.ne.s32.totalorder %s222, %s223
      %p235 = scmp.eq.s32.totalorder %s40, 1
      %p236 = por %p234, %p235
      %p238 = scmp.ne.s32.totalorder %s223, %s237
      %p239 = scmp.eq.s32.totalorder %s40, 0
      %p240 = por %p238, %p239
      %s242 = sadd.s32 %s241, 1
      %p245 = scmp.eq.s32.totalorder %s34, 1
      %p246 = scmp.ne.s32.totalorder %s241, %s243
      %p247 = scmp.eq.s32.totalorder %s34, 0
      %p248 = por %p246, %p247
      %p249 = scmp.ne.s32.totalorder %s241, %s243
      %p250 = scmp.eq.s32.totalorder %s39, 1
      %p251 = por %p249, %p250
      %p252 = scmp.ne.s32.totalorder %s243, %s244
      %p253 = scmp.eq.s32.totalorder %s39, 0
      %p254 = por %p252, %p253
      %p255 = scmp.ne.s32.totalorder %s243, %s244
      %p256 = scmp.eq.s32.totalorder %s40, 1
      %p257 = por %p255, %p256
      %p259 = scmp.ne.s32.totalorder %s244, %s258
      %p260 = scmp.eq.s32.totalorder %s40, 0
      %p261 = por %p259, %p260
      %s263 = sadd.s32 %s262, 1
      %p266 = scmp.eq.s32.totalorder %s34, 1
      %p267 = scmp.ne.s32.totalorder %s262, %s264
      %p268 = scmp.eq.s32.totalorder %s34, 0
      %p269 = por %p267, %p268
      %p270 = scmp.ne.s32.totalorder %s262, %s264
      %p271 = scmp.eq.s32.totalorder %s39, 1
      %p272 = por %p270, %p271
      %p273 = scmp.ne.s32.totalorder %s264, %s265
      %p274 = scmp.eq.s32.totalorder %s39, 0
      %p275 = por %p273, %p274
      %p276 = scmp.ne.s32.totalorder %s264, %s265
      %p277 = scmp.eq.s32.totalorder %s40, 1
      %p278 = por %p276, %p277
      %p280 = scmp.ne.s32.totalorder %s265, %s279
      %p281 = scmp.eq.s32.totalorder %s40, 0
      %p282 = por %p280, %p281
      %s284 = sadd.s32 %s283, 1
      %p287 = scmp.eq.s32.totalorder %s34, 1
      %p288 = scmp.ne.s32.totalorder %s283, %s285
      %p289 = scmp.eq.s32.totalorder %s34, 0
      %p290 = por %p288, %p289
      %p291 = scmp.ne.s32.totalorder %s283, %s285
      %p292 = scmp.eq.s32.totalorder %s39, 1
      %p293 = por %p291, %p292
      %p294 = scmp.ne.s32.totalorder %s285, %s286
      %p295 = scmp.eq.s32.totalorder %s39, 0
      %p296 = por %p294, %p295
      %p297 = scmp.ne.s32.totalorder %s285, %s286
      %p298 = scmp.eq.s32.totalorder %s40, 1
      %p299 = por %p297, %p298
      %p301 = scmp.ne.s32.totalorder %s286, %s300
      %p302 = scmp.eq.s32.totalorder %s40, 0
      %p303 = por %p301, %p302
      %s305 = sadd.s32 %s304, 1
      %p308 = scmp.eq.s32.totalorder %s34, 1
      %p309 = scmp.ne.s32.totalorder %s304, %s306
      %p310 = scmp.eq.s32.totalorder %s34, 0
      %p311 = por %p309, %p310
      %p312 = scmp.ne.s32.totalorder %s304, %s306
      %p313 = scmp.eq.s32.totalorder %s39, 1
      %p314 = por %p312, %p313
      %p315 = scmp.ne.s32.totalorder %s306, %s307
      %p316 = scmp.eq.s32.totalorder %s39, 0
      %p317 = por %p315, %p316
      %p318 = scmp.ne.s32.totalorder %s306, %s307
      %p319 = scmp.eq.s32.totalorder %s40, 1
      %p320 = por %p318, %p319
      %p322 = scmp.ne.s32.totalorder %s307, %s321
      %p323 = scmp.eq.s32.totalorder %s40, 0
      %p324 = por %p322, %p323
      %s326 = sadd.s32 %s325, 1
      %p329 = scmp.eq.s32.totalorder %s34, 1
      %p330 = scmp.ne.s32.totalorder %s325, %s327
      %p331 = scmp.eq.s32.totalorder %s34, 0
      %p332 = por %p330, %p331
      %p333 = scmp.ne.s32.totalorder %s325, %s327
      %p334 = scmp.eq.s32.totalorder %s39, 1
      %p335 = por %p333, %p334
      %p336 = scmp.ne.s32.totalorder %s327, %s328
      %p337 = scmp.eq.s32.totalorder %s39, 0
      %p338 = por %p336, %p337
      %p339 = scmp.ne.s32.totalorder %s327, %s328
      %p340 = scmp.eq.s32.totalorder %s40, 1
      %p341 = por %p339, %p340
      %p343 = scmp.ne.s32.totalorder %s328, %s342
      %p344 = scmp.eq.s32.totalorder %s40, 0
      %p345 = por %p343, %p344
      %s346 = ssub.s32 %s34, %s41
      %p347 = scmp.eq.s32.totalorder %s346, 0
      %s349 = sadd.s32 %s348, 1
      %s350 = scalar_select %p347, %s348, %s349
      %p353 = pneg %p347
      %p354 = scmp.eq.s32.totalorder %s34, 1
      %p355 = por %p353, %p354
      %p356 = scmp.ne.s32.totalorder %s348, %s351
      %p357 = scmp.eq.s32.totalorder %s34, 0
      %p358 = por %p356, %p357
      %p359 = scmp.ne.s32.totalorder %s348, %s351
      %p360 = scmp.eq.s32.totalorder %s39, 1
      %p361 = por %p359, %p360
      %p362 = scmp.ne.s32.totalorder %s351, %s352
      %p363 = scmp.eq.s32.totalorder %s39, 0
      %p364 = por %p362, %p363
      %p365 = scmp.ne.s32.totalorder %s351, %s352
      %p366 = scmp.eq.s32.totalorder %s40, 1
      %p367 = por %p365, %p366
      %p369 = scmp.ne.s32.totalorder %s352, %s368
      %p370 = scmp.eq.s32.totalorder %s40, 0
      %p371 = por %p369, %p370
      %s372 = ssub.s32 %s34, %s41
      %p373 = scmp.eq.s32.totalorder %s372, 0
      %s375 = sadd.s32 %s374, 1
      %s376 = scalar_select %p373, %s374, %s375
      %p379 = pneg %p373
      %p380 = scmp.eq.s32.totalorder %s34, 1
      %p381 = por %p379, %p380
      %p382 = scmp.ne.s32.totalorder %s374, %s377
      %p383 = scmp.eq.s32.totalorder %s34, 0
      %p384 = por %p382, %p383
      %p385 = scmp.ne.s32.totalorder %s374, %s377
      %p386 = scmp.eq.s32.totalorder %s39, 1
      %p387 = por %p385, %p386
      %p388 = scmp.ne.s32.totalorder %s377, %s378
      %p389 = scmp.eq.s32.totalorder %s39, 0
      %p390 = por %p388, %p389
      %p391 = scmp.ne.s32.totalorder %s377, %s378
      %p392 = scmp.eq.s32.totalorder %s40, 1
      %p393 = por %p391, %p392
      %p395 = scmp.ne.s32.totalorder %s378, %s394
      %p396 = scmp.eq.s32.totalorder %s40, 0
      %p397 = por %p395, %p396
      %s398 = ssub.s32 %s34, %s41
      %p399 = scmp.eq.s32.totalorder %s398, 0
      %s401 = sadd.s32 %s400, 1
      %s402 = scalar_select %p399, %s400, %s401
      %p405 = pneg %p399
      %p406 = scmp.eq.s32.totalorder %s34, 1
      %p407 = por %p405, %p406
      %p408 = scmp.ne.s32.totalorder %s400, %s403
      %p409 = scmp.eq.s32.totalorder %s34, 0
      %p410 = por %p408, %p409
      %p411 = scmp.ne.s32.totalorder %s400, %s403
      %p412 = scmp.eq.s32.totalorder %s39, 1
      %p413 = por %p411, %p412
      %p414 = scmp.ne.s32.totalorder %s403, %s404
      %p415 = scmp.eq.s32.totalorder %s39, 0
      %p416 = por %p414, %p415
      %p417 = scmp.ne.s32.totalorder %s403, %s404
      %p418 = scmp.eq.s32.totalorder %s40, 1
      %p419 = por %p417, %p418
      %p421 = scmp.ne.s32.totalorder %s404, %s420
      %p422 = scmp.eq.s32.totalorder %s40, 0
      %p423 = por %p421, %p422
      %s424 = ssub.s32 %s34, %s41
      %p425 = scmp.eq.s32.totalorder %s424, 0
      %s427 = sadd.s32 %s426, 1
      %s428 = scalar_select %p425, %s426, %s427
      %p431 = pneg %p425
      %p432 = scmp.eq.s32.totalorder %s34, 1
      %p433 = por %p431, %p432
      %p434 = scmp.ne.s32.totalorder %s426, %s429
      %p435 = scmp.eq.s32.totalorder %s34, 0
      %p436 = por %p434, %p435
      %p437 = scmp.ne.s32.totalorder %s426, %s429
      %p438 = scmp.eq.s32.totalorder %s39, 1
      %p439 = por %p437, %p438
      %p440 = scmp.ne.s32.totalorder %s429, %s430
      %p441 = scmp.eq.s32.totalorder %s39, 0
      %p442 = por %p440, %p441
      %p443 = scmp.ne.s32.totalorder %s429, %s430
      %p444 = scmp.eq.s32.totalorder %s40, 1
      %p445 = por %p443, %p444
      %p447 = scmp.ne.s32.totalorder %s430, %s446
      %p448 = scmp.eq.s32.totalorder %s40, 0
      %p449 = por %p447, %p448
      %p450 = scmp.le.s32.totalorder 1, %s34
      %p451 = scmp.lt.s32.totalorder %s34, 3
      %p452 = pnand %p450, %p451
      %p453 = pneg %p452
      // Predicated region
      $region9: #{_lambda_.3} parent=5 // pred_check
        _
      $region10: #{_lambda_.3} parent=5 // pred_check_branch
        %455 = sbr.rel (%p452) target = $region12
      $region11: #{_lambda_.3} parent=5 // pred_region
        %s456 = ssub.s32 %s34, 1
        // Predicated region
        $region13: #{_lambda_.3} parent=11 // pred_check
          %p457 = pneg %p107
        $region14: #{_lambda_.3} parent=11 // pred_check_branch
          %459 = sbr.rel (%p457) target = $region16
        $region15: #{_lambda_.3} parent=11 // pred_region
          _
        $region16: #{_lambda_.3} parent=11 // pred_fallthru
          _
        // Predicated region
        $region17: #{_lambda_.3} parent=11 // pred_check
          %p460 = pneg %p128
        $region18: #{_lambda_.3} parent=11 // pred_check_branch
          %462 = sbr.rel (%p460) target = $region20
        $region19: #{_lambda_.3} parent=11 // pred_region
          %s464 = ssub.s32 16, 16
          %465 = vsyncadd [#allocation4], %s464
          %s467 = sshll.u32 [#allocation3], 4
          %s468 = int_to_ptr.vmem [resolvable:$true] %s467
          %470 = dma.hbm_to_vmem [thread:$0]  %s3, 16, %s468, [#allocation4]
        $region20: #{_lambda_.3} parent=11 // pred_fallthru
          _
        // Predicated region
        $region21: #{_lambda_.3} parent=11 // pred_check
          %p471 = pneg %p149
        $region22: #{_lambda_.3} parent=11 // pred_check_branch
          %473 = sbr.rel (%p471) target = $region24
        $region23: #{_lambda_.3} parent=11 // pred_region
          %s475 = ssub.s32 2048, 2048
          %476 = vsyncadd [#allocation7], %s475
          %s477 = sshll.u32 [#allocation6], 4
          %s478 = int_to_ptr.vmem [resolvable:$true] %s477
          %483 = dma.hbm_to_vmem [thread:$0]  %s4, 2048, %s478, [#allocation7], 256, 256, 16
        $region24: #{_lambda_.3} parent=11 // pred_fallthru
          _
        // Predicated region
        $region25: #{_lambda_.3} parent=11 // pred_check
          %p484 = pneg %p170
        $region26: #{_lambda_.3} parent=11 // pred_check_branch
          %486 = sbr.rel (%p484) target = $region28
        $region27: #{_lambda_.3} parent=11 // pred_region
          %s488 = ssub.s32 32, 32
          %489 = vsyncadd [#allocation7], %s488
          %s491 = sshll.u32 [#allocation8], 4
          %s492 = int_to_ptr.vmem [resolvable:$true] %s491
          %494 = dma.hbm_to_vmem [thread:$0]  %s5, 32, %s492, [#allocation7]
        $region28: #{_lambda_.3} parent=11 // pred_fallthru
          _
        // Predicated region
        $region29: #{_lambda_.3} parent=11 // pred_check
          %p495 = pneg %p191
        $region30: #{_lambda_.3} parent=11 // pred_check_branch
          %497 = sbr.rel (%p495) target = $region32
        $region31: #{_lambda_.3} parent=11 // pred_region
          %s499 = ssub.s32 4096, 4096
          %500 = vsyncadd [#allocation10], %s499
          %s501 = sshll.u32 [#allocation9], 4
          %s502 = int_to_ptr.vmem [resolvable:$true] %s501
          %507 = dma.hbm_to_vmem [thread:$0]  %s6, 4096, %s502, [#allocation10], 128, 128, 8
        $region32: #{_lambda_.3} parent=11 // pred_fallthru
          _
        // Predicated region
        $region33: #{_lambda_.3} parent=11 // pred_check
          %p508 = pneg %p212
        $region34: #{_lambda_.3} parent=11 // pred_check_branch
          %510 = sbr.rel (%p508) target = $region36
        $region35: #{_lambda_.3} parent=11 // pred_region
          %s512 = ssub.s32 16, 16
          %513 = vsyncadd [#allocation10], %s512
          %s515 = sshll.u32 [#allocation11], 4
          %s516 = int_to_ptr.vmem [resolvable:$true] %s515
          %518 = dma.hbm_to_vmem [thread:$0]  %s7, 16, %s516, [#allocation10]
        $region36: #{_lambda_.3} parent=11 // pred_fallthru
          _
        // Predicated region
        $region37: #{_lambda_.3} parent=11 // pred_check
          %p519 = pneg %p233
        $region38: #{_lambda_.3} parent=11 // pred_check_branch
          %521 = sbr.rel (%p519) target = $region40
        $region39: #{_lambda_.3} parent=11 // pred_region
          _
        $region40: #{_lambda_.3} parent=11 // pred_fallthru
          _
        // Predicated region
        $region41: #{_lambda_.3} parent=11 // pred_check
          %p522 = pneg %p254
        $region42: #{_lambda_.3} parent=11 // pred_check_branch
          %524 = sbr.rel (%p522) target = $region44
        $region43: #{_lambda_.3} parent=11 // pred_region
          %s526 = ssub.s32 6912, 6912
          %527 = vsyncadd [#allocation13], %s526
          %s528 = sshll.u32 [#allocation12], 4
          %s529 = int_to_ptr.vmem [resolvable:$true] %s528
          %534 = dma.hbm_to_vmem [thread:$0]  %s9, 6912, %s529, [#allocation13], 128, 128, 8
        $region44: #{_lambda_.3} parent=11 // pred_fallthru
          _
        // Predicated region
        $region45: #{_lambda_.3} parent=11 // pred_check
          %p535 = pneg %p275
        $region46: #{_lambda_.3} parent=11 // pred_check_branch
          %537 = sbr.rel (%p535) target = $region48
        $region47: #{_lambda_.3} parent=11 // pred_region
          _
        $region48: #{_lambda_.3} parent=11 // pred_fallthru
          _
        // Predicated region
        $region49: #{_lambda_.3} parent=11 // pred_check
          %p538 = pneg %p296
        $region50: #{_lambda_.3} parent=11 // pred_check_branch
          %540 = sbr.rel (%p538) target = $region52
        $region51: #{_lambda_.3} parent=11 // pred_region
          _
        $region52: #{_lambda_.3} parent=11 // pred_fallthru
          _
        // Predicated region
        $region53: #{_lambda_.3} parent=11 // pred_check
          %p541 = pneg %p317
        $region54: #{_lambda_.3} parent=11 // pred_check_branch
          %543 = sbr.rel (%p541) target = $region56
        $region55: #{_lambda_.3} parent=11 // pred_region
          _
        $region56: #{_lambda_.3} parent=11 // pred_fallthru
          _
        // Predicated region
        $region57: #{_lambda_.3} parent=11 // pred_check
          %p544 = pneg %p338
        $region58: #{_lambda_.3} parent=11 // pred_check_branch
          %546 = sbr.rel (%p544) target = $region60
        $region59: #{_lambda_.3} parent=11 // pred_region
          _
        $region60: #{_lambda_.3} parent=11 // pred_fallthru
          _
      $region12: #{_lambda_.3} parent=5 // pred_fallthru
        _
      %p547 = scmp.lt.s32.totalorder %s34, 2
      // Predicated region
      $region61: #{_lambda_.3} parent=5 // pred_check
        %p548 = pneg %p547
      $region62: #{_lambda_.3} parent=5 // pred_check_branch
        %550 = sbr.rel (%p548) target = $region64
      $region63: #{_lambda_.3} parent=5 // pred_region
        // Predicated region
        $region65: #{_lambda_.3} parent=63 // pred_check
          %p551 = pneg %p54
        $region66: #{_lambda_.3} parent=63 // pred_check_branch
          %553 = sbr.rel (%p551) target = $region68
        $region67: #{_lambda_.3} parent=63 // pred_region
          %p554 = scmp.lt.s32.totalorder %s34, 1
          %s555 = scalar_select %p554, %s34, 1
          %s556 = smul.addr %s555, 32
          %s557 = scalar_lea.vmem %s0, %s556
        $region68: #{_lambda_.3} parent=63 // pred_fallthru
          _
        // Predicated region
        $region69: #{_lambda_.3} parent=63 // pred_check
          %p558 = pneg %p80
        $region70: #{_lambda_.3} parent=63 // pred_check_branch
          %560 = sbr.rel (%p558) target = $region72
        $region71: #{_lambda_.3} parent=63 // pred_region
          %p561 = scmp.lt.s32.totalorder %s34, 1
          %s562 = scalar_select %p561, %s34, 1
          %s563 = scalar_lea.vmem %s1, %s562
        $region72: #{_lambda_.3} parent=63 // pred_fallthru
          _
      $region64: #{_lambda_.3} parent=5 // pred_fallthru
        _
      %p564 = scmp.le.s32.totalorder 1, %s34
      %p565 = scmp.lt.s32.totalorder %s34, 3
      %p566 = pnand %p564, %p565
      %p567 = pneg %p566
      // Predicated region
      $region73: #{_lambda_.3} parent=5 // pred_check
        _
      $region74: #{_lambda_.3} parent=5 // pred_check_branch
        %569 = sbr.rel (%p566) target = $region76
      $region75: #{_lambda_.3} parent=5 // pred_region
        %s570 = ssub.s32 %s34, 1
        // Predicated region
        $region77: #{_lambda_.3} parent=75 // pred_check
          %p571 = pneg %p128
        $region78: #{_lambda_.3} parent=75 // pred_check_branch
          %573 = sbr.rel (%p571) target = $region80
        $region79: #{_lambda_.3} parent=75 // pred_region
          %574 = dma.done [#allocation4], 16
        $region80: #{_lambda_.3} parent=75 // pred_fallthru
          _
        // Predicated region
        $region81: #{_lambda_.3} parent=75 // pred_check
          %p575 = pneg %p149
        $region82: #{_lambda_.3} parent=75 // pred_check_branch
          %577 = sbr.rel (%p575) target = $region84
        $region83: #{_lambda_.3} parent=75 // pred_region
          %578 = dma.done [#allocation7], 2048
        $region84: #{_lambda_.3} parent=75 // pred_fallthru
          _
        // Predicated region
        $region85: #{_lambda_.3} parent=75 // pred_check
          %p579 = pneg %p170
        $region86: #{_lambda_.3} parent=75 // pred_check_branch
          %581 = sbr.rel (%p579) target = $region88
        $region87: #{_lambda_.3} parent=75 // pred_region
          %582 = dma.done [#allocation7], 32
        $region88: #{_lambda_.3} parent=75 // pred_fallthru
          _
        // Predicated region
        $region89: #{_lambda_.3} parent=75 // pred_check
          %p583 = pneg %p191
        $region90: #{_lambda_.3} parent=75 // pred_check_branch
          %585 = sbr.rel (%p583) target = $region92
        $region91: #{_lambda_.3} parent=75 // pred_region
          %586 = dma.done [#allocation10], 4096
        $region92: #{_lambda_.3} parent=75 // pred_fallthru
          _
        // Predicated region
        $region93: #{_lambda_.3} parent=75 // pred_check
          %p587 = pneg %p212
        $region94: #{_lambda_.3} parent=75 // pred_check_branch
          %589 = sbr.rel (%p587) target = $region96
        $region95: #{_lambda_.3} parent=75 // pred_region
          %590 = dma.done [#allocation10], 16
        $region96: #{_lambda_.3} parent=75 // pred_fallthru
          _
        // Predicated region
        $region97: #{_lambda_.3} parent=75 // pred_check
          %p591 = pneg %p254
        $region98: #{_lambda_.3} parent=75 // pred_check_branch
          %593 = sbr.rel (%p591) target = $region100
        $region99: #{_lambda_.3} parent=75 // pred_region
          %594 = dma.done [#allocation13], 6912
        $region100: #{_lambda_.3} parent=75 // pred_fallthru
          _
        %p595 = scmp.lt.s32.totalorder %s39, 1
        %s596 = scalar_select %p595, %s39, 1
        %s597 = smul.addr %s596, 32
        %s598 = scalar_lea.vmem %s0, %s597
        %p599 = pneg %p60
        %p600 = pneg %p57
        %p601 = scmp.lt.s32.totalorder %s39, 1
        %s602 = scalar_select %p601, %s39, 1
        %s603 = scalar_lea.vmem %s1, %s602
        %p604 = pneg %p86
        %p605 = pneg %p83
        %p606 = pneg %p107
        %p607 = pneg %p104
        %p608 = pneg %p128
        %p609 = pneg %p125
        %p610 = pneg %p149
        %p611 = pneg %p146
        %p612 = pneg %p170
        %p613 = pneg %p167
        %p614 = pneg %p191
        %p615 = pneg %p188
        %p616 = pneg %p212
        %p617 = pneg %p209
        %p618 = pneg %p233
        %p619 = pneg %p230
        %p620 = pneg %p254
        %p621 = pneg %p251
        %p622 = pneg %p275
        %p623 = pneg %p272
        %p624 = pneg %p296
        %p625 = pneg %p293
        %p626 = pneg %p317
        %p627 = pneg %p314
        %p628 = pneg %p338
        %p629 = pneg %p335
        %p630 = pneg %p364
        %p631 = pneg %p361
        %p632 = scmp.lt.s32.totalorder %s39, 1
        %s633 = scalar_select %p632, %s39, 1
        %s634 = smul.addr %s633, 2
        %s635 = smul.addr %s634, 4
        %s636 = scalar_lea.vmem %s14, %s635
        %p637 = pneg %p390
        %p638 = pneg %p387
        %s639 = sand.u32 %s377, 1
        %s640 = scalar_lea.sflag [#allocation5], %s639
        %s641 = sand.u32 %s377, 1
        %s642 = scalar_lea.vmem [#allocation14], %s641
        %p643 = pneg %p416
        %p644 = pneg %p413
        %s645 = sand.u32 %s39, 1
        %s646 = scalar_lea.sflag [#allocation16], %s645
        %s647 = sand.u32 %s403, 1
        %s648 = scalar_lea.vmem [#allocation15], %s647
        %p649 = pneg %p442
        %p650 = pneg %p439
        %s651 = sand.u32 %s39, 1
        %s652 = scalar_lea.sflag [#allocation16], %s651
        %s653 = sand.u32 %s429, 1
        %s654 = scalar_lea.vmem [#allocation17], %s653
        %p655 = scmp.lt.s32.totalorder %s39, 1
        %s656 = scalar_select %p655, %s39, 1
        %s657 = smul.addr %s656, 32
        %s658 = scalar_lea.vmem %s0, %s657
        %p659 = scmp.lt.s32.totalorder %s39, 1
        %s660 = scalar_select %p659, %s39, 1
        %s661 = scalar_lea.vmem %s1, %s660
        %p662 = scmp.lt.s32.totalorder %s39, 1
        %s663 = scalar_select %p662, %s39, 1
        %s664 = smul.addr %s663, 2
        %s665 = smul.addr %s664, 4
        %s666 = scalar_lea.vmem %s14, %s665
        %v667 = vld [vmem:[%s658] sm:$0xff]
        %v668 = vld [vmem:[%s658 + $0x8] sm:$0xff]
        %v669 = vld [vmem:[%s658 + $0x10] sm:$0xff]
        %v670 = vld [vmem:[%s658 + $0x18] sm:$0xff]
        %v671 = vld [vmem:[%s2] sm:$0xff]
        %v672 = vld [vmem:[%s2 + $0x8] sm:$0xff]
        %v673 = vld [vmem:[%s2 + $0x10] sm:$0xff]
        %v674 = vld [vmem:[%s2 + $0x18] sm:$0xff]
        %v675 = vld [vmem:[%s2 + $0x20] sm:$0xff]
        %v676 = vld [vmem:[%s2 + $0x28] sm:$0xff]
        %v677 = vld [vmem:[%s2 + $0x30] sm:$0xff]
        %v678 = vld [vmem:[%s2 + $0x38] sm:$0xff]
        %v679 = vld [vmem:[%s2 + $0x40] sm:$0xff]
        %v680 = vld [vmem:[%s2 + $0x48] sm:$0xff]
        %v681 = vld [vmem:[%s2 + $0x50] sm:$0xff]
        %v682 = vld [vmem:[%s2 + $0x58] sm:$0xff]
        %v683 = vld [vmem:[%s2 + $0x60] sm:$0xff]
        %v684 = vld [vmem:[%s2 + $0x68] sm:$0xff]
        %v685 = vld [vmem:[%s2 + $0x70] sm:$0xff]
        %v686 = vld [vmem:[%s2 + $0x78] sm:$0xff]
        %v687 = vld [vmem:[%s2 + $0x80] sm:$0xff]
        %v688 = vld [vmem:[%s2 + $0x88] sm:$0xff]
        %v689 = vld [vmem:[%s2 + $0x90] sm:$0xff]
        %v690 = vld [vmem:[%s2 + $0x98] sm:$0xff]
        %v691 = vld [vmem:[%s2 + $0xa0] sm:$0xff]
        %v692 = vld [vmem:[%s2 + $0xa8] sm:$0xff]
        %v693 = vld [vmem:[%s2 + $0xb0] sm:$0xff]
        %v694 = vld [vmem:[%s2 + $0xb8] sm:$0xff]
        %v695 = vld [vmem:[%s2 + $0xc0] sm:$0xff]
        %v696 = vld [vmem:[%s2 + $0xc8] sm:$0xff]
        %v697 = vld [vmem:[%s2 + $0xd0] sm:$0xff]
        %v698 = vld [vmem:[%s2 + $0xd8] sm:$0xff]
        %v699 = vld [vmem:[%s2 + $0xe0] sm:$0xff]
        %v700 = vld [vmem:[%s2 + $0xe8] sm:$0xff]
        %v701 = vld [vmem:[%s2 + $0xf0] sm:$0xff]
        %v702 = vld [vmem:[%s2 + $0xf8] sm:$0xff]
        %v703 = vld [vmem:[%s2 + $0x100] sm:$0xff]
        %v704 = vld [vmem:[%s2 + $0x108] sm:$0xff]
        %v705 = vld [vmem:[%s2 + $0x110] sm:$0xff]
        %v706 = vld [vmem:[%s2 + $0x118] sm:$0xff]
        %v707 = vld [vmem:[%s2 + $0x120] sm:$0xff]
        %v708 = vld [vmem:[%s2 + $0x128] sm:$0xff]
        %v709 = vld [vmem:[%s2 + $0x130] sm:$0xff]
        %v710 = vld [vmem:[%s2 + $0x138] sm:$0xff]
        %v711 = vld [vmem:[%s2 + $0x140] sm:$0xff]
        %v712 = vld [vmem:[%s2 + $0x148] sm:$0xff]
        %v713 = vld [vmem:[%s2 + $0x150] sm:$0xff]
        %v714 = vld [vmem:[%s2 + $0x158] sm:$0xff]
        %v715 = vld [vmem:[%s2 + $0x160] sm:$0xff]
        %v716 = vld [vmem:[%s2 + $0x168] sm:$0xff]
        %v717 = vld [vmem:[%s2 + $0x170] sm:$0xff]
        %v718 = vld [vmem:[%s2 + $0x178] sm:$0xff]
        %v719 = vld [vmem:[%s2 + $0x180] sm:$0xff]
        %v720 = vld [vmem:[%s2 + $0x188] sm:$0xff]
        %v721 = vld [vmem:[%s2 + $0x190] sm:$0xff]
        %v722 = vld [vmem:[%s2 + $0x198] sm:$0xff]
        %v723 = vld [vmem:[%s2 + $0x1a0] sm:$0xff]
        %v724 = vld [vmem:[%s2 + $0x1a8] sm:$0xff]
        %v725 = vld [vmem:[%s2 + $0x1b0] sm:$0xff]
        %v726 = vld [vmem:[%s2 + $0x1b8] sm:$0xff]
        %v727 = vld [vmem:[%s2 + $0x1c0] sm:$0xff]
        %v728 = vld [vmem:[%s2 + $0x1c8] sm:$0xff]
        %v729 = vld [vmem:[%s2 + $0x1d0] sm:$0xff]
        %v730 = vld [vmem:[%s2 + $0x1d8] sm:$0xff]
        %v731 = vld [vmem:[%s2 + $0x1e0] sm:$0xff]
        %v732 = vld [vmem:[%s2 + $0x1e8] sm:$0xff]
        %v733 = vld [vmem:[%s2 + $0x1f0] sm:$0xff]
        %v734 = vld [vmem:[%s2 + $0x1f8] sm:$0xff]
        %v735 = vld [vmem:[%s2 + $0x200] sm:$0xff]
        %v736 = vld [vmem:[%s2 + $0x208] sm:$0xff]
        %v737 = vld [vmem:[%s2 + $0x210] sm:$0xff]
        %v738 = vld [vmem:[%s2 + $0x218] sm:$0xff]
        %v739 = vld [vmem:[%s2 + $0x220] sm:$0xff]
        %v740 = vld [vmem:[%s2 + $0x228] sm:$0xff]
        %v741 = vld [vmem:[%s2 + $0x230] sm:$0xff]
        %v742 = vld [vmem:[%s2 + $0x238] sm:$0xff]
        %v743 = vld [vmem:[%s2 + $0x240] sm:$0xff]
        %v744 = vld [vmem:[%s2 + $0x248] sm:$0xff]
        %v745 = vld [vmem:[%s2 + $0x250] sm:$0xff]
        %v746 = vld [vmem:[%s2 + $0x258] sm:$0xff]
        %v747 = vld [vmem:[%s2 + $0x260] sm:$0xff]
        %v748 = vld [vmem:[%s2 + $0x268] sm:$0xff]
        %v749 = vld [vmem:[%s2 + $0x270] sm:$0xff]
        %v750 = vld [vmem:[%s2 + $0x278] sm:$0xff]
        %v751 = vld [vmem:[%s2 + $0x280] sm:$0xff]
        %v752 = vld [vmem:[%s2 + $0x288] sm:$0xff]
        %v753 = vld [vmem:[%s2 + $0x290] sm:$0xff]
        %v754 = vld [vmem:[%s2 + $0x298] sm:$0xff]
        %v755 = vld [vmem:[%s2 + $0x2a0] sm:$0xff]
        %v756 = vld [vmem:[%s2 + $0x2a8] sm:$0xff]
        %v757 = vld [vmem:[%s2 + $0x2b0] sm:$0xff]
        %v758 = vld [vmem:[%s2 + $0x2b8] sm:$0xff]
        %v759 = vld [vmem:[%s2 + $0x2c0] sm:$0xff]
        %v760 = vld [vmem:[%s2 + $0x2c8] sm:$0xff]
        %v761 = vld [vmem:[%s2 + $0x2d0] sm:$0xff]
        %v762 = vld [vmem:[%s2 + $0x2d8] sm:$0xff]
        %v763 = vld [vmem:[%s2 + $0x2e0] sm:$0xff]
        %v764 = vld [vmem:[%s2 + $0x2e8] sm:$0xff]
        %v765 = vld [vmem:[%s2 + $0x2f0] sm:$0xff]
        %v766 = vld [vmem:[%s2 + $0x2f8] sm:$0xff]
        %v767 = vld [vmem:[%s2 + $0x300] sm:$0xff]
        %v768 = vld [vmem:[%s2 + $0x308] sm:$0xff]
        %v769 = vld [vmem:[%s2 + $0x310] sm:$0xff]
        %v770 = vld [vmem:[%s2 + $0x318] sm:$0xff]
        %v771 = vld [vmem:[%s2 + $0x320] sm:$0xff]
        %v772 = vld [vmem:[%s2 + $0x328] sm:$0xff]
        %v773 = vld [vmem:[%s2 + $0x330] sm:$0xff]
        %v774 = vld [vmem:[%s2 + $0x338] sm:$0xff]
        %v775 = vld [vmem:[%s2 + $0x340] sm:$0xff]
        %v776 = vld [vmem:[%s2 + $0x348] sm:$0xff]
        %v777 = vld [vmem:[%s2 + $0x350] sm:$0xff]
        %v778 = vld [vmem:[%s2 + $0x358] sm:$0xff]
        %v779 = vld [vmem:[%s2 + $0x360] sm:$0xff]
        %v780 = vld [vmem:[%s2 + $0x368] sm:$0xff]
        %v781 = vld [vmem:[%s2 + $0x370] sm:$0xff]
        %v782 = vld [vmem:[%s2 + $0x378] sm:$0xff]
        %v783 = vld [vmem:[%s2 + $0x380] sm:$0xff]
        %v784 = vld [vmem:[%s2 + $0x388] sm:$0xff]
        %v785 = vld [vmem:[%s2 + $0x390] sm:$0xff]
        %v786 = vld [vmem:[%s2 + $0x398] sm:$0xff]
        %v787 = vld [vmem:[%s2 + $0x3a0] sm:$0xff]
        %v788 = vld [vmem:[%s2 + $0x3a8] sm:$0xff]
        %v789 = vld [vmem:[%s2 + $0x3b0] sm:$0xff]
        %v790 = vld [vmem:[%s2 + $0x3b8] sm:$0xff]
        %v791 = vld [vmem:[%s2 + $0x3c0] sm:$0xff]
        %v792 = vld [vmem:[%s2 + $0x3c8] sm:$0xff]
        %v793 = vld [vmem:[%s2 + $0x3d0] sm:$0xff]
        %v794 = vld [vmem:[%s2 + $0x3d8] sm:$0xff]
        %v795 = vld [vmem:[%s2 + $0x3e0] sm:$0xff]
        %v796 = vld [vmem:[%s2 + $0x3e8] sm:$0xff]
        %v797 = vld [vmem:[%s2 + $0x3f0] sm:$0xff]
        %v798 = vld [vmem:[%s2 + $0x3f8] sm:$0xff]
        %v799 = vld [vmem:[%s2 + $0x400] sm:$0xff]
        %v800 = vld [vmem:[%s2 + $0x408] sm:$0xff]
        %v801 = vld [vmem:[%s2 + $0x410] sm:$0xff]
        %v802 = vld [vmem:[%s2 + $0x418] sm:$0xff]
        %v803 = vld [vmem:[%s2 + $0x420] sm:$0xff]
        %v804 = vld [vmem:[%s2 + $0x428] sm:$0xff]
        %v805 = vld [vmem:[%s2 + $0x430] sm:$0xff]
        %v806 = vld [vmem:[%s2 + $0x438] sm:$0xff]
        %v807 = vld [vmem:[%s2 + $0x440] sm:$0xff]
        %v808 = vld [vmem:[%s2 + $0x448] sm:$0xff]
        %v809 = vld [vmem:[%s2 + $0x450] sm:$0xff]
        %v810 = vld [vmem:[%s2 + $0x458] sm:$0xff]
        %v811 = vld [vmem:[%s2 + $0x460] sm:$0xff]
        %v812 = vld [vmem:[%s2 + $0x468] sm:$0xff]
        %v813 = vld [vmem:[%s2 + $0x470] sm:$0xff]
        %v814 = vld [vmem:[%s2 + $0x478] sm:$0xff]
        %v815 = vld [vmem:[%s2 + $0x480] sm:$0xff]
        %v816 = vld [vmem:[%s2 + $0x488] sm:$0xff]
        %v817 = vld [vmem:[%s2 + $0x490] sm:$0xff]
        %v818 = vld [vmem:[%s2 + $0x498] sm:$0xff]
        %v819 = vld [vmem:[%s2 + $0x4a0] sm:$0xff]
        %v820 = vld [vmem:[%s2 + $0x4a8] sm:$0xff]
        %v821 = vld [vmem:[%s2 + $0x4b0] sm:$0xff]
        %v822 = vld [vmem:[%s2 + $0x4b8] sm:$0xff]
        %v823 = vld [vmem:[%s2 + $0x4c0] sm:$0xff]
        %v824 = vld [vmem:[%s2 + $0x4c8] sm:$0xff]
        %v825 = vld [vmem:[%s2 + $0x4d0] sm:$0xff]
        %v826 = vld [vmem:[%s2 + $0x4d8] sm:$0xff]
        %v827 = vld [vmem:[%s2 + $0x4e0] sm:$0xff]
        %v828 = vld [vmem:[%s2 + $0x4e8] sm:$0xff]
        %v829 = vld [vmem:[%s2 + $0x4f0] sm:$0xff]
        %v830 = vld [vmem:[%s2 + $0x4f8] sm:$0xff]
        %v831 = vld [vmem:[%s2 + $0x500] sm:$0xff]
        %v832 = vld [vmem:[%s2 + $0x508] sm:$0xff]
        %v833 = vld [vmem:[%s2 + $0x510] sm:$0xff]
        %v834 = vld [vmem:[%s2 + $0x518] sm:$0xff]
        %v835 = vld [vmem:[%s2 + $0x520] sm:$0xff]
        %v836 = vld [vmem:[%s2 + $0x528] sm:$0xff]
        %v837 = vld [vmem:[%s2 + $0x530] sm:$0xff]
        %v838 = vld [vmem:[%s2 + $0x538] sm:$0xff]
        %v839 = vld [vmem:[%s2 + $0x540] sm:$0xff]
        %v840 = vld [vmem:[%s2 + $0x548] sm:$0xff]
        %v841 = vld [vmem:[%s2 + $0x550] sm:$0xff]
        %v842 = vld [vmem:[%s2 + $0x558] sm:$0xff]
        %v843 = vld [vmem:[%s2 + $0x560] sm:$0xff]
        %v844 = vld [vmem:[%s2 + $0x568] sm:$0xff]
        %v845 = vld [vmem:[%s2 + $0x570] sm:$0xff]
        %v846 = vld [vmem:[%s2 + $0x578] sm:$0xff]
        %v847 = vld [vmem:[%s2 + $0x580] sm:$0xff]
        %v848 = vld [vmem:[%s2 + $0x588] sm:$0xff]
        %v849 = vld [vmem:[%s2 + $0x590] sm:$0xff]
        %v850 = vld [vmem:[%s2 + $0x598] sm:$0xff]
        %v851 = vld [vmem:[%s2 + $0x5a0] sm:$0xff]
        %v852 = vld [vmem:[%s2 + $0x5a8] sm:$0xff]
        %v853 = vld [vmem:[%s2 + $0x5b0] sm:$0xff]
        %v854 = vld [vmem:[%s2 + $0x5b8] sm:$0xff]
        %v855 = vld [vmem:[%s2 + $0x5c0] sm:$0xff]
        %v856 = vld [vmem:[%s2 + $0x5c8] sm:$0xff]
        %v857 = vld [vmem:[%s2 + $0x5d0] sm:$0xff]
        %v858 = vld [vmem:[%s2 + $0x5d8] sm:$0xff]
        %v859 = vld [vmem:[%s2 + $0x5e0] sm:$0xff]
        %v860 = vld [vmem:[%s2 + $0x5e8] sm:$0xff]
        %v861 = vld [vmem:[%s2 + $0x5f0] sm:$0xff]
        %v862 = vld [vmem:[%s2 + $0x5f8] sm:$0xff]
        %v863 = vld [vmem:[%s2 + $0x600] sm:$0xff]
        %v864 = vld [vmem:[%s2 + $0x608] sm:$0xff]
        %v865 = vld [vmem:[%s2 + $0x610] sm:$0xff]
        %v866 = vld [vmem:[%s2 + $0x618] sm:$0xff]
        %v867 = vld [vmem:[%s2 + $0x620] sm:$0xff]
        %v868 = vld [vmem:[%s2 + $0x628] sm:$0xff]
        %v869 = vld [vmem:[%s2 + $0x630] sm:$0xff]
        %v870 = vld [vmem:[%s2 + $0x638] sm:$0xff]
        %v871 = vld [vmem:[%s2 + $0x640] sm:$0xff]
        %v872 = vld [vmem:[%s2 + $0x648] sm:$0xff]
        %v873 = vld [vmem:[%s2 + $0x650] sm:$0xff]
        %v874 = vld [vmem:[%s2 + $0x658] sm:$0xff]
        %v875 = vld [vmem:[%s2 + $0x660] sm:$0xff]
        %v876 = vld [vmem:[%s2 + $0x668] sm:$0xff]
        %v877 = vld [vmem:[%s2 + $0x670] sm:$0xff]
        %v878 = vld [vmem:[%s2 + $0x678] sm:$0xff]
        %v879 = vld [vmem:[%s2 + $0x680] sm:$0xff]
        %v880 = vld [vmem:[%s2 + $0x688] sm:$0xff]
        %v881 = vld [vmem:[%s2 + $0x690] sm:$0xff]
        %v882 = vld [vmem:[%s2 + $0x698] sm:$0xff]
        %v883 = vld [vmem:[%s2 + $0x6a0] sm:$0xff]
        %v884 = vld [vmem:[%s2 + $0x6a8] sm:$0xff]
        %v885 = vld [vmem:[%s2 + $0x6b0] sm:$0xff]
        %v886 = vld [vmem:[%s2 + $0x6b8] sm:$0xff]
        %v887 = vld [vmem:[%s2 + $0x6c0] sm:$0xff]
        %v888 = vld [vmem:[%s2 + $0x6c8] sm:$0xff]
        %v889 = vld [vmem:[%s2 + $0x6d0] sm:$0xff]
        %v890 = vld [vmem:[%s2 + $0x6d8] sm:$0xff]
        %v891 = vld [vmem:[%s2 + $0x6e0] sm:$0xff]
        %v892 = vld [vmem:[%s2 + $0x6e8] sm:$0xff]
        %v893 = vld [vmem:[%s2 + $0x6f0] sm:$0xff]
        %v894 = vld [vmem:[%s2 + $0x6f8] sm:$0xff]
        %v895 = vld [vmem:[%s2 + $0x700] sm:$0xff]
        %v896 = vld [vmem:[%s2 + $0x708] sm:$0xff]
        %v897 = vld [vmem:[%s2 + $0x710] sm:$0xff]
        %v898 = vld [vmem:[%s2 + $0x718] sm:$0xff]
        %v899 = vld [vmem:[%s2 + $0x720] sm:$0xff]
        %v900 = vld [vmem:[%s2 + $0x728] sm:$0xff]
        %v901 = vld [vmem:[%s2 + $0x730] sm:$0xff]
        %v902 = vld [vmem:[%s2 + $0x738] sm:$0xff]
        %v903 = vld [vmem:[%s2 + $0x740] sm:$0xff]
        %v904 = vld [vmem:[%s2 + $0x748] sm:$0xff]
        %v905 = vld [vmem:[%s2 + $0x750] sm:$0xff]
        %v906 = vld [vmem:[%s2 + $0x758] sm:$0xff]
        %v907 = vld [vmem:[%s2 + $0x760] sm:$0xff]
        %v908 = vld [vmem:[%s2 + $0x768] sm:$0xff]
        %v909 = vld [vmem:[%s2 + $0x770] sm:$0xff]
        %v910 = vld [vmem:[%s2 + $0x778] sm:$0xff]
        %v911 = vld [vmem:[%s2 + $0x780] sm:$0xff]
        %v912 = vld [vmem:[%s2 + $0x788] sm:$0xff]
        %v913 = vld [vmem:[%s2 + $0x790] sm:$0xff]
        %v914 = vld [vmem:[%s2 + $0x798] sm:$0xff]
        %v915 = vld [vmem:[%s2 + $0x7a0] sm:$0xff]
        %v916 = vld [vmem:[%s2 + $0x7a8] sm:$0xff]
        %v917 = vld [vmem:[%s2 + $0x7b0] sm:$0xff]
        %v918 = vld [vmem:[%s2 + $0x7b8] sm:$0xff]
        %v919 = vld [vmem:[%s2 + $0x7c0] sm:$0xff]
        %v920 = vld [vmem:[%s2 + $0x7c8] sm:$0xff]
        %v921 = vld [vmem:[%s2 + $0x7d0] sm:$0xff]
        %v922 = vld [vmem:[%s2 + $0x7d8] sm:$0xff]
        %v923 = vld [vmem:[%s2 + $0x7e0] sm:$0xff]
        %v924 = vld [vmem:[%s2 + $0x7e8] sm:$0xff]
        %v925 = vld [vmem:[%s2 + $0x7f0] sm:$0xff]
        %v926 = vld [vmem:[%s2 + $0x7f8] sm:$0xff]
        %v927 = vld [vmem:[%s2 + $0x800] sm:$0xff]
        %v928 = vld [vmem:[%s2 + $0x808] sm:$0xff]
        %v929 = vld [vmem:[%s2 + $0x810] sm:$0xff]
        %v930 = vld [vmem:[%s2 + $0x818] sm:$0xff]
        %v931 = vld [vmem:[%s2 + $0x820] sm:$0xff]
        %v932 = vld [vmem:[%s2 + $0x828] sm:$0xff]
        %v933 = vld [vmem:[%s2 + $0x830] sm:$0xff]
        %v934 = vld [vmem:[%s2 + $0x838] sm:$0xff]
        %v935 = vld [vmem:[%s2 + $0x840] sm:$0xff]
        %v936 = vld [vmem:[%s2 + $0x848] sm:$0xff]
        %v937 = vld [vmem:[%s2 + $0x850] sm:$0xff]
        %v938 = vld [vmem:[%s2 + $0x858] sm:$0xff]
        %v939 = vld [vmem:[%s2 + $0x860] sm:$0xff]
        %v940 = vld [vmem:[%s2 + $0x868] sm:$0xff]
        %v941 = vld [vmem:[%s2 + $0x870] sm:$0xff]
        %v942 = vld [vmem:[%s2 + $0x878] sm:$0xff]
        %v943 = vld [vmem:[%s2 + $0x880] sm:$0xff]
        %v944 = vld [vmem:[%s2 + $0x888] sm:$0xff]
        %v945 = vld [vmem:[%s2 + $0x890] sm:$0xff]
        %v946 = vld [vmem:[%s2 + $0x898] sm:$0xff]
        %v947 = vld [vmem:[%s2 + $0x8a0] sm:$0xff]
        %v948 = vld [vmem:[%s2 + $0x8a8] sm:$0xff]
        %v949 = vld [vmem:[%s2 + $0x8b0] sm:$0xff]
        %v950 = vld [vmem:[%s2 + $0x8b8] sm:$0xff]
        %v951 = vld [vmem:[%s2 + $0x8c0] sm:$0xff]
        %v952 = vld [vmem:[%s2 + $0x8c8] sm:$0xff]
        %v953 = vld [vmem:[%s2 + $0x8d0] sm:$0xff]
        %v954 = vld [vmem:[%s2 + $0x8d8] sm:$0xff]
        %v955 = vld [vmem:[%s2 + $0x8e0] sm:$0xff]
        %v956 = vld [vmem:[%s2 + $0x8e8] sm:$0xff]
        %v957 = vld [vmem:[%s2 + $0x8f0] sm:$0xff]
        %v958 = vld [vmem:[%s2 + $0x8f8] sm:$0xff]
        %v959 = vld [vmem:[%s2 + $0x900] sm:$0xff]
        %v960 = vld [vmem:[%s2 + $0x908] sm:$0xff]
        %v961 = vld [vmem:[%s2 + $0x910] sm:$0xff]
        %v962 = vld [vmem:[%s2 + $0x918] sm:$0xff]
        %v963 = vld [vmem:[%s2 + $0x920] sm:$0xff]
        %v964 = vld [vmem:[%s2 + $0x928] sm:$0xff]
        %v965 = vld [vmem:[%s2 + $0x930] sm:$0xff]
        %v966 = vld [vmem:[%s2 + $0x938] sm:$0xff]
        %v967 = vld [vmem:[%s2 + $0x940] sm:$0xff]
        %v968 = vld [vmem:[%s2 + $0x948] sm:$0xff]
        %v969 = vld [vmem:[%s2 + $0x950] sm:$0xff]
        %v970 = vld [vmem:[%s2 + $0x958] sm:$0xff]
        %v971 = vld [vmem:[%s2 + $0x960] sm:$0xff]
        %v972 = vld [vmem:[%s2 + $0x968] sm:$0xff]
        %v973 = vld [vmem:[%s2 + $0x970] sm:$0xff]
        %v974 = vld [vmem:[%s2 + $0x978] sm:$0xff]
        %v975 = vld [vmem:[%s2 + $0x980] sm:$0xff]
        %v976 = vld [vmem:[%s2 + $0x988] sm:$0xff]
        %v977 = vld [vmem:[%s2 + $0x990] sm:$0xff]
        %v978 = vld [vmem:[%s2 + $0x998] sm:$0xff]
        %v979 = vld [vmem:[%s2 + $0x9a0] sm:$0xff]
        %v980 = vld [vmem:[%s2 + $0x9a8] sm:$0xff]
        %v981 = vld [vmem:[%s2 + $0x9b0] sm:$0xff]
        %v982 = vld [vmem:[%s2 + $0x9b8] sm:$0xff]
        %v983 = vld [vmem:[%s2 + $0x9c0] sm:$0xff]
        %v984 = vld [vmem:[%s2 + $0x9c8] sm:$0xff]
        %v985 = vld [vmem:[%s2 + $0x9d0] sm:$0xff]
        %v986 = vld [vmem:[%s2 + $0x9d8] sm:$0xff]
        %v987 = vld [vmem:[%s2 + $0x9e0] sm:$0xff]
        %v988 = vld [vmem:[%s2 + $0x9e8] sm:$0xff]
        %v989 = vld [vmem:[%s2 + $0x9f0] sm:$0xff]
        %v990 = vld [vmem:[%s2 + $0x9f8] sm:$0xff]
        %v991 = vld [vmem:[%s2 + $0xa00] sm:$0xff]
        %v992 = vld [vmem:[%s2 + $0xa08] sm:$0xff]
        %v993 = vld [vmem:[%s2 + $0xa10] sm:$0xff]
        %v994 = vld [vmem:[%s2 + $0xa18] sm:$0xff]
        %v995 = vld [vmem:[%s2 + $0xa20] sm:$0xff]
        %v996 = vld [vmem:[%s2 + $0xa28] sm:$0xff]
        %v997 = vld [vmem:[%s2 + $0xa30] sm:$0xff]
        %v998 = vld [vmem:[%s2 + $0xa38] sm:$0xff]
        %v999 = vld [vmem:[%s2 + $0xa40] sm:$0xff]
        %v1000 = vld [vmem:[%s2 + $0xa48] sm:$0xff]
        %v1001 = vld [vmem:[%s2 + $0xa50] sm:$0xff]
        %v1002 = vld [vmem:[%s2 + $0xa58] sm:$0xff]
        %v1003 = vld [vmem:[%s2 + $0xa60] sm:$0xff]
        %v1004 = vld [vmem:[%s2 + $0xa68] sm:$0xff]
        %v1005 = vld [vmem:[%s2 + $0xa70] sm:$0xff]
        %v1006 = vld [vmem:[%s2 + $0xa78] sm:$0xff]
        %v1007 = vld [vmem:[%s2 + $0xa80] sm:$0xff]
        %v1008 = vld [vmem:[%s2 + $0xa88] sm:$0xff]
        %v1009 = vld [vmem:[%s2 + $0xa90] sm:$0xff]
        %v1010 = vld [vmem:[%s2 + $0xa98] sm:$0xff]
        %v1011 = vld [vmem:[%s2 + $0xaa0] sm:$0xff]
        %v1012 = vld [vmem:[%s2 + $0xaa8] sm:$0xff]
        %v1013 = vld [vmem:[%s2 + $0xab0] sm:$0xff]
        %v1014 = vld [vmem:[%s2 + $0xab8] sm:$0xff]
        %v1015 = vld [vmem:[%s2 + $0xac0] sm:$0xff]
        %v1016 = vld [vmem:[%s2 + $0xac8] sm:$0xff]
        %v1017 = vld [vmem:[%s2 + $0xad0] sm:$0xff]
        %v1018 = vld [vmem:[%s2 + $0xad8] sm:$0xff]
        %v1019 = vld [vmem:[%s2 + $0xae0] sm:$0xff]
        %v1020 = vld [vmem:[%s2 + $0xae8] sm:$0xff]
        %v1021 = vld [vmem:[%s2 + $0xaf0] sm:$0xff]
        %v1022 = vld [vmem:[%s2 + $0xaf8] sm:$0xff]
        %v1023 = vld [vmem:[%s2 + $0xb00] sm:$0xff]
        %v1024 = vld [vmem:[%s2 + $0xb08] sm:$0xff]
        %v1025 = vld [vmem:[%s2 + $0xb10] sm:$0xff]
        %v1026 = vld [vmem:[%s2 + $0xb18] sm:$0xff]
        %v1027 = vld [vmem:[%s2 + $0xb20] sm:$0xff]
        %v1028 = vld [vmem:[%s2 + $0xb28] sm:$0xff]
        %v1029 = vld [vmem:[%s2 + $0xb30] sm:$0xff]
        %v1030 = vld [vmem:[%s2 + $0xb38] sm:$0xff]
        %v1031 = vld [vmem:[%s2 + $0xb40] sm:$0xff]
        %v1032 = vld [vmem:[%s2 + $0xb48] sm:$0xff]
        %v1033 = vld [vmem:[%s2 + $0xb50] sm:$0xff]
        %v1034 = vld [vmem:[%s2 + $0xb58] sm:$0xff]
        %v1035 = vld [vmem:[%s2 + $0xb60] sm:$0xff]
        %v1036 = vld [vmem:[%s2 + $0xb68] sm:$0xff]
        %v1037 = vld [vmem:[%s2 + $0xb70] sm:$0xff]
        %v1038 = vld [vmem:[%s2 + $0xb78] sm:$0xff]
        %v1039 = vld [vmem:[%s2 + $0xb80] sm:$0xff]
        %v1040 = vld [vmem:[%s2 + $0xb88] sm:$0xff]
        %v1041 = vld [vmem:[%s2 + $0xb90] sm:$0xff]
        %v1042 = vld [vmem:[%s2 + $0xb98] sm:$0xff]
        %v1043 = vld [vmem:[%s2 + $0xba0] sm:$0xff]
        %v1044 = vld [vmem:[%s2 + $0xba8] sm:$0xff]
        %v1045 = vld [vmem:[%s2 + $0xbb0] sm:$0xff]
        %v1046 = vld [vmem:[%s2 + $0xbb8] sm:$0xff]
        %v1047 = vld [vmem:[%s2 + $0xbc0] sm:$0xff]
        %v1048 = vld [vmem:[%s2 + $0xbc8] sm:$0xff]
        %v1049 = vld [vmem:[%s2 + $0xbd0] sm:$0xff]
        %v1050 = vld [vmem:[%s2 + $0xbd8] sm:$0xff]
        %v1051 = vld [vmem:[%s2 + $0xbe0] sm:$0xff]
        %v1052 = vld [vmem:[%s2 + $0xbe8] sm:$0xff]
        %v1053 = vld [vmem:[%s2 + $0xbf0] sm:$0xff]
        %v1054 = vld [vmem:[%s2 + $0xbf8] sm:$0xff]
        %v1055 = vld [vmem:[%s2 + $0xc00] sm:$0xff]
        %v1056 = vld [vmem:[%s2 + $0xc08] sm:$0xff]
        %v1057 = vld [vmem:[%s2 + $0xc10] sm:$0xff]
        %v1058 = vld [vmem:[%s2 + $0xc18] sm:$0xff]
        %v1059 = vld [vmem:[%s2 + $0xc20] sm:$0xff]
        %v1060 = vld [vmem:[%s2 + $0xc28] sm:$0xff]
        %v1061 = vld [vmem:[%s2 + $0xc30] sm:$0xff]
        %v1062 = vld [vmem:[%s2 + $0xc38] sm:$0xff]
        %v1063 = vld [vmem:[%s2 + $0xc40] sm:$0xff]
        %v1064 = vld [vmem:[%s2 + $0xc48] sm:$0xff]
        %v1065 = vld [vmem:[%s2 + $0xc50] sm:$0xff]
        %v1066 = vld [vmem:[%s2 + $0xc58] sm:$0xff]
        %v1067 = vld [vmem:[%s2 + $0xc60] sm:$0xff]
        %v1068 = vld [vmem:[%s2 + $0xc68] sm:$0xff]
        %v1069 = vld [vmem:[%s2 + $0xc70] sm:$0xff]
        %v1070 = vld [vmem:[%s2 + $0xc78] sm:$0xff]
        %v1071 = vld [vmem:[%s2 + $0xc80] sm:$0xff]
        %v1072 = vld [vmem:[%s2 + $0xc88] sm:$0xff]
        %v1073 = vld [vmem:[%s2 + $0xc90] sm:$0xff]
        %v1074 = vld [vmem:[%s2 + $0xc98] sm:$0xff]
        %v1075 = vld [vmem:[%s2 + $0xca0] sm:$0xff]
        %v1076 = vld [vmem:[%s2 + $0xca8] sm:$0xff]
        %v1077 = vld [vmem:[%s2 + $0xcb0] sm:$0xff]
        %v1078 = vld [vmem:[%s2 + $0xcb8] sm:$0xff]
        %v1079 = vld [vmem:[%s2 + $0xcc0] sm:$0xff]
        %v1080 = vld [vmem:[%s2 + $0xcc8] sm:$0xff]
        %v1081 = vld [vmem:[%s2 + $0xcd0] sm:$0xff]
        %v1082 = vld [vmem:[%s2 + $0xcd8] sm:$0xff]
        %v1083 = vld [vmem:[%s2 + $0xce0] sm:$0xff]
        %v1084 = vld [vmem:[%s2 + $0xce8] sm:$0xff]
        %v1085 = vld [vmem:[%s2 + $0xcf0] sm:$0xff]
        %v1086 = vld [vmem:[%s2 + $0xcf8] sm:$0xff]
        %v1087 = vld [vmem:[%s2 + $0xd00] sm:$0xff]
        %v1088 = vld [vmem:[%s2 + $0xd08] sm:$0xff]
        %v1089 = vld [vmem:[%s2 + $0xd10] sm:$0xff]
        %v1090 = vld [vmem:[%s2 + $0xd18] sm:$0xff]
        %v1091 = vld [vmem:[%s2 + $0xd20] sm:$0xff]
        %v1092 = vld [vmem:[%s2 + $0xd28] sm:$0xff]
        %v1093 = vld [vmem:[%s2 + $0xd30] sm:$0xff]
        %v1094 = vld [vmem:[%s2 + $0xd38] sm:$0xff]
        %v1095 = vld [vmem:[%s2 + $0xd40] sm:$0xff]
        %v1096 = vld [vmem:[%s2 + $0xd48] sm:$0xff]
        %v1097 = vld [vmem:[%s2 + $0xd50] sm:$0xff]
        %v1098 = vld [vmem:[%s2 + $0xd58] sm:$0xff]
        %v1099 = vld [vmem:[%s2 + $0xd60] sm:$0xff]
        %v1100 = vld [vmem:[%s2 + $0xd68] sm:$0xff]
        %v1101 = vld [vmem:[%s2 + $0xd70] sm:$0xff]
        %v1102 = vld [vmem:[%s2 + $0xd78] sm:$0xff]
        %v1103 = vld [vmem:[%s2 + $0xd80] sm:$0xff]
        %v1104 = vld [vmem:[%s2 + $0xd88] sm:$0xff]
        %v1105 = vld [vmem:[%s2 + $0xd90] sm:$0xff]
        %v1106 = vld [vmem:[%s2 + $0xd98] sm:$0xff]
        %v1107 = vld [vmem:[%s2 + $0xda0] sm:$0xff]
        %v1108 = vld [vmem:[%s2 + $0xda8] sm:$0xff]
        %v1109 = vld [vmem:[%s2 + $0xdb0] sm:$0xff]
        %v1110 = vld [vmem:[%s2 + $0xdb8] sm:$0xff]
        %v1111 = vld [vmem:[%s2 + $0xdc0] sm:$0xff]
        %v1112 = vld [vmem:[%s2 + $0xdc8] sm:$0xff]
        %v1113 = vld [vmem:[%s2 + $0xdd0] sm:$0xff]
        %v1114 = vld [vmem:[%s2 + $0xdd8] sm:$0xff]
        %v1115 = vld [vmem:[%s2 + $0xde0] sm:$0xff]
        %v1116 = vld [vmem:[%s2 + $0xde8] sm:$0xff]
        %v1117 = vld [vmem:[%s2 + $0xdf0] sm:$0xff]
        %v1118 = vld [vmem:[%s2 + $0xdf8] sm:$0xff]
        %v1119 = vld [vmem:[%s2 + $0xe00] sm:$0xff]
        %v1120 = vld [vmem:[%s2 + $0xe08] sm:$0xff]
        %v1121 = vld [vmem:[%s2 + $0xe10] sm:$0xff]
        %v1122 = vld [vmem:[%s2 + $0xe18] sm:$0xff]
        %v1123 = vld [vmem:[%s2 + $0xe20] sm:$0xff]
        %v1124 = vld [vmem:[%s2 + $0xe28] sm:$0xff]
        %v1125 = vld [vmem:[%s2 + $0xe30] sm:$0xff]
        %v1126 = vld [vmem:[%s2 + $0xe38] sm:$0xff]
        %v1127 = vld [vmem:[%s2 + $0xe40] sm:$0xff]
        %v1128 = vld [vmem:[%s2 + $0xe48] sm:$0xff]
        %v1129 = vld [vmem:[%s2 + $0xe50] sm:$0xff]
        %v1130 = vld [vmem:[%s2 + $0xe58] sm:$0xff]
        %v1131 = vld [vmem:[%s2 + $0xe60] sm:$0xff]
        %v1132 = vld [vmem:[%s2 + $0xe68] sm:$0xff]
        %v1133 = vld [vmem:[%s2 + $0xe70] sm:$0xff]
        %v1134 = vld [vmem:[%s2 + $0xe78] sm:$0xff]
        %v1135 = vld [vmem:[%s2 + $0xe80] sm:$0xff]
        %v1136 = vld [vmem:[%s2 + $0xe88] sm:$0xff]
        %v1137 = vld [vmem:[%s2 + $0xe90] sm:$0xff]
        %v1138 = vld [vmem:[%s2 + $0xe98] sm:$0xff]
        %v1139 = vld [vmem:[%s2 + $0xea0] sm:$0xff]
        %v1140 = vld [vmem:[%s2 + $0xea8] sm:$0xff]
        %v1141 = vld [vmem:[%s2 + $0xeb0] sm:$0xff]
        %v1142 = vld [vmem:[%s2 + $0xeb8] sm:$0xff]
        %v1143 = vld [vmem:[%s2 + $0xec0] sm:$0xff]
        %v1144 = vld [vmem:[%s2 + $0xec8] sm:$0xff]
        %v1145 = vld [vmem:[%s2 + $0xed0] sm:$0xff]
        %v1146 = vld [vmem:[%s2 + $0xed8] sm:$0xff]
        %v1147 = vld [vmem:[%s2 + $0xee0] sm:$0xff]
        %v1148 = vld [vmem:[%s2 + $0xee8] sm:$0xff]
        %v1149 = vld [vmem:[%s2 + $0xef0] sm:$0xff]
        %v1150 = vld [vmem:[%s2 + $0xef8] sm:$0xff]
        %v1151 = vld [vmem:[%s2 + $0xf00] sm:$0xff]
        %v1152 = vld [vmem:[%s2 + $0xf08] sm:$0xff]
        %v1153 = vld [vmem:[%s2 + $0xf10] sm:$0xff]
        %v1154 = vld [vmem:[%s2 + $0xf18] sm:$0xff]
        %v1155 = vld [vmem:[%s2 + $0xf20] sm:$0xff]
        %v1156 = vld [vmem:[%s2 + $0xf28] sm:$0xff]
        %v1157 = vld [vmem:[%s2 + $0xf30] sm:$0xff]
        %v1158 = vld [vmem:[%s2 + $0xf38] sm:$0xff]
        %v1159 = vld [vmem:[%s2 + $0xf40] sm:$0xff]
        %v1160 = vld [vmem:[%s2 + $0xf48] sm:$0xff]
        %v1161 = vld [vmem:[%s2 + $0xf50] sm:$0xff]
        %v1162 = vld [vmem:[%s2 + $0xf58] sm:$0xff]
        %v1163 = vld [vmem:[%s2 + $0xf60] sm:$0xff]
        %v1164 = vld [vmem:[%s2 + $0xf68] sm:$0xff]
        %v1165 = vld [vmem:[%s2 + $0xf70] sm:$0xff]
        %v1166 = vld [vmem:[%s2 + $0xf78] sm:$0xff]
        %v1167 = vld [vmem:[%s2 + $0xf80] sm:$0xff]
        %v1168 = vld [vmem:[%s2 + $0xf88] sm:$0xff]
        %v1169 = vld [vmem:[%s2 + $0xf90] sm:$0xff]
        %v1170 = vld [vmem:[%s2 + $0xf98] sm:$0xff]
        %v1171 = vld [vmem:[%s2 + $0xfa0] sm:$0xff]
        %v1172 = vld [vmem:[%s2 + $0xfa8] sm:$0xff]
        %v1173 = vld [vmem:[%s2 + $0xfb0] sm:$0xff]
        %v1174 = vld [vmem:[%s2 + $0xfb8] sm:$0xff]
        %v1175 = vld [vmem:[%s2 + $0xfc0] sm:$0xff]
        %v1176 = vld [vmem:[%s2 + $0xfc8] sm:$0xff]
        %v1177 = vld [vmem:[%s2 + $0xfd0] sm:$0xff]
        %v1178 = vld [vmem:[%s2 + $0xfd8] sm:$0xff]
        %v1179 = vld [vmem:[%s2 + $0xfe0] sm:$0xff]
        %v1180 = vld [vmem:[%s2 + $0xfe8] sm:$0xff]
        %v1181 = vld [vmem:[%s2 + $0xff0] sm:$0xff]
        %v1182 = vld [vmem:[%s2 + $0xff8] sm:$0xff]
        %v1183 = vld [vmem:[#allocation3] sm:$0x1]
        %v1188 = vlaneseq
        %v1189 = vshrl.u32 %v1188, 7
        %v1190 = vsub.s32 0, %v1189
        %v1191 = vrot.slane %v667, %v1190
        %v1192 = vlaneseq
        %v1193 = vshrl.u32 %v1192, 7
        %v1194 = vsub.s32 1, %v1193
        %v1195 = vrot.slane %v667, %v1194
        %v1196 = vlaneseq
        %v1197 = vshrl.u32 %v1196, 7
        %v1198 = vsub.s32 2, %v1197
        %v1199 = vrot.slane %v667, %v1198
        %v1200 = vlaneseq
        %v1201 = vshrl.u32 %v1200, 7
        %v1202 = vsub.s32 3, %v1201
        %v1203 = vrot.slane %v667, %v1202
        %v1204 = vlaneseq
        %v1205 = vshrl.u32 %v1204, 7
        %v1206 = vsub.s32 4, %v1205
        %v1207 = vrot.slane %v667, %v1206
        %v1208 = vlaneseq
        %v1209 = vshrl.u32 %v1208, 7
        %v1210 = vsub.s32 5, %v1209
        %v1211 = vrot.slane %v667, %v1210
        %v1212 = vlaneseq
        %v1213 = vshrl.u32 %v1212, 7
        %v1214 = vsub.s32 6, %v1213
        %v1215 = vrot.slane %v667, %v1214
        %v1216 = vlaneseq
        %v1217 = vshrl.u32 %v1216, 7
        %v1218 = vsub.s32 7, %v1217
        %v1219 = vrot.slane %v667, %v1218
        %v1220 = vlaneseq
        %v1221 = vshrl.u32 %v1220, 7
        %v1222 = vsub.s32 0, %v1221
        %v1223 = vrot.slane %v668, %v1222
        %v1224 = vlaneseq
        %v1225 = vshrl.u32 %v1224, 7
        %v1226 = vsub.s32 1, %v1225
        %v1227 = vrot.slane %v668, %v1226
        %v1228 = vlaneseq
        %v1229 = vshrl.u32 %v1228, 7
        %v1230 = vsub.s32 2, %v1229
        %v1231 = vrot.slane %v668, %v1230
        %v1232 = vlaneseq
        %v1233 = vshrl.u32 %v1232, 7
        %v1234 = vsub.s32 3, %v1233
        %v1235 = vrot.slane %v668, %v1234
        %v1236 = vlaneseq
        %v1237 = vshrl.u32 %v1236, 7
        %v1238 = vsub.s32 4, %v1237
        %v1239 = vrot.slane %v668, %v1238
        %v1240 = vlaneseq
        %v1241 = vshrl.u32 %v1240, 7
        %v1242 = vsub.s32 5, %v1241
        %v1243 = vrot.slane %v668, %v1242
        %v1244 = vlaneseq
        %v1245 = vshrl.u32 %v1244, 7
        %v1246 = vsub.s32 6, %v1245
        %v1247 = vrot.slane %v668, %v1246
        %v1248 = vlaneseq
        %v1249 = vshrl.u32 %v1248, 7
        %v1250 = vsub.s32 7, %v1249
        %v1251 = vrot.slane %v668, %v1250
        %v1252 = vlaneseq
        %v1253 = vshrl.u32 %v1252, 7
        %v1254 = vsub.s32 0, %v1253
        %v1255 = vrot.slane %v669, %v1254
        %v1256 = vlaneseq
        %v1257 = vshrl.u32 %v1256, 7
        %v1258 = vsub.s32 1, %v1257
        %v1259 = vrot.slane %v669, %v1258
        %v1260 = vlaneseq
        %v1261 = vshrl.u32 %v1260, 7
        %v1262 = vsub.s32 2, %v1261
        %v1263 = vrot.slane %v669, %v1262
        %v1264 = vlaneseq
        %v1265 = vshrl.u32 %v1264, 7
        %v1266 = vsub.s32 3, %v1265
        %v1267 = vrot.slane %v669, %v1266
        %v1268 = vlaneseq
        %v1269 = vshrl.u32 %v1268, 7
        %v1270 = vsub.s32 4, %v1269
        %v1271 = vrot.slane %v669, %v1270
        %v1272 = vlaneseq
        %v1273 = vshrl.u32 %v1272, 7
        %v1274 = vsub.s32 5, %v1273
        %v1275 = vrot.slane %v669, %v1274
        %v1276 = vlaneseq
        %v1277 = vshrl.u32 %v1276, 7
        %v1278 = vsub.s32 6, %v1277
        %v1279 = vrot.slane %v669, %v1278
        %v1280 = vlaneseq
        %v1281 = vshrl.u32 %v1280, 7
        %v1282 = vsub.s32 7, %v1281
        %v1283 = vrot.slane %v669, %v1282
        %v1284 = vlaneseq
        %v1285 = vshrl.u32 %v1284, 7
        %v1286 = vsub.s32 0, %v1285
        %v1287 = vrot.slane %v670, %v1286
        %v1288 = vlaneseq
        %v1289 = vshrl.u32 %v1288, 7
        %v1290 = vsub.s32 1, %v1289
        %v1291 = vrot.slane %v670, %v1290
        %v1292 = vlaneseq
        %v1293 = vshrl.u32 %v1292, 7
        %v1294 = vsub.s32 2, %v1293
        %v1295 = vrot.slane %v670, %v1294
        %v1296 = vlaneseq
        %v1297 = vshrl.u32 %v1296, 7
        %v1298 = vsub.s32 3, %v1297
        %v1299 = vrot.slane %v670, %v1298
        %v1300 = vlaneseq
        %v1301 = vshrl.u32 %v1300, 7
        %v1302 = vsub.s32 4, %v1301
        %v1303 = vrot.slane %v670, %v1302
        %v1304 = vlaneseq
        %v1305 = vshrl.u32 %v1304, 7
        %v1306 = vsub.s32 5, %v1305
        %v1307 = vrot.slane %v670, %v1306
        %v1308 = vlaneseq
        %v1309 = vshrl.u32 %v1308, 7
        %v1310 = vsub.s32 6, %v1309
        %v1311 = vrot.slane %v670, %v1310
        %v1312 = vlaneseq
        %v1313 = vshrl.u32 %v1312, 7
        %v1314 = vsub.s32 7, %v1313
        %v1315 = vrot.slane %v670, %v1314
        %1348 = vmatprep.subr.mxu0 0.0
        %1349 = vmatpush1.msra.mxu0 %v671
        %1350 = vmatprep.subr.mxu0 0.0
        %1351 = vmatpush1.msra.mxu0 %v672
        %1352 = vmatprep.subr.mxu0 0.0
        %1353 = vmatpush1.msra.mxu0 %v673
        %1354 = vmatprep.subr.mxu0 0.0
        %1355 = vmatpush1.msra.mxu0 %v674
        %1356 = vmatprep.subr.mxu0 0.0
        %1357 = vmatpush1.msra.mxu0 %v675
        %1358 = vmatprep.subr.mxu0 0.0
        %1359 = vmatpush1.msra.mxu0 %v676
        %1360 = vmatprep.subr.mxu0 0.0
        %1361 = vmatpush1.msra.mxu0 %v677
        %1362 = vmatprep.subr.mxu0 0.0
        %1363 = vmatpush1.msra.mxu0 %v678
        %1364 = vmatprep.subr.mxu0 0.0
        %1365 = vmatpush1.msra.mxu0 %v679
        %1366 = vmatprep.subr.mxu0 0.0
        %1367 = vmatpush1.msra.mxu0 %v680
        %1368 = vmatprep.subr.mxu0 0.0
        %1369 = vmatpush1.msra.mxu0 %v681
        %1370 = vmatprep.subr.mxu0 0.0
        %1371 = vmatpush1.msra.mxu0 %v682
        %1372 = vmatprep.subr.mxu0 0.0
        %1373 = vmatpush1.msra.mxu0 %v683
        %1374 = vmatprep.subr.mxu0 0.0
        %1375 = vmatpush1.msra.mxu0 %v684
        %1376 = vmatprep.subr.mxu0 0.0
        %1377 = vmatpush1.msra.mxu0 %v685
        %1378 = vmatprep.subr.mxu0 0.0
        %1379 = vmatpush1.msra.mxu0 %v686
        %1380 = vmatprep.subr.mxu0 0.0
        %1381 = vmatpush1.msra.mxu0 %v687
        %1382 = vmatprep.subr.mxu0 0.0
        %1383 = vmatpush1.msra.mxu0 %v688
        %1384 = vmatprep.subr.mxu0 0.0
        %1385 = vmatpush1.msra.mxu0 %v689
        %1386 = vmatprep.subr.mxu0 0.0
        %1387 = vmatpush1.msra.mxu0 %v690
        %1388 = vmatprep.subr.mxu0 0.0
        %1389 = vmatpush1.msra.mxu0 %v691
        %1390 = vmatprep.subr.mxu0 0.0
        %1391 = vmatpush1.msra.mxu0 %v692
        %1392 = vmatprep.subr.mxu0 0.0
        %1393 = vmatpush1.msra.mxu0 %v693
        %1394 = vmatprep.subr.mxu0 0.0
        %1395 = vmatpush1.msra.mxu0 %v694
        %1396 = vmatprep.subr.mxu0 0.0
        %1397 = vmatpush1.msra.mxu0 %v695
        %1398 = vmatprep.subr.mxu0 0.0
        %1399 = vmatpush1.msra.mxu0 %v696
        %1400 = vmatprep.subr.mxu0 0.0
        %1401 = vmatpush1.msra.mxu0 %v697
        %1402 = vmatprep.subr.mxu0 0.0
        %1403 = vmatpush1.msra.mxu0 %v698
        %1404 = vmatprep.subr.mxu0 0.0
        %1405 = vmatpush1.msra.mxu0 %v699
        %1406 = vmatprep.subr.mxu0 0.0
        %1407 = vmatpush1.msra.mxu0 %v700
        %1408 = vmatprep.subr.mxu0 0.0
        %1409 = vmatpush1.msra.mxu0 %v701
        %1410 = vmatprep.subr.mxu0 0.0
        %1411 = vmatpush1.msra.mxu0 %v702
        %1412 = vmatprep.mubr.f32.mxu0 %v1195
        %1413 = vmatmul.mubr.f32.gmra.mrb[0].mxu0 %v1191
        %v1414 = vpop.f32.mrb[0].mxu0
        %v1415 = vadd.f32 %v1183, %v1414
        %v1416 = vpop.f32.mrb[0].mxu0
        %1417 = vdwg.mxu0
        %1418 = vmatprep.subr.mxu0 0.0
        %1419 = vmatpush1.msra.mxu0 %v703
        %1420 = vmatprep.subr.mxu0 0.0
        %1421 = vmatpush1.msra.mxu0 %v704
        %1422 = vmatprep.subr.mxu0 0.0
        %1423 = vmatpush1.msra.mxu0 %v705
        %1424 = vmatprep.subr.mxu0 0.0
        %1425 = vmatpush1.msra.mxu0 %v706
        %1426 = vmatprep.subr.mxu0 0.0
        %1427 = vmatpush1.msra.mxu0 %v707
        %1428 = vmatprep.subr.mxu0 0.0
        %1429 = vmatpush1.msra.mxu0 %v708
        %1430 = vmatprep.subr.mxu0 0.0
        %1431 = vmatpush1.msra.mxu0 %v709
        %1432 = vmatprep.subr.mxu0 0.0
        %1433 = vmatpush1.msra.mxu0 %v710
        %1434 = vmatprep.subr.mxu0 0.0
        %1435 = vmatpush1.msra.mxu0 %v711
        %1436 = vmatprep.subr.mxu0 0.0
        %1437 = vmatpush1.msra.mxu0 %v712
        %1438 = vmatprep.subr.mxu0 0.0
        %1439 = vmatpush1.msra.mxu0 %v713
        %1440 = vmatprep.subr.mxu0 0.0
        %1441 = vmatpush1.msra.mxu0 %v714
        %1442 = vmatprep.subr.mxu0 0.0
        %1443 = vmatpush1.msra.mxu0 %v715
        %1444 = vmatprep.subr.mxu0 0.0
        %1445 = vmatpush1.msra.mxu0 %v716
        %1446 = vmatprep.subr.mxu0 0.0
        %1447 = vmatpush1.msra.mxu0 %v717
        %1448 = vmatprep.subr.mxu0 0.0
        %1449 = vmatpush1.msra.mxu0 %v718
        %1450 = vmatprep.subr.mxu0 0.0
        %1451 = vmatpush1.msra.mxu0 %v719
        %1452 = vmatprep.subr.mxu0 0.0
        %1453 = vmatpush1.msra.mxu0 %v720
        %1454 = vmatprep.subr.mxu0 0.0
        %1455 = vmatpush1.msra.mxu0 %v721
        %1456 = vmatprep.subr.mxu0 0.0
        %1457 = vmatpush1.msra.mxu0 %v722
        %1458 = vmatprep.subr.mxu0 0.0
        %1459 = vmatpush1.msra.mxu0 %v723
        %1460 = vmatprep.subr.mxu0 0.0
        %1461 = vmatpush1.msra.mxu0 %v724
        %1462 = vmatprep.subr.mxu0 0.0
        %1463 = vmatpush1.msra.mxu0 %v725
        %1464 = vmatprep.subr.mxu0 0.0
        %1465 = vmatpush1.msra.mxu0 %v726
        %1466 = vmatprep.subr.mxu0 0.0
        %1467 = vmatpush1.msra.mxu0 %v727
        %1468 = vmatprep.subr.mxu0 0.0
        %1469 = vmatpush1.msra.mxu0 %v728
        %1470 = vmatprep.subr.mxu0 0.0
        %1471 = vmatpush1.msra.mxu0 %v729
        %1472 = vmatprep.subr.mxu0 0.0
        %1473 = vmatpush1.msra.mxu0 %v730
        %1474 = vmatprep.subr.mxu0 0.0
        %1475 = vmatpush1.msra.mxu0 %v731
        %1476 = vmatprep.subr.mxu0 0.0
        %1477 = vmatpush1.msra.mxu0 %v732
        %1478 = vmatprep.subr.mxu0 0.0
        %1479 = vmatpush1.msra.mxu0 %v733
        %1480 = vmatprep.subr.mxu0 0.0
        %1481 = vmatpush1.msra.mxu0 %v734
        %1482 = vmatprep.mubr.f32.mxu0 %v1203
        %1483 = vmatmul.mubr.f32.gmra.mrb[0].mxu0 %v1199
        %v1484 = vpop.f32.mrb[0].mxu0
        %v1485 = vadd.f32 %v1415, %v1484
        %v1486 = vpop.f32.mrb[0].mxu0
        %1487 = vdwg.mxu0
        %1488 = vmatprep.subr.mxu0 0.0
        %1489 = vmatpush1.msra.mxu0 %v735
        %1490 = vmatprep.subr.mxu0 0.0
        %1491 = vmatpush1.msra.mxu0 %v736
        %1492 = vmatprep.subr.mxu0 0.0
        %1493 = vmatpush1.msra.mxu0 %v737
        %1494 = vmatprep.subr.mxu0 0.0
        %1495 = vmatpush1.msra.mxu0 %v738
        %1496 = vmatprep.subr.mxu0 0.0
        %1497 = vmatpush1.msra.mxu0 %v739
        %1498 = vmatprep.subr.mxu0 0.0
        %1499 = vmatpush1.msra.mxu0 %v740
        %1500 = vmatprep.subr.mxu0 0.0
        %1501 = vmatpush1.msra.mxu0 %v741
        %1502 = vmatprep.subr.mxu0 0.0
        %1503 = vmatpush1.msra.mxu0 %v742
        %1504 = vmatprep.subr.mxu0 0.0
        %1505 = vmatpush1.msra.mxu0 %v743
        %1506 = vmatprep.subr.mxu0 0.0
        %1507 = vmatpush1.msra.mxu0 %v744
        %1508 = vmatprep.subr.mxu0 0.0
        %1509 = vmatpush1.msra.mxu0 %v745
        %1510 = vmatprep.subr.mxu0 0.0
        %1511 = vmatpush1.msra.mxu0 %v746
        %1512 = vmatprep.subr.mxu0 0.0
        %1513 = vmatpush1.msra.mxu0 %v747
        %1514 = vmatprep.subr.mxu0 0.0
        %1515 = vmatpush1.msra.mxu0 %v748
        %1516 = vmatprep.subr.mxu0 0.0
        %1517 = vmatpush1.msra.mxu0 %v749
        %1518 = vmatprep.subr.mxu0 0.0
        %1519 = vmatpush1.msra.mxu0 %v750
        %1520 = vmatprep.subr.mxu0 0.0
        %1521 = vmatpush1.msra.mxu0 %v751
        %1522 = vmatprep.subr.mxu0 0.0
        %1523 = vmatpush1.msra.mxu0 %v752
        %1524 = vmatprep.subr.mxu0 0.0
        %1525 = vmatpush1.msra.mxu0 %v753
        %1526 = vmatprep.subr.mxu0 0.0
        %1527 = vmatpush1.msra.mxu0 %v754
        %1528 = vmatprep.subr.mxu0 0.0
        %1529 = vmatpush1.msra.mxu0 %v755
        %1530 = vmatprep.subr.mxu0 0.0
        %1531 = vmatpush1.msra.mxu0 %v756
        %1532 = vmatprep.subr.mxu0 0.0
        %1533 = vmatpush1.msra.mxu0 %v757
        %1534 = vmatprep.subr.mxu0 0.0
        %1535 = vmatpush1.msra.mxu0 %v758
        %1536 = vmatprep.subr.mxu0 0.0
        %1537 = vmatpush1.msra.mxu0 %v759
        %1538 = vmatprep.subr.mxu0 0.0
        %1539 = vmatpush1.msra.mxu0 %v760
        %1540 = vmatprep.subr.mxu0 0.0
        %1541 = vmatpush1.msra.mxu0 %v761
        %1542 = vmatprep.subr.mxu0 0.0
        %1543 = vmatpush1.msra.mxu0 %v762
        %1544 = vmatprep.subr.mxu0 0.0
        %1545 = vmatpush1.msra.mxu0 %v763
        %1546 = vmatprep.subr.mxu0 0.0
        %1547 = vmatpush1.msra.mxu0 %v764
        %1548 = vmatprep.subr.mxu0 0.0
        %1549 = vmatpush1.msra.mxu0 %v765
        %1550 = vmatprep.subr.mxu0 0.0
        %1551 = vmatpush1.msra.mxu0 %v766
        %1552 = vmatprep.mubr.f32.mxu0 %v1211
        %1553 = vmatmul.mubr.f32.gmra.mrb[0].mxu0 %v1207
        %v1554 = vpop.f32.mrb[0].mxu0
        %v1555 = vadd.f32 %v1485, %v1554
        %v1556 = vpop.f32.mrb[0].mxu0
        %1557 = vdwg.mxu0
        %1558 = vmatprep.subr.mxu0 0.0
        %1559 = vmatpush1.msra.mxu0 %v767
        %1560 = vmatprep.subr.mxu0 0.0
        %1561 = vmatpush1.msra.mxu0 %v768
        %1562 = vmatprep.subr.mxu0 0.0
        %1563 = vmatpush1.msra.mxu0 %v769
        %1564 = vmatprep.subr.mxu0 0.0
        %1565 = vmatpush1.msra.mxu0 %v770
        %1566 = vmatprep.subr.mxu0 0.0
        %1567 = vmatpush1.msra.mxu0 %v771
        %1568 = vmatprep.subr.mxu0 0.0
        %1569 = vmatpush1.msra.mxu0 %v772
        %1570 = vmatprep.subr.mxu0 0.0
        %1571 = vmatpush1.msra.mxu0 %v773
        %1572 = vmatprep.subr.mxu0 0.0
        %1573 = vmatpush1.msra.mxu0 %v774
        %1574 = vmatprep.subr.mxu0 0.0
        %1575 = vmatpush1.msra.mxu0 %v775
        %1576 = vmatprep.subr.mxu0 0.0
        %1577 = vmatpush1.msra.mxu0 %v776
        %1578 = vmatprep.subr.mxu0 0.0
        %1579 = vmatpush1.msra.mxu0 %v777
        %1580 = vmatprep.subr.mxu0 0.0
        %1581 = vmatpush1.msra.mxu0 %v778
        %1582 = vmatprep.subr.mxu0 0.0
        %1583 = vmatpush1.msra.mxu0 %v779
        %1584 = vmatprep.subr.mxu0 0.0
        %1585 = vmatpush1.msra.mxu0 %v780
        %1586 = vmatprep.subr.mxu0 0.0
        %1587 = vmatpush1.msra.mxu0 %v781
        %1588 = vmatprep.subr.mxu0 0.0
        %1589 = vmatpush1.msra.mxu0 %v782
        %1590 = vmatprep.subr.mxu0 0.0
        %1591 = vmatpush1.msra.mxu0 %v783
        %1592 = vmatprep.subr.mxu0 0.0
        %1593 = vmatpush1.msra.mxu0 %v784
        %1594 = vmatprep.subr.mxu0 0.0
        %1595 = vmatpush1.msra.mxu0 %v785
        %1596 = vmatprep.subr.mxu0 0.0
        %1597 = vmatpush1.msra.mxu0 %v786
        %1598 = vmatprep.subr.mxu0 0.0
        %1599 = vmatpush1.msra.mxu0 %v787
        %1600 = vmatprep.subr.mxu0 0.0
        %1601 = vmatpush1.msra.mxu0 %v788
        %1602 = vmatprep.subr.mxu0 0.0
        %1603 = vmatpush1.msra.mxu0 %v789
        %1604 = vmatprep.subr.mxu0 0.0
        %1605 = vmatpush1.msra.mxu0 %v790
        %1606 = vmatprep.subr.mxu0 0.0
        %1607 = vmatpush1.msra.mxu0 %v791
        %1608 = vmatprep.subr.mxu0 0.0
        %1609 = vmatpush1.msra.mxu0 %v792
        %1610 = vmatprep.subr.mxu0 0.0
        %1611 = vmatpush1.msra.mxu0 %v793
        %1612 = vmatprep.subr.mxu0 0.0
        %1613 = vmatpush1.msra.mxu0 %v794
        %1614 = vmatprep.subr.mxu0 0.0
        %1615 = vmatpush1.msra.mxu0 %v795
        %1616 = vmatprep.subr.mxu0 0.0
        %1617 = vmatpush1.msra.mxu0 %v796
        %1618 = vmatprep.subr.mxu0 0.0
        %1619 = vmatpush1.msra.mxu0 %v797
        %1620 = vmatprep.subr.mxu0 0.0
        %1621 = vmatpush1.msra.mxu0 %v798
        %1622 = vmatprep.mubr.f32.mxu0 %v1219
        %1623 = vmatmul.mubr.f32.gmra.mrb[0].mxu0 %v1215
        %v1624 = vpop.f32.mrb[0].mxu0
        %v1625 = vadd.f32 %v1555, %v1624
        %v1626 = vpop.f32.mrb[0].mxu0
        %1627 = vdwg.mxu0
        %1628 = vmatprep.subr.mxu0 0.0
        %1629 = vmatpush1.msra.mxu0 %v799
        %1630 = vmatprep.subr.mxu0 0.0
        %1631 = vmatpush1.msra.mxu0 %v800
        %1632 = vmatprep.subr.mxu0 0.0
        %1633 = vmatpush1.msra.mxu0 %v801
        %1634 = vmatprep.subr.mxu0 0.0
        %1635 = vmatpush1.msra.mxu0 %v802
        %1636 = vmatprep.subr.mxu0 0.0
        %1637 = vmatpush1.msra.mxu0 %v803
        %1638 = vmatprep.subr.mxu0 0.0
        %1639 = vmatpush1.msra.mxu0 %v804
        %1640 = vmatprep.subr.mxu0 0.0
        %1641 = vmatpush1.msra.mxu0 %v805
        %1642 = vmatprep.subr.mxu0 0.0
        %1643 = vmatpush1.msra.mxu0 %v806
        %1644 = vmatprep.subr.mxu0 0.0
        %1645 = vmatpush1.msra.mxu0 %v807
        %1646 = vmatprep.subr.mxu0 0.0
        %1647 = vmatpush1.msra.mxu0 %v808
        %1648 = vmatprep.subr.mxu0 0.0
        %1649 = vmatpush1.msra.mxu0 %v809
        %1650 = vmatprep.subr.mxu0 0.0
        %1651 = vmatpush1.msra.mxu0 %v810
        %1652 = vmatprep.subr.mxu0 0.0
        %1653 = vmatpush1.msra.mxu0 %v811
        %1654 = vmatprep.subr.mxu0 0.0
        %1655 = vmatpush1.msra.mxu0 %v812
        %1656 = vmatprep.subr.mxu0 0.0
        %1657 = vmatpush1.msra.mxu0 %v813
        %1658 = vmatprep.subr.mxu0 0.0
        %1659 = vmatpush1.msra.mxu0 %v814
        %1660 = vmatprep.subr.mxu0 0.0
        %1661 = vmatpush1.msra.mxu0 %v815
        %1662 = vmatprep.subr.mxu0 0.0
        %1663 = vmatpush1.msra.mxu0 %v816
        %1664 = vmatprep.subr.mxu0 0.0
        %1665 = vmatpush1.msra.mxu0 %v817
        %1666 = vmatprep.subr.mxu0 0.0
        %1667 = vmatpush1.msra.mxu0 %v818
        %1668 = vmatprep.subr.mxu0 0.0
        %1669 = vmatpush1.msra.mxu0 %v819
        %1670 = vmatprep.subr.mxu0 0.0
        %1671 = vmatpush1.msra.mxu0 %v820
        %1672 = vmatprep.subr.mxu0 0.0
        %1673 = vmatpush1.msra.mxu0 %v821
        %1674 = vmatprep.subr.mxu0 0.0
        %1675 = vmatpush1.msra.mxu0 %v822
        %1676 = vmatprep.subr.mxu0 0.0
        %1677 = vmatpush1.msra.mxu0 %v823
        %1678 = vmatprep.subr.mxu0 0.0
        %1679 = vmatpush1.msra.mxu0 %v824
        %1680 = vmatprep.subr.mxu0 0.0
        %1681 = vmatpush1.msra.mxu0 %v825
        %1682 = vmatprep.subr.mxu0 0.0
        %1683 = vmatpush1.msra.mxu0 %v826
        %1684 = vmatprep.subr.mxu0 0.0
        %1685 = vmatpush1.msra.mxu0 %v827
        %1686 = vmatprep.subr.mxu0 0.0
        %1687 = vmatpush1.msra.mxu0 %v828
        %1688 = vmatprep.subr.mxu0 0.0
        %1689 = vmatpush1.msra.mxu0 %v829
        %1690 = vmatprep.subr.mxu0 0.0
        %1691 = vmatpush1.msra.mxu0 %v830
        %1692 = vmatprep.mubr.f32.mxu0 %v1227
        %1693 = vmatmul.mubr.f32.gmra.mrb[0].mxu0 %v1223
        %v1694 = vpop.f32.mrb[0].mxu0
        %v1695 = vadd.f32 %v1625, %v1694
        %v1696 = vpop.f32.mrb[0].mxu0
        %1697 = vdwg.mxu0
        %1698 = vmatprep.subr.mxu0 0.0
        %1699 = vmatpush1.msra.mxu0 %v831
        %1700 = vmatprep.subr.mxu0 0.0
        %1701 = vmatpush1.msra.mxu0 %v832
        %1702 = vmatprep.subr.mxu0 0.0
        %1703 = vmatpush1.msra.mxu0 %v833
        %1704 = vmatprep.subr.mxu0 0.0
        %1705 = vmatpush1.msra.mxu0 %v834
        %1706 = vmatprep.subr.mxu0 0.0
        %1707 = vmatpush1.msra.mxu0 %v835
        %1708 = vmatprep.subr.mxu0 0.0
        %1709 = vmatpush1.msra.mxu0 %v836
        %1710 = vmatprep.subr.mxu0 0.0
        %1711 = vmatpush1.msra.mxu0 %v837
        %1712 = vmatprep.subr.mxu0 0.0
        %1713 = vmatpush1.msra.mxu0 %v838
        %1714 = vmatprep.subr.mxu0 0.0
        %1715 = vmatpush1.msra.mxu0 %v839
        %1716 = vmatprep.subr.mxu0 0.0
        %1717 = vmatpush1.msra.mxu0 %v840
        %1718 = vmatprep.subr.mxu0 0.0
        %1719 = vmatpush1.msra.mxu0 %v841
        %1720 = vmatprep.subr.mxu0 0.0
        %1721 = vmatpush1.msra.mxu0 %v842
        %1722 = vmatprep.subr.mxu0 0.0
        %1723 = vmatpush1.msra.mxu0 %v843
        %1724 = vmatprep.subr.mxu0 0.0
        %1725 = vmatpush1.msra.mxu0 %v844
        %1726 = vmatprep.subr.mxu0 0.0
        %1727 = vmatpush1.msra.mxu0 %v845
        %1728 = vmatprep.subr.mxu0 0.0
        %1729 = vmatpush1.msra.mxu0 %v846
        %1730 = vmatprep.subr.mxu0 0.0
        %1731 = vmatpush1.msra.mxu0 %v847
        %1732 = vmatprep.subr.mxu0 0.0
        %1733 = vmatpush1.msra.mxu0 %v848
        %1734 = vmatprep.subr.mxu0 0.0
        %1735 = vmatpush1.msra.mxu0 %v849
        %1736 = vmatprep.subr.mxu0 0.0
        %1737 = vmatpush1.msra.mxu0 %v850
        %1738 = vmatprep.subr.mxu0 0.0
        %1739 = vmatpush1.msra.mxu0 %v851
        %1740 = vmatprep.subr.mxu0 0.0
        %1741 = vmatpush1.msra.mxu0 %v852
        %1742 = vmatprep.subr.mxu0 0.0
        %1743 = vmatpush1.msra.mxu0 %v853
        %1744 = vmatprep.subr.mxu0 0.0
        %1745 = vmatpush1.msra.mxu0 %v854
        %1746 = vmatprep.subr.mxu0 0.0
        %1747 = vmatpush1.msra.mxu0 %v855
        %1748 = vmatprep.subr.mxu0 0.0
        %1749 = vmatpush1.msra.mxu0 %v856
        %1750 = vmatprep.subr.mxu0 0.0
        %1751 = vmatpush1.msra.mxu0 %v857
        %1752 = vmatprep.subr.mxu0 0.0
        %1753 = vmatpush1.msra.mxu0 %v858
        %1754 = vmatprep.subr.mxu0 0.0
        %1755 = vmatpush1.msra.mxu0 %v859
        %1756 = vmatprep.subr.mxu0 0.0
        %1757 = vmatpush1.msra.mxu0 %v860
        %1758 = vmatprep.subr.mxu0 0.0
        %1759 = vmatpush1.msra.mxu0 %v861
        %1760 = vmatprep.subr.mxu0 0.0
        %1761 = vmatpush1.msra.mxu0 %v862
        %1762 = vmatprep.mubr.f32.mxu0 %v1235
        %1763 = vmatmul.mubr.f32.gmra.mrb[0].mxu0 %v1231
        %v1764 = vpop.f32.mrb[0].mxu0
        %v1765 = vadd.f32 %v1695, %v1764
        %v1766 = vpop.f32.mrb[0].mxu0
        %1767 = vdwg.mxu0
        %1768 = vmatprep.subr.mxu0 0.0
        %1769 = vmatpush1.msra.mxu0 %v863
        %1770 = vmatprep.subr.mxu0 0.0
        %1771 = vmatpush1.msra.mxu0 %v864
        %1772 = vmatprep.subr.mxu0 0.0
        %1773 = vmatpush1.msra.mxu0 %v865
        %1774 = vmatprep.subr.mxu0 0.0
        %1775 = vmatpush1.msra.mxu0 %v866
        %1776 = vmatprep.subr.mxu0 0.0
        %1777 = vmatpush1.msra.mxu0 %v867
        %1778 = vmatprep.subr.mxu0 0.0
        %1779 = vmatpush1.msra.mxu0 %v868
        %1780 = vmatprep.subr.mxu0 0.0
        %1781 = vmatpush1.msra.mxu0 %v869
        %1782 = vmatprep.subr.mxu0 0.0
        %1783 = vmatpush1.msra.mxu0 %v870
        %1784 = vmatprep.subr.mxu0 0.0
        %1785 = vmatpush1.msra.mxu0 %v871
        %1786 = vmatprep.subr.mxu0 0.0
        %1787 = vmatpush1.msra.mxu0 %v872
        %1788 = vmatprep.subr.mxu0 0.0
        %1789 = vmatpush1.msra.mxu0 %v873
        %1790 = vmatprep.subr.mxu0 0.0
        %1791 = vmatpush1.msra.mxu0 %v874
        %1792 = vmatprep.subr.mxu0 0.0
        %1793 = vmatpush1.msra.mxu0 %v875
        %1794 = vmatprep.subr.mxu0 0.0
        %1795 = vmatpush1.msra.mxu0 %v876
        %1796 = vmatprep.subr.mxu0 0.0
        %1797 = vmatpush1.msra.mxu0 %v877
        %1798 = vmatprep.subr.mxu0 0.0
        %1799 = vmatpush1.msra.mxu0 %v878
        %1800 = vmatprep.subr.mxu0 0.0
        %1801 = vmatpush1.msra.mxu0 %v879
        %1802 = vmatprep.subr.mxu0 0.0
        %1803 = vmatpush1.msra.mxu0 %v880
        %1804 = vmatprep.subr.mxu0 0.0
        %1805 = vmatpush1.msra.mxu0 %v881
        %1806 = vmatprep.subr.mxu0 0.0
        %1807 = vmatpush1.msra.mxu0 %v882
        %1808 = vmatprep.subr.mxu0 0.0
        %1809 = vmatpush1.msra.mxu0 %v883
        %1810 = vmatprep.subr.mxu0 0.0
        %1811 = vmatpush1.msra.mxu0 %v884
        %1812 = vmatprep.subr.mxu0 0.0
        %1813 = vmatpush1.msra.mxu0 %v885
        %1814 = vmatprep.subr.mxu0 0.0
        %1815 = vmatpush1.msra.mxu0 %v886
        %1816 = vmatprep.subr.mxu0 0.0
        %1817 = vmatpush1.msra.mxu0 %v887
        %1818 = vmatprep.subr.mxu0 0.0
        %1819 = vmatpush1.msra.mxu0 %v888
        %1820 = vmatprep.subr.mxu0 0.0
        %1821 = vmatpush1.msra.mxu0 %v889
        %1822 = vmatprep.subr.mxu0 0.0
        %1823 = vmatpush1.msra.mxu0 %v890
        %1824 = vmatprep.subr.mxu0 0.0
        %1825 = vmatpush1.msra.mxu0 %v891
        %1826 = vmatprep.subr.mxu0 0.0
        %1827 = vmatpush1.msra.mxu0 %v892
        %1828 = vmatprep.subr.mxu0 0.0
        %1829 = vmatpush1.msra.mxu0 %v893
        %1830 = vmatprep.subr.mxu0 0.0
        %1831 = vmatpush1.msra.mxu0 %v894
        %1832 = vmatprep.mubr.f32.mxu0 %v1243
        %1833 = vmatmul.mubr.f32.gmra.mrb[0].mxu0 %v1239
        %v1834 = vpop.f32.mrb[0].mxu0
        %v1835 = vadd.f32 %v1765, %v1834
        %v1836 = vpop.f32.mrb[0].mxu0
        %1837 = vdwg.mxu0
        %1838 = vmatprep.subr.mxu0 0.0
        %1839 = vmatpush1.msra.mxu0 %v895
        %1840 = vmatprep.subr.mxu0 0.0
        %1841 = vmatpush1.msra.mxu0 %v896
        %1842 = vmatprep.subr.mxu0 0.0
        %1843 = vmatpush1.msra.mxu0 %v897
        %1844 = vmatprep.subr.mxu0 0.0
        %1845 = vmatpush1.msra.mxu0 %v898
        %1846 = vmatprep.subr.mxu0 0.0
        %1847 = vmatpush1.msra.mxu0 %v899
        %1848 = vmatprep.subr.mxu0 0.0
        %1849 = vmatpush1.msra.mxu0 %v900
        %1850 = vmatprep.subr.mxu0 0.0
        %1851 = vmatpush1.msra.mxu0 %v901
        %1852 = vmatprep.subr.mxu0 0.0
        %1853 = vmatpush1.msra.mxu0 %v902
        %1854 = vmatprep.subr.mxu0 0.0
        %1855 = vmatpush1.msra.mxu0 %v903
        %1856 = vmatprep.subr.mxu0 0.0
        %1857 = vmatpush1.msra.mxu0 %v904
        %1858 = vmatprep.subr.mxu0 0.0
        %1859 = vmatpush1.msra.mxu0 %v905
        %1860 = vmatprep.subr.mxu0 0.0
        %1861 = vmatpush1.msra.mxu0 %v906
        %1862 = vmatprep.subr.mxu0 0.0
        %1863 = vmatpush1.msra.mxu0 %v907
        %1864 = vmatprep.subr.mxu0 0.0
        %1865 = vmatpush1.msra.mxu0 %v908
        %1866 = vmatprep.subr.mxu0 0.0
        %1867 = vmatpush1.msra.mxu0 %v909
        %1868 = vmatprep.subr.mxu0 0.0
        %1869 = vmatpush1.msra.mxu0 %v910
        %1870 = vmatprep.subr.mxu0 0.0
        %1871 = vmatpush1.msra.mxu0 %v911
        %1872 = vmatprep.subr.mxu0 0.0
        %1873 = vmatpush1.msra.mxu0 %v912
        %1874 = vmatprep.subr.mxu0 0.0
        %1875 = vmatpush1.msra.mxu0 %v913
        %1876 = vmatprep.subr.mxu0 0.0
        %1877 = vmatpush1.msra.mxu0 %v914
        %1878 = vmatprep.subr.mxu0 0.0
        %1879 = vmatpush1.msra.mxu0 %v915
        %1880 = vmatprep.subr.mxu0 0.0
        %1881 = vmatpush1.msra.mxu0 %v916
        %1882 = vmatprep.subr.mxu0 0.0
        %1883 = vmatpush1.msra.mxu0 %v917
        %1884 = vmatprep.subr.mxu0 0.0
        %1885 = vmatpush1.msra.mxu0 %v918
        %1886 = vmatprep.subr.mxu0 0.0
        %1887 = vmatpush1.msra.mxu0 %v919
        %1888 = vmatprep.subr.mxu0 0.0
        %1889 = vmatpush1.msra.mxu0 %v920
        %1890 = vmatprep.subr.mxu0 0.0
        %1891 = vmatpush1.msra.mxu0 %v921
        %1892 = vmatprep.subr.mxu0 0.0
        %1893 = vmatpush1.msra.mxu0 %v922
        %1894 = vmatprep.subr.mxu0 0.0
        %1895 = vmatpush1.msra.mxu0 %v923
        %1896 = vmatprep.subr.mxu0 0.0
        %1897 = vmatpush1.msra.mxu0 %v924
        %1898 = vmatprep.subr.mxu0 0.0
        %1899 = vmatpush1.msra.mxu0 %v925
        %1900 = vmatprep.subr.mxu0 0.0
        %1901 = vmatpush1.msra.mxu0 %v926
        %1902 = vmatprep.mubr.f32.mxu0 %v1251
        %1903 = vmatmul.mubr.f32.gmra.mrb[0].mxu0 %v1247
        %v1904 = vpop.f32.mrb[0].mxu0
        %v1905 = vadd.f32 %v1835, %v1904
        %v1906 = vpop.f32.mrb[0].mxu0
        %1907 = vdwg.mxu0
        %1908 = vmatprep.subr.mxu0 0.0
        %1909 = vmatpush1.msra.mxu0 %v927
        %1910 = vmatprep.subr.mxu0 0.0
        %1911 = vmatpush1.msra.mxu0 %v928
        %1912 = vmatprep.subr.mxu0 0.0
        %1913 = vmatpush1.msra.mxu0 %v929
        %1914 = vmatprep.subr.mxu0 0.0
        %1915 = vmatpush1.msra.mxu0 %v930
        %1916 = vmatprep.subr.mxu0 0.0
        %1917 = vmatpush1.msra.mxu0 %v931
        %1918 = vmatprep.subr.mxu0 0.0
        %1919 = vmatpush1.msra.mxu0 %v932
        %1920 = vmatprep.subr.mxu0 0.0
        %1921 = vmatpush1.msra.mxu0 %v933
        %1922 = vmatprep.subr.mxu0 0.0
        %1923 = vmatpush1.msra.mxu0 %v934
        %1924 = vmatprep.subr.mxu0 0.0
        %1925 = vmatpush1.msra.mxu0 %v935
        %1926 = vmatprep.subr.mxu0 0.0
        %1927 = vmatpush1.msra.mxu0 %v936
        %1928 = vmatprep.subr.mxu0 0.0
        %1929 = vmatpush1.msra.mxu0 %v937
        %1930 = vmatprep.subr.mxu0 0.0
        %1931 = vmatpush1.msra.mxu0 %v938
        %1932 = vmatprep.subr.mxu0 0.0
        %1933 = vmatpush1.msra.mxu0 %v939
        %1934 = vmatprep.subr.mxu0 0.0
        %1935 = vmatpush1.msra.mxu0 %v940
        %1936 = vmatprep.subr.mxu0 0.0
        %1937 = vmatpush1.msra.mxu0 %v941
        %1938 = vmatprep.subr.mxu0 0.0
        %1939 = vmatpush1.msra.mxu0 %v942
        %1940 = vmatprep.subr.mxu0 0.0
        %1941 = vmatpush1.msra.mxu0 %v943
        %1942 = vmatprep.subr.mxu0 0.0
        %1943 = vmatpush1.msra.mxu0 %v944
        %1944 = vmatprep.subr.mxu0 0.0
        %1945 = vmatpush1.msra.mxu0 %v945
        %1946 = vmatprep.subr.mxu0 0.0
        %1947 = vmatpush1.msra.mxu0 %v946
        %1948 = vmatprep.subr.mxu0 0.0
        %1949 = vmatpush1.msra.mxu0 %v947
        %1950 = vmatprep.subr.mxu0 0.0
        %1951 = vmatpush1.msra.mxu0 %v948
        %1952 = vmatprep.subr.mxu0 0.0
        %1953 = vmatpush1.msra.mxu0 %v949
        %1954 = vmatprep.subr.mxu0 0.0
        %1955 = vmatpush1.msra.mxu0 %v950
        %1956 = vmatprep.subr.mxu0 0.0
        %1957 = vmatpush1.msra.mxu0 %v951
        %1958 = vmatprep.subr.mxu0 0.0
        %1959 = vmatpush1.msra.mxu0 %v952
        %1960 = vmatprep.subr.mxu0 0.0
        %1961 = vmatpush1.msra.mxu0 %v953
        %1962 = vmatprep.subr.mxu0 0.0
        %1963 = vmatpush1.msra.mxu0 %v954
        %1964 = vmatprep.subr.mxu0 0.0
        %1965 = vmatpush1.msra.mxu0 %v955
        %1966 = vmatprep.subr.mxu0 0.0
        %1967 = vmatpush1.msra.mxu0 %v956
        %1968 = vmatprep.subr.mxu0 0.0
        %1969 = vmatpush1.msra.mxu0 %v957
        %1970 = vmatprep.subr.mxu0 0.0
        %1971 = vmatpush1.msra.mxu0 %v958
        %1972 = vmatprep.mubr.f32.mxu0 %v1259
        %1973 = vmatmul.mubr.f32.gmra.mrb[0].mxu0 %v1255
        %v1974 = vpop.f32.mrb[0].mxu0
        %v1975 = vadd.f32 %v1905, %v1974
        %v1976 = vpop.f32.mrb[0].mxu0
        %1977 = vdwg.mxu0
        %1978 = vmatprep.subr.mxu0 0.0
        %1979 = vmatpush1.msra.mxu0 %v959
        %1980 = vmatprep.subr.mxu0 0.0
        %1981 = vmatpush1.msra.mxu0 %v960
        %1982 = vmatprep.subr.mxu0 0.0
        %1983 = vmatpush1.msra.mxu0 %v961
        %1984 = vmatprep.subr.mxu0 0.0
        %1985 = vmatpush1.msra.mxu0 %v962
        %1986 = vmatprep.subr.mxu0 0.0
        %1987 = vmatpush1.msra.mxu0 %v963
        %1988 = vmatprep.subr.mxu0 0.0
        %1989 = vmatpush1.msra.mxu0 %v964
        %1990 = vmatprep.subr.mxu0 0.0
        %1991 = vmatpush1.msra.mxu0 %v965
        %1992 = vmatprep.subr.mxu0 0.0
        %1993 = vmatpush1.msra.mxu0 %v966
        %1994 = vmatprep.subr.mxu0 0.0
        %1995 = vmatpush1.msra.mxu0 %v967
        %1996 = vmatprep.subr.mxu0 0.0
        %1997 = vmatpush1.msra.mxu0 %v968
        %1998 = vmatprep.subr.mxu0 0.0
        %1999 = vmatpush1.msra.mxu0 %v969
        %2000 = vmatprep.subr.mxu0 0.0
        %2001 = vmatpush1.msra.mxu0 %v970
        %2002 = vmatprep.subr.mxu0 0.0
        %2003 = vmatpush1.msra.mxu0 %v971
        %2004 = vmatprep.subr.mxu0 0.0
        %2005 = vmatpush1.msra.mxu0 %v972
        %2006 = vmatprep.subr.mxu0 0.0
        %2007 = vmatpush1.msra.mxu0 %v973
        %2008 = vmatprep.subr.mxu0 0.0
        %2009 = vmatpush1.msra.mxu0 %v974
        %2010 = vmatprep.subr.mxu0 0.0
        %2011 = vmatpush1.msra.mxu0 %v975
        %2012 = vmatprep.subr.mxu0 0.0
        %2013 = vmatpush1.msra.mxu0 %v976
        %2014 = vmatprep.subr.mxu0 0.0
        %2015 = vmatpush1.msra.mxu0 %v977
        %2016 = vmatprep.subr.mxu0 0.0
        %2017 = vmatpush1.msra.mxu0 %v978
        %2018 = vmatprep.subr.mxu0 0.0
        %2019 = vmatpush1.msra.mxu0 %v979
        %2020 = vmatprep.subr.mxu0 0.0
        %2021 = vmatpush1.msra.mxu0 %v980
        %2022 = vmatprep.subr.mxu0 0.0
        %2023 = vmatpush1.msra.mxu0 %v981
        %2024 = vmatprep.subr.mxu0 0.0
        %2025 = vmatpush1.msra.mxu0 %v982
        %2026 = vmatprep.subr.mxu0 0.0
        %2027 = vmatpush1.msra.mxu0 %v983
        %2028 = vmatprep.subr.mxu0 0.0
        %2029 = vmatpush1.msra.mxu0 %v984
        %2030 = vmatprep.subr.mxu0 0.0
        %2031 = vmatpush1.msra.mxu0 %v985
        %2032 = vmatprep.subr.mxu0 0.0
        %2033 = vmatpush1.msra.mxu0 %v986
        %2034 = vmatprep.subr.mxu0 0.0
        %2035 = vmatpush1.msra.mxu0 %v987
        %2036 = vmatprep.subr.mxu0 0.0
        %2037 = vmatpush1.msra.mxu0 %v988
        %2038 = vmatprep.subr.mxu0 0.0
        %2039 = vmatpush1.msra.mxu0 %v989
        %2040 = vmatprep.subr.mxu0 0.0
        %2041 = vmatpush1.msra.mxu0 %v990
        %2042 = vmatprep.mubr.f32.mxu0 %v1267
        %2043 = vmatmul.mubr.f32.gmra.mrb[0].mxu0 %v1263
        %v2044 = vpop.f32.mrb[0].mxu0
        %v2045 = vadd.f32 %v1975, %v2044
        %v2046 = vpop.f32.mrb[0].mxu0
        %2047 = vdwg.mxu0
        %2048 = vmatprep.subr.mxu0 0.0
        %2049 = vmatpush1.msra.mxu0 %v991
        %2050 = vmatprep.subr.mxu0 0.0
        %2051 = vmatpush1.msra.mxu0 %v992
        %2052 = vmatprep.subr.mxu0 0.0
        %2053 = vmatpush1.msra.mxu0 %v993
        %2054 = vmatprep.subr.mxu0 0.0
        %2055 = vmatpush1.msra.mxu0 %v994
        %2056 = vmatprep.subr.mxu0 0.0
        %2057 = vmatpush1.msra.mxu0 %v995
        %2058 = vmatprep.subr.mxu0 0.0
        %2059 = vmatpush1.msra.mxu0 %v996
        %2060 = vmatprep.subr.mxu0 0.0
        %2061 = vmatpush1.msra.mxu0 %v997
        %2062 = vmatprep.subr.mxu0 0.0
        %2063 = vmatpush1.msra.mxu0 %v998
        %2064 = vmatprep.subr.mxu0 0.0
        %2065 = vmatpush1.msra.mxu0 %v999
        %2066 = vmatprep.subr.mxu0 0.0
        %2067 = vmatpush1.msra.mxu0 %v1000
        %2068 = vmatprep.subr.mxu0 0.0
        %2069 = vmatpush1.msra.mxu0 %v1001
        %2070 = vmatprep.subr.mxu0 0.0
        %2071 = vmatpush1.msra.mxu0 %v1002
        %2072 = vmatprep.subr.mxu0 0.0
        %2073 = vmatpush1.msra.mxu0 %v1003
        %2074 = vmatprep.subr.mxu0 0.0
        %2075 = vmatpush1.msra.mxu0 %v1004
        %2076 = vmatprep.subr.mxu0 0.0
        %2077 = vmatpush1.msra.mxu0 %v1005
        %2078 = vmatprep.subr.mxu0 0.0
        %2079 = vmatpush1.msra.mxu0 %v1006
        %2080 = vmatprep.subr.mxu0 0.0
        %2081 = vmatpush1.msra.mxu0 %v1007
        %2082 = vmatprep.subr.mxu0 0.0
        %2083 = vmatpush1.msra.mxu0 %v1008
        %2084 = vmatprep.subr.mxu0 0.0
        %2085 = vmatpush1.msra.mxu0 %v1009
        %2086 = vmatprep.subr.mxu0 0.0
        %2087 = vmatpush1.msra.mxu0 %v1010
        %2088 = vmatprep.subr.mxu0 0.0
        %2089 = vmatpush1.msra.mxu0 %v1011
        %2090 = vmatprep.subr.mxu0 0.0
        %2091 = vmatpush1.msra.mxu0 %v1012
        %2092 = vmatprep.subr.mxu0 0.0
        %2093 = vmatpush1.msra.mxu0 %v1013
        %2094 = vmatprep.subr.mxu0 0.0
        %2095 = vmatpush1.msra.mxu0 %v1014
        %2096 = vmatprep.subr.mxu0 0.0
        %2097 = vmatpush1.msra.mxu0 %v1015
        %2098 = vmatprep.subr.mxu0 0.0
        %2099 = vmatpush1.msra.mxu0 %v1016
        %2100 = vmatprep.subr.mxu0 0.0
        %2101 = vmatpush1.msra.mxu0 %v1017
        %2102 = vmatprep.subr.mxu0 0.0
        %2103 = vmatpush1.msra.mxu0 %v1018
        %2104 = vmatprep.subr.mxu0 0.0
        %2105 = vmatpush1.msra.mxu0 %v1019
        %2106 = vmatprep.subr.mxu0 0.0
        %2107 = vmatpush1.msra.mxu0 %v1020
        %2108 = vmatprep.subr.mxu0 0.0
        %2109 = vmatpush1.msra.mxu0 %v1021
        %2110 = vmatprep.subr.mxu0 0.0
        %2111 = vmatpush1.msra.mxu0 %v1022
        %2112 = vmatprep.mubr.f32.mxu0 %v1275
        %2113 = vmatmul.mubr.f32.gmra.mrb[0].mxu0 %v1271
        %v2114 = vpop.f32.mrb[0].mxu0
        %v2115 = vadd.f32 %v2045, %v2114
        %v2116 = vpop.f32.mrb[0].mxu0
        %2117 = vdwg.mxu0
        %2118 = vmatprep.subr.mxu0 0.0
        %2119 = vmatpush1.msra.mxu0 %v1023
        %2120 = vmatprep.subr.mxu0 0.0
        %2121 = vmatpush1.msra.mxu0 %v1024
        %2122 = vmatprep.subr.mxu0 0.0
        %2123 = vmatpush1.msra.mxu0 %v1025
        %2124 = vmatprep.subr.mxu0 0.0
        %2125 = vmatpush1.msra.mxu0 %v1026
        %2126 = vmatprep.subr.mxu0 0.0
        %2127 = vmatpush1.msra.mxu0 %v1027
        %2128 = vmatprep.subr.mxu0 0.0
        %2129 = vmatpush1.msra.mxu0 %v1028
        %2130 = vmatprep.subr.mxu0 0.0
        %2131 = vmatpush1.msra.mxu0 %v1029
        %2132 = vmatprep.subr.mxu0 0.0
        %2133 = vmatpush1.msra.mxu0 %v1030
        %2134 = vmatprep.subr.mxu0 0.0
        %2135 = vmatpush1.msra.mxu0 %v1031
        %2136 = vmatprep.subr.mxu0 0.0
        %2137 = vmatpush1.msra.mxu0 %v1032
        %2138 = vmatprep.subr.mxu0 0.0
        %2139 = vmatpush1.msra.mxu0 %v1033
        %2140 = vmatprep.subr.mxu0 0.0
        %2141 = vmatpush1.msra.mxu0 %v1034
        %2142 = vmatprep.subr.mxu0 0.0
        %2143 = vmatpush1.msra.mxu0 %v1035
        %2144 = vmatprep.subr.mxu0 0.0
        %2145 = vmatpush1.msra.mxu0 %v1036
        %2146 = vmatprep.subr.mxu0 0.0
        %2147 = vmatpush1.msra.mxu0 %v1037
        %2148 = vmatprep.subr.mxu0 0.0
        %2149 = vmatpush1.msra.mxu0 %v1038
        %2150 = vmatprep.subr.mxu0 0.0
        %2151 = vmatpush1.msra.mxu0 %v1039
        %2152 = vmatprep.subr.mxu0 0.0
        %2153 = vmatpush1.msra.mxu0 %v1040
        %2154 = vmatprep.subr.mxu0 0.0
        %2155 = vmatpush1.msra.mxu0 %v1041
        %2156 = vmatprep.subr.mxu0 0.0
        %2157 = vmatpush1.msra.mxu0 %v1042
        %2158 = vmatprep.subr.mxu0 0.0
        %2159 = vmatpush1.msra.mxu0 %v1043
        %2160 = vmatprep.subr.mxu0 0.0
        %2161 = vmatpush1.msra.mxu0 %v1044
        %2162 = vmatprep.subr.mxu0 0.0
        %2163 = vmatpush1.msra.mxu0 %v1045
        %2164 = vmatprep.subr.mxu0 0.0
        %2165 = vmatpush1.msra.mxu0 %v1046
        %2166 = vmatprep.subr.mxu0 0.0
        %2167 = vmatpush1.msra.mxu0 %v1047
        %2168 = vmatprep.subr.mxu0 0.0
        %2169 = vmatpush1.msra.mxu0 %v1048
        %2170 = vmatprep.subr.mxu0 0.0
        %2171 = vmatpush1.msra.mxu0 %v1049
        %2172 = vmatprep.subr.mxu0 0.0
        %2173 = vmatpush1.msra.mxu0 %v1050
        %2174 = vmatprep.subr.mxu0 0.0
        %2175 = vmatpush1.msra.mxu0 %v1051
        %2176 = vmatprep.subr.mxu0 0.0
        %2177 = vmatpush1.msra.mxu0 %v1052
        %2178 = vmatprep.subr.mxu0 0.0
        %2179 = vmatpush1.msra.mxu0 %v1053
        %2180 = vmatprep.subr.mxu0 0.0
        %2181 = vmatpush1.msra.mxu0 %v1054
        %2182 = vmatprep.mubr.f32.mxu0 %v1283
        %2183 = vmatmul.mubr.f32.gmra.mrb[0].mxu0 %v1279
        %v2184 = vpop.f32.mrb[0].mxu0
        %v2185 = vadd.f32 %v2115, %v2184
        %v2186 = vpop.f32.mrb[0].mxu0
        %2187 = vdwg.mxu0
        %2188 = vmatprep.subr.mxu0 0.0
        %2189 = vmatpush1.msra.mxu0 %v1055
        %2190 = vmatprep.subr.mxu0 0.0
        %2191 = vmatpush1.msra.mxu0 %v1056
        %2192 = vmatprep.subr.mxu0 0.0
        %2193 = vmatpush1.msra.mxu0 %v1057
        %2194 = vmatprep.subr.mxu0 0.0
        %2195 = vmatpush1.msra.mxu0 %v1058
        %2196 = vmatprep.subr.mxu0 0.0
        %2197 = vmatpush1.msra.mxu0 %v1059
        %2198 = vmatprep.subr.mxu0 0.0
        %2199 = vmatpush1.msra.mxu0 %v1060
        %2200 = vmatprep.subr.mxu0 0.0
        %2201 = vmatpush1.msra.mxu0 %v1061
        %2202 = vmatprep.subr.mxu0 0.0
        %2203 = vmatpush1.msra.mxu0 %v1062
        %2204 = vmatprep.subr.mxu0 0.0
        %2205 = vmatpush1.msra.mxu0 %v1063
        %2206 = vmatprep.subr.mxu0 0.0
        %2207 = vmatpush1.msra.mxu0 %v1064
        %2208 = vmatprep.subr.mxu0 0.0
        %2209 = vmatpush1.msra.mxu0 %v1065
        %2210 = vmatprep.subr.mxu0 0.0
        %2211 = vmatpush1.msra.mxu0 %v1066
        %2212 = vmatprep.subr.mxu0 0.0
        %2213 = vmatpush1.msra.mxu0 %v1067
        %2214 = vmatprep.subr.mxu0 0.0
        %2215 = vmatpush1.msra.mxu0 %v1068
        %2216 = vmatprep.subr.mxu0 0.0
        %2217 = vmatpush1.msra.mxu0 %v1069
        %2218 = vmatprep.subr.mxu0 0.0
        %2219 = vmatpush1.msra.mxu0 %v1070
        %2220 = vmatprep.subr.mxu0 0.0
        %2221 = vmatpush1.msra.mxu0 %v1071
        %2222 = vmatprep.subr.mxu0 0.0
        %2223 = vmatpush1.msra.mxu0 %v1072
        %2224 = vmatprep.subr.mxu0 0.0
        %2225 = vmatpush1.msra.mxu0 %v1073
        %2226 = vmatprep.subr.mxu0 0.0
        %2227 = vmatpush1.msra.mxu0 %v1074
        %2228 = vmatprep.subr.mxu0 0.0
        %2229 = vmatpush1.msra.mxu0 %v1075
        %2230 = vmatprep.subr.mxu0 0.0
        %2231 = vmatpush1.msra.mxu0 %v1076
        %2232 = vmatprep.subr.mxu0 0.0
        %2233 = vmatpush1.msra.mxu0 %v1077
        %2234 = vmatprep.subr.mxu0 0.0
        %2235 = vmatpush1.msra.mxu0 %v1078
        %2236 = vmatprep.subr.mxu0 0.0
        %2237 = vmatpush1.msra.mxu0 %v1079
        %2238 = vmatprep.subr.mxu0 0.0
        %2239 = vmatpush1.msra.mxu0 %v1080
        %2240 = vmatprep.subr.mxu0 0.0
        %2241 = vmatpush1.msra.mxu0 %v1081
        %2242 = vmatprep.subr.mxu0 0.0
        %2243 = vmatpush1.msra.mxu0 %v1082
        %2244 = vmatprep.subr.mxu0 0.0
        %2245 = vmatpush1.msra.mxu0 %v1083
        %2246 = vmatprep.subr.mxu0 0.0
        %2247 = vmatpush1.msra.mxu0 %v1084
        %2248 = vmatprep.subr.mxu0 0.0
        %2249 = vmatpush1.msra.mxu0 %v1085
        %2250 = vmatprep.subr.mxu0 0.0
        %2251 = vmatpush1.msra.mxu0 %v1086
        %2252 = vmatprep.mubr.f32.mxu0 %v1291
        %2253 = vmatmul.mubr.f32.gmra.mrb[0].mxu0 %v1287
        %v2254 = vpop.f32.mrb[0].mxu0
        %v2255 = vadd.f32 %v2185, %v2254
        %v2256 = vpop.f32.mrb[0].mxu0
        %2257 = vdwg.mxu0
        %2258 = vmatprep.subr.mxu0 0.0
        %2259 = vmatpush1.msra.mxu0 %v1087
        %2260 = vmatprep.subr.mxu0 0.0
        %2261 = vmatpush1.msra.mxu0 %v1088
        %2262 = vmatprep.subr.mxu0 0.0
        %2263 = vmatpush1.msra.mxu0 %v1089
        %2264 = vmatprep.subr.mxu0 0.0
        %2265 = vmatpush1.msra.mxu0 %v1090
        %2266 = vmatprep.subr.mxu0 0.0
        %2267 = vmatpush1.msra.mxu0 %v1091
        %2268 = vmatprep.subr.mxu0 0.0
        %2269 = vmatpush1.msra.mxu0 %v1092
        %2270 = vmatprep.subr.mxu0 0.0
        %2271 = vmatpush1.msra.mxu0 %v1093
        %2272 = vmatprep.subr.mxu0 0.0
        %2273 = vmatpush1.msra.mxu0 %v1094
        %2274 = vmatprep.subr.mxu0 0.0
        %2275 = vmatpush1.msra.mxu0 %v1095
        %2276 = vmatprep.subr.mxu0 0.0
        %2277 = vmatpush1.msra.mxu0 %v1096
        %2278 = vmatprep.subr.mxu0 0.0
        %2279 = vmatpush1.msra.mxu0 %v1097
        %2280 = vmatprep.subr.mxu0 0.0
        %2281 = vmatpush1.msra.mxu0 %v1098
        %2282 = vmatprep.subr.mxu0 0.0
        %2283 = vmatpush1.msra.mxu0 %v1099
        %2284 = vmatprep.subr.mxu0 0.0
        %2285 = vmatpush1.msra.mxu0 %v1100
        %2286 = vmatprep.subr.mxu0 0.0
        %2287 = vmatpush1.msra.mxu0 %v1101
        %2288 = vmatprep.subr.mxu0 0.0
        %2289 = vmatpush1.msra.mxu0 %v1102
        %2290 = vmatprep.subr.mxu0 0.0
        %2291 = vmatpush1.msra.mxu0 %v1103
        %2292 = vmatprep.subr.mxu0 0.0
        %2293 = vmatpush1.msra.mxu0 %v1104
        %2294 = vmatprep.subr.mxu0 0.0
        %2295 = vmatpush1.msra.mxu0 %v1105
        %2296 = vmatprep.subr.mxu0 0.0
        %2297 = vmatpush1.msra.mxu0 %v1106
        %2298 = vmatprep.subr.mxu0 0.0
        %2299 = vmatpush1.msra.mxu0 %v1107
        %2300 = vmatprep.subr.mxu0 0.0
        %2301 = vmatpush1.msra.mxu0 %v1108
        %2302 = vmatprep.subr.mxu0 0.0
        %2303 = vmatpush1.msra.mxu0 %v1109
        %2304 = vmatprep.subr.mxu0 0.0
        %2305 = vmatpush1.msra.mxu0 %v1110
        %2306 = vmatprep.subr.mxu0 0.0
        %2307 = vmatpush1.msra.mxu0 %v1111
        %2308 = vmatprep.subr.mxu0 0.0
        %2309 = vmatpush1.msra.mxu0 %v1112
        %2310 = vmatprep.subr.mxu0 0.0
        %2311 = vmatpush1.msra.mxu0 %v1113
        %2312 = vmatprep.subr.mxu0 0.0
        %2313 = vmatpush1.msra.mxu0 %v1114
        %2314 = vmatprep.subr.mxu0 0.0
        %2315 = vmatpush1.msra.mxu0 %v1115
        %2316 = vmatprep.subr.mxu0 0.0
        %2317 = vmatpush1.msra.mxu0 %v1116
        %2318 = vmatprep.subr.mxu0 0.0
        %2319 = vmatpush1.msra.mxu0 %v1117
        %2320 = vmatprep.subr.mxu0 0.0
        %2321 = vmatpush1.msra.mxu0 %v1118
        %2322 = vmatprep.mubr.f32.mxu0 %v1299
        %2323 = vmatmul.mubr.f32.gmra.mrb[0].mxu0 %v1295
        %v2324 = vpop.f32.mrb[0].mxu0
        %v2325 = vadd.f32 %v2255, %v2324
        %v2326 = vpop.f32.mrb[0].mxu0
        %2327 = vdwg.mxu0
        %2328 = vmatprep.subr.mxu0 0.0
        %2329 = vmatpush1.msra.mxu0 %v1119
        %2330 = vmatprep.subr.mxu0 0.0
        %2331 = vmatpush1.msra.mxu0 %v1120
        %2332 = vmatprep.subr.mxu0 0.0
        %2333 = vmatpush1.msra.mxu0 %v1121
        %2334 = vmatprep.subr.mxu0 0.0
        %2335 = vmatpush1.msra.mxu0 %v1122
        %2336 = vmatprep.subr.mxu0 0.0
        %2337 = vmatpush1.msra.mxu0 %v1123
        %2338 = vmatprep.subr.mxu0 0.0
        %2339 = vmatpush1.msra.mxu0 %v1124
        %2340 = vmatprep.subr.mxu0 0.0
        %2341 = vmatpush1.msra.mxu0 %v1125
        %2342 = vmatprep.subr.mxu0 0.0
        %2343 = vmatpush1.msra.mxu0 %v1126
        %2344 = vmatprep.subr.mxu0 0.0
        %2345 = vmatpush1.msra.mxu0 %v1127
        %2346 = vmatprep.subr.mxu0 0.0
        %2347 = vmatpush1.msra.mxu0 %v1128
        %2348 = vmatprep.subr.mxu0 0.0
        %2349 = vmatpush1.msra.mxu0 %v1129
        %2350 = vmatprep.subr.mxu0 0.0
        %2351 = vmatpush1.msra.mxu0 %v1130
        %2352 = vmatprep.subr.mxu0 0.0
        %2353 = vmatpush1.msra.mxu0 %v1131
        %2354 = vmatprep.subr.mxu0 0.0
        %2355 = vmatpush1.msra.mxu0 %v1132
        %2356 = vmatprep.subr.mxu0 0.0
        %2357 = vmatpush1.msra.mxu0 %v1133
        %2358 = vmatprep.subr.mxu0 0.0
        %2359 = vmatpush1.msra.mxu0 %v1134
        %2360 = vmatprep.subr.mxu0 0.0
        %2361 = vmatpush1.msra.mxu0 %v1135
        %2362 = vmatprep.subr.mxu0 0.0
        %2363 = vmatpush1.msra.mxu0 %v1136
        %2364 = vmatprep.subr.mxu0 0.0
        %2365 = vmatpush1.msra.mxu0 %v1137
        %2366 = vmatprep.subr.mxu0 0.0
        %2367 = vmatpush1.msra.mxu0 %v1138
        %2368 = vmatprep.subr.mxu0 0.0
        %2369 = vmatpush1.msra.mxu0 %v1139
        %2370 = vmatprep.subr.mxu0 0.0
        %2371 = vmatpush1.msra.mxu0 %v1140
        %2372 = vmatprep.subr.mxu0 0.0
        %2373 = vmatpush1.msra.mxu0 %v1141
        %2374 = vmatprep.subr.mxu0 0.0
        %2375 = vmatpush1.msra.mxu0 %v1142
        %2376 = vmatprep.subr.mxu0 0.0
        %2377 = vmatpush1.msra.mxu0 %v1143
        %2378 = vmatprep.subr.mxu0 0.0
        %2379 = vmatpush1.msra.mxu0 %v1144
        %2380 = vmatprep.subr.mxu0 0.0
        %2381 = vmatpush1.msra.mxu0 %v1145
        %2382 = vmatprep.subr.mxu0 0.0
        %2383 = vmatpush1.msra.mxu0 %v1146
        %2384 = vmatprep.subr.mxu0 0.0
        %2385 = vmatpush1.msra.mxu0 %v1147
        %2386 = vmatprep.subr.mxu0 0.0
        %2387 = vmatpush1.msra.mxu0 %v1148
        %2388 = vmatprep.subr.mxu0 0.0
        %2389 = vmatpush1.msra.mxu0 %v1149
        %2390 = vmatprep.subr.mxu0 0.0
        %2391 = vmatpush1.msra.mxu0 %v1150
        %2392 = vmatprep.mubr.f32.mxu0 %v1307
        %2393 = vmatmul.mubr.f32.gmra.mrb[0].mxu0 %v1303
        %v2394 = vpop.f32.mrb[0].mxu0
        %v2395 = vadd.f32 %v2325, %v2394
        %v2396 = vpop.f32.mrb[0].mxu0
        %2397 = vdwg.mxu0
        %2398 = vmatprep.subr.mxu0 0.0
        %2399 = vmatpush1.msra.mxu0 %v1151
        %2400 = vmatprep.subr.mxu0 0.0
        %2401 = vmatpush1.msra.mxu0 %v1152
        %2402 = vmatprep.subr.mxu0 0.0
        %2403 = vmatpush1.msra.mxu0 %v1153
        %2404 = vmatprep.subr.mxu0 0.0
        %2405 = vmatpush1.msra.mxu0 %v1154
        %2406 = vmatprep.subr.mxu0 0.0
        %2407 = vmatpush1.msra.mxu0 %v1155
        %2408 = vmatprep.subr.mxu0 0.0
        %2409 = vmatpush1.msra.mxu0 %v1156
        %2410 = vmatprep.subr.mxu0 0.0
        %2411 = vmatpush1.msra.mxu0 %v1157
        %2412 = vmatprep.subr.mxu0 0.0
        %2413 = vmatpush1.msra.mxu0 %v1158
        %2414 = vmatprep.subr.mxu0 0.0
        %2415 = vmatpush1.msra.mxu0 %v1159
        %2416 = vmatprep.subr.mxu0 0.0
        %2417 = vmatpush1.msra.mxu0 %v1160
        %2418 = vmatprep.subr.mxu0 0.0
        %2419 = vmatpush1.msra.mxu0 %v1161
        %2420 = vmatprep.subr.mxu0 0.0
        %2421 = vmatpush1.msra.mxu0 %v1162
        %2422 = vmatprep.subr.mxu0 0.0
        %2423 = vmatpush1.msra.mxu0 %v1163
        %2424 = vmatprep.subr.mxu0 0.0
        %2425 = vmatpush1.msra.mxu0 %v1164
        %2426 = vmatprep.subr.mxu0 0.0
        %2427 = vmatpush1.msra.mxu0 %v1165
        %2428 = vmatprep.subr.mxu0 0.0
        %2429 = vmatpush1.msra.mxu0 %v1166
        %2430 = vmatprep.subr.mxu0 0.0
        %2431 = vmatpush1.msra.mxu0 %v1167
        %2432 = vmatprep.subr.mxu0 0.0
        %2433 = vmatpush1.msra.mxu0 %v1168
        %2434 = vmatprep.subr.mxu0 0.0
        %2435 = vmatpush1.msra.mxu0 %v1169
        %2436 = vmatprep.subr.mxu0 0.0
        %2437 = vmatpush1.msra.mxu0 %v1170
        %2438 = vmatprep.subr.mxu0 0.0
        %2439 = vmatpush1.msra.mxu0 %v1171
        %2440 = vmatprep.subr.mxu0 0.0
        %2441 = vmatpush1.msra.mxu0 %v1172
        %2442 = vmatprep.subr.mxu0 0.0
        %2443 = vmatpush1.msra.mxu0 %v1173
        %2444 = vmatprep.subr.mxu0 0.0
        %2445 = vmatpush1.msra.mxu0 %v1174
        %2446 = vmatprep.subr.mxu0 0.0
        %2447 = vmatpush1.msra.mxu0 %v1175
        %2448 = vmatprep.subr.mxu0 0.0
        %2449 = vmatpush1.msra.mxu0 %v1176
        %2450 = vmatprep.subr.mxu0 0.0
        %2451 = vmatpush1.msra.mxu0 %v1177
        %2452 = vmatprep.subr.mxu0 0.0
        %2453 = vmatpush1.msra.mxu0 %v1178
        %2454 = vmatprep.subr.mxu0 0.0
        %2455 = vmatpush1.msra.mxu0 %v1179
        %2456 = vmatprep.subr.mxu0 0.0
        %2457 = vmatpush1.msra.mxu0 %v1180
        %2458 = vmatprep.subr.mxu0 0.0
        %2459 = vmatpush1.msra.mxu0 %v1181
        %2460 = vmatprep.subr.mxu0 0.0
        %2461 = vmatpush1.msra.mxu0 %v1182
        %2462 = vmatprep.mubr.f32.mxu0 %v1315
        %2463 = vmatmul.mubr.f32.gmra.mrb[0].mxu0 %v1311
        %v2464 = vpop.f32.mrb[0].mxu0
        %v2465 = vadd.f32 %v2395, %v2464
        %v2466 = vpop.f32.mrb[0].mxu0
        %2467 = vdwg.mxu0
        %v2468 = vmax.f32 %v2465, 0.0
        %v2469 = vld [vmem:[#allocation6] sm:$0xff]
        %v2470 = vld [vmem:[#allocation6 + $0x8] sm:$0xff]
        %v2471 = vld [vmem:[#allocation6 + $0x10] sm:$0xff]
        %v2472 = vld [vmem:[#allocation6 + $0x18] sm:$0xff]
        %v2473 = vld [vmem:[#allocation6 + $0x20] sm:$0xff]
        %v2474 = vld [vmem:[#allocation6 + $0x28] sm:$0xff]
        %v2475 = vld [vmem:[#allocation6 + $0x30] sm:$0xff]
        %v2476 = vld [vmem:[#allocation6 + $0x38] sm:$0xff]
        %v2477 = vld [vmem:[#allocation6 + $0x40] sm:$0xff]
        %v2478 = vld [vmem:[#allocation6 + $0x48] sm:$0xff]
        %v2479 = vld [vmem:[#allocation6 + $0x50] sm:$0xff]
        %v2480 = vld [vmem:[#allocation6 + $0x58] sm:$0xff]
        %v2481 = vld [vmem:[#allocation6 + $0x60] sm:$0xff]
        %v2482 = vld [vmem:[#allocation6 + $0x68] sm:$0xff]
        %v2483 = vld [vmem:[#allocation6 + $0x70] sm:$0xff]
        %v2484 = vld [vmem:[#allocation6 + $0x78] sm:$0xff]
        %v2485 = vld [vmem:[#allocation8] sm:$0x3]
        %v2487 = vlaneseq
        %v2488 = vshrl.u32 %v2487, 7
        %v2489 = vsub.s32 0, %v2488
        %v2490 = vrot.slane %v2485, %v2489
        %v2491 = vlaneseq
        %v2492 = vshrl.u32 %v2491, 7
        %v2493 = vsub.s32 1, %v2492
        %v2494 = vrot.slane %v2485, %v2493
        %vm2497 = vcmask 523264
        %v2499 = vsel %vm2497, %v2468, 0
        %2501 = vmatprep.subr.mxu0 %v2470
        %2502 = vmatpush1.msra.mxu0 %v2469
        %2503 = vmatprep.subr.mxu0 %v2472
        %2504 = vmatpush1.msra.mxu0 %v2471
        %2505 = vmatprep.subr.mxu0 %v2474
        %2506 = vmatpush1.msra.mxu0 %v2473
        %2507 = vmatprep.subr.mxu0 %v2476
        %2508 = vmatpush1.msra.mxu0 %v2475
        %2509 = vmatprep.subr.mxu0 %v2478
        %2510 = vmatpush1.msra.mxu0 %v2477
        %2511 = vmatprep.subr.mxu0 %v2480
        %2512 = vmatpush1.msra.mxu0 %v2479
        %2513 = vmatprep.subr.mxu0 %v2482
        %2514 = vmatpush1.msra.mxu0 %v2481
        %2515 = vmatprep.subr.mxu0 %v2484
        %2516 = vmatpush1.msra.mxu0 %v2483
        %2517 = vmatprep.subr.mxu0 0.0
        %2518 = vmatpush1.msra.mxu0 0.0
        %2519 = vmatprep.subr.mxu0 0.0
        %2520 = vmatpush1.msra.mxu0 0.0
        %2521 = vmatprep.subr.mxu0 0.0
        %2522 = vmatpush1.msra.mxu0 0.0
        %2523 = vmatprep.subr.mxu0 0.0
        %2524 = vmatpush1.msra.mxu0 0.0
        %2525 = vmatprep.subr.mxu0 0.0
        %2526 = vmatpush1.msra.mxu0 0.0
        %2527 = vmatprep.subr.mxu0 0.0
        %2528 = vmatpush1.msra.mxu0 0.0
        %2529 = vmatprep.subr.mxu0 0.0
        %2530 = vmatpush1.msra.mxu0 0.0
        %2531 = vmatprep.subr.mxu0 0.0
        %2532 = vmatpush1.msra.mxu0 0.0
        %2533 = vmatprep.subr.mxu0 0.0
        %2534 = vmatpush1.msra.mxu0 0.0
        %2535 = vmatprep.subr.mxu0 0.0
        %2536 = vmatpush1.msra.mxu0 0.0
        %2537 = vmatprep.subr.mxu0 0.0
        %2538 = vmatpush1.msra.mxu0 0.0
        %2539 = vmatprep.subr.mxu0 0.0
        %2540 = vmatpush1.msra.mxu0 0.0
        %2541 = vmatprep.subr.mxu0 0.0
        %2542 = vmatpush1.msra.mxu0 0.0
        %2543 = vmatprep.subr.mxu0 0.0
        %2544 = vmatpush1.msra.mxu0 0.0
        %2545 = vmatprep.subr.mxu0 0.0
        %2546 = vmatpush1.msra.mxu0 0.0
        %2547 = vmatprep.subr.mxu0 0.0
        %2548 = vmatpush1.msra.mxu0 0.0
        %2549 = vmatprep.subr.mxu0 0.0
        %2550 = vmatpush1.msra.mxu0 0.0
        %2551 = vmatprep.subr.mxu0 0.0
        %2552 = vmatpush1.msra.mxu0 0.0
        %2553 = vmatprep.subr.mxu0 0.0
        %2554 = vmatpush1.msra.mxu0 0.0
        %2555 = vmatprep.subr.mxu0 0.0
        %2556 = vmatpush1.msra.mxu0 0.0
        %2557 = vmatprep.subr.mxu0 0.0
        %2558 = vmatpush1.msra.mxu0 0.0
        %2559 = vmatprep.subr.mxu0 0.0
        %2560 = vmatpush1.msra.mxu0 0.0
        %2561 = vmatprep.subr.mxu0 0.0
        %2562 = vmatpush1.msra.mxu0 0.0
        %2563 = vmatprep.subr.mxu0 0.0
        %2564 = vmatpush1.msra.mxu0 0.0
        %2565 = vmatprep.mubr.f32.mxu0 0.0
        %2566 = vmatmul.mubr.f32.gmra.mrb[0].mxu0 %v2499
        %v2567 = vpop.f32.mrb[0].mxu0
        %v2568 = vadd.f32 %v2490, %v2567
        %v2569 = vpop.f32.mrb[0].mxu0
        %v2570 = vadd.f32 %v2494, %v2569
        %2571 = vdwg.mxu0
        %v2572 = vmax.f32 %v2568, 0.0
        %v2573 = vmax.f32 %v2570, 0.0
        %v2574 = vld [vmem:[#allocation9] sm:$0xff]
        %v2575 = vld [vmem:[#allocation9 + $0x8] sm:$0xff]
        %v2576 = vld [vmem:[#allocation9 + $0x10] sm:$0xff]
        %v2577 = vld [vmem:[#allocation9 + $0x18] sm:$0xff]
        %v2578 = vld [vmem:[#allocation9 + $0x20] sm:$0xff]
        %v2579 = vld [vmem:[#allocation9 + $0x28] sm:$0xff]
        %v2580 = vld [vmem:[#allocation9 + $0x30] sm:$0xff]
        %v2581 = vld [vmem:[#allocation9 + $0x38] sm:$0xff]
        %v2582 = vld [vmem:[#allocation9 + $0x40] sm:$0xff]
        %v2583 = vld [vmem:[#allocation9 + $0x48] sm:$0xff]
        %v2584 = vld [vmem:[#allocation9 + $0x50] sm:$0xff]
        %v2585 = vld [vmem:[#allocation9 + $0x58] sm:$0xff]
        %v2586 = vld [vmem:[#allocation9 + $0x60] sm:$0xff]
        %v2587 = vld [vmem:[#allocation9 + $0x68] sm:$0xff]
        %v2588 = vld [vmem:[#allocation9 + $0x70] sm:$0xff]
        %v2589 = vld [vmem:[#allocation9 + $0x78] sm:$0xff]
        %v2590 = vld [vmem:[#allocation9 + $0x80] sm:$0xff]
        %v2591 = vld [vmem:[#allocation9 + $0x88] sm:$0xff]
        %v2592 = vld [vmem:[#allocation9 + $0x90] sm:$0xff]
        %v2593 = vld [vmem:[#allocation9 + $0x98] sm:$0xff]
        %v2594 = vld [vmem:[#allocation9 + $0xa0] sm:$0xff]
        %v2595 = vld [vmem:[#allocation9 + $0xa8] sm:$0xff]
        %v2596 = vld [vmem:[#allocation9 + $0xb0] sm:$0xff]
        %v2597 = vld [vmem:[#allocation9 + $0xb8] sm:$0xff]
        %v2598 = vld [vmem:[#allocation9 + $0xc0] sm:$0xff]
        %v2599 = vld [vmem:[#allocation9 + $0xc8] sm:$0xff]
        %v2600 = vld [vmem:[#allocation9 + $0xd0] sm:$0xff]
        %v2601 = vld [vmem:[#allocation9 + $0xd8] sm:$0xff]
        %v2602 = vld [vmem:[#allocation9 + $0xe0] sm:$0xff]
        %v2603 = vld [vmem:[#allocation9 + $0xe8] sm:$0xff]
        %v2604 = vld [vmem:[#allocation9 + $0xf0] sm:$0xff]
        %v2605 = vld [vmem:[#allocation9 + $0xf8] sm:$0xff]
        %v2606 = vld [vmem:[#allocation11] sm:$0x1]
        %2607 = vmatprep.subr.mxu0 0.0
        %2608 = vmatpush1.msra.mxu0 %v2574
        %2609 = vmatprep.subr.mxu0 0.0
        %2610 = vmatpush1.msra.mxu0 %v2575
        %2611 = vmatprep.subr.mxu0 0.0
        %2612 = vmatpush1.msra.mxu0 %v2576
        %2613 = vmatprep.subr.mxu0 0.0
        %2614 = vmatpush1.msra.mxu0 %v2577
        %2615 = vmatprep.subr.mxu0 0.0
        %2616 = vmatpush1.msra.mxu0 %v2578
        %2617 = vmatprep.subr.mxu0 0.0
        %2618 = vmatpush1.msra.mxu0 %v2579
        %2619 = vmatprep.subr.mxu0 0.0
        %2620 = vmatpush1.msra.mxu0 %v2580
        %2621 = vmatprep.subr.mxu0 0.0
        %2622 = vmatpush1.msra.mxu0 %v2581
        %2623 = vmatprep.subr.mxu0 0.0
        %2624 = vmatpush1.msra.mxu0 %v2582
        %2625 = vmatprep.subr.mxu0 0.0
        %2626 = vmatpush1.msra.mxu0 %v2583
        %2627 = vmatprep.subr.mxu0 0.0
        %2628 = vmatpush1.msra.mxu0 %v2584
        %2629 = vmatprep.subr.mxu0 0.0
        %2630 = vmatpush1.msra.mxu0 %v2585
        %2631 = vmatprep.subr.mxu0 0.0
        %2632 = vmatpush1.msra.mxu0 %v2586
        %2633 = vmatprep.subr.mxu0 0.0
        %2634 = vmatpush1.msra.mxu0 %v2587
        %2635 = vmatprep.subr.mxu0 0.0
        %2636 = vmatpush1.msra.mxu0 %v2588
        %2637 = vmatprep.subr.mxu0 0.0
        %2638 = vmatpush1.msra.mxu0 %v2589
        %2639 = vmatprep.subr.mxu0 0.0
        %2640 = vmatpush1.msra.mxu0 %v2590
        %2641 = vmatprep.subr.mxu0 0.0
        %2642 = vmatpush1.msra.mxu0 %v2591
        %2643 = vmatprep.subr.mxu0 0.0
        %2644 = vmatpush1.msra.mxu0 %v2592
        %2645 = vmatprep.subr.mxu0 0.0
        %2646 = vmatpush1.msra.mxu0 %v2593
        %2647 = vmatprep.subr.mxu0 0.0
        %2648 = vmatpush1.msra.mxu0 %v2594
        %2649 = vmatprep.subr.mxu0 0.0
        %2650 = vmatpush1.msra.mxu0 %v2595
        %2651 = vmatprep.subr.mxu0 0.0
        %2652 = vmatpush1.msra.mxu0 %v2596
        %2653 = vmatprep.subr.mxu0 0.0
        %2654 = vmatpush1.msra.mxu0 %v2597
        %2655 = vmatprep.subr.mxu0 0.0
        %2656 = vmatpush1.msra.mxu0 %v2598
        %2657 = vmatprep.subr.mxu0 0.0
        %2658 = vmatpush1.msra.mxu0 %v2599
        %2659 = vmatprep.subr.mxu0 0.0
        %2660 = vmatpush1.msra.mxu0 %v2600
        %2661 = vmatprep.subr.mxu0 0.0
        %2662 = vmatpush1.msra.mxu0 %v2601
        %2663 = vmatprep.subr.mxu0 0.0
        %2664 = vmatpush1.msra.mxu0 %v2602
        %2665 = vmatprep.subr.mxu0 0.0
        %2666 = vmatpush1.msra.mxu0 %v2603
        %2667 = vmatprep.subr.mxu0 0.0
        %2668 = vmatpush1.msra.mxu0 %v2604
        %2669 = vmatprep.subr.mxu0 0.0
        %2670 = vmatpush1.msra.mxu0 %v2605
        %2671 = vmatprep.mubr.f32.mxu0 %v2573
        %2672 = vmatmul.mubr.f32.gmra.mrb[0].mxu0 %v2572
        %v2673 = vpop.f32.mrb[0].mxu0
        %v2674 = vadd.f32 %v2606, %v2673
        %v2675 = vpop.f32.mrb[0].mxu0
        %2676 = vdwg.mxu0
        %v2677 = vadd.f32 %v2674, 0.5
        %v2678 = vmax.f32 %v2677, 0.0
        %v2679 = vand.u32 2147483647, %v2677
        %v2680 = vsub.f32 0.0, %v2679
        %v2681 = vmul.f32 %v2680, 1.442695
        %v2682 = vpow.pop %v2681
        %v2683 = vadd.f32 %v2682, 1.0
        %v2684 = vlog2.pop %v2683
        %v2685 = vmul.f32 %v2684, 0.6931472
        %v2686 = vadd.f32 %v2678, %v2685
        %v2687 = vadd.f32 %v2686, 1e-08
        %v2688 = vld [vmem:[%s661] sm:$0x1]
        %v2690 = vlaneseq
        %v2691 = vshrl.u32 %v2690, 7
        %v2692 = vsub.s32 0, %v2691
        %v2693 = vrot.slane %v2688, %v2692
        %2694 = vrot.lane.b32.xlu0 %v2693, 16
        %v2695 = vpop.permute.xlu0 %2694
        %v2697 = vmul.f32 %v2687, %v2695
        %2699 = vrot.lane.b32.xlu0 %v2697, 112
        %v2700 = vpop.permute.xlu0 %2699
        %v2702 = vadd.f32 %v2674, %v2700
        %vm2703 = vcmask 122880
        %2704 = vst.msk [vmem:[%s642] sm:$0x1] %vm2703, %v2674
        %2706 = vrot.lane.b32.xlu0 %v2687, 112
        %v2707 = vpop.permute.xlu0 %2706
        %2709 = vst.msk [vmem:[%s648] sm:$0x1] %vm2703, %v2707
        %2710 = vst.msk [vmem:[%s654] sm:$0x1] %vm2703, %v2702
        %v2711 = vld [vmem:[%s8] sm:$0xff]
        %v2712 = vld [vmem:[%s8 + $0x8] sm:$0xff]
        %vm2713 = vcmask 130048
        %v2715 = vsel %vm2713, %v2702, 0
        %2717 = vmatprep.subr.mxu0 0.0
        %2718 = vmatpush1.msra.mxu0 %v2711
        %2719 = vmatprep.subr.mxu0 0.0
        %2720 = vmatpush1.msra.mxu0 %v2712
        %2721 = vmatprep.subr.mxu0 0.0
        %2722 = vmatpush1.msra.mxu0 0.0
        %2723 = vmatprep.subr.mxu0 0.0
        %2724 = vmatpush1.msra.mxu0 0.0
        %2725 = vmatprep.subr.mxu0 0.0
        %2726 = vmatpush1.msra.mxu0 0.0
        %2727 = vmatprep.subr.mxu0 0.0
        %2728 = vmatpush1.msra.mxu0 0.0
        %2729 = vmatprep.subr.mxu0 0.0
        %2730 = vmatpush1.msra.mxu0 0.0
        %2731 = vmatprep.subr.mxu0 0.0
        %2732 = vmatpush1.msra.mxu0 0.0
        %2733 = vmatprep.subr.mxu0 0.0
        %2734 = vmatpush1.msra.mxu0 0.0
        %2735 = vmatprep.subr.mxu0 0.0
        %2736 = vmatpush1.msra.mxu0 0.0
        %2737 = vmatprep.subr.mxu0 0.0
        %2738 = vmatpush1.msra.mxu0 0.0
        %2739 = vmatprep.subr.mxu0 0.0
        %2740 = vmatpush1.msra.mxu0 0.0
        %2741 = vmatprep.subr.mxu0 0.0
        %2742 = vmatpush1.msra.mxu0 0.0
        %2743 = vmatprep.subr.mxu0 0.0
        %2744 = vmatpush1.msra.mxu0 0.0
        %2745 = vmatprep.subr.mxu0 0.0
        %2746 = vmatpush1.msra.mxu0 0.0
        %2747 = vmatprep.subr.mxu0 0.0
        %2748 = vmatpush1.msra.mxu0 0.0
        %2749 = vmatprep.subr.mxu0 0.0
        %2750 = vmatpush1.msra.mxu0 0.0
        %2751 = vmatprep.subr.mxu0 0.0
        %2752 = vmatpush1.msra.mxu0 0.0
        %2753 = vmatprep.subr.mxu0 0.0
        %2754 = vmatpush1.msra.mxu0 0.0
        %2755 = vmatprep.subr.mxu0 0.0
        %2756 = vmatpush1.msra.mxu0 0.0
        %2757 = vmatprep.subr.mxu0 0.0
        %2758 = vmatpush1.msra.mxu0 0.0
        %2759 = vmatprep.subr.mxu0 0.0
        %2760 = vmatpush1.msra.mxu0 0.0
        %2761 = vmatprep.subr.mxu0 0.0
        %2762 = vmatpush1.msra.mxu0 0.0
        %2763 = vmatprep.subr.mxu0 0.0
        %2764 = vmatpush1.msra.mxu0 0.0
        %2765 = vmatprep.subr.mxu0 0.0
        %2766 = vmatpush1.msra.mxu0 0.0
        %2767 = vmatprep.subr.mxu0 0.0
        %2768 = vmatpush1.msra.mxu0 0.0
        %2769 = vmatprep.subr.mxu0 0.0
        %2770 = vmatpush1.msra.mxu0 0.0
        %2771 = vmatprep.subr.mxu0 0.0
        %2772 = vmatpush1.msra.mxu0 0.0
        %2773 = vmatprep.subr.mxu0 0.0
        %2774 = vmatpush1.msra.mxu0 0.0
        %2775 = vmatprep.subr.mxu0 0.0
        %2776 = vmatpush1.msra.mxu0 0.0
        %2777 = vmatprep.subr.mxu0 0.0
        %2778 = vmatpush1.msra.mxu0 0.0
        %2779 = vmatprep.subr.mxu0 0.0
        %2780 = vmatpush1.msra.mxu0 0.0
        %2781 = vmatprep.mubr.f32.mxu0 0.0
        %2782 = vmatmul.mubr.f32.gmra.mrb[0].mxu0 %v2715
        %v2783 = vpop.f32.mrb[0].mxu0
        %v2784 = vadd.f32 0.0, %v2783
        %v2785 = vpop.f32.mrb[0].mxu0
        %2786 = vdwg.mxu0
        %v2787 = vld [vmem:[#allocation12] sm:$0xff]
        %v2788 = vld [vmem:[#allocation12 + $0x8] sm:$0xff]
        %v2789 = vld [vmem:[#allocation12 + $0x10] sm:$0x3]
        %v2790 = vld [vmem:[#allocation12 + $0x18] sm:$0xff]
        %v2791 = vld [vmem:[#allocation12 + $0x20] sm:$0xff]
        %v2792 = vld [vmem:[#allocation12 + $0x28] sm:$0x3]
        %v2793 = vld [vmem:[#allocation12 + $0x30] sm:$0xff]
        %v2794 = vld [vmem:[#allocation12 + $0x38] sm:$0xff]
        %v2795 = vld [vmem:[#allocation12 + $0x40] sm:$0x3]
        %v2796 = vld [vmem:[#allocation12 + $0x48] sm:$0xff]
        %v2797 = vld [vmem:[#allocation12 + $0x50] sm:$0xff]
        %v2798 = vld [vmem:[#allocation12 + $0x58] sm:$0x3]
        %v2799 = vld [vmem:[#allocation12 + $0x60] sm:$0xff]
        %v2800 = vld [vmem:[#allocation12 + $0x68] sm:$0xff]
        %v2801 = vld [vmem:[#allocation12 + $0x70] sm:$0x3]
        %v2802 = vld [vmem:[#allocation12 + $0x78] sm:$0xff]
        %v2803 = vld [vmem:[#allocation12 + $0x80] sm:$0xff]
        %v2804 = vld [vmem:[#allocation12 + $0x88] sm:$0x3]
        %v2805 = vld [vmem:[#allocation12 + $0x90] sm:$0xff]
        %v2806 = vld [vmem:[#allocation12 + $0x98] sm:$0xff]
        %v2807 = vld [vmem:[#allocation12 + $0xa0] sm:$0x3]
        %v2808 = vld [vmem:[#allocation12 + $0xa8] sm:$0xff]
        %v2809 = vld [vmem:[#allocation12 + $0xb0] sm:$0xff]
        %v2810 = vld [vmem:[#allocation12 + $0xb8] sm:$0x3]
        %v2811 = vld [vmem:[#allocation12 + $0xc0] sm:$0xff]
        %v2812 = vld [vmem:[#allocation12 + $0xc8] sm:$0xff]
        %v2813 = vld [vmem:[#allocation12 + $0xd0] sm:$0x3]
        %v2814 = vld [vmem:[#allocation12 + $0xd8] sm:$0xff]
        %v2815 = vld [vmem:[#allocation12 + $0xe0] sm:$0xff]
        %v2816 = vld [vmem:[#allocation12 + $0xe8] sm:$0x3]
        %v2817 = vld [vmem:[#allocation12 + $0xf0] sm:$0xff]
        %v2818 = vld [vmem:[#allocation12 + $0xf8] sm:$0xff]
        %v2819 = vld [vmem:[#allocation12 + $0x100] sm:$0x3]
        %v2820 = vld [vmem:[#allocation12 + $0x108] sm:$0xff]
        %v2821 = vld [vmem:[#allocation12 + $0x110] sm:$0xff]
        %v2822 = vld [vmem:[#allocation12 + $0x118] sm:$0x3]
        %v2823 = vld [vmem:[#allocation12 + $0x120] sm:$0xff]
        %v2824 = vld [vmem:[#allocation12 + $0x128] sm:$0xff]
        %v2825 = vld [vmem:[#allocation12 + $0x130] sm:$0x3]
        %v2826 = vld [vmem:[#allocation12 + $0x138] sm:$0xff]
        %v2827 = vld [vmem:[#allocation12 + $0x140] sm:$0xff]
        %v2828 = vld [vmem:[#allocation12 + $0x148] sm:$0x3]
        %v2829 = vld [vmem:[#allocation12 + $0x150] sm:$0xff]
        %v2830 = vld [vmem:[#allocation12 + $0x158] sm:$0xff]
        %v2831 = vld [vmem:[#allocation12 + $0x160] sm:$0x3]
        %v2832 = vld [vmem:[#allocation12 + $0x168] sm:$0xff]
        %v2833 = vld [vmem:[#allocation12 + $0x170] sm:$0xff]
        %v2834 = vld [vmem:[#allocation12 + $0x178] sm:$0x3]
        %v2835 = vld [vmem:[#allocation12 + $0x180] sm:$0xff]
        %v2836 = vld [vmem:[#allocation12 + $0x188] sm:$0xff]
        %v2837 = vld [vmem:[#allocation12 + $0x190] sm:$0x3]
        %v2838 = vld [vmem:[#allocation12 + $0x198] sm:$0xff]
        %v2839 = vld [vmem:[#allocation12 + $0x1a0] sm:$0xff]
        %v2840 = vld [vmem:[#allocation12 + $0x1a8] sm:$0x3]
        %v2841 = vlaneseq
        %v2842 = vshrl.u32 %v2841, 7
        %v2843 = vsub.s32 0, %v2842
        %v2844 = vrot.slane %v2784, %v2843
        %v2845 = vadd.f32 %v2787, %v2844
        %v2846 = vadd.f32 %v2788, %v2844
        %v2847 = vadd.f32 %v2789, %v2844
        %v2848 = vadd.f32 %v2790, %v2844
        %v2849 = vadd.f32 %v2791, %v2844
        %v2850 = vadd.f32 %v2792, %v2844
        %v2851 = vadd.f32 %v2793, %v2844
        %v2852 = vadd.f32 %v2794, %v2844
        %v2853 = vadd.f32 %v2795, %v2844
        %v2854 = vadd.f32 %v2796, %v2844
        %v2855 = vadd.f32 %v2797, %v2844
        %v2856 = vadd.f32 %v2798, %v2844
        %v2857 = vadd.f32 %v2799, %v2844
        %v2858 = vadd.f32 %v2800, %v2844
        %v2859 = vadd.f32 %v2801, %v2844
        %v2860 = vadd.f32 %v2802, %v2844
        %v2861 = vadd.f32 %v2803, %v2844
        %v2862 = vadd.f32 %v2804, %v2844
        %v2863 = vadd.f32 %v2805, %v2844
        %v2864 = vadd.f32 %v2806, %v2844
        %v2865 = vadd.f32 %v2807, %v2844
        %v2866 = vadd.f32 %v2808, %v2844
        %v2867 = vadd.f32 %v2809, %v2844
        %v2868 = vadd.f32 %v2810, %v2844
        %v2869 = vadd.f32 %v2811, %v2844
        %v2870 = vadd.f32 %v2812, %v2844
        %v2871 = vadd.f32 %v2813, %v2844
        %v2872 = vadd.f32 %v2814, %v2844
        %v2873 = vadd.f32 %v2815, %v2844
        %v2874 = vadd.f32 %v2816, %v2844
        %v2875 = vadd.f32 %v2817, %v2844
        %v2876 = vadd.f32 %v2818, %v2844
        %v2877 = vadd.f32 %v2819, %v2844
        %v2878 = vadd.f32 %v2820, %v2844
        %v2879 = vadd.f32 %v2821, %v2844
        %v2880 = vadd.f32 %v2822, %v2844
        %v2881 = vadd.f32 %v2823, %v2844
        %v2882 = vadd.f32 %v2824, %v2844
        %v2883 = vadd.f32 %v2825, %v2844
        %v2884 = vadd.f32 %v2826, %v2844
        %v2885 = vadd.f32 %v2827, %v2844
        %v2886 = vadd.f32 %v2828, %v2844
        %v2887 = vadd.f32 %v2829, %v2844
        %v2888 = vadd.f32 %v2830, %v2844
        %v2889 = vadd.f32 %v2831, %v2844
        %v2890 = vadd.f32 %v2832, %v2844
        %v2891 = vadd.f32 %v2833, %v2844
        %v2892 = vadd.f32 %v2834, %v2844
        %v2893 = vadd.f32 %v2835, %v2844
        %v2894 = vadd.f32 %v2836, %v2844
        %v2895 = vadd.f32 %v2837, %v2844
        %v2896 = vadd.f32 %v2838, %v2844
        %v2897 = vadd.f32 %v2839, %v2844
        %v2898 = vadd.f32 %v2840, %v2844
        %v2899 = vmax.f32 %v2845, 0.0
        %v2900 = vmax.f32 %v2846, 0.0
        %v2901 = vmax.f32 %v2847, 0.0
        %v2902 = vmax.f32 %v2848, 0.0
        %v2903 = vmax.f32 %v2849, 0.0
        %v2904 = vmax.f32 %v2850, 0.0
        %v2905 = vmax.f32 %v2851, 0.0
        %v2906 = vmax.f32 %v2852, 0.0
        %v2907 = vmax.f32 %v2853, 0.0
        %v2908 = vmax.f32 %v2854, 0.0
        %v2909 = vmax.f32 %v2855, 0.0
        %v2910 = vmax.f32 %v2856, 0.0
        %v2911 = vmax.f32 %v2857, 0.0
        %v2912 = vmax.f32 %v2858, 0.0
        %v2913 = vmax.f32 %v2859, 0.0
        %v2914 = vmax.f32 %v2860, 0.0
        %v2915 = vmax.f32 %v2861, 0.0
        %v2916 = vmax.f32 %v2862, 0.0
        %v2917 = vmax.f32 %v2863, 0.0
        %v2918 = vmax.f32 %v2864, 0.0
        %v2919 = vmax.f32 %v2865, 0.0
        %v2920 = vmax.f32 %v2866, 0.0
        %v2921 = vmax.f32 %v2867, 0.0
        %v2922 = vmax.f32 %v2868, 0.0
        %v2923 = vmax.f32 %v2869, 0.0
        %v2924 = vmax.f32 %v2870, 0.0
        %v2925 = vmax.f32 %v2871, 0.0
        %v2926 = vmax.f32 %v2872, 0.0
        %v2927 = vmax.f32 %v2873, 0.0
        %v2928 = vmax.f32 %v2874, 0.0
        %v2929 = vmax.f32 %v2875, 0.0
        %v2930 = vmax.f32 %v2876, 0.0
        %v2931 = vmax.f32 %v2877, 0.0
        %v2932 = vmax.f32 %v2878, 0.0
        %v2933 = vmax.f32 %v2879, 0.0
        %v2934 = vmax.f32 %v2880, 0.0
        %v2935 = vmax.f32 %v2881, 0.0
        %v2936 = vmax.f32 %v2882, 0.0
        %v2937 = vmax.f32 %v2883, 0.0
        %v2938 = vmax.f32 %v2884, 0.0
        %v2939 = vmax.f32 %v2885, 0.0
        %v2940 = vmax.f32 %v2886, 0.0
        %v2941 = vmax.f32 %v2887, 0.0
        %v2942 = vmax.f32 %v2888, 0.0
        %v2943 = vmax.f32 %v2889, 0.0
        %v2944 = vmax.f32 %v2890, 0.0
        %v2945 = vmax.f32 %v2891, 0.0
        %v2946 = vmax.f32 %v2892, 0.0
        %v2947 = vmax.f32 %v2893, 0.0
        %v2948 = vmax.f32 %v2894, 0.0
        %v2949 = vmax.f32 %v2895, 0.0
        %v2950 = vmax.f32 %v2896, 0.0
        %v2951 = vmax.f32 %v2897, 0.0
        %v2952 = vmax.f32 %v2898, 0.0
        %vm2953 = vcmask 261120
        %2954 = vst.msk [vmem:[#allocation2] sm:$0xff] %vm2953, %v2899
        %2955 = vst.msk [vmem:[#allocation2 + $0x8] sm:$0xff] %vm2953, %v2900
        %vm2956 = vcmask 254976
        %2957 = vst.msk [vmem:[#allocation2 + $0x10] sm:$0x3] %vm2956, %v2901
        %2958 = vst.msk [vmem:[#allocation2 + $0x18] sm:$0xff] %vm2953, %v2902
        %2959 = vst.msk [vmem:[#allocation2 + $0x20] sm:$0xff] %vm2953, %v2903
        %2960 = vst.msk [vmem:[#allocation2 + $0x28] sm:$0x3] %vm2956, %v2904
        %2961 = vst.msk [vmem:[#allocation2 + $0x30] sm:$0xff] %vm2953, %v2905
        %2962 = vst.msk [vmem:[#allocation2 + $0x38] sm:$0xff] %vm2953, %v2906
        %2963 = vst.msk [vmem:[#allocation2 + $0x40] sm:$0x3] %vm2956, %v2907
        %2964 = vst.msk [vmem:[#allocation2 + $0x48] sm:$0xff] %vm2953, %v2908
        %2965 = vst.msk [vmem:[#allocation2 + $0x50] sm:$0xff] %vm2953, %v2909
        %2966 = vst.msk [vmem:[#allocation2 + $0x58] sm:$0x3] %vm2956, %v2910
        %2967 = vst.msk [vmem:[#allocation2 + $0x60] sm:$0xff] %vm2953, %v2911
        %2968 = vst.msk [vmem:[#allocation2 + $0x68] sm:$0xff] %vm2953, %v2912
        %2969 = vst.msk [vmem:[#allocation2 + $0x70] sm:$0x3] %vm2956, %v2913
        %2970 = vst.msk [vmem:[#allocation2 + $0x78] sm:$0xff] %vm2953, %v2914
        %2971 = vst.msk [vmem:[#allocation2 + $0x80] sm:$0xff] %vm2953, %v2915
        %2972 = vst.msk [vmem:[#allocation2 + $0x88] sm:$0x3] %vm2956, %v2916
        %2973 = vst.msk [vmem:[#allocation2 + $0x90] sm:$0xff] %vm2953, %v2917
        %2974 = vst.msk [vmem:[#allocation2 + $0x98] sm:$0xff] %vm2953, %v2918
        %2975 = vst.msk [vmem:[#allocation2 + $0xa0] sm:$0x3] %vm2956, %v2919
        %2976 = vst.msk [vmem:[#allocation2 + $0xa8] sm:$0xff] %vm2953, %v2920
        %2977 = vst.msk [vmem:[#allocation2 + $0xb0] sm:$0xff] %vm2953, %v2921
        %2978 = vst.msk [vmem:[#allocation2 + $0xb8] sm:$0x3] %vm2956, %v2922
        %2979 = vst.msk [vmem:[#allocation2 + $0xc0] sm:$0xff] %vm2953, %v2923
        %2980 = vst.msk [vmem:[#allocation2 + $0xc8] sm:$0xff] %vm2953, %v2924
        %2981 = vst.msk [vmem:[#allocation2 + $0xd0] sm:$0x3] %vm2956, %v2925
        %2982 = vst.msk [vmem:[#allocation2 + $0xd8] sm:$0xff] %vm2953, %v2926
        %2983 = vst.msk [vmem:[#allocation2 + $0xe0] sm:$0xff] %vm2953, %v2927
        %2984 = vst.msk [vmem:[#allocation2 + $0xe8] sm:$0x3] %vm2956, %v2928
        %2985 = vst.msk [vmem:[#allocation2 + $0xf0] sm:$0xff] %vm2953, %v2929
        %2986 = vst.msk [vmem:[#allocation2 + $0xf8] sm:$0xff] %vm2953, %v2930
        %2987 = vst.msk [vmem:[#allocation2 + $0x100] sm:$0x3] %vm2956, %v2931
        %2988 = vst.msk [vmem:[#allocation2 + $0x108] sm:$0xff] %vm2953, %v2932
        %2989 = vst.msk [vmem:[#allocation2 + $0x110] sm:$0xff] %vm2953, %v2933
        %2990 = vst.msk [vmem:[#allocation2 + $0x118] sm:$0x3] %vm2956, %v2934
        %2991 = vst.msk [vmem:[#allocation2 + $0x120] sm:$0xff] %vm2953, %v2935
        %2992 = vst.msk [vmem:[#allocation2 + $0x128] sm:$0xff] %vm2953, %v2936
        %2993 = vst.msk [vmem:[#allocation2 + $0x130] sm:$0x3] %vm2956, %v2937
        %2994 = vst.msk [vmem:[#allocation2 + $0x138] sm:$0xff] %vm2953, %v2938
        %2995 = vst.msk [vmem:[#allocation2 + $0x140] sm:$0xff] %vm2953, %v2939
        %2996 = vst.msk [vmem:[#allocation2 + $0x148] sm:$0x3] %vm2956, %v2940
        %2997 = vst.msk [vmem:[#allocation2 + $0x150] sm:$0xff] %vm2953, %v2941
        %2998 = vst.msk [vmem:[#allocation2 + $0x158] sm:$0xff] %vm2953, %v2942
        %2999 = vst.msk [vmem:[#allocation2 + $0x160] sm:$0x3] %vm2956, %v2943
        %3000 = vst.msk [vmem:[#allocation2 + $0x168] sm:$0xff] %vm2953, %v2944
        %3001 = vst.msk [vmem:[#allocation2 + $0x170] sm:$0xff] %vm2953, %v2945
        %3002 = vst.msk [vmem:[#allocation2 + $0x178] sm:$0x3] %vm2956, %v2946
        %3003 = vst.msk [vmem:[#allocation2 + $0x180] sm:$0xff] %vm2953, %v2947
        %3004 = vst.msk [vmem:[#allocation2 + $0x188] sm:$0xff] %vm2953, %v2948
        %3005 = vst.msk [vmem:[#allocation2 + $0x190] sm:$0x3] %vm2956, %v2949
        %3006 = vst.msk [vmem:[#allocation2 + $0x198] sm:$0xff] %vm2953, %v2950
        %3007 = vst.msk [vmem:[#allocation2 + $0x1a0] sm:$0xff] %vm2953, %v2951
        %3008 = vst.msk [vmem:[#allocation2 + $0x1a8] sm:$0x3] %vm2956, %v2952
        %v3009 = vld [vmem:[#allocation2] sm:$0xff]
        %v3010 = vld [vmem:[#allocation2 + $0x8] sm:$0xff]
        %v3011 = vld [vmem:[#allocation2 + $0x18] sm:$0xff]
        %v3012 = vld [vmem:[#allocation2 + $0x20] sm:$0xff]
        %v3013 = vld [vmem:[#allocation2 + $0x30] sm:$0xff]
        %v3014 = vld [vmem:[#allocation2 + $0x38] sm:$0xff]
        %v3015 = vld [vmem:[#allocation2 + $0x48] sm:$0xff]
        %v3016 = vld [vmem:[#allocation2 + $0x50] sm:$0xff]
        %v3017 = vld [vmem:[#allocation2 + $0x60] sm:$0xff]
        %v3018 = vld [vmem:[#allocation2 + $0x68] sm:$0xff]
        %v3019 = vld [vmem:[#allocation2 + $0x78] sm:$0xff]
        %v3020 = vld [vmem:[#allocation2 + $0x80] sm:$0xff]
        %v3021 = vld [vmem:[#allocation2 + $0x90] sm:$0xff]
        %v3022 = vld [vmem:[#allocation2 + $0x98] sm:$0xff]
        %v3023 = vld [vmem:[#allocation2 + $0xa8] sm:$0xff]
        %v3024 = vld [vmem:[#allocation2 + $0xb0] sm:$0xff]
        %v3025 = vld [vmem:[#allocation2 + $0xc0] sm:$0xff]
        %v3026 = vld [vmem:[#allocation2 + $0xc8] sm:$0xff]
        %v3027 = vld [vmem:[#allocation2 + $0xd8] sm:$0xff]
        %v3028 = vld [vmem:[#allocation2 + $0xe0] sm:$0xff]
        %v3029 = vld [vmem:[#allocation2 + $0xf0] sm:$0xff]
        %v3030 = vld [vmem:[#allocation2 + $0xf8] sm:$0xff]
        %v3031 = vld [vmem:[#allocation2 + $0x108] sm:$0xff]
        %v3032 = vld [vmem:[#allocation2 + $0x110] sm:$0xff]
        %v3033 = vld [vmem:[#allocation2 + $0x120] sm:$0xff]
        %v3034 = vld [vmem:[#allocation2 + $0x128] sm:$0xff]
        %v3035 = vld [vmem:[#allocation2 + $0x138] sm:$0xff]
        %v3036 = vld [vmem:[#allocation2 + $0x140] sm:$0xff]
        %v3037 = vld [vmem:[#allocation2 + $0x150] sm:$0xff]
        %v3038 = vld [vmem:[#allocation2 + $0x158] sm:$0xff]
        %v3039 = vld [vmem:[#allocation2 + $0x168] sm:$0xff]
        %v3040 = vld [vmem:[#allocation2 + $0x170] sm:$0xff]
        %v3041 = vld [vmem:[%s10] sm:$0xff]
        %v3042 = vld [vmem:[%s10 + $0x8] sm:$0xff]
        %v3043 = vld [vmem:[%s10 + $0x10] sm:$0xff]
        %v3044 = vld [vmem:[%s10 + $0x18] sm:$0xff]
        %v3045 = vld [vmem:[#allocation2 + $0x1] sm:$0xff]
        %v3046 = vld [vmem:[#allocation2 + $0x9] sm:$0xff]
        %v3047 = vld [vmem:[#allocation2 + $0x19] sm:$0xff]
        %v3048 = vld [vmem:[#allocation2 + $0x21] sm:$0xff]
        %v3049 = vld [vmem:[#allocation2 + $0x31] sm:$0xff]
        %v3050 = vld [vmem:[#allocation2 + $0x39] sm:$0xff]
        %v3051 = vld [vmem:[#allocation2 + $0x49] sm:$0xff]
        %v3052 = vld [vmem:[#allocation2 + $0x51] sm:$0xff]
        %v3053 = vld [vmem:[#allocation2 + $0x61] sm:$0xff]
        %v3054 = vld [vmem:[#allocation2 + $0x69] sm:$0xff]
        %v3055 = vld [vmem:[#allocation2 + $0x79] sm:$0xff]
        %v3056 = vld [vmem:[#allocation2 + $0x81] sm:$0xff]
        %v3057 = vld [vmem:[#allocation2 + $0x91] sm:$0xff]
        %v3058 = vld [vmem:[#allocation2 + $0x99] sm:$0xff]
        %v3059 = vld [vmem:[#allocation2 + $0xa9] sm:$0xff]
        %v3060 = vld [vmem:[#allocation2 + $0xb1] sm:$0xff]
        %v3061 = vld [vmem:[#allocation2 + $0xc1] sm:$0xff]
        %v3062 = vld [vmem:[#allocation2 + $0xc9] sm:$0xff]
        %v3063 = vld [vmem:[#allocation2 + $0xd9] sm:$0xff]
        %v3064 = vld [vmem:[#allocation2 + $0xe1] sm:$0xff]
        %v3065 = vld [vmem:[#allocation2 + $0xf1] sm:$0xff]
        %v3066 = vld [vmem:[#allocation2 + $0xf9] sm:$0xff]
        %v3067 = vld [vmem:[#allocation2 + $0x109] sm:$0xff]
        %v3068 = vld [vmem:[#allocation2 + $0x111] sm:$0xff]
        %v3069 = vld [vmem:[#allocation2 + $0x121] sm:$0xff]
        %v3070 = vld [vmem:[#allocation2 + $0x129] sm:$0xff]
        %v3071 = vld [vmem:[#allocation2 + $0x139] sm:$0xff]
        %v3072 = vld [vmem:[#allocation2 + $0x141] sm:$0xff]
        %v3073 = vld [vmem:[#allocation2 + $0x151] sm:$0xff]
        %v3074 = vld [vmem:[#allocation2 + $0x159] sm:$0xff]
        %v3075 = vld [vmem:[#allocation2 + $0x169] sm:$0xff]
        %v3076 = vld [vmem:[#allocation2 + $0x171] sm:$0xff]
        %s3077 = scalar_lea.vmem %s10, 32
        %v3078 = vld [vmem:[%s3077] sm:$0xff]
        %v3079 = vld [vmem:[%s3077 + $0x8] sm:$0xff]
        %v3080 = vld [vmem:[%s3077 + $0x10] sm:$0xff]
        %v3081 = vld [vmem:[%s3077 + $0x18] sm:$0xff]
        %v3083 = vsel %vm2953, %v3045, 0
        %v3086 = vsel %vm2953, %v3046, 0
        %v3089 = vsel %vm2953, %v3047, 0
        %v3092 = vsel %vm2953, %v3048, 0
        %v3095 = vsel %vm2953, %v3049, 0
        %v3098 = vsel %vm2953, %v3050, 0
        %v3101 = vsel %vm2953, %v3051, 0
        %v3104 = vsel %vm2953, %v3052, 0
        %v3107 = vsel %vm2953, %v3053, 0
        %v3110 = vsel %vm2953, %v3054, 0
        %v3113 = vsel %vm2953, %v3055, 0
        %v3116 = vsel %vm2953, %v3056, 0
        %v3119 = vsel %vm2953, %v3057, 0
        %v3122 = vsel %vm2953, %v3058, 0
        %v3125 = vsel %vm2953, %v3059, 0
        %v3128 = vsel %vm2953, %v3060, 0
        %v3131 = vsel %vm2953, %v3061, 0
        %v3134 = vsel %vm2953, %v3062, 0
        %v3137 = vsel %vm2953, %v3063, 0
        %v3140 = vsel %vm2953, %v3064, 0
        %v3143 = vsel %vm2953, %v3065, 0
        %v3146 = vsel %vm2953, %v3066, 0
        %v3149 = vsel %vm2953, %v3067, 0
        %v3152 = vsel %vm2953, %v3068, 0
        %v3155 = vsel %vm2953, %v3069, 0
        %v3158 = vsel %vm2953, %v3070, 0
        %v3161 = vsel %vm2953, %v3071, 0
        %v3164 = vsel %vm2953, %v3072, 0
        %v3167 = vsel %vm2953, %v3073, 0
        %v3170 = vsel %vm2953, %v3074, 0
        %v3173 = vsel %vm2953, %v3075, 0
        %v3176 = vsel %vm2953, %v3076, 0
        %3178 = vmatprep.subr.mxu0 0.0
        %3179 = vmatpush1.msra.mxu0 %v3078
        %3180 = vmatprep.subr.mxu0 0.0
        %3181 = vmatpush1.msra.mxu0 %v3079
        %3182 = vmatprep.subr.mxu0 0.0
        %3183 = vmatpush1.msra.mxu0 %v3080
        %3184 = vmatprep.subr.mxu0 0.0
        %3185 = vmatpush1.msra.mxu0 %v3081
        %3186 = vmatprep.subr.mxu0 0.0
        %3187 = vmatpush1.msra.mxu0 0.0
        %3188 = vmatprep.subr.mxu0 0.0
        %3189 = vmatpush1.msra.mxu0 0.0
        %3190 = vmatprep.subr.mxu0 0.0
        %3191 = vmatpush1.msra.mxu0 0.0
        %3192 = vmatprep.subr.mxu0 0.0
        %3193 = vmatpush1.msra.mxu0 0.0
        %3194 = vmatprep.subr.mxu0 0.0
        %3195 = vmatpush1.msra.mxu0 0.0
        %3196 = vmatprep.subr.mxu0 0.0
        %3197 = vmatpush1.msra.mxu0 0.0
        %3198 = vmatprep.subr.mxu0 0.0
        %3199 = vmatpush1.msra.mxu0 0.0
        %3200 = vmatprep.subr.mxu0 0.0
        %3201 = vmatpush1.msra.mxu0 0.0
        %3202 = vmatprep.subr.mxu0 0.0
        %3203 = vmatpush1.msra.mxu0 0.0
        %3204 = vmatprep.subr.mxu0 0.0
        %3205 = vmatpush1.msra.mxu0 0.0
        %3206 = vmatprep.subr.mxu0 0.0
        %3207 = vmatpush1.msra.mxu0 0.0
        %3208 = vmatprep.subr.mxu0 0.0
        %3209 = vmatpush1.msra.mxu0 0.0
        %3210 = vmatprep.subr.mxu0 0.0
        %3211 = vmatpush1.msra.mxu0 0.0
        %3212 = vmatprep.subr.mxu0 0.0
        %3213 = vmatpush1.msra.mxu0 0.0
        %3214 = vmatprep.subr.mxu0 0.0
        %3215 = vmatpush1.msra.mxu0 0.0
        %3216 = vmatprep.subr.mxu0 0.0
        %3217 = vmatpush1.msra.mxu0 0.0
        %3218 = vmatprep.subr.mxu0 0.0
        %3219 = vmatpush1.msra.mxu0 0.0
        %3220 = vmatprep.subr.mxu0 0.0
        %3221 = vmatpush1.msra.mxu0 0.0
        %3222 = vmatprep.subr.mxu0 0.0
        %3223 = vmatpush1.msra.mxu0 0.0
        %3224 = vmatprep.subr.mxu0 0.0
        %3225 = vmatpush1.msra.mxu0 0.0
        %3226 = vmatprep.subr.mxu0 0.0
        %3227 = vmatpush1.msra.mxu0 0.0
        %3228 = vmatprep.subr.mxu0 0.0
        %3229 = vmatpush1.msra.mxu0 0.0
        %3230 = vmatprep.subr.mxu0 0.0
        %3231 = vmatpush1.msra.mxu0 0.0
        %3232 = vmatprep.subr.mxu0 0.0
        %3233 = vmatpush1.msra.mxu0 0.0
        %3234 = vmatprep.subr.mxu0 0.0
        %3235 = vmatpush1.msra.mxu0 0.0
        %3236 = vmatprep.subr.mxu0 0.0
        %3237 = vmatpush1.msra.mxu0 0.0
        %3238 = vmatprep.subr.mxu0 0.0
        %3239 = vmatpush1.msra.mxu0 0.0
        %3240 = vmatprep.subr.mxu0 0.0
        %3241 = vmatpush1.msra.mxu0 0.0
        %3242 = vmatprep.mubr.f32.mxu0 0.0
        %3243 = vmatmul.mubr.f32.gmra.mrb[0].mxu0 %v3083
        %v3244 = vpop.f32.mrb[0].mxu0
        %v3245 = vadd.f32 0.0, %v3244
        %v3246 = vpop.f32.mrb[0].mxu0
        %3247 = vmatprep.mubr.f32.mxu0 0.0
        %3248 = vmatmul.mubr.f32.gmra.mrb[0].mxu0 %v3086
        %v3249 = vpop.f32.mrb[0].mxu0
        %v3250 = vadd.f32 0.0, %v3249
        %v3251 = vpop.f32.mrb[0].mxu0
        %3252 = vmatprep.mubr.f32.mxu0 0.0
        %3253 = vmatmul.mubr.f32.gmra.mrb[0].mxu0 %v3089
        %v3254 = vpop.f32.mrb[0].mxu0
        %v3255 = vadd.f32 0.0, %v3254
        %v3256 = vpop.f32.mrb[0].mxu0
        %3257 = vmatprep.mubr.f32.mxu0 0.0
        %3258 = vmatmul.mubr.f32.gmra.mrb[0].mxu0 %v3092
        %v3259 = vpop.f32.mrb[0].mxu0
        %v3260 = vadd.f32 0.0, %v3259
        %v3261 = vpop.f32.mrb[0].mxu0
        %3262 = vmatprep.mubr.f32.mxu0 0.0
        %3263 = vmatmul.mubr.f32.gmra.mrb[0].mxu0 %v3095
        %v3264 = vpop.f32.mrb[0].mxu0
        %v3265 = vadd.f32 0.0, %v3264
        %v3266 = vpop.f32.mrb[0].mxu0
        %3267 = vmatprep.mubr.f32.mxu0 0.0
        %3268 = vmatmul.mubr.f32.gmra.mrb[0].mxu0 %v3098
        %v3269 = vpop.f32.mrb[0].mxu0
        %v3270 = vadd.f32 0.0, %v3269
        %v3271 = vpop.f32.mrb[0].mxu0
        %3272 = vmatprep.mubr.f32.mxu0 0.0
        %3273 = vmatmul.mubr.f32.gmra.mrb[0].mxu0 %v3101
        %v3274 = vpop.f32.mrb[0].mxu0
        %v3275 = vadd.f32 0.0, %v3274
        %v3276 = vpop.f32.mrb[0].mxu0
        %3277 = vmatprep.mubr.f32.mxu0 0.0
        %3278 = vmatmul.mubr.f32.gmra.mrb[0].mxu0 %v3104
        %v3279 = vpop.f32.mrb[0].mxu0
        %v3280 = vadd.f32 0.0, %v3279
        %v3281 = vpop.f32.mrb[0].mxu0
        %3282 = vmatprep.mubr.f32.mxu0 0.0
        %3283 = vmatmul.mubr.f32.gmra.mrb[0].mxu0 %v3107
        %v3284 = vpop.f32.mrb[0].mxu0
        %v3285 = vadd.f32 0.0, %v3284
        %v3286 = vpop.f32.mrb[0].mxu0
        %3287 = vmatprep.mubr.f32.mxu0 0.0
        %3288 = vmatmul.mubr.f32.gmra.mrb[0].mxu0 %v3110
        %v3289 = vpop.f32.mrb[0].mxu0
        %v3290 = vadd.f32 0.0, %v3289
        %v3291 = vpop.f32.mrb[0].mxu0
        %3292 = vmatprep.mubr.f32.mxu0 0.0
        %3293 = vmatmul.mubr.f32.gmra.mrb[0].mxu0 %v3113
        %v3294 = vpop.f32.mrb[0].mxu0
        %v3295 = vadd.f32 0.0, %v3294
        %v3296 = vpop.f32.mrb[0].mxu0
        %3297 = vmatprep.mubr.f32.mxu0 0.0
        %3298 = vmatmul.mubr.f32.gmra.mrb[0].mxu0 %v3116
        %v3299 = vpop.f32.mrb[0].mxu0
        %v3300 = vadd.f32 0.0, %v3299
        %v3301 = vpop.f32.mrb[0].mxu0
        %3302 = vmatprep.mubr.f32.mxu0 0.0
        %3303 = vmatmul.mubr.f32.gmra.mrb[0].mxu0 %v3119
        %v3304 = vpop.f32.mrb[0].mxu0
        %v3305 = vadd.f32 0.0, %v3304
        %v3306 = vpop.f32.mrb[0].mxu0
        %3307 = vmatprep.mubr.f32.mxu0 0.0
        %3308 = vmatmul.mubr.f32.gmra.mrb[0].mxu0 %v3122
        %v3309 = vpop.f32.mrb[0].mxu0
        %v3310 = vadd.f32 0.0, %v3309
        %v3311 = vpop.f32.mrb[0].mxu0
        %3312 = vmatprep.mubr.f32.mxu0 0.0
        %3313 = vmatmul.mubr.f32.gmra.mrb[0].mxu0 %v3125
        %v3314 = vpop.f32.mrb[0].mxu0
        %v3315 = vadd.f32 0.0, %v3314
        %v3316 = vpop.f32.mrb[0].mxu0
        %3317 = vmatprep.mubr.f32.mxu0 0.0
        %3318 = vmatmul.mubr.f32.gmra.mrb[0].mxu0 %v3128
        %v3319 = vpop.f32.mrb[0].mxu0
        %v3320 = vadd.f32 0.0, %v3319
        %v3321 = vpop.f32.mrb[0].mxu0
        %3322 = vmatprep.mubr.f32.mxu0 0.0
        %3323 = vmatmul.mubr.f32.gmra.mrb[0].mxu0 %v3131
        %v3324 = vpop.f32.mrb[0].mxu0
        %v3325 = vadd.f32 0.0, %v3324
        %v3326 = vpop.f32.mrb[0].mxu0
        %3327 = vmatprep.mubr.f32.mxu0 0.0
        %3328 = vmatmul.mubr.f32.gmra.mrb[0].mxu0 %v3134
        %v3329 = vpop.f32.mrb[0].mxu0
        %v3330 = vadd.f32 0.0, %v3329
        %v3331 = vpop.f32.mrb[0].mxu0
        %3332 = vmatprep.mubr.f32.mxu0 0.0
        %3333 = vmatmul.mubr.f32.gmra.mrb[0].mxu0 %v3137
        %v3334 = vpop.f32.mrb[0].mxu0
        %v3335 = vadd.f32 0.0, %v3334
        %v3336 = vpop.f32.mrb[0].mxu0
        %3337 = vmatprep.mubr.f32.mxu0 0.0
        %3338 = vmatmul.mubr.f32.gmra.mrb[0].mxu0 %v3140
        %v3339 = vpop.f32.mrb[0].mxu0
        %v3340 = vadd.f32 0.0, %v3339
        %v3341 = vpop.f32.mrb[0].mxu0
        %3342 = vmatprep.mubr.f32.mxu0 0.0
        %3343 = vmatmul.mubr.f32.gmra.mrb[0].mxu0 %v3143
        %v3344 = vpop.f32.mrb[0].mxu0
        %v3345 = vadd.f32 0.0, %v3344
        %v3346 = vpop.f32.mrb[0].mxu0
        %3347 = vmatprep.mubr.f32.mxu0 0.0
        %3348 = vmatmul.mubr.f32.gmra.mrb[0].mxu0 %v3146
        %v3349 = vpop.f32.mrb[0].mxu0
        %v3350 = vadd.f32 0.0, %v3349
        %v3351 = vpop.f32.mrb[0].mxu0
        %3352 = vmatprep.mubr.f32.mxu0 0.0
        %3353 = vmatmul.mubr.f32.gmra.mrb[0].mxu0 %v3149
        %v3354 = vpop.f32.mrb[0].mxu0
        %v3355 = vadd.f32 0.0, %v3354
        %v3356 = vpop.f32.mrb[0].mxu0
        %3357 = vmatprep.mubr.f32.mxu0 0.0
        %3358 = vmatmul.mubr.f32.gmra.mrb[0].mxu0 %v3152
        %v3359 = vpop.f32.mrb[0].mxu0
        %v3360 = vadd.f32 0.0, %v3359
        %v3361 = vpop.f32.mrb[0].mxu0
        %3362 = vmatprep.mubr.f32.mxu0 0.0
        %3363 = vmatmul.mubr.f32.gmra.mrb[0].mxu0 %v3155
        %v3364 = vpop.f32.mrb[0].mxu0
        %v3365 = vadd.f32 0.0, %v3364
        %v3366 = vpop.f32.mrb[0].mxu0
        %3367 = vmatprep.mubr.f32.mxu0 0.0
        %3368 = vmatmul.mubr.f32.gmra.mrb[0].mxu0 %v3158
        %v3369 = vpop.f32.mrb[0].mxu0
        %v3370 = vadd.f32 0.0, %v3369
        %v3371 = vpop.f32.mrb[0].mxu0
        %3372 = vmatprep.mubr.f32.mxu0 0.0
        %3373 = vmatmul.mubr.f32.gmra.mrb[0].mxu0 %v3161
        %v3374 = vpop.f32.mrb[0].mxu0
        %v3375 = vadd.f32 0.0, %v3374
        %v3376 = vpop.f32.mrb[0].mxu0
        %3377 = vmatprep.mubr.f32.mxu0 0.0
        %3378 = vmatmul.mubr.f32.gmra.mrb[0].mxu0 %v3164
        %v3379 = vpop.f32.mrb[0].mxu0
        %v3380 = vadd.f32 0.0, %v3379
        %v3381 = vpop.f32.mrb[0].mxu0
        %3382 = vmatprep.mubr.f32.mxu0 0.0
        %3383 = vmatmul.mubr.f32.gmra.mrb[0].mxu0 %v3167
        %v3384 = vpop.f32.mrb[0].mxu0
        %v3385 = vadd.f32 0.0, %v3384
        %v3386 = vpop.f32.mrb[0].mxu0
        %3387 = vmatprep.mubr.f32.mxu0 0.0
        %3388 = vmatmul.mubr.f32.gmra.mrb[0].mxu0 %v3170
        %v3389 = vpop.f32.mrb[0].mxu0
        %v3390 = vadd.f32 0.0, %v3389
        %v3391 = vpop.f32.mrb[0].mxu0
        %3392 = vmatprep.mubr.f32.mxu0 0.0
        %3393 = vmatmul.mubr.f32.gmra.mrb[0].mxu0 %v3173
        %v3394 = vpop.f32.mrb[0].mxu0
        %v3395 = vadd.f32 0.0, %v3394
        %v3396 = vpop.f32.mrb[0].mxu0
        %3397 = vmatprep.mubr.f32.mxu0 0.0
        %3398 = vmatmul.mubr.f32.gmra.mrb[0].mxu0 %v3176
        %v3399 = vpop.f32.mrb[0].mxu0
        %v3400 = vadd.f32 0.0, %v3399
        %v3401 = vpop.f32.mrb[0].mxu0
        %3402 = vdwg.mxu0
        %v3404 = vsel %vm2953, %v3009, 0
        %v3407 = vsel %vm2953, %v3010, 0
        %v3410 = vsel %vm2953, %v3011, 0
        %v3413 = vsel %vm2953, %v3012, 0
        %v3416 = vsel %vm2953, %v3013, 0
        %v3419 = vsel %vm2953, %v3014, 0
        %v3422 = vsel %vm2953, %v3015, 0
        %v3425 = vsel %vm2953, %v3016, 0
        %v3428 = vsel %vm2953, %v3017, 0
        %v3431 = vsel %vm2953, %v3018, 0
        %v3434 = vsel %vm2953, %v3019, 0
        %v3437 = vsel %vm2953, %v3020, 0
        %v3440 = vsel %vm2953, %v3021, 0
        %v3443 = vsel %vm2953, %v3022, 0
        %v3446 = vsel %vm2953, %v3023, 0
        %v3449 = vsel %vm2953, %v3024, 0
        %v3452 = vsel %vm2953, %v3025, 0
        %v3455 = vsel %vm2953, %v3026, 0
        %v3458 = vsel %vm2953, %v3027, 0
        %v3461 = vsel %vm2953, %v3028, 0
        %v3464 = vsel %vm2953, %v3029, 0
        %v3467 = vsel %vm2953, %v3030, 0
        %v3470 = vsel %vm2953, %v3031, 0
        %v3473 = vsel %vm2953, %v3032, 0
        %v3476 = vsel %vm2953, %v3033, 0
        %v3479 = vsel %vm2953, %v3034, 0
        %v3482 = vsel %vm2953, %v3035, 0
        %v3485 = vsel %vm2953, %v3036, 0
        %v3488 = vsel %vm2953, %v3037, 0
        %v3491 = vsel %vm2953, %v3038, 0
        %v3494 = vsel %vm2953, %v3039, 0
        %v3497 = vsel %vm2953, %v3040, 0
        %3499 = vmatprep.subr.mxu0 0.0
        %3500 = vmatpush1.msra.mxu0 %v3041
        %3501 = vmatprep.subr.mxu0 0.0
        %3502 = vmatpush1.msra.mxu0 %v3042
        %3503 = vmatprep.subr.mxu0 0.0
        %3504 = vmatpush1.msra.mxu0 %v3043
        %3505 = vmatprep.subr.mxu0 0.0
        %3506 = vmatpush1.msra.mxu0 %v3044
        %3507 = vmatprep.subr.mxu0 0.0
        %3508 = vmatpush1.msra.mxu0 0.0
        %3509 = vmatprep.subr.mxu0 0.0
        %3510 = vmatpush1.msra.mxu0 0.0
        %3511 = vmatprep.subr.mxu0 0.0
        %3512 = vmatpush1.msra.mxu0 0.0
        %3513 = vmatprep.subr.mxu0 0.0
        %3514 = vmatpush1.msra.mxu0 0.0
        %3515 = vmatprep.subr.mxu0 0.0
        %3516 = vmatpush1.msra.mxu0 0.0
        %3517 = vmatprep.subr.mxu0 0.0
        %3518 = vmatpush1.msra.mxu0 0.0
        %3519 = vmatprep.subr.mxu0 0.0
        %3520 = vmatpush1.msra.mxu0 0.0
        %3521 = vmatprep.subr.mxu0 0.0
        %3522 = vmatpush1.msra.mxu0 0.0
        %3523 = vmatprep.subr.mxu0 0.0
        %3524 = vmatpush1.msra.mxu0 0.0
        %3525 = vmatprep.subr.mxu0 0.0
        %3526 = vmatpush1.msra.mxu0 0.0
        %3527 = vmatprep.subr.mxu0 0.0
        %3528 = vmatpush1.msra.mxu0 0.0
        %3529 = vmatprep.subr.mxu0 0.0
        %3530 = vmatpush1.msra.mxu0 0.0
        %3531 = vmatprep.subr.mxu0 0.0
        %3532 = vmatpush1.msra.mxu0 0.0
        %3533 = vmatprep.subr.mxu0 0.0
        %3534 = vmatpush1.msra.mxu0 0.0
        %3535 = vmatprep.subr.mxu0 0.0
        %3536 = vmatpush1.msra.mxu0 0.0
        %3537 = vmatprep.subr.mxu0 0.0
        %3538 = vmatpush1.msra.mxu0 0.0
        %3539 = vmatprep.subr.mxu0 0.0
        %3540 = vmatpush1.msra.mxu0 0.0
        %3541 = vmatprep.subr.mxu0 0.0
        %3542 = vmatpush1.msra.mxu0 0.0
        %3543 = vmatprep.subr.mxu0 0.0
        %3544 = vmatpush1.msra.mxu0 0.0
        %3545 = vmatprep.subr.mxu0 0.0
        %3546 = vmatpush1.msra.mxu0 0.0
        %3547 = vmatprep.subr.mxu0 0.0
        %3548 = vmatpush1.msra.mxu0 0.0
        %3549 = vmatprep.subr.mxu0 0.0
        %3550 = vmatpush1.msra.mxu0 0.0
        %3551 = vmatprep.subr.mxu0 0.0
        %3552 = vmatpush1.msra.mxu0 0.0
        %3553 = vmatprep.subr.mxu0 0.0
        %3554 = vmatpush1.msra.mxu0 0.0
        %3555 = vmatprep.subr.mxu0 0.0
        %3556 = vmatpush1.msra.mxu0 0.0
        %3557 = vmatprep.subr.mxu0 0.0
        %3558 = vmatpush1.msra.mxu0 0.0
        %3559 = vmatprep.subr.mxu0 0.0
        %3560 = vmatpush1.msra.mxu0 0.0
        %3561 = vmatprep.subr.mxu0 0.0
        %3562 = vmatpush1.msra.mxu0 0.0
        %3563 = vmatprep.mubr.f32.mxu0 0.0
        %3564 = vmatmul.mubr.f32.gmra.mrb[0].mxu0 %v3404
        %v3565 = vpop.f32.mrb[0].mxu0
        %v3566 = vadd.f32 %v3245, %v3565
        %v3567 = vpop.f32.mrb[0].mxu0
        %3568 = vmatprep.mubr.f32.mxu0 0.0
        %3569 = vmatmul.mubr.f32.gmra.mrb[0].mxu0 %v3407
        %v3570 = vpop.f32.mrb[0].mxu0
        %v3571 = vadd.f32 %v3250, %v3570
        %v3572 = vpop.f32.mrb[0].mxu0
        %3573 = vmatprep.mubr.f32.mxu0 0.0
        %3574 = vmatmul.mubr.f32.gmra.mrb[0].mxu0 %v3410
        %v3575 = vpop.f32.mrb[0].mxu0
        %v3576 = vadd.f32 %v3255, %v3575
        %v3577 = vpop.f32.mrb[0].mxu0
        %3578 = vmatprep.mubr.f32.mxu0 0.0
        %3579 = vmatmul.mubr.f32.gmra.mrb[0].mxu0 %v3413
        %v3580 = vpop.f32.mrb[0].mxu0
        %v3581 = vadd.f32 %v3260, %v3580
        %v3582 = vpop.f32.mrb[0].mxu0
        %3583 = vmatprep.mubr.f32.mxu0 0.0
        %3584 = vmatmul.mubr.f32.gmra.mrb[0].mxu0 %v3416
        %v3585 = vpop.f32.mrb[0].mxu0
        %v3586 = vadd.f32 %v3265, %v3585
        %v3587 = vpop.f32.mrb[0].mxu0
        %3588 = vmatprep.mubr.f32.mxu0 0.0
        %3589 = vmatmul.mubr.f32.gmra.mrb[0].mxu0 %v3419
        %v3590 = vpop.f32.mrb[0].mxu0
        %v3591 = vadd.f32 %v3270, %v3590
        %v3592 = vpop.f32.mrb[0].mxu0
        %3593 = vmatprep.mubr.f32.mxu0 0.0
        %3594 = vmatmul.mubr.f32.gmra.mrb[0].mxu0 %v3422
        %v3595 = vpop.f32.mrb[0].mxu0
        %v3596 = vadd.f32 %v3275, %v3595
        %v3597 = vpop.f32.mrb[0].mxu0
        %3598 = vmatprep.mubr.f32.mxu0 0.0
        %3599 = vmatmul.mubr.f32.gmra.mrb[0].mxu0 %v3425
        %v3600 = vpop.f32.mrb[0].mxu0
        %v3601 = vadd.f32 %v3280, %v3600
        %v3602 = vpop.f32.mrb[0].mxu0
        %3603 = vmatprep.mubr.f32.mxu0 0.0
        %3604 = vmatmul.mubr.f32.gmra.mrb[0].mxu0 %v3428
        %v3605 = vpop.f32.mrb[0].mxu0
        %v3606 = vadd.f32 %v3285, %v3605
        %v3607 = vpop.f32.mrb[0].mxu0
        %3608 = vmatprep.mubr.f32.mxu0 0.0
        %3609 = vmatmul.mubr.f32.gmra.mrb[0].mxu0 %v3431
        %v3610 = vpop.f32.mrb[0].mxu0
        %v3611 = vadd.f32 %v3290, %v3610
        %v3612 = vpop.f32.mrb[0].mxu0
        %3613 = vmatprep.mubr.f32.mxu0 0.0
        %3614 = vmatmul.mubr.f32.gmra.mrb[0].mxu0 %v3434
        %v3615 = vpop.f32.mrb[0].mxu0
        %v3616 = vadd.f32 %v3295, %v3615
        %v3617 = vpop.f32.mrb[0].mxu0
        %3618 = vmatprep.mubr.f32.mxu0 0.0
        %3619 = vmatmul.mubr.f32.gmra.mrb[0].mxu0 %v3437
        %v3620 = vpop.f32.mrb[0].mxu0
        %v3621 = vadd.f32 %v3300, %v3620
        %v3622 = vpop.f32.mrb[0].mxu0
        %3623 = vmatprep.mubr.f32.mxu0 0.0
        %3624 = vmatmul.mubr.f32.gmra.mrb[0].mxu0 %v3440
        %v3625 = vpop.f32.mrb[0].mxu0
        %v3626 = vadd.f32 %v3305, %v3625
        %v3627 = vpop.f32.mrb[0].mxu0
        %3628 = vmatprep.mubr.f32.mxu0 0.0
        %3629 = vmatmul.mubr.f32.gmra.mrb[0].mxu0 %v3443
        %v3630 = vpop.f32.mrb[0].mxu0
        %v3631 = vadd.f32 %v3310, %v3630
        %v3632 = vpop.f32.mrb[0].mxu0
        %3633 = vmatprep.mubr.f32.mxu0 0.0
        %3634 = vmatmul.mubr.f32.gmra.mrb[0].mxu0 %v3446
        %v3635 = vpop.f32.mrb[0].mxu0
        %v3636 = vadd.f32 %v3315, %v3635
        %v3637 = vpop.f32.mrb[0].mxu0
        %3638 = vmatprep.mubr.f32.mxu0 0.0
        %3639 = vmatmul.mubr.f32.gmra.mrb[0].mxu0 %v3449
        %v3640 = vpop.f32.mrb[0].mxu0
        %v3641 = vadd.f32 %v3320, %v3640
        %v3642 = vpop.f32.mrb[0].mxu0
        %3643 = vmatprep.mubr.f32.mxu0 0.0
        %3644 = vmatmul.mubr.f32.gmra.mrb[0].mxu0 %v3452
        %v3645 = vpop.f32.mrb[0].mxu0
        %v3646 = vadd.f32 %v3325, %v3645
        %v3647 = vpop.f32.mrb[0].mxu0
        %3648 = vmatprep.mubr.f32.mxu0 0.0
        %3649 = vmatmul.mubr.f32.gmra.mrb[0].mxu0 %v3455
        %v3650 = vpop.f32.mrb[0].mxu0
        %v3651 = vadd.f32 %v3330, %v3650
        %v3652 = vpop.f32.mrb[0].mxu0
        %3653 = vmatprep.mubr.f32.mxu0 0.0
        %3654 = vmatmul.mubr.f32.gmra.mrb[0].mxu0 %v3458
        %v3655 = vpop.f32.mrb[0].mxu0
        %v3656 = vadd.f32 %v3335, %v3655
        %v3657 = vpop.f32.mrb[0].mxu0
        %3658 = vmatprep.mubr.f32.mxu0 0.0
        %3659 = vmatmul.mubr.f32.gmra.mrb[0].mxu0 %v3461
        %v3660 = vpop.f32.mrb[0].mxu0
        %v3661 = vadd.f32 %v3340, %v3660
        %v3662 = vpop.f32.mrb[0].mxu0
        %3663 = vmatprep.mubr.f32.mxu0 0.0
        %3664 = vmatmul.mubr.f32.gmra.mrb[0].mxu0 %v3464
        %v3665 = vpop.f32.mrb[0].mxu0
        %v3666 = vadd.f32 %v3345, %v3665
        %v3667 = vpop.f32.mrb[0].mxu0
        %3668 = vmatprep.mubr.f32.mxu0 0.0
        %3669 = vmatmul.mubr.f32.gmra.mrb[0].mxu0 %v3467
        %v3670 = vpop.f32.mrb[0].mxu0
        %v3671 = vadd.f32 %v3350, %v3670
        %v3672 = vpop.f32.mrb[0].mxu0
        %3673 = vmatprep.mubr.f32.mxu0 0.0
        %3674 = vmatmul.mubr.f32.gmra.mrb[0].mxu0 %v3470
        %v3675 = vpop.f32.mrb[0].mxu0
        %v3676 = vadd.f32 %v3355, %v3675
        %v3677 = vpop.f32.mrb[0].mxu0
        %3678 = vmatprep.mubr.f32.mxu0 0.0
        %3679 = vmatmul.mubr.f32.gmra.mrb[0].mxu0 %v3473
        %v3680 = vpop.f32.mrb[0].mxu0
        %v3681 = vadd.f32 %v3360, %v3680
        %v3682 = vpop.f32.mrb[0].mxu0
        %3683 = vmatprep.mubr.f32.mxu0 0.0
        %3684 = vmatmul.mubr.f32.gmra.mrb[0].mxu0 %v3476
        %v3685 = vpop.f32.mrb[0].mxu0
        %v3686 = vadd.f32 %v3365, %v3685
        %v3687 = vpop.f32.mrb[0].mxu0
        %3688 = vmatprep.mubr.f32.mxu0 0.0
        %3689 = vmatmul.mubr.f32.gmra.mrb[0].mxu0 %v3479
        %v3690 = vpop.f32.mrb[0].mxu0
        %v3691 = vadd.f32 %v3370, %v3690
        %v3692 = vpop.f32.mrb[0].mxu0
        %3693 = vmatprep.mubr.f32.mxu0 0.0
        %3694 = vmatmul.mubr.f32.gmra.mrb[0].mxu0 %v3482
        %v3695 = vpop.f32.mrb[0].mxu0
        %v3696 = vadd.f32 %v3375, %v3695
        %v3697 = vpop.f32.mrb[0].mxu0
        %3698 = vmatprep.mubr.f32.mxu0 0.0
        %3699 = vmatmul.mubr.f32.gmra.mrb[0].mxu0 %v3485
        %v3700 = vpop.f32.mrb[0].mxu0
        %v3701 = vadd.f32 %v3380, %v3700
        %v3702 = vpop.f32.mrb[0].mxu0
        %3703 = vmatprep.mubr.f32.mxu0 0.0
        %3704 = vmatmul.mubr.f32.gmra.mrb[0].mxu0 %v3488
        %v3705 = vpop.f32.mrb[0].mxu0
        %v3706 = vadd.f32 %v3385, %v3705
        %v3707 = vpop.f32.mrb[0].mxu0
        %3708 = vmatprep.mubr.f32.mxu0 0.0
        %3709 = vmatmul.mubr.f32.gmra.mrb[0].mxu0 %v3491
        %v3710 = vpop.f32.mrb[0].mxu0
        %v3711 = vadd.f32 %v3390, %v3710
        %v3712 = vpop.f32.mrb[0].mxu0
        %3713 = vmatprep.mubr.f32.mxu0 0.0
        %3714 = vmatmul.mubr.f32.gmra.mrb[0].mxu0 %v3494
        %v3715 = vpop.f32.mrb[0].mxu0
        %v3716 = vadd.f32 %v3395, %v3715
        %v3717 = vpop.f32.mrb[0].mxu0
        %3718 = vmatprep.mubr.f32.mxu0 0.0
        %3719 = vmatmul.mubr.f32.gmra.mrb[0].mxu0 %v3497
        %v3720 = vpop.f32.mrb[0].mxu0
        %v3721 = vadd.f32 %v3400, %v3720
        %v3722 = vpop.f32.mrb[0].mxu0
        %3723 = vdwg.mxu0
        %v3724 = vld [vmem:[#allocation2 + $0x2] sm:$0xff]
        %v3725 = vld [vmem:[#allocation2 + $0xa] sm:$0xff]
        %v3726 = vld [vmem:[#allocation2 + $0x1a] sm:$0xff]
        %v3727 = vld [vmem:[#allocation2 + $0x22] sm:$0xff]
        %v3728 = vld [vmem:[#allocation2 + $0x32] sm:$0xff]
        %v3729 = vld [vmem:[#allocation2 + $0x3a] sm:$0xff]
        %v3730 = vld [vmem:[#allocation2 + $0x4a] sm:$0xff]
        %v3731 = vld [vmem:[#allocation2 + $0x52] sm:$0xff]
        %v3732 = vld [vmem:[#allocation2 + $0x62] sm:$0xff]
        %v3733 = vld [vmem:[#allocation2 + $0x6a] sm:$0xff]
        %v3734 = vld [vmem:[#allocation2 + $0x7a] sm:$0xff]
        %v3735 = vld [vmem:[#allocation2 + $0x82] sm:$0xff]
        %v3736 = vld [vmem:[#allocation2 + $0x92] sm:$0xff]
        %v3737 = vld [vmem:[#allocation2 + $0x9a] sm:$0xff]
        %v3738 = vld [vmem:[#allocation2 + $0xaa] sm:$0xff]
        %v3739 = vld [vmem:[#allocation2 + $0xb2] sm:$0xff]
        %v3740 = vld [vmem:[#allocation2 + $0xc2] sm:$0xff]
        %v3741 = vld [vmem:[#allocation2 + $0xca] sm:$0xff]
        %v3742 = vld [vmem:[#allocation2 + $0xda] sm:$0xff]
        %v3743 = vld [vmem:[#allocation2 + $0xe2] sm:$0xff]
        %v3744 = vld [vmem:[#allocation2 + $0xf2] sm:$0xff]
        %v3745 = vld [vmem:[#allocation2 + $0xfa] sm:$0xff]
        %v3746 = vld [vmem:[#allocation2 + $0x10a] sm:$0xff]
        %v3747 = vld [vmem:[#allocation2 + $0x112] sm:$0xff]
        %v3748 = vld [vmem:[#allocation2 + $0x122] sm:$0xff]
        %v3749 = vld [vmem:[#allocation2 + $0x12a] sm:$0xff]
        %v3750 = vld [vmem:[#allocation2 + $0x13a] sm:$0xff]
        %v3751 = vld [vmem:[#allocation2 + $0x142] sm:$0xff]
        %v3752 = vld [vmem:[#allocation2 + $0x152] sm:$0xff]
        %v3753 = vld [vmem:[#allocation2 + $0x15a] sm:$0xff]
        %v3754 = vld [vmem:[#allocation2 + $0x16a] sm:$0xff]
        %v3755 = vld [vmem:[#allocation2 + $0x172] sm:$0xff]
        %s3756 = scalar_lea.vmem %s10, 64
        %v3757 = vld [vmem:[%s3756] sm:$0xff]
        %v3758 = vld [vmem:[%s3756 + $0x8] sm:$0xff]
        %v3759 = vld [vmem:[%s3756 + $0x10] sm:$0xff]
        %v3760 = vld [vmem:[%s3756 + $0x18] sm:$0xff]
        %v3762 = vsel %vm2953, %v3724, 0
        %v3765 = vsel %vm2953, %v3725, 0
        %v3768 = vsel %vm2953, %v3726, 0
        %v3771 = vsel %vm2953, %v3727, 0
        %v3774 = vsel %vm2953, %v3728, 0
        %v3777 = vsel %vm2953, %v3729, 0
        %v3780 = vsel %vm2953, %v3730, 0
        %v3783 = vsel %vm2953, %v3731, 0
        %v3786 = vsel %vm2953, %v3732, 0
        %v3789 = vsel %vm2953, %v3733, 0
        %v3792 = vsel %vm2953, %v3734, 0
        %v3795 = vsel %vm2953, %v3735, 0
        %v3798 = vsel %vm2953, %v3736, 0
        %v3801 = vsel %vm2953, %v3737, 0
        %v3804 = vsel %vm2953, %v3738, 0
        %v3807 = vsel %vm2953, %v3739, 0
        %v3810 = vsel %vm2953, %v3740, 0
        %v3813 = vsel %vm2953, %v3741, 0
        %v3816 = vsel %vm2953, %v3742, 0
        %v3819 = vsel %vm2953, %v3743, 0
        %v3822 = vsel %vm2953, %v3744, 0
        %v3825 = vsel %vm2953, %v3745, 0
        %v3828 = vsel %vm2953, %v3746, 0
        %v3831 = vsel %vm2953, %v3747, 0
        %v3834 = vsel %vm2953, %v3748, 0
        %v3837 = vsel %vm2953, %v3749, 0
        %v3840 = vsel %vm2953, %v3750, 0
        %v3843 = vsel %vm2953, %v3751, 0
        %v3846 = vsel %vm2953, %v3752, 0
        %v3849 = vsel %vm2953, %v3753, 0
        %v3852 = vsel %vm2953, %v3754, 0
        %v3855 = vsel %vm2953, %v3755, 0
        %3857 = vmatprep.subr.mxu0 0.0
        %3858 = vmatpush1.msra.mxu0 %v3757
        %3859 = vmatprep.subr.mxu0 0.0
        %3860 = vmatpush1.msra.mxu0 %v3758
        %3861 = vmatprep.subr.mxu0 0.0
        %3862 = vmatpush1.msra.mxu0 %v3759
        %3863 = vmatprep.subr.mxu0 0.0
        %3864 = vmatpush1.msra.mxu0 %v3760
        %3865 = vmatprep.subr.mxu0 0.0
        %3866 = vmatpush1.msra.mxu0 0.0
        %3867 = vmatprep.subr.mxu0 0.0
        %3868 = vmatpush1.msra.mxu0 0.0
        %3869 = vmatprep.subr.mxu0 0.0
        %3870 = vmatpush1.msra.mxu0 0.0
        %3871 = vmatprep.subr.mxu0 0.0
        %3872 = vmatpush1.msra.mxu0 0.0
        %3873 = vmatprep.subr.mxu0 0.0
        %3874 = vmatpush1.msra.mxu0 0.0
        %3875 = vmatprep.subr.mxu0 0.0
        %3876 = vmatpush1.msra.mxu0 0.0
        %3877 = vmatprep.subr.mxu0 0.0
        %3878 = vmatpush1.msra.mxu0 0.0
        %3879 = vmatprep.subr.mxu0 0.0
        %3880 = vmatpush1.msra.mxu0 0.0
        %3881 = vmatprep.subr.mxu0 0.0
        %3882 = vmatpush1.msra.mxu0 0.0
        %3883 = vmatprep.subr.mxu0 0.0
        %3884 = vmatpush1.msra.mxu0 0.0
        %3885 = vmatprep.subr.mxu0 0.0
        %3886 = vmatpush1.msra.mxu0 0.0
        %3887 = vmatprep.subr.mxu0 0.0
        %3888 = vmatpush1.msra.mxu0 0.0
        %3889 = vmatprep.subr.mxu0 0.0
        %3890 = vmatpush1.msra.mxu0 0.0
        %3891 = vmatprep.subr.mxu0 0.0
        %3892 = vmatpush1.msra.mxu0 0.0
        %3893 = vmatprep.subr.mxu0 0.0
        %3894 = vmatpush1.msra.mxu0 0.0
        %3895 = vmatprep.subr.mxu0 0.0
        %3896 = vmatpush1.msra.mxu0 0.0
        %3897 = vmatprep.subr.mxu0 0.0
        %3898 = vmatpush1.msra.mxu0 0.0
        %3899 = vmatprep.subr.mxu0 0.0
        %3900 = vmatpush1.msra.mxu0 0.0
        %3901 = vmatprep.subr.mxu0 0.0
        %3902 = vmatpush1.msra.mxu0 0.0
        %3903 = vmatprep.subr.mxu0 0.0
        %3904 = vmatpush1.msra.mxu0 0.0
        %3905 = vmatprep.subr.mxu0 0.0
        %3906 = vmatpush1.msra.mxu0 0.0
        %3907 = vmatprep.subr.mxu0 0.0
        %3908 = vmatpush1.msra.mxu0 0.0
        %3909 = vmatprep.subr.mxu0 0.0
        %3910 = vmatpush1.msra.mxu0 0.0
        %3911 = vmatprep.subr.mxu0 0.0
        %3912 = vmatpush1.msra.mxu0 0.0
        %3913 = vmatprep.subr.mxu0 0.0
        %3914 = vmatpush1.msra.mxu0 0.0
        %3915 = vmatprep.subr.mxu0 0.0
        %3916 = vmatpush1.msra.mxu0 0.0
        %3917 = vmatprep.subr.mxu0 0.0
        %3918 = vmatpush1.msra.mxu0 0.0
        %3919 = vmatprep.subr.mxu0 0.0
        %3920 = vmatpush1.msra.mxu0 0.0
        %3921 = vmatprep.mubr.f32.mxu0 0.0
        %3922 = vmatmul.mubr.f32.gmra.mrb[0].mxu0 %v3762
        %v3923 = vpop.f32.mrb[0].mxu0
        %v3924 = vadd.f32 0.0, %v3923
        %v3925 = vpop.f32.mrb[0].mxu0
        %3926 = vmatprep.mubr.f32.mxu0 0.0
        %3927 = vmatmul.mubr.f32.gmra.mrb[0].mxu0 %v3765
        %v3928 = vpop.f32.mrb[0].mxu0
        %v3929 = vadd.f32 0.0, %v3928
        %v3930 = vpop.f32.mrb[0].mxu0
        %3931 = vmatprep.mubr.f32.mxu0 0.0
        %3932 = vmatmul.mubr.f32.gmra.mrb[0].mxu0 %v3768
        %v3933 = vpop.f32.mrb[0].mxu0
        %v3934 = vadd.f32 0.0, %v3933
        %v3935 = vpop.f32.mrb[0].mxu0
        %3936 = vmatprep.mubr.f32.mxu0 0.0
        %3937 = vmatmul.mubr.f32.gmra.mrb[0].mxu0 %v3771
        %v3938 = vpop.f32.mrb[0].mxu0
        %v3939 = vadd.f32 0.0, %v3938
        %v3940 = vpop.f32.mrb[0].mxu0
        %3941 = vmatprep.mubr.f32.mxu0 0.0
        %3942 = vmatmul.mubr.f32.gmra.mrb[0].mxu0 %v3774
        %v3943 = vpop.f32.mrb[0].mxu0
        %v3944 = vadd.f32 0.0, %v3943
        %v3945 = vpop.f32.mrb[0].mxu0
        %3946 = vmatprep.mubr.f32.mxu0 0.0
        %3947 = vmatmul.mubr.f32.gmra.mrb[0].mxu0 %v3777
        %v3948 = vpop.f32.mrb[0].mxu0
        %v3949 = vadd.f32 0.0, %v3948
        %v3950 = vpop.f32.mrb[0].mxu0
        %3951 = vmatprep.mubr.f32.mxu0 0.0
        %3952 = vmatmul.mubr.f32.gmra.mrb[0].mxu0 %v3780
        %v3953 = vpop.f32.mrb[0].mxu0
        %v3954 = vadd.f32 0.0, %v3953
        %v3955 = vpop.f32.mrb[0].mxu0
        %3956 = vmatprep.mubr.f32.mxu0 0.0
        %3957 = vmatmul.mubr.f32.gmra.mrb[0].mxu0 %v3783
        %v3958 = vpop.f32.mrb[0].mxu0
        %v3959 = vadd.f32 0.0, %v3958
        %v3960 = vpop.f32.mrb[0].mxu0
        %3961 = vmatprep.mubr.f32.mxu0 0.0
        %3962 = vmatmul.mubr.f32.gmra.mrb[0].mxu0 %v3786
        %v3963 = vpop.f32.mrb[0].mxu0
        %v3964 = vadd.f32 0.0, %v3963
        %v3965 = vpop.f32.mrb[0].mxu0
        %3966 = vmatprep.mubr.f32.mxu0 0.0
        %3967 = vmatmul.mubr.f32.gmra.mrb[0].mxu0 %v3789
        %v3968 = vpop.f32.mrb[0].mxu0
        %v3969 = vadd.f32 0.0, %v3968
        %v3970 = vpop.f32.mrb[0].mxu0
        %3971 = vmatprep.mubr.f32.mxu0 0.0
        %3972 = vmatmul.mubr.f32.gmra.mrb[0].mxu0 %v3792
        %v3973 = vpop.f32.mrb[0].mxu0
        %v3974 = vadd.f32 0.0, %v3973
        %v3975 = vpop.f32.mrb[0].mxu0
        %3976 = vmatprep.mubr.f32.mxu0 0.0
        %3977 = vmatmul.mubr.f32.gmra.mrb[0].mxu0 %v3795
        %v3978 = vpop.f32.mrb[0].mxu0
        %v3979 = vadd.f32 0.0, %v3978
        %v3980 = vpop.f32.mrb[0].mxu0
        %3981 = vmatprep.mubr.f32.mxu0 0.0
        %3982 = vmatmul.mubr.f32.gmra.mrb[0].mxu0 %v3798
        %v3983 = vpop.f32.mrb[0].mxu0
        %v3984 = vadd.f32 0.0, %v3983
        %v3985 = vpop.f32.mrb[0].mxu0
        %3986 = vmatprep.mubr.f32.mxu0 0.0
        %3987 = vmatmul.mubr.f32.gmra.mrb[0].mxu0 %v3801
        %v3988 = vpop.f32.mrb[0].mxu0
        %v3989 = vadd.f32 0.0, %v3988
        %v3990 = vpop.f32.mrb[0].mxu0
        %3991 = vmatprep.mubr.f32.mxu0 0.0
        %3992 = vmatmul.mubr.f32.gmra.mrb[0].mxu0 %v3804
        %v3993 = vpop.f32.mrb[0].mxu0
        %v3994 = vadd.f32 0.0, %v3993
        %v3995 = vpop.f32.mrb[0].mxu0
        %3996 = vmatprep.mubr.f32.mxu0 0.0
        %3997 = vmatmul.mubr.f32.gmra.mrb[0].mxu0 %v3807
        %v3998 = vpop.f32.mrb[0].mxu0
        %v3999 = vadd.f32 0.0, %v3998
        %v4000 = vpop.f32.mrb[0].mxu0
        %4001 = vmatprep.mubr.f32.mxu0 0.0
        %4002 = vmatmul.mubr.f32.gmra.mrb[0].mxu0 %v3810
        %v4003 = vpop.f32.mrb[0].mxu0
        %v4004 = vadd.f32 0.0, %v4003
        %v4005 = vpop.f32.mrb[0].mxu0
        %4006 = vmatprep.mubr.f32.mxu0 0.0
        %4007 = vmatmul.mubr.f32.gmra.mrb[0].mxu0 %v3813
        %v4008 = vpop.f32.mrb[0].mxu0
        %v4009 = vadd.f32 0.0, %v4008
        %v4010 = vpop.f32.mrb[0].mxu0
        %4011 = vmatprep.mubr.f32.mxu0 0.0
        %4012 = vmatmul.mubr.f32.gmra.mrb[0].mxu0 %v3816
        %v4013 = vpop.f32.mrb[0].mxu0
        %v4014 = vadd.f32 0.0, %v4013
        %v4015 = vpop.f32.mrb[0].mxu0
        %4016 = vmatprep.mubr.f32.mxu0 0.0
        %4017 = vmatmul.mubr.f32.gmra.mrb[0].mxu0 %v3819
        %v4018 = vpop.f32.mrb[0].mxu0
        %v4019 = vadd.f32 0.0, %v4018
        %v4020 = vpop.f32.mrb[0].mxu0
        %4021 = vmatprep.mubr.f32.mxu0 0.0
        %4022 = vmatmul.mubr.f32.gmra.mrb[0].mxu0 %v3822
        %v4023 = vpop.f32.mrb[0].mxu0
        %v4024 = vadd.f32 0.0, %v4023
        %v4025 = vpop.f32.mrb[0].mxu0
        %4026 = vmatprep.mubr.f32.mxu0 0.0
        %4027 = vmatmul.mubr.f32.gmra.mrb[0].mxu0 %v3825
        %v4028 = vpop.f32.mrb[0].mxu0
        %v4029 = vadd.f32 0.0, %v4028
        %v4030 = vpop.f32.mrb[0].mxu0
        %4031 = vmatprep.mubr.f32.mxu0 0.0
        %4032 = vmatmul.mubr.f32.gmra.mrb[0].mxu0 %v3828
        %v4033 = vpop.f32.mrb[0].mxu0
        %v4034 = vadd.f32 0.0, %v4033
        %v4035 = vpop.f32.mrb[0].mxu0
        %4036 = vmatprep.mubr.f32.mxu0 0.0
        %4037 = vmatmul.mubr.f32.gmra.mrb[0].mxu0 %v3831
        %v4038 = vpop.f32.mrb[0].mxu0
        %v4039 = vadd.f32 0.0, %v4038
        %v4040 = vpop.f32.mrb[0].mxu0
        %4041 = vmatprep.mubr.f32.mxu0 0.0
        %4042 = vmatmul.mubr.f32.gmra.mrb[0].mxu0 %v3834
        %v4043 = vpop.f32.mrb[0].mxu0
        %v4044 = vadd.f32 0.0, %v4043
        %v4045 = vpop.f32.mrb[0].mxu0
        %4046 = vmatprep.mubr.f32.mxu0 0.0
        %4047 = vmatmul.mubr.f32.gmra.mrb[0].mxu0 %v3837
        %v4048 = vpop.f32.mrb[0].mxu0
        %v4049 = vadd.f32 0.0, %v4048
        %v4050 = vpop.f32.mrb[0].mxu0
        %4051 = vmatprep.mubr.f32.mxu0 0.0
        %4052 = vmatmul.mubr.f32.gmra.mrb[0].mxu0 %v3840
        %v4053 = vpop.f32.mrb[0].mxu0
        %v4054 = vadd.f32 0.0, %v4053
        %v4055 = vpop.f32.mrb[0].mxu0
        %4056 = vmatprep.mubr.f32.mxu0 0.0
        %4057 = vmatmul.mubr.f32.gmra.mrb[0].mxu0 %v3843
        %v4058 = vpop.f32.mrb[0].mxu0
        %v4059 = vadd.f32 0.0, %v4058
        %v4060 = vpop.f32.mrb[0].mxu0
        %4061 = vmatprep.mubr.f32.mxu0 0.0
        %4062 = vmatmul.mubr.f32.gmra.mrb[0].mxu0 %v3846
        %v4063 = vpop.f32.mrb[0].mxu0
        %v4064 = vadd.f32 0.0, %v4063
        %v4065 = vpop.f32.mrb[0].mxu0
        %4066 = vmatprep.mubr.f32.mxu0 0.0
        %4067 = vmatmul.mubr.f32.gmra.mrb[0].mxu0 %v3849
        %v4068 = vpop.f32.mrb[0].mxu0
        %v4069 = vadd.f32 0.0, %v4068
        %v4070 = vpop.f32.mrb[0].mxu0
        %4071 = vmatprep.mubr.f32.mxu0 0.0
        %4072 = vmatmul.mubr.f32.gmra.mrb[0].mxu0 %v3852
        %v4073 = vpop.f32.mrb[0].mxu0
        %v4074 = vadd.f32 0.0, %v4073
        %v4075 = vpop.f32.mrb[0].mxu0
        %4076 = vmatprep.mubr.f32.mxu0 0.0
        %4077 = vmatmul.mubr.f32.gmra.mrb[0].mxu0 %v3855
        %v4078 = vpop.f32.mrb[0].mxu0
        %v4079 = vadd.f32 0.0, %v4078
        %v4080 = vpop.f32.mrb[0].mxu0
        %4081 = vdwg.mxu0
        %v4082 = vadd.f32 %v3566, %v3924
        %v4083 = vadd.f32 %v3571, %v3929
        %v4084 = vadd.f32 %v3576, %v3934
        %v4085 = vadd.f32 %v3581, %v3939
        %v4086 = vadd.f32 %v3586, %v3944
        %v4087 = vadd.f32 %v3591, %v3949
        %v4088 = vadd.f32 %v3596, %v3954
        %v4089 = vadd.f32 %v3601, %v3959
        %v4090 = vadd.f32 %v3606, %v3964
        %v4091 = vadd.f32 %v3611, %v3969
        %v4092 = vadd.f32 %v3616, %v3974
        %v4093 = vadd.f32 %v3621, %v3979
        %v4094 = vadd.f32 %v3626, %v3984
        %v4095 = vadd.f32 %v3631, %v3989
        %v4096 = vadd.f32 %v3636, %v3994
        %v4097 = vadd.f32 %v3641, %v3999
        %v4098 = vadd.f32 %v3646, %v4004
        %v4099 = vadd.f32 %v3651, %v4009
        %v4100 = vadd.f32 %v3656, %v4014
        %v4101 = vadd.f32 %v3661, %v4019
        %v4102 = vadd.f32 %v3666, %v4024
        %v4103 = vadd.f32 %v3671, %v4029
        %v4104 = vadd.f32 %v3676, %v4034
        %v4105 = vadd.f32 %v3681, %v4039
        %v4106 = vadd.f32 %v3686, %v4044
        %v4107 = vadd.f32 %v3691, %v4049
        %v4108 = vadd.f32 %v3696, %v4054
        %v4109 = vadd.f32 %v3701, %v4059
        %v4110 = vadd.f32 %v3706, %v4064
        %v4111 = vadd.f32 %v3711, %v4069
        %v4112 = vadd.f32 %v3716, %v4074
        %v4113 = vadd.f32 %v3721, %v4079
        %s4114 = scalar_lea.vmem [#allocation2], 24
        %v4115 = vld [vmem:[%s4114] sm:$0xff]
        %v4116 = vld [vmem:[%s4114 + $0x8] sm:$0xff]
        %v4117 = vld [vmem:[%s4114 + $0x18] sm:$0xff]
        %v4118 = vld [vmem:[%s4114 + $0x20] sm:$0xff]
        %v4119 = vld [vmem:[%s4114 + $0x30] sm:$0xff]
        %v4120 = vld [vmem:[%s4114 + $0x38] sm:$0xff]
        %v4121 = vld [vmem:[%s4114 + $0x48] sm:$0xff]
        %v4122 = vld [vmem:[%s4114 + $0x50] sm:$0xff]
        %v4123 = vld [vmem:[%s4114 + $0x60] sm:$0xff]
        %v4124 = vld [vmem:[%s4114 + $0x68] sm:$0xff]
        %v4125 = vld [vmem:[%s4114 + $0x78] sm:$0xff]
        %v4126 = vld [vmem:[%s4114 + $0x80] sm:$0xff]
        %v4127 = vld [vmem:[%s4114 + $0x90] sm:$0xff]
        %v4128 = vld [vmem:[%s4114 + $0x98] sm:$0xff]
        %v4129 = vld [vmem:[%s4114 + $0xa8] sm:$0xff]
        %v4130 = vld [vmem:[%s4114 + $0xb0] sm:$0xff]
        %v4131 = vld [vmem:[%s4114 + $0xc0] sm:$0xff]
        %v4132 = vld [vmem:[%s4114 + $0xc8] sm:$0xff]
        %v4133 = vld [vmem:[%s4114 + $0xd8] sm:$0xff]
        %v4134 = vld [vmem:[%s4114 + $0xe0] sm:$0xff]
        %v4135 = vld [vmem:[%s4114 + $0xf0] sm:$0xff]
        %v4136 = vld [vmem:[%s4114 + $0xf8] sm:$0xff]
        %v4137 = vld [vmem:[%s4114 + $0x108] sm:$0xff]
        %v4138 = vld [vmem:[%s4114 + $0x110] sm:$0xff]
        %v4139 = vld [vmem:[%s4114 + $0x120] sm:$0xff]
        %v4140 = vld [vmem:[%s4114 + $0x128] sm:$0xff]
        %v4141 = vld [vmem:[%s4114 + $0x138] sm:$0xff]
        %v4142 = vld [vmem:[%s4114 + $0x140] sm:$0xff]
        %v4143 = vld [vmem:[%s4114 + $0x150] sm:$0xff]
        %v4144 = vld [vmem:[%s4114 + $0x158] sm:$0xff]
        %v4145 = vld [vmem:[%s4114 + $0x168] sm:$0xff]
        %v4146 = vld [vmem:[%s4114 + $0x170] sm:$0xff]
        %s4147 = scalar_lea.vmem %s10, 96
        %v4148 = vld [vmem:[%s4147] sm:$0xff]
        %v4149 = vld [vmem:[%s4147 + $0x8] sm:$0xff]
        %v4150 = vld [vmem:[%s4147 + $0x10] sm:$0xff]
        %v4151 = vld [vmem:[%s4147 + $0x18] sm:$0xff]
        %v4153 = vsel %vm2953, %v4115, 0
        %v4156 = vsel %vm2953, %v4116, 0
        %v4159 = vsel %vm2953, %v4117, 0
        %v4162 = vsel %vm2953, %v4118, 0
        %v4165 = vsel %vm2953, %v4119, 0
        %v4168 = vsel %vm2953, %v4120, 0
        %v4171 = vsel %vm2953, %v4121, 0
        %v4174 = vsel %vm2953, %v4122, 0
        %v4177 = vsel %vm2953, %v4123, 0
        %v4180 = vsel %vm2953, %v4124, 0
        %v4183 = vsel %vm2953, %v4125, 0
        %v4186 = vsel %vm2953, %v4126, 0
        %v4189 = vsel %vm2953, %v4127, 0
        %v4192 = vsel %vm2953, %v4128, 0
        %v4195 = vsel %vm2953, %v4129, 0
        %v4198 = vsel %vm2953, %v4130, 0
        %v4201 = vsel %vm2953, %v4131, 0
        %v4204 = vsel %vm2953, %v4132, 0
        %v4207 = vsel %vm2953, %v4133, 0
        %v4210 = vsel %vm2953, %v4134, 0
        %v4213 = vsel %vm2953, %v4135, 0
        %v4216 = vsel %vm2953, %v4136, 0
        %v4219 = vsel %vm2953, %v4137, 0
        %v4222 = vsel %vm2953, %v4138, 0
        %v4225 = vsel %vm2953, %v4139, 0
        %v4228 = vsel %vm2953, %v4140, 0
        %v4231 = vsel %vm2953, %v4141, 0
        %v4234 = vsel %vm2953, %v4142, 0
        %v4237 = vsel %vm2953, %v4143, 0
        %v4240 = vsel %vm2953, %v4144, 0
        %v4243 = vsel %vm2953, %v4145, 0
        %v4246 = vsel %vm2953, %v4146, 0
        %4248 = vmatprep.subr.mxu0 0.0
        %4249 = vmatpush1.msra.mxu0 %v4148
        %4250 = vmatprep.subr.mxu0 0.0
        %4251 = vmatpush1.msra.mxu0 %v4149
        %4252 = vmatprep.subr.mxu0 0.0
        %4253 = vmatpush1.msra.mxu0 %v4150
        %4254 = vmatprep.subr.mxu0 0.0
        %4255 = vmatpush1.msra.mxu0 %v4151
        %4256 = vmatprep.subr.mxu0 0.0
        %4257 = vmatpush1.msra.mxu0 0.0
        %4258 = vmatprep.subr.mxu0 0.0
        %4259 = vmatpush1.msra.mxu0 0.0
        %4260 = vmatprep.subr.mxu0 0.0
        %4261 = vmatpush1.msra.mxu0 0.0
        %4262 = vmatprep.subr.mxu0 0.0
        %4263 = vmatpush1.msra.mxu0 0.0
        %4264 = vmatprep.subr.mxu0 0.0
        %4265 = vmatpush1.msra.mxu0 0.0
        %4266 = vmatprep.subr.mxu0 0.0
        %4267 = vmatpush1.msra.mxu0 0.0
        %4268 = vmatprep.subr.mxu0 0.0
        %4269 = vmatpush1.msra.mxu0 0.0
        %4270 = vmatprep.subr.mxu0 0.0
        %4271 = vmatpush1.msra.mxu0 0.0
        %4272 = vmatprep.subr.mxu0 0.0
        %4273 = vmatpush1.msra.mxu0 0.0
        %4274 = vmatprep.subr.mxu0 0.0
        %4275 = vmatpush1.msra.mxu0 0.0
        %4276 = vmatprep.subr.mxu0 0.0
        %4277 = vmatpush1.msra.mxu0 0.0
        %4278 = vmatprep.subr.mxu0 0.0
        %4279 = vmatpush1.msra.mxu0 0.0
        %4280 = vmatprep.subr.mxu0 0.0
        %4281 = vmatpush1.msra.mxu0 0.0
        %4282 = vmatprep.subr.mxu0 0.0
        %4283 = vmatpush1.msra.mxu0 0.0
        %4284 = vmatprep.subr.mxu0 0.0
        %4285 = vmatpush1.msra.mxu0 0.0
        %4286 = vmatprep.subr.mxu0 0.0
        %4287 = vmatpush1.msra.mxu0 0.0
        %4288 = vmatprep.subr.mxu0 0.0
        %4289 = vmatpush1.msra.mxu0 0.0
        %4290 = vmatprep.subr.mxu0 0.0
        %4291 = vmatpush1.msra.mxu0 0.0
        %4292 = vmatprep.subr.mxu0 0.0
        %4293 = vmatpush1.msra.mxu0 0.0
        %4294 = vmatprep.subr.mxu0 0.0
        %4295 = vmatpush1.msra.mxu0 0.0
        %4296 = vmatprep.subr.mxu0 0.0
        %4297 = vmatpush1.msra.mxu0 0.0
        %4298 = vmatprep.subr.mxu0 0.0
        %4299 = vmatpush1.msra.mxu0 0.0
        %4300 = vmatprep.subr.mxu0 0.0
        %4301 = vmatpush1.msra.mxu0 0.0
        %4302 = vmatprep.subr.mxu0 0.0
        %4303 = vmatpush1.msra.mxu0 0.0
        %4304 = vmatprep.subr.mxu0 0.0
        %4305 = vmatpush1.msra.mxu0 0.0
        %4306 = vmatprep.subr.mxu0 0.0
        %4307 = vmatpush1.msra.mxu0 0.0
        %4308 = vmatprep.subr.mxu0 0.0
        %4309 = vmatpush1.msra.mxu0 0.0
        %4310 = vmatprep.subr.mxu0 0.0
        %4311 = vmatpush1.msra.mxu0 0.0
        %4312 = vmatprep.mubr.f32.mxu0 0.0
        %4313 = vmatmul.mubr.f32.gmra.mrb[0].mxu0 %v4153
        %v4314 = vpop.f32.mrb[0].mxu0
        %v4315 = vadd.f32 0.0, %v4314
        %v4316 = vpop.f32.mrb[0].mxu0
        %4317 = vmatprep.mubr.f32.mxu0 0.0
        %4318 = vmatmul.mubr.f32.gmra.mrb[0].mxu0 %v4156
        %v4319 = vpop.f32.mrb[0].mxu0
        %v4320 = vadd.f32 0.0, %v4319
        %v4321 = vpop.f32.mrb[0].mxu0
        %4322 = vmatprep.mubr.f32.mxu0 0.0
        %4323 = vmatmul.mubr.f32.gmra.mrb[0].mxu0 %v4159
        %v4324 = vpop.f32.mrb[0].mxu0
        %v4325 = vadd.f32 0.0, %v4324
        %v4326 = vpop.f32.mrb[0].mxu0
        %4327 = vmatprep.mubr.f32.mxu0 0.0
        %4328 = vmatmul.mubr.f32.gmra.mrb[0].mxu0 %v4162
        %v4329 = vpop.f32.mrb[0].mxu0
        %v4330 = vadd.f32 0.0, %v4329
        %v4331 = vpop.f32.mrb[0].mxu0
        %4332 = vmatprep.mubr.f32.mxu0 0.0
        %4333 = vmatmul.mubr.f32.gmra.mrb[0].mxu0 %v4165
        %v4334 = vpop.f32.mrb[0].mxu0
        %v4335 = vadd.f32 0.0, %v4334
        %v4336 = vpop.f32.mrb[0].mxu0
        %4337 = vmatprep.mubr.f32.mxu0 0.0
        %4338 = vmatmul.mubr.f32.gmra.mrb[0].mxu0 %v4168
        %v4339 = vpop.f32.mrb[0].mxu0
        %v4340 = vadd.f32 0.0, %v4339
        %v4341 = vpop.f32.mrb[0].mxu0
        %4342 = vmatprep.mubr.f32.mxu0 0.0
        %4343 = vmatmul.mubr.f32.gmra.mrb[0].mxu0 %v4171
        %v4344 = vpop.f32.mrb[0].mxu0
        %v4345 = vadd.f32 0.0, %v4344
        %v4346 = vpop.f32.mrb[0].mxu0
        %4347 = vmatprep.mubr.f32.mxu0 0.0
        %4348 = vmatmul.mubr.f32.gmra.mrb[0].mxu0 %v4174
        %v4349 = vpop.f32.mrb[0].mxu0
        %v4350 = vadd.f32 0.0, %v4349
        %v4351 = vpop.f32.mrb[0].mxu0
        %4352 = vmatprep.mubr.f32.mxu0 0.0
        %4353 = vmatmul.mubr.f32.gmra.mrb[0].mxu0 %v4177
        %v4354 = vpop.f32.mrb[0].mxu0
        %v4355 = vadd.f32 0.0, %v4354
        %v4356 = vpop.f32.mrb[0].mxu0
        %4357 = vmatprep.mubr.f32.mxu0 0.0
        %4358 = vmatmul.mubr.f32.gmra.mrb[0].mxu0 %v4180
        %v4359 = vpop.f32.mrb[0].mxu0
        %v4360 = vadd.f32 0.0, %v4359
        %v4361 = vpop.f32.mrb[0].mxu0
        %4362 = vmatprep.mubr.f32.mxu0 0.0
        %4363 = vmatmul.mubr.f32.gmra.mrb[0].mxu0 %v4183
        %v4364 = vpop.f32.mrb[0].mxu0
        %v4365 = vadd.f32 0.0, %v4364
        %v4366 = vpop.f32.mrb[0].mxu0
        %4367 = vmatprep.mubr.f32.mxu0 0.0
        %4368 = vmatmul.mubr.f32.gmra.mrb[0].mxu0 %v4186
        %v4369 = vpop.f32.mrb[0].mxu0
        %v4370 = vadd.f32 0.0, %v4369
        %v4371 = vpop.f32.mrb[0].mxu0
        %4372 = vmatprep.mubr.f32.mxu0 0.0
        %4373 = vmatmul.mubr.f32.gmra.mrb[0].mxu0 %v4189
        %v4374 = vpop.f32.mrb[0].mxu0
        %v4375 = vadd.f32 0.0, %v4374
        %v4376 = vpop.f32.mrb[0].mxu0
        %4377 = vmatprep.mubr.f32.mxu0 0.0
        %4378 = vmatmul.mubr.f32.gmra.mrb[0].mxu0 %v4192
        %v4379 = vpop.f32.mrb[0].mxu0
        %v4380 = vadd.f32 0.0, %v4379
        %v4381 = vpop.f32.mrb[0].mxu0
        %4382 = vmatprep.mubr.f32.mxu0 0.0
        %4383 = vmatmul.mubr.f32.gmra.mrb[0].mxu0 %v4195
        %v4384 = vpop.f32.mrb[0].mxu0
        %v4385 = vadd.f32 0.0, %v4384
        %v4386 = vpop.f32.mrb[0].mxu0
        %4387 = vmatprep.mubr.f32.mxu0 0.0
        %4388 = vmatmul.mubr.f32.gmra.mrb[0].mxu0 %v4198
        %v4389 = vpop.f32.mrb[0].mxu0
        %v4390 = vadd.f32 0.0, %v4389
        %v4391 = vpop.f32.mrb[0].mxu0
        %4392 = vmatprep.mubr.f32.mxu0 0.0
        %4393 = vmatmul.mubr.f32.gmra.mrb[0].mxu0 %v4201
        %v4394 = vpop.f32.mrb[0].mxu0
        %v4395 = vadd.f32 0.0, %v4394
        %v4396 = vpop.f32.mrb[0].mxu0
        %4397 = vmatprep.mubr.f32.mxu0 0.0
        %4398 = vmatmul.mubr.f32.gmra.mrb[0].mxu0 %v4204
        %v4399 = vpop.f32.mrb[0].mxu0
        %v4400 = vadd.f32 0.0, %v4399
        %v4401 = vpop.f32.mrb[0].mxu0
        %4402 = vmatprep.mubr.f32.mxu0 0.0
        %4403 = vmatmul.mubr.f32.gmra.mrb[0].mxu0 %v4207
        %v4404 = vpop.f32.mrb[0].mxu0
        %v4405 = vadd.f32 0.0, %v4404
        %v4406 = vpop.f32.mrb[0].mxu0
        %4407 = vmatprep.mubr.f32.mxu0 0.0
        %4408 = vmatmul.mubr.f32.gmra.mrb[0].mxu0 %v4210
        %v4409 = vpop.f32.mrb[0].mxu0
        %v4410 = vadd.f32 0.0, %v4409
        %v4411 = vpop.f32.mrb[0].mxu0
        %4412 = vmatprep.mubr.f32.mxu0 0.0
        %4413 = vmatmul.mubr.f32.gmra.mrb[0].mxu0 %v4213
        %v4414 = vpop.f32.mrb[0].mxu0
        %v4415 = vadd.f32 0.0, %v4414
        %v4416 = vpop.f32.mrb[0].mxu0
        %4417 = vmatprep.mubr.f32.mxu0 0.0
        %4418 = vmatmul.mubr.f32.gmra.mrb[0].mxu0 %v4216
        %v4419 = vpop.f32.mrb[0].mxu0
        %v4420 = vadd.f32 0.0, %v4419
        %v4421 = vpop.f32.mrb[0].mxu0
        %4422 = vmatprep.mubr.f32.mxu0 0.0
        %4423 = vmatmul.mubr.f32.gmra.mrb[0].mxu0 %v4219
        %v4424 = vpop.f32.mrb[0].mxu0
        %v4425 = vadd.f32 0.0, %v4424
        %v4426 = vpop.f32.mrb[0].mxu0
        %4427 = vmatprep.mubr.f32.mxu0 0.0
        %4428 = vmatmul.mubr.f32.gmra.mrb[0].mxu0 %v4222
        %v4429 = vpop.f32.mrb[0].mxu0
        %v4430 = vadd.f32 0.0, %v4429
        %v4431 = vpop.f32.mrb[0].mxu0
        %4432 = vmatprep.mubr.f32.mxu0 0.0
        %4433 = vmatmul.mubr.f32.gmra.mrb[0].mxu0 %v4225
        %v4434 = vpop.f32.mrb[0].mxu0
        %v4435 = vadd.f32 0.0, %v4434
        %v4436 = vpop.f32.mrb[0].mxu0
        %4437 = vmatprep.mubr.f32.mxu0 0.0
        %4438 = vmatmul.mubr.f32.gmra.mrb[0].mxu0 %v4228
        %v4439 = vpop.f32.mrb[0].mxu0
        %v4440 = vadd.f32 0.0, %v4439
        %v4441 = vpop.f32.mrb[0].mxu0
        %4442 = vmatprep.mubr.f32.mxu0 0.0
        %4443 = vmatmul.mubr.f32.gmra.mrb[0].mxu0 %v4231
        %v4444 = vpop.f32.mrb[0].mxu0
        %v4445 = vadd.f32 0.0, %v4444
        %v4446 = vpop.f32.mrb[0].mxu0
        %4447 = vmatprep.mubr.f32.mxu0 0.0
        %4448 = vmatmul.mubr.f32.gmra.mrb[0].mxu0 %v4234
        %v4449 = vpop.f32.mrb[0].mxu0
        %v4450 = vadd.f32 0.0, %v4449
        %v4451 = vpop.f32.mrb[0].mxu0
        %4452 = vmatprep.mubr.f32.mxu0 0.0
        %4453 = vmatmul.mubr.f32.gmra.mrb[0].mxu0 %v4237
        %v4454 = vpop.f32.mrb[0].mxu0
        %v4455 = vadd.f32 0.0, %v4454
        %v4456 = vpop.f32.mrb[0].mxu0
        %4457 = vmatprep.mubr.f32.mxu0 0.0
        %4458 = vmatmul.mubr.f32.gmra.mrb[0].mxu0 %v4240
        %v4459 = vpop.f32.mrb[0].mxu0
        %v4460 = vadd.f32 0.0, %v4459
        %v4461 = vpop.f32.mrb[0].mxu0
        %4462 = vmatprep.mubr.f32.mxu0 0.0
        %4463 = vmatmul.mubr.f32.gmra.mrb[0].mxu0 %v4243
        %v4464 = vpop.f32.mrb[0].mxu0
        %v4465 = vadd.f32 0.0, %v4464
        %v4466 = vpop.f32.mrb[0].mxu0
        %4467 = vmatprep.mubr.f32.mxu0 0.0
        %4468 = vmatmul.mubr.f32.gmra.mrb[0].mxu0 %v4246
        %v4469 = vpop.f32.mrb[0].mxu0
        %v4470 = vadd.f32 0.0, %v4469
        %v4471 = vpop.f32.mrb[0].mxu0
        %4472 = vdwg.mxu0
        %v4473 = vadd.f32 %v4082, %v4315
        %v4474 = vadd.f32 %v4083, %v4320
        %v4475 = vadd.f32 %v4084, %v4325
        %v4476 = vadd.f32 %v4085, %v4330
        %v4477 = vadd.f32 %v4086, %v4335
        %v4478 = vadd.f32 %v4087, %v4340
        %v4479 = vadd.f32 %v4088, %v4345
        %v4480 = vadd.f32 %v4089, %v4350
        %v4481 = vadd.f32 %v4090, %v4355
        %v4482 = vadd.f32 %v4091, %v4360
        %v4483 = vadd.f32 %v4092, %v4365
        %v4484 = vadd.f32 %v4093, %v4370
        %v4485 = vadd.f32 %v4094, %v4375
        %v4486 = vadd.f32 %v4095, %v4380
        %v4487 = vadd.f32 %v4096, %v4385
        %v4488 = vadd.f32 %v4097, %v4390
        %v4489 = vadd.f32 %v4098, %v4395
        %v4490 = vadd.f32 %v4099, %v4400
        %v4491 = vadd.f32 %v4100, %v4405
        %v4492 = vadd.f32 %v4101, %v4410
        %v4493 = vadd.f32 %v4102, %v4415
        %v4494 = vadd.f32 %v4103, %v4420
        %v4495 = vadd.f32 %v4104, %v4425
        %v4496 = vadd.f32 %v4105, %v4430
        %v4497 = vadd.f32 %v4106, %v4435
        %v4498 = vadd.f32 %v4107, %v4440
        %v4499 = vadd.f32 %v4108, %v4445
        %v4500 = vadd.f32 %v4109, %v4450
        %v4501 = vadd.f32 %v4110, %v4455
        %v4502 = vadd.f32 %v4111, %v4460
        %v4503 = vadd.f32 %v4112, %v4465
        %v4504 = vadd.f32 %v4113, %v4470
        %v4505 = vld [vmem:[%s4114 + $0x1] sm:$0xff]
        %v4506 = vld [vmem:[%s4114 + $0x9] sm:$0xff]
        %v4507 = vld [vmem:[%s4114 + $0x19] sm:$0xff]
        %v4508 = vld [vmem:[%s4114 + $0x21] sm:$0xff]
        %v4509 = vld [vmem:[%s4114 + $0x31] sm:$0xff]
        %v4510 = vld [vmem:[%s4114 + $0x39] sm:$0xff]
        %v4511 = vld [vmem:[%s4114 + $0x49] sm:$0xff]
        %v4512 = vld [vmem:[%s4114 + $0x51] sm:$0xff]
        %v4513 = vld [vmem:[%s4114 + $0x61] sm:$0xff]
        %v4514 = vld [vmem:[%s4114 + $0x69] sm:$0xff]
        %v4515 = vld [vmem:[%s4114 + $0x79] sm:$0xff]
        %v4516 = vld [vmem:[%s4114 + $0x81] sm:$0xff]
        %v4517 = vld [vmem:[%s4114 + $0x91] sm:$0xff]
        %v4518 = vld [vmem:[%s4114 + $0x99] sm:$0xff]
        %v4519 = vld [vmem:[%s4114 + $0xa9] sm:$0xff]
        %v4520 = vld [vmem:[%s4114 + $0xb1] sm:$0xff]
        %v4521 = vld [vmem:[%s4114 + $0xc1] sm:$0xff]
        %v4522 = vld [vmem:[%s4114 + $0xc9] sm:$0xff]
        %v4523 = vld [vmem:[%s4114 + $0xd9] sm:$0xff]
        %v4524 = vld [vmem:[%s4114 + $0xe1] sm:$0xff]
        %v4525 = vld [vmem:[%s4114 + $0xf1] sm:$0xff]
        %v4526 = vld [vmem:[%s4114 + $0xf9] sm:$0xff]
        %v4527 = vld [vmem:[%s4114 + $0x109] sm:$0xff]
        %v4528 = vld [vmem:[%s4114 + $0x111] sm:$0xff]
        %v4529 = vld [vmem:[%s4114 + $0x121] sm:$0xff]
        %v4530 = vld [vmem:[%s4114 + $0x129] sm:$0xff]
        %v4531 = vld [vmem:[%s4114 + $0x139] sm:$0xff]
        %v4532 = vld [vmem:[%s4114 + $0x141] sm:$0xff]
        %v4533 = vld [vmem:[%s4114 + $0x151] sm:$0xff]
        %v4534 = vld [vmem:[%s4114 + $0x159] sm:$0xff]
        %v4535 = vld [vmem:[%s4114 + $0x169] sm:$0xff]
        %v4536 = vld [vmem:[%s4114 + $0x171] sm:$0xff]
        %s4537 = scalar_lea.vmem %s10, 128
        %v4538 = vld [vmem:[%s4537] sm:$0xff]
        %v4539 = vld [vmem:[%s4537 + $0x8] sm:$0xff]
        %v4540 = vld [vmem:[%s4537 + $0x10] sm:$0xff]
        %v4541 = vld [vmem:[%s4537 + $0x18] sm:$0xff]
        %v4543 = vsel %vm2953, %v4505, 0
        %v4546 = vsel %vm2953, %v4506, 0
        %v4549 = vsel %vm2953, %v4507, 0
        %v4552 = vsel %vm2953, %v4508, 0
        %v4555 = vsel %vm2953, %v4509, 0
        %v4558 = vsel %vm2953, %v4510, 0
        %v4561 = vsel %vm2953, %v4511, 0
        %v4564 = vsel %vm2953, %v4512, 0
        %v4567 = vsel %vm2953, %v4513, 0
        %v4570 = vsel %vm2953, %v4514, 0
        %v4573 = vsel %vm2953, %v4515, 0
        %v4576 = vsel %vm2953, %v4516, 0
        %v4579 = vsel %vm2953, %v4517, 0
        %v4582 = vsel %vm2953, %v4518, 0
        %v4585 = vsel %vm2953, %v4519, 0
        %v4588 = vsel %vm2953, %v4520, 0
        %v4591 = vsel %vm2953, %v4521, 0
        %v4594 = vsel %vm2953, %v4522, 0
        %v4597 = vsel %vm2953, %v4523, 0
        %v4600 = vsel %vm2953, %v4524, 0
        %v4603 = vsel %vm2953, %v4525, 0
        %v4606 = vsel %vm2953, %v4526, 0
        %v4609 = vsel %vm2953, %v4527, 0
        %v4612 = vsel %vm2953, %v4528, 0
        %v4615 = vsel %vm2953, %v4529, 0
        %v4618 = vsel %vm2953, %v4530, 0
        %v4621 = vsel %vm2953, %v4531, 0
        %v4624 = vsel %vm2953, %v4532, 0
        %v4627 = vsel %vm2953, %v4533, 0
        %v4630 = vsel %vm2953, %v4534, 0
        %v4633 = vsel %vm2953, %v4535, 0
        %v4636 = vsel %vm2953, %v4536, 0
        %4638 = vmatprep.subr.mxu0 0.0
        %4639 = vmatpush1.msra.mxu0 %v4538
        %4640 = vmatprep.subr.mxu0 0.0
        %4641 = vmatpush1.msra.mxu0 %v4539
        %4642 = vmatprep.subr.mxu0 0.0
        %4643 = vmatpush1.msra.mxu0 %v4540
        %4644 = vmatprep.subr.mxu0 0.0
        %4645 = vmatpush1.msra.mxu0 %v4541
        %4646 = vmatprep.subr.mxu0 0.0
        %4647 = vmatpush1.msra.mxu0 0.0
        %4648 = vmatprep.subr.mxu0 0.0
        %4649 = vmatpush1.msra.mxu0 0.0
        %4650 = vmatprep.subr.mxu0 0.0
        %4651 = vmatpush1.msra.mxu0 0.0
        %4652 = vmatprep.subr.mxu0 0.0
        %4653 = vmatpush1.msra.mxu0 0.0
        %4654 = vmatprep.subr.mxu0 0.0
        %4655 = vmatpush1.msra.mxu0 0.0
        %4656 = vmatprep.subr.mxu0 0.0
        %4657 = vmatpush1.msra.mxu0 0.0
        %4658 = vmatprep.subr.mxu0 0.0
        %4659 = vmatpush1.msra.mxu0 0.0
        %4660 = vmatprep.subr.mxu0 0.0
        %4661 = vmatpush1.msra.mxu0 0.0
        %4662 = vmatprep.subr.mxu0 0.0
        %4663 = vmatpush1.msra.mxu0 0.0
        %4664 = vmatprep.subr.mxu0 0.0
        %4665 = vmatpush1.msra.mxu0 0.0
        %4666 = vmatprep.subr.mxu0 0.0
        %4667 = vmatpush1.msra.mxu0 0.0
        %4668 = vmatprep.subr.mxu0 0.0
        %4669 = vmatpush1.msra.mxu0 0.0
        %4670 = vmatprep.subr.mxu0 0.0
        %4671 = vmatpush1.msra.mxu0 0.0
        %4672 = vmatprep.subr.mxu0 0.0
        %4673 = vmatpush1.msra.mxu0 0.0
        %4674 = vmatprep.subr.mxu0 0.0
        %4675 = vmatpush1.msra.mxu0 0.0
        %4676 = vmatprep.subr.mxu0 0.0
        %4677 = vmatpush1.msra.mxu0 0.0
        %4678 = vmatprep.subr.mxu0 0.0
        %4679 = vmatpush1.msra.mxu0 0.0
        %4680 = vmatprep.subr.mxu0 0.0
        %4681 = vmatpush1.msra.mxu0 0.0
        %4682 = vmatprep.subr.mxu0 0.0
        %4683 = vmatpush1.msra.mxu0 0.0
        %4684 = vmatprep.subr.mxu0 0.0
        %4685 = vmatpush1.msra.mxu0 0.0
        %4686 = vmatprep.subr.mxu0 0.0
        %4687 = vmatpush1.msra.mxu0 0.0
        %4688 = vmatprep.subr.mxu0 0.0
        %4689 = vmatpush1.msra.mxu0 0.0
        %4690 = vmatprep.subr.mxu0 0.0
        %4691 = vmatpush1.msra.mxu0 0.0
        %4692 = vmatprep.subr.mxu0 0.0
        %4693 = vmatpush1.msra.mxu0 0.0
        %4694 = vmatprep.subr.mxu0 0.0
        %4695 = vmatpush1.msra.mxu0 0.0
        %4696 = vmatprep.subr.mxu0 0.0
        %4697 = vmatpush1.msra.mxu0 0.0
        %4698 = vmatprep.subr.mxu0 0.0
        %4699 = vmatpush1.msra.mxu0 0.0
        %4700 = vmatprep.subr.mxu0 0.0
        %4701 = vmatpush1.msra.mxu0 0.0
        %4702 = vmatprep.mubr.f32.mxu0 0.0
        %4703 = vmatmul.mubr.f32.gmra.mrb[0].mxu0 %v4543
        %v4704 = vpop.f32.mrb[0].mxu0
        %v4705 = vadd.f32 0.0, %v4704
        %v4706 = vpop.f32.mrb[0].mxu0
        %4707 = vmatprep.mubr.f32.mxu0 0.0
        %4708 = vmatmul.mubr.f32.gmra.mrb[0].mxu0 %v4546
        %v4709 = vpop.f32.mrb[0].mxu0
        %v4710 = vadd.f32 0.0, %v4709
        %v4711 = vpop.f32.mrb[0].mxu0
        %4712 = vmatprep.mubr.f32.mxu0 0.0
        %4713 = vmatmul.mubr.f32.gmra.mrb[0].mxu0 %v4549
        %v4714 = vpop.f32.mrb[0].mxu0
        %v4715 = vadd.f32 0.0, %v4714
        %v4716 = vpop.f32.mrb[0].mxu0
        %4717 = vmatprep.mubr.f32.mxu0 0.0
        %4718 = vmatmul.mubr.f32.gmra.mrb[0].mxu0 %v4552
        %v4719 = vpop.f32.mrb[0].mxu0
        %v4720 = vadd.f32 0.0, %v4719
        %v4721 = vpop.f32.mrb[0].mxu0
        %4722 = vmatprep.mubr.f32.mxu0 0.0
        %4723 = vmatmul.mubr.f32.gmra.mrb[0].mxu0 %v4555
        %v4724 = vpop.f32.mrb[0].mxu0
        %v4725 = vadd.f32 0.0, %v4724
        %v4726 = vpop.f32.mrb[0].mxu0
        %4727 = vmatprep.mubr.f32.mxu0 0.0
        %4728 = vmatmul.mubr.f32.gmra.mrb[0].mxu0 %v4558
        %v4729 = vpop.f32.mrb[0].mxu0
        %v4730 = vadd.f32 0.0, %v4729
        %v4731 = vpop.f32.mrb[0].mxu0
        %4732 = vmatprep.mubr.f32.mxu0 0.0
        %4733 = vmatmul.mubr.f32.gmra.mrb[0].mxu0 %v4561
        %v4734 = vpop.f32.mrb[0].mxu0
        %v4735 = vadd.f32 0.0, %v4734
        %v4736 = vpop.f32.mrb[0].mxu0
        %4737 = vmatprep.mubr.f32.mxu0 0.0
        %4738 = vmatmul.mubr.f32.gmra.mrb[0].mxu0 %v4564
        %v4739 = vpop.f32.mrb[0].mxu0
        %v4740 = vadd.f32 0.0, %v4739
        %v4741 = vpop.f32.mrb[0].mxu0
        %4742 = vmatprep.mubr.f32.mxu0 0.0
        %4743 = vmatmul.mubr.f32.gmra.mrb[0].mxu0 %v4567
        %v4744 = vpop.f32.mrb[0].mxu0
        %v4745 = vadd.f32 0.0, %v4744
        %v4746 = vpop.f32.mrb[0].mxu0
        %4747 = vmatprep.mubr.f32.mxu0 0.0
        %4748 = vmatmul.mubr.f32.gmra.mrb[0].mxu0 %v4570
        %v4749 = vpop.f32.mrb[0].mxu0
        %v4750 = vadd.f32 0.0, %v4749
        %v4751 = vpop.f32.mrb[0].mxu0
        %4752 = vmatprep.mubr.f32.mxu0 0.0
        %4753 = vmatmul.mubr.f32.gmra.mrb[0].mxu0 %v4573
        %v4754 = vpop.f32.mrb[0].mxu0
        %v4755 = vadd.f32 0.0, %v4754
        %v4756 = vpop.f32.mrb[0].mxu0
        %4757 = vmatprep.mubr.f32.mxu0 0.0
        %4758 = vmatmul.mubr.f32.gmra.mrb[0].mxu0 %v4576
        %v4759 = vpop.f32.mrb[0].mxu0
        %v4760 = vadd.f32 0.0, %v4759
        %v4761 = vpop.f32.mrb[0].mxu0
        %4762 = vmatprep.mubr.f32.mxu0 0.0
        %4763 = vmatmul.mubr.f32.gmra.mrb[0].mxu0 %v4579
        %v4764 = vpop.f32.mrb[0].mxu0
        %v4765 = vadd.f32 0.0, %v4764
        %v4766 = vpop.f32.mrb[0].mxu0
        %4767 = vmatprep.mubr.f32.mxu0 0.0
        %4768 = vmatmul.mubr.f32.gmra.mrb[0].mxu0 %v4582
        %v4769 = vpop.f32.mrb[0].mxu0
        %v4770 = vadd.f32 0.0, %v4769
        %v4771 = vpop.f32.mrb[0].mxu0
        %4772 = vmatprep.mubr.f32.mxu0 0.0
        %4773 = vmatmul.mubr.f32.gmra.mrb[0].mxu0 %v4585
        %v4774 = vpop.f32.mrb[0].mxu0
        %v4775 = vadd.f32 0.0, %v4774
        %v4776 = vpop.f32.mrb[0].mxu0
        %4777 = vmatprep.mubr.f32.mxu0 0.0
        %4778 = vmatmul.mubr.f32.gmra.mrb[0].mxu0 %v4588
        %v4779 = vpop.f32.mrb[0].mxu0
        %v4780 = vadd.f32 0.0, %v4779
        %v4781 = vpop.f32.mrb[0].mxu0
        %4782 = vmatprep.mubr.f32.mxu0 0.0
        %4783 = vmatmul.mubr.f32.gmra.mrb[0].mxu0 %v4591
        %v4784 = vpop.f32.mrb[0].mxu0
        %v4785 = vadd.f32 0.0, %v4784
        %v4786 = vpop.f32.mrb[0].mxu0
        %4787 = vmatprep.mubr.f32.mxu0 0.0
        %4788 = vmatmul.mubr.f32.gmra.mrb[0].mxu0 %v4594
        %v4789 = vpop.f32.mrb[0].mxu0
        %v4790 = vadd.f32 0.0, %v4789
        %v4791 = vpop.f32.mrb[0].mxu0
        %4792 = vmatprep.mubr.f32.mxu0 0.0
        %4793 = vmatmul.mubr.f32.gmra.mrb[0].mxu0 %v4597
        %v4794 = vpop.f32.mrb[0].mxu0
        %v4795 = vadd.f32 0.0, %v4794
        %v4796 = vpop.f32.mrb[0].mxu0
        %4797 = vmatprep.mubr.f32.mxu0 0.0
        %4798 = vmatmul.mubr.f32.gmra.mrb[0].mxu0 %v4600
        %v4799 = vpop.f32.mrb[0].mxu0
        %v4800 = vadd.f32 0.0, %v4799
        %v4801 = vpop.f32.mrb[0].mxu0
        %4802 = vmatprep.mubr.f32.mxu0 0.0
        %4803 = vmatmul.mubr.f32.gmra.mrb[0].mxu0 %v4603
        %v4804 = vpop.f32.mrb[0].mxu0
        %v4805 = vadd.f32 0.0, %v4804
        %v4806 = vpop.f32.mrb[0].mxu0
        %4807 = vmatprep.mubr.f32.mxu0 0.0
        %4808 = vmatmul.mubr.f32.gmra.mrb[0].mxu0 %v4606
        %v4809 = vpop.f32.mrb[0].mxu0
        %v4810 = vadd.f32 0.0, %v4809
        %v4811 = vpop.f32.mrb[0].mxu0
        %4812 = vmatprep.mubr.f32.mxu0 0.0
        %4813 = vmatmul.mubr.f32.gmra.mrb[0].mxu0 %v4609
        %v4814 = vpop.f32.mrb[0].mxu0
        %v4815 = vadd.f32 0.0, %v4814
        %v4816 = vpop.f32.mrb[0].mxu0
        %4817 = vmatprep.mubr.f32.mxu0 0.0
        %4818 = vmatmul.mubr.f32.gmra.mrb[0].mxu0 %v4612
        %v4819 = vpop.f32.mrb[0].mxu0
        %v4820 = vadd.f32 0.0, %v4819
        %v4821 = vpop.f32.mrb[0].mxu0
        %4822 = vmatprep.mubr.f32.mxu0 0.0
        %4823 = vmatmul.mubr.f32.gmra.mrb[0].mxu0 %v4615
        %v4824 = vpop.f32.mrb[0].mxu0
        %v4825 = vadd.f32 0.0, %v4824
        %v4826 = vpop.f32.mrb[0].mxu0
        %4827 = vmatprep.mubr.f32.mxu0 0.0
        %4828 = vmatmul.mubr.f32.gmra.mrb[0].mxu0 %v4618
        %v4829 = vpop.f32.mrb[0].mxu0
        %v4830 = vadd.f32 0.0, %v4829
        %v4831 = vpop.f32.mrb[0].mxu0
        %4832 = vmatprep.mubr.f32.mxu0 0.0
        %4833 = vmatmul.mubr.f32.gmra.mrb[0].mxu0 %v4621
        %v4834 = vpop.f32.mrb[0].mxu0
        %v4835 = vadd.f32 0.0, %v4834
        %v4836 = vpop.f32.mrb[0].mxu0
        %4837 = vmatprep.mubr.f32.mxu0 0.0
        %4838 = vmatmul.mubr.f32.gmra.mrb[0].mxu0 %v4624
        %v4839 = vpop.f32.mrb[0].mxu0
        %v4840 = vadd.f32 0.0, %v4839
        %v4841 = vpop.f32.mrb[0].mxu0
        %4842 = vmatprep.mubr.f32.mxu0 0.0
        %4843 = vmatmul.mubr.f32.gmra.mrb[0].mxu0 %v4627
        %v4844 = vpop.f32.mrb[0].mxu0
        %v4845 = vadd.f32 0.0, %v4844
        %v4846 = vpop.f32.mrb[0].mxu0
        %4847 = vmatprep.mubr.f32.mxu0 0.0
        %4848 = vmatmul.mubr.f32.gmra.mrb[0].mxu0 %v4630
        %v4849 = vpop.f32.mrb[0].mxu0
        %v4850 = vadd.f32 0.0, %v4849
        %v4851 = vpop.f32.mrb[0].mxu0
        %4852 = vmatprep.mubr.f32.mxu0 0.0
        %4853 = vmatmul.mubr.f32.gmra.mrb[0].mxu0 %v4633
        %v4854 = vpop.f32.mrb[0].mxu0
        %v4855 = vadd.f32 0.0, %v4854
        %v4856 = vpop.f32.mrb[0].mxu0
        %4857 = vmatprep.mubr.f32.mxu0 0.0
        %4858 = vmatmul.mubr.f32.gmra.mrb[0].mxu0 %v4636
        %v4859 = vpop.f32.mrb[0].mxu0
        %v4860 = vadd.f32 0.0, %v4859
        %v4861 = vpop.f32.mrb[0].mxu0
        %4862 = vdwg.mxu0
        %v4863 = vadd.f32 %v4473, %v4705
        %v4864 = vadd.f32 %v4474, %v4710
        %v4865 = vadd.f32 %v4475, %v4715
        %v4866 = vadd.f32 %v4476, %v4720
        %v4867 = vadd.f32 %v4477, %v4725
        %v4868 = vadd.f32 %v4478, %v4730
        %v4869 = vadd.f32 %v4479, %v4735
        %v4870 = vadd.f32 %v4480, %v4740
        %v4871 = vadd.f32 %v4481, %v4745
        %v4872 = vadd.f32 %v4482, %v4750
        %v4873 = vadd.f32 %v4483, %v4755
        %v4874 = vadd.f32 %v4484, %v4760
        %v4875 = vadd.f32 %v4485, %v4765
        %v4876 = vadd.f32 %v4486, %v4770
        %v4877 = vadd.f32 %v4487, %v4775
        %v4878 = vadd.f32 %v4488, %v4780
        %v4879 = vadd.f32 %v4489, %v4785
        %v4880 = vadd.f32 %v4490, %v4790
        %v4881 = vadd.f32 %v4491, %v4795
        %v4882 = vadd.f32 %v4492, %v4800
        %v4883 = vadd.f32 %v4493, %v4805
        %v4884 = vadd.f32 %v4494, %v4810
        %v4885 = vadd.f32 %v4495, %v4815
        %v4886 = vadd.f32 %v4496, %v4820
        %v4887 = vadd.f32 %v4497, %v4825
        %v4888 = vadd.f32 %v4498, %v4830
        %v4889 = vadd.f32 %v4499, %v4835
        %v4890 = vadd.f32 %v4500, %v4840
        %v4891 = vadd.f32 %v4501, %v4845
        %v4892 = vadd.f32 %v4502, %v4850
        %v4893 = vadd.f32 %v4503, %v4855
        %v4894 = vadd.f32 %v4504, %v4860
        %v4895 = vld [vmem:[%s4114 + $0x2] sm:$0xff]
        %v4896 = vld [vmem:[%s4114 + $0xa] sm:$0xff]
        %v4897 = vld [vmem:[%s4114 + $0x1a] sm:$0xff]
        %v4898 = vld [vmem:[%s4114 + $0x22] sm:$0xff]
        %v4899 = vld [vmem:[%s4114 + $0x32] sm:$0xff]
        %v4900 = vld [vmem:[%s4114 + $0x3a] sm:$0xff]
        %v4901 = vld [vmem:[%s4114 + $0x4a] sm:$0xff]
        %v4902 = vld [vmem:[%s4114 + $0x52] sm:$0xff]
        %v4903 = vld [vmem:[%s4114 + $0x62] sm:$0xff]
        %v4904 = vld [vmem:[%s4114 + $0x6a] sm:$0xff]
        %v4905 = vld [vmem:[%s4114 + $0x7a] sm:$0xff]
        %v4906 = vld [vmem:[%s4114 + $0x82] sm:$0xff]
        %v4907 = vld [vmem:[%s4114 + $0x92] sm:$0xff]
        %v4908 = vld [vmem:[%s4114 + $0x9a] sm:$0xff]
        %v4909 = vld [vmem:[%s4114 + $0xaa] sm:$0xff]
        %v4910 = vld [vmem:[%s4114 + $0xb2] sm:$0xff]
        %v4911 = vld [vmem:[%s4114 + $0xc2] sm:$0xff]
        %v4912 = vld [vmem:[%s4114 + $0xca] sm:$0xff]
        %v4913 = vld [vmem:[%s4114 + $0xda] sm:$0xff]
        %v4914 = vld [vmem:[%s4114 + $0xe2] sm:$0xff]
        %v4915 = vld [vmem:[%s4114 + $0xf2] sm:$0xff]
        %v4916 = vld [vmem:[%s4114 + $0xfa] sm:$0xff]
        %v4917 = vld [vmem:[%s4114 + $0x10a] sm:$0xff]
        %v4918 = vld [vmem:[%s4114 + $0x112] sm:$0xff]
        %v4919 = vld [vmem:[%s4114 + $0x122] sm:$0xff]
        %v4920 = vld [vmem:[%s4114 + $0x12a] sm:$0xff]
        %v4921 = vld [vmem:[%s4114 + $0x13a] sm:$0xff]
        %v4922 = vld [vmem:[%s4114 + $0x142] sm:$0xff]
        %v4923 = vld [vmem:[%s4114 + $0x152] sm:$0xff]
        %v4924 = vld [vmem:[%s4114 + $0x15a] sm:$0xff]
        %v4925 = vld [vmem:[%s4114 + $0x16a] sm:$0xff]
        %v4926 = vld [vmem:[%s4114 + $0x172] sm:$0xff]
        %s4927 = scalar_lea.vmem %s10, 160
        %v4928 = vld [vmem:[%s4927] sm:$0xff]
        %v4929 = vld [vmem:[%s4927 + $0x8] sm:$0xff]
        %v4930 = vld [vmem:[%s4927 + $0x10] sm:$0xff]
        %v4931 = vld [vmem:[%s4927 + $0x18] sm:$0xff]
        %v4933 = vsel %vm2953, %v4895, 0
        %v4936 = vsel %vm2953, %v4896, 0
        %v4939 = vsel %vm2953, %v4897, 0
        %v4942 = vsel %vm2953, %v4898, 0
        %v4945 = vsel %vm2953, %v4899, 0
        %v4948 = vsel %vm2953, %v4900, 0
        %v4951 = vsel %vm2953, %v4901, 0
        %v4954 = vsel %vm2953, %v4902, 0
        %v4957 = vsel %vm2953, %v4903, 0
        %v4960 = vsel %vm2953, %v4904, 0
        %v4963 = vsel %vm2953, %v4905, 0
        %v4966 = vsel %vm2953, %v4906, 0
        %v4969 = vsel %vm2953, %v4907, 0
        %v4972 = vsel %vm2953, %v4908, 0
        %v4975 = vsel %vm2953, %v4909, 0
        %v4978 = vsel %vm2953, %v4910, 0
        %v4981 = vsel %vm2953, %v4911, 0
        %v4984 = vsel %vm2953, %v4912, 0
        %v4987 = vsel %vm2953, %v4913, 0
        %v4990 = vsel %vm2953, %v4914, 0
        %v4993 = vsel %vm2953, %v4915, 0
        %v4996 = vsel %vm2953, %v4916, 0
        %v4999 = vsel %vm2953, %v4917, 0
        %v5002 = vsel %vm2953, %v4918, 0
        %v5005 = vsel %vm2953, %v4919, 0
        %v5008 = vsel %vm2953, %v4920, 0
        %v5011 = vsel %vm2953, %v4921, 0
        %v5014 = vsel %vm2953, %v4922, 0
        %v5017 = vsel %vm2953, %v4923, 0
        %v5020 = vsel %vm2953, %v4924, 0
        %v5023 = vsel %vm2953, %v4925, 0
        %v5026 = vsel %vm2953, %v4926, 0
        %5028 = vmatprep.subr.mxu0 0.0
        %5029 = vmatpush1.msra.mxu0 %v4928
        %5030 = vmatprep.subr.mxu0 0.0
        %5031 = vmatpush1.msra.mxu0 %v4929
        %5032 = vmatprep.subr.mxu0 0.0
        %5033 = vmatpush1.msra.mxu0 %v4930
        %5034 = vmatprep.subr.mxu0 0.0
        %5035 = vmatpush1.msra.mxu0 %v4931
        %5036 = vmatprep.subr.mxu0 0.0
        %5037 = vmatpush1.msra.mxu0 0.0
        %5038 = vmatprep.subr.mxu0 0.0
        %5039 = vmatpush1.msra.mxu0 0.0
        %5040 = vmatprep.subr.mxu0 0.0
        %5041 = vmatpush1.msra.mxu0 0.0
        %5042 = vmatprep.subr.mxu0 0.0
        %5043 = vmatpush1.msra.mxu0 0.0
        %5044 = vmatprep.subr.mxu0 0.0
        %5045 = vmatpush1.msra.mxu0 0.0
        %5046 = vmatprep.subr.mxu0 0.0
        %5047 = vmatpush1.msra.mxu0 0.0
        %5048 = vmatprep.subr.mxu0 0.0
        %5049 = vmatpush1.msra.mxu0 0.0
        %5050 = vmatprep.subr.mxu0 0.0
        %5051 = vmatpush1.msra.mxu0 0.0
        %5052 = vmatprep.subr.mxu0 0.0
        %5053 = vmatpush1.msra.mxu0 0.0
        %5054 = vmatprep.subr.mxu0 0.0
        %5055 = vmatpush1.msra.mxu0 0.0
        %5056 = vmatprep.subr.mxu0 0.0
        %5057 = vmatpush1.msra.mxu0 0.0
        %5058 = vmatprep.subr.mxu0 0.0
        %5059 = vmatpush1.msra.mxu0 0.0
        %5060 = vmatprep.subr.mxu0 0.0
        %5061 = vmatpush1.msra.mxu0 0.0
        %5062 = vmatprep.subr.mxu0 0.0
        %5063 = vmatpush1.msra.mxu0 0.0
        %5064 = vmatprep.subr.mxu0 0.0
        %5065 = vmatpush1.msra.mxu0 0.0
        %5066 = vmatprep.subr.mxu0 0.0
        %5067 = vmatpush1.msra.mxu0 0.0
        %5068 = vmatprep.subr.mxu0 0.0
        %5069 = vmatpush1.msra.mxu0 0.0
        %5070 = vmatprep.subr.mxu0 0.0
        %5071 = vmatpush1.msra.mxu0 0.0
        %5072 = vmatprep.subr.mxu0 0.0
        %5073 = vmatpush1.msra.mxu0 0.0
        %5074 = vmatprep.subr.mxu0 0.0
        %5075 = vmatpush1.msra.mxu0 0.0
        %5076 = vmatprep.subr.mxu0 0.0
        %5077 = vmatpush1.msra.mxu0 0.0
        %5078 = vmatprep.subr.mxu0 0.0
        %5079 = vmatpush1.msra.mxu0 0.0
        %5080 = vmatprep.subr.mxu0 0.0
        %5081 = vmatpush1.msra.mxu0 0.0
        %5082 = vmatprep.subr.mxu0 0.0
        %5083 = vmatpush1.msra.mxu0 0.0
        %5084 = vmatprep.subr.mxu0 0.0
        %5085 = vmatpush1.msra.mxu0 0.0
        %5086 = vmatprep.subr.mxu0 0.0
        %5087 = vmatpush1.msra.mxu0 0.0
        %5088 = vmatprep.subr.mxu0 0.0
        %5089 = vmatpush1.msra.mxu0 0.0
        %5090 = vmatprep.subr.mxu0 0.0
        %5091 = vmatpush1.msra.mxu0 0.0
        %5092 = vmatprep.mubr.f32.mxu0 0.0
        %5093 = vmatmul.mubr.f32.gmra.mrb[0].mxu0 %v4933
        %v5094 = vpop.f32.mrb[0].mxu0
        %v5095 = vadd.f32 0.0, %v5094
        %v5096 = vpop.f32.mrb[0].mxu0
        %5097 = vmatprep.mubr.f32.mxu0 0.0
        %5098 = vmatmul.mubr.f32.gmra.mrb[0].mxu0 %v4936
        %v5099 = vpop.f32.mrb[0].mxu0
        %v5100 = vadd.f32 0.0, %v5099
        %v5101 = vpop.f32.mrb[0].mxu0
        %5102 = vmatprep.mubr.f32.mxu0 0.0
        %5103 = vmatmul.mubr.f32.gmra.mrb[0].mxu0 %v4939
        %v5104 = vpop.f32.mrb[0].mxu0
        %v5105 = vadd.f32 0.0, %v5104
        %v5106 = vpop.f32.mrb[0].mxu0
        %5107 = vmatprep.mubr.f32.mxu0 0.0
        %5108 = vmatmul.mubr.f32.gmra.mrb[0].mxu0 %v4942
        %v5109 = vpop.f32.mrb[0].mxu0
        %v5110 = vadd.f32 0.0, %v5109
        %v5111 = vpop.f32.mrb[0].mxu0
        %5112 = vmatprep.mubr.f32.mxu0 0.0
        %5113 = vmatmul.mubr.f32.gmra.mrb[0].mxu0 %v4945
        %v5114 = vpop.f32.mrb[0].mxu0
        %v5115 = vadd.f32 0.0, %v5114
        %v5116 = vpop.f32.mrb[0].mxu0
        %5117 = vmatprep.mubr.f32.mxu0 0.0
        %5118 = vmatmul.mubr.f32.gmra.mrb[0].mxu0 %v4948
        %v5119 = vpop.f32.mrb[0].mxu0
        %v5120 = vadd.f32 0.0, %v5119
        %v5121 = vpop.f32.mrb[0].mxu0
        %5122 = vmatprep.mubr.f32.mxu0 0.0
        %5123 = vmatmul.mubr.f32.gmra.mrb[0].mxu0 %v4951
        %v5124 = vpop.f32.mrb[0].mxu0
        %v5125 = vadd.f32 0.0, %v5124
        %v5126 = vpop.f32.mrb[0].mxu0
        %5127 = vmatprep.mubr.f32.mxu0 0.0
        %5128 = vmatmul.mubr.f32.gmra.mrb[0].mxu0 %v4954
        %v5129 = vpop.f32.mrb[0].mxu0
        %v5130 = vadd.f32 0.0, %v5129
        %v5131 = vpop.f32.mrb[0].mxu0
        %5132 = vmatprep.mubr.f32.mxu0 0.0
        %5133 = vmatmul.mubr.f32.gmra.mrb[0].mxu0 %v4957
        %v5134 = vpop.f32.mrb[0].mxu0
        %v5135 = vadd.f32 0.0, %v5134
        %v5136 = vpop.f32.mrb[0].mxu0
        %5137 = vmatprep.mubr.f32.mxu0 0.0
        %5138 = vmatmul.mubr.f32.gmra.mrb[0].mxu0 %v4960
        %v5139 = vpop.f32.mrb[0].mxu0
        %v5140 = vadd.f32 0.0, %v5139
        %v5141 = vpop.f32.mrb[0].mxu0
        %5142 = vmatprep.mubr.f32.mxu0 0.0
        %5143 = vmatmul.mubr.f32.gmra.mrb[0].mxu0 %v4963
        %v5144 = vpop.f32.mrb[0].mxu0
        %v5145 = vadd.f32 0.0, %v5144
        %v5146 = vpop.f32.mrb[0].mxu0
        %5147 = vmatprep.mubr.f32.mxu0 0.0
        %5148 = vmatmul.mubr.f32.gmra.mrb[0].mxu0 %v4966
        %v5149 = vpop.f32.mrb[0].mxu0
        %v5150 = vadd.f32 0.0, %v5149
        %v5151 = vpop.f32.mrb[0].mxu0
        %5152 = vmatprep.mubr.f32.mxu0 0.0
        %5153 = vmatmul.mubr.f32.gmra.mrb[0].mxu0 %v4969
        %v5154 = vpop.f32.mrb[0].mxu0
        %v5155 = vadd.f32 0.0, %v5154
        %v5156 = vpop.f32.mrb[0].mxu0
        %5157 = vmatprep.mubr.f32.mxu0 0.0
        %5158 = vmatmul.mubr.f32.gmra.mrb[0].mxu0 %v4972
        %v5159 = vpop.f32.mrb[0].mxu0
        %v5160 = vadd.f32 0.0, %v5159
        %v5161 = vpop.f32.mrb[0].mxu0
        %5162 = vmatprep.mubr.f32.mxu0 0.0
        %5163 = vmatmul.mubr.f32.gmra.mrb[0].mxu0 %v4975
        %v5164 = vpop.f32.mrb[0].mxu0
        %v5165 = vadd.f32 0.0, %v5164
        %v5166 = vpop.f32.mrb[0].mxu0
        %5167 = vmatprep.mubr.f32.mxu0 0.0
        %5168 = vmatmul.mubr.f32.gmra.mrb[0].mxu0 %v4978
        %v5169 = vpop.f32.mrb[0].mxu0
        %v5170 = vadd.f32 0.0, %v5169
        %v5171 = vpop.f32.mrb[0].mxu0
        %5172 = vmatprep.mubr.f32.mxu0 0.0
        %5173 = vmatmul.mubr.f32.gmra.mrb[0].mxu0 %v4981
        %v5174 = vpop.f32.mrb[0].mxu0
        %v5175 = vadd.f32 0.0, %v5174
        %v5176 = vpop.f32.mrb[0].mxu0
        %5177 = vmatprep.mubr.f32.mxu0 0.0
        %5178 = vmatmul.mubr.f32.gmra.mrb[0].mxu0 %v4984
        %v5179 = vpop.f32.mrb[0].mxu0
        %v5180 = vadd.f32 0.0, %v5179
        %v5181 = vpop.f32.mrb[0].mxu0
        %5182 = vmatprep.mubr.f32.mxu0 0.0
        %5183 = vmatmul.mubr.f32.gmra.mrb[0].mxu0 %v4987
        %v5184 = vpop.f32.mrb[0].mxu0
        %v5185 = vadd.f32 0.0, %v5184
        %v5186 = vpop.f32.mrb[0].mxu0
        %5187 = vmatprep.mubr.f32.mxu0 0.0
        %5188 = vmatmul.mubr.f32.gmra.mrb[0].mxu0 %v4990
        %v5189 = vpop.f32.mrb[0].mxu0
        %v5190 = vadd.f32 0.0, %v5189
        %v5191 = vpop.f32.mrb[0].mxu0
        %5192 = vmatprep.mubr.f32.mxu0 0.0
        %5193 = vmatmul.mubr.f32.gmra.mrb[0].mxu0 %v4993
        %v5194 = vpop.f32.mrb[0].mxu0
        %v5195 = vadd.f32 0.0, %v5194
        %v5196 = vpop.f32.mrb[0].mxu0
        %5197 = vmatprep.mubr.f32.mxu0 0.0
        %5198 = vmatmul.mubr.f32.gmra.mrb[0].mxu0 %v4996
        %v5199 = vpop.f32.mrb[0].mxu0
        %v5200 = vadd.f32 0.0, %v5199
        %v5201 = vpop.f32.mrb[0].mxu0
        %5202 = vmatprep.mubr.f32.mxu0 0.0
        %5203 = vmatmul.mubr.f32.gmra.mrb[0].mxu0 %v4999
        %v5204 = vpop.f32.mrb[0].mxu0
        %v5205 = vadd.f32 0.0, %v5204
        %v5206 = vpop.f32.mrb[0].mxu0
        %5207 = vmatprep.mubr.f32.mxu0 0.0
        %5208 = vmatmul.mubr.f32.gmra.mrb[0].mxu0 %v5002
        %v5209 = vpop.f32.mrb[0].mxu0
        %v5210 = vadd.f32 0.0, %v5209
        %v5211 = vpop.f32.mrb[0].mxu0
        %5212 = vmatprep.mubr.f32.mxu0 0.0
        %5213 = vmatmul.mubr.f32.gmra.mrb[0].mxu0 %v5005
        %v5214 = vpop.f32.mrb[0].mxu0
        %v5215 = vadd.f32 0.0, %v5214
        %v5216 = vpop.f32.mrb[0].mxu0
        %5217 = vmatprep.mubr.f32.mxu0 0.0
        %5218 = vmatmul.mubr.f32.gmra.mrb[0].mxu0 %v5008
        %v5219 = vpop.f32.mrb[0].mxu0
        %v5220 = vadd.f32 0.0, %v5219
        %v5221 = vpop.f32.mrb[0].mxu0
        %5222 = vmatprep.mubr.f32.mxu0 0.0
        %5223 = vmatmul.mubr.f32.gmra.mrb[0].mxu0 %v5011
        %v5224 = vpop.f32.mrb[0].mxu0
        %v5225 = vadd.f32 0.0, %v5224
        %v5226 = vpop.f32.mrb[0].mxu0
        %5227 = vmatprep.mubr.f32.mxu0 0.0
        %5228 = vmatmul.mubr.f32.gmra.mrb[0].mxu0 %v5014
        %v5229 = vpop.f32.mrb[0].mxu0
        %v5230 = vadd.f32 0.0, %v5229
        %v5231 = vpop.f32.mrb[0].mxu0
        %5232 = vmatprep.mubr.f32.mxu0 0.0
        %5233 = vmatmul.mubr.f32.gmra.mrb[0].mxu0 %v5017
        %v5234 = vpop.f32.mrb[0].mxu0
        %v5235 = vadd.f32 0.0, %v5234
        %v5236 = vpop.f32.mrb[0].mxu0
        %5237 = vmatprep.mubr.f32.mxu0 0.0
        %5238 = vmatmul.mubr.f32.gmra.mrb[0].mxu0 %v5020
        %v5239 = vpop.f32.mrb[0].mxu0
        %v5240 = vadd.f32 0.0, %v5239
        %v5241 = vpop.f32.mrb[0].mxu0
        %5242 = vmatprep.mubr.f32.mxu0 0.0
        %5243 = vmatmul.mubr.f32.gmra.mrb[0].mxu0 %v5023
        %v5244 = vpop.f32.mrb[0].mxu0
        %v5245 = vadd.f32 0.0, %v5244
        %v5246 = vpop.f32.mrb[0].mxu0
        %5247 = vmatprep.mubr.f32.mxu0 0.0
        %5248 = vmatmul.mubr.f32.gmra.mrb[0].mxu0 %v5026
        %v5249 = vpop.f32.mrb[0].mxu0
        %v5250 = vadd.f32 0.0, %v5249
        %v5251 = vpop.f32.mrb[0].mxu0
        %5252 = vdwg.mxu0
        %v5253 = vadd.f32 %v4863, %v5095
        %v5254 = vadd.f32 %v4864, %v5100
        %v5255 = vadd.f32 %v4865, %v5105
        %v5256 = vadd.f32 %v4866, %v5110
        %v5257 = vadd.f32 %v4867, %v5115
        %v5258 = vadd.f32 %v4868, %v5120
        %v5259 = vadd.f32 %v4869, %v5125
        %v5260 = vadd.f32 %v4870, %v5130
        %v5261 = vadd.f32 %v4871, %v5135
        %v5262 = vadd.f32 %v4872, %v5140
        %v5263 = vadd.f32 %v4873, %v5145
        %v5264 = vadd.f32 %v4874, %v5150
        %v5265 = vadd.f32 %v4875, %v5155
        %v5266 = vadd.f32 %v4876, %v5160
        %v5267 = vadd.f32 %v4877, %v5165
        %v5268 = vadd.f32 %v4878, %v5170
        %v5269 = vadd.f32 %v4879, %v5175
        %v5270 = vadd.f32 %v4880, %v5180
        %v5271 = vadd.f32 %v4881, %v5185
        %v5272 = vadd.f32 %v4882, %v5190
        %v5273 = vadd.f32 %v4883, %v5195
        %v5274 = vadd.f32 %v4884, %v5200
        %v5275 = vadd.f32 %v4885, %v5205
        %v5276 = vadd.f32 %v4886, %v5210
        %v5277 = vadd.f32 %v4887, %v5215
        %v5278 = vadd.f32 %v4888, %v5220
        %v5279 = vadd.f32 %v4889, %v5225
        %v5280 = vadd.f32 %v4890, %v5230
        %v5281 = vadd.f32 %v4891, %v5235
        %v5282 = vadd.f32 %v4892, %v5240
        %v5283 = vadd.f32 %v4893, %v5245
        %v5284 = vadd.f32 %v4894, %v5250
        %s5285 = scalar_lea.vmem [#allocation2], 48
        %v5286 = vld [vmem:[%s5285] sm:$0xff]
        %v5287 = vld [vmem:[%s5285 + $0x8] sm:$0xff]
        %v5288 = vld [vmem:[%s5285 + $0x18] sm:$0xff]
        %v5289 = vld [vmem:[%s5285 + $0x20] sm:$0xff]
        %v5290 = vld [vmem:[%s5285 + $0x30] sm:$0xff]
        %v5291 = vld [vmem:[%s5285 + $0x38] sm:$0xff]
        %v5292 = vld [vmem:[%s5285 + $0x48] sm:$0xff]
        %v5293 = vld [vmem:[%s5285 + $0x50] sm:$0xff]
        %v5294 = vld [vmem:[%s5285 + $0x60] sm:$0xff]
        %v5295 = vld [vmem:[%s5285 + $0x68] sm:$0xff]
        %v5296 = vld [vmem:[%s5285 + $0x78] sm:$0xff]
        %v5297 = vld [vmem:[%s5285 + $0x80] sm:$0xff]
        %v5298 = vld [vmem:[%s5285 + $0x90] sm:$0xff]
        %v5299 = vld [vmem:[%s5285 + $0x98] sm:$0xff]
        %v5300 = vld [vmem:[%s5285 + $0xa8] sm:$0xff]
        %v5301 = vld [vmem:[%s5285 + $0xb0] sm:$0xff]
        %v5302 = vld [vmem:[%s5285 + $0xc0] sm:$0xff]
        %v5303 = vld [vmem:[%s5285 + $0xc8] sm:$0xff]
        %v5304 = vld [vmem:[%s5285 + $0xd8] sm:$0xff]
        %v5305 = vld [vmem:[%s5285 + $0xe0] sm:$0xff]
        %v5306 = vld [vmem:[%s5285 + $0xf0] sm:$0xff]
        %v5307 = vld [vmem:[%s5285 + $0xf8] sm:$0xff]
        %v5308 = vld [vmem:[%s5285 + $0x108] sm:$0xff]
        %v5309 = vld [vmem:[%s5285 + $0x110] sm:$0xff]
        %v5310 = vld [vmem:[%s5285 + $0x120] sm:$0xff]
        %v5311 = vld [vmem:[%s5285 + $0x128] sm:$0xff]
        %v5312 = vld [vmem:[%s5285 + $0x138] sm:$0xff]
        %v5313 = vld [vmem:[%s5285 + $0x140] sm:$0xff]
        %v5314 = vld [vmem:[%s5285 + $0x150] sm:$0xff]
        %v5315 = vld [vmem:[%s5285 + $0x158] sm:$0xff]
        %v5316 = vld [vmem:[%s5285 + $0x168] sm:$0xff]
        %v5317 = vld [vmem:[%s5285 + $0x170] sm:$0xff]
        %s5318 = scalar_lea.vmem %s10, 192
        %v5319 = vld [vmem:[%s5318] sm:$0xff]
        %v5320 = vld [vmem:[%s5318 + $0x8] sm:$0xff]
        %v5321 = vld [vmem:[%s5318 + $0x10] sm:$0xff]
        %v5322 = vld [vmem:[%s5318 + $0x18] sm:$0xff]
        %v5324 = vsel %vm2953, %v5286, 0
        %v5327 = vsel %vm2953, %v5287, 0
        %v5330 = vsel %vm2953, %v5288, 0
        %v5333 = vsel %vm2953, %v5289, 0
        %v5336 = vsel %vm2953, %v5290, 0
        %v5339 = vsel %vm2953, %v5291, 0
        %v5342 = vsel %vm2953, %v5292, 0
        %v5345 = vsel %vm2953, %v5293, 0
        %v5348 = vsel %vm2953, %v5294, 0
        %v5351 = vsel %vm2953, %v5295, 0
        %v5354 = vsel %vm2953, %v5296, 0
        %v5357 = vsel %vm2953, %v5297, 0
        %v5360 = vsel %vm2953, %v5298, 0
        %v5363 = vsel %vm2953, %v5299, 0
        %v5366 = vsel %vm2953, %v5300, 0
        %v5369 = vsel %vm2953, %v5301, 0
        %v5372 = vsel %vm2953, %v5302, 0
        %v5375 = vsel %vm2953, %v5303, 0
        %v5378 = vsel %vm2953, %v5304, 0
        %v5381 = vsel %vm2953, %v5305, 0
        %v5384 = vsel %vm2953, %v5306, 0
        %v5387 = vsel %vm2953, %v5307, 0
        %v5390 = vsel %vm2953, %v5308, 0
        %v5393 = vsel %vm2953, %v5309, 0
        %v5396 = vsel %vm2953, %v5310, 0
        %v5399 = vsel %vm2953, %v5311, 0
        %v5402 = vsel %vm2953, %v5312, 0
        %v5405 = vsel %vm2953, %v5313, 0
        %v5408 = vsel %vm2953, %v5314, 0
        %v5411 = vsel %vm2953, %v5315, 0
        %v5414 = vsel %vm2953, %v5316, 0
        %v5417 = vsel %vm2953, %v5317, 0
        %5419 = vmatprep.subr.mxu0 0.0
        %5420 = vmatpush1.msra.mxu0 %v5319
        %5421 = vmatprep.subr.mxu0 0.0
        %5422 = vmatpush1.msra.mxu0 %v5320
        %5423 = vmatprep.subr.mxu0 0.0
        %5424 = vmatpush1.msra.mxu0 %v5321
        %5425 = vmatprep.subr.mxu0 0.0
        %5426 = vmatpush1.msra.mxu0 %v5322
        %5427 = vmatprep.subr.mxu0 0.0
        %5428 = vmatpush1.msra.mxu0 0.0
        %5429 = vmatprep.subr.mxu0 0.0
        %5430 = vmatpush1.msra.mxu0 0.0
        %5431 = vmatprep.subr.mxu0 0.0
        %5432 = vmatpush1.msra.mxu0 0.0
        %5433 = vmatprep.subr.mxu0 0.0
        %5434 = vmatpush1.msra.mxu0 0.0
        %5435 = vmatprep.subr.mxu0 0.0
        %5436 = vmatpush1.msra.mxu0 0.0
        %5437 = vmatprep.subr.mxu0 0.0
        %5438 = vmatpush1.msra.mxu0 0.0
        %5439 = vmatprep.subr.mxu0 0.0
        %5440 = vmatpush1.msra.mxu0 0.0
        %5441 = vmatprep.subr.mxu0 0.0
        %5442 = vmatpush1.msra.mxu0 0.0
        %5443 = vmatprep.subr.mxu0 0.0
        %5444 = vmatpush1.msra.mxu0 0.0
        %5445 = vmatprep.subr.mxu0 0.0
        %5446 = vmatpush1.msra.mxu0 0.0
        %5447 = vmatprep.subr.mxu0 0.0
        %5448 = vmatpush1.msra.mxu0 0.0
        %5449 = vmatprep.subr.mxu0 0.0
        %5450 = vmatpush1.msra.mxu0 0.0
        %5451 = vmatprep.subr.mxu0 0.0
        %5452 = vmatpush1.msra.mxu0 0.0
        %5453 = vmatprep.subr.mxu0 0.0
        %5454 = vmatpush1.msra.mxu0 0.0
        %5455 = vmatprep.subr.mxu0 0.0
        %5456 = vmatpush1.msra.mxu0 0.0
        %5457 = vmatprep.subr.mxu0 0.0
        %5458 = vmatpush1.msra.mxu0 0.0
        %5459 = vmatprep.subr.mxu0 0.0
        %5460 = vmatpush1.msra.mxu0 0.0
        %5461 = vmatprep.subr.mxu0 0.0
        %5462 = vmatpush1.msra.mxu0 0.0
        %5463 = vmatprep.subr.mxu0 0.0
        %5464 = vmatpush1.msra.mxu0 0.0
        %5465 = vmatprep.subr.mxu0 0.0
        %5466 = vmatpush1.msra.mxu0 0.0
        %5467 = vmatprep.subr.mxu0 0.0
        %5468 = vmatpush1.msra.mxu0 0.0
        %5469 = vmatprep.subr.mxu0 0.0
        %5470 = vmatpush1.msra.mxu0 0.0
        %5471 = vmatprep.subr.mxu0 0.0
        %5472 = vmatpush1.msra.mxu0 0.0
        %5473 = vmatprep.subr.mxu0 0.0
        %5474 = vmatpush1.msra.mxu0 0.0
        %5475 = vmatprep.subr.mxu0 0.0
        %5476 = vmatpush1.msra.mxu0 0.0
        %5477 = vmatprep.subr.mxu0 0.0
        %5478 = vmatpush1.msra.mxu0 0.0
        %5479 = vmatprep.subr.mxu0 0.0
        %5480 = vmatpush1.msra.mxu0 0.0
        %5481 = vmatprep.subr.mxu0 0.0
        %5482 = vmatpush1.msra.mxu0 0.0
        %5483 = vmatprep.mubr.f32.mxu0 0.0
        %5484 = vmatmul.mubr.f32.gmra.mrb[0].mxu0 %v5324
        %v5485 = vpop.f32.mrb[0].mxu0
        %v5486 = vadd.f32 0.0, %v5485
        %v5487 = vpop.f32.mrb[0].mxu0
        %5488 = vmatprep.mubr.f32.mxu0 0.0
        %5489 = vmatmul.mubr.f32.gmra.mrb[0].mxu0 %v5327
        %v5490 = vpop.f32.mrb[0].mxu0
        %v5491 = vadd.f32 0.0, %v5490
        %v5492 = vpop.f32.mrb[0].mxu0
        %5493 = vmatprep.mubr.f32.mxu0 0.0
        %5494 = vmatmul.mubr.f32.gmra.mrb[0].mxu0 %v5330
        %v5495 = vpop.f32.mrb[0].mxu0
        %v5496 = vadd.f32 0.0, %v5495
        %v5497 = vpop.f32.mrb[0].mxu0
        %5498 = vmatprep.mubr.f32.mxu0 0.0
        %5499 = vmatmul.mubr.f32.gmra.mrb[0].mxu0 %v5333
        %v5500 = vpop.f32.mrb[0].mxu0
        %v5501 = vadd.f32 0.0, %v5500
        %v5502 = vpop.f32.mrb[0].mxu0
        %5503 = vmatprep.mubr.f32.mxu0 0.0
        %5504 = vmatmul.mubr.f32.gmra.mrb[0].mxu0 %v5336
        %v5505 = vpop.f32.mrb[0].mxu0
        %v5506 = vadd.f32 0.0, %v5505
        %v5507 = vpop.f32.mrb[0].mxu0
        %5508 = vmatprep.mubr.f32.mxu0 0.0
        %5509 = vmatmul.mubr.f32.gmra.mrb[0].mxu0 %v5339
        %v5510 = vpop.f32.mrb[0].mxu0
        %v5511 = vadd.f32 0.0, %v5510
        %v5512 = vpop.f32.mrb[0].mxu0
        %5513 = vmatprep.mubr.f32.mxu0 0.0
        %5514 = vmatmul.mubr.f32.gmra.mrb[0].mxu0 %v5342
        %v5515 = vpop.f32.mrb[0].mxu0
        %v5516 = vadd.f32 0.0, %v5515
        %v5517 = vpop.f32.mrb[0].mxu0
        %5518 = vmatprep.mubr.f32.mxu0 0.0
        %5519 = vmatmul.mubr.f32.gmra.mrb[0].mxu0 %v5345
        %v5520 = vpop.f32.mrb[0].mxu0
        %v5521 = vadd.f32 0.0, %v5520
        %v5522 = vpop.f32.mrb[0].mxu0
        %5523 = vmatprep.mubr.f32.mxu0 0.0
        %5524 = vmatmul.mubr.f32.gmra.mrb[0].mxu0 %v5348
        %v5525 = vpop.f32.mrb[0].mxu0
        %v5526 = vadd.f32 0.0, %v5525
        %v5527 = vpop.f32.mrb[0].mxu0
        %5528 = vmatprep.mubr.f32.mxu0 0.0
        %5529 = vmatmul.mubr.f32.gmra.mrb[0].mxu0 %v5351
        %v5530 = vpop.f32.mrb[0].mxu0
        %v5531 = vadd.f32 0.0, %v5530
        %v5532 = vpop.f32.mrb[0].mxu0
        %5533 = vmatprep.mubr.f32.mxu0 0.0
        %5534 = vmatmul.mubr.f32.gmra.mrb[0].mxu0 %v5354
        %v5535 = vpop.f32.mrb[0].mxu0
        %v5536 = vadd.f32 0.0, %v5535
        %v5537 = vpop.f32.mrb[0].mxu0
        %5538 = vmatprep.mubr.f32.mxu0 0.0
        %5539 = vmatmul.mubr.f32.gmra.mrb[0].mxu0 %v5357
        %v5540 = vpop.f32.mrb[0].mxu0
        %v5541 = vadd.f32 0.0, %v5540
        %v5542 = vpop.f32.mrb[0].mxu0
        %5543 = vmatprep.mubr.f32.mxu0 0.0
        %5544 = vmatmul.mubr.f32.gmra.mrb[0].mxu0 %v5360
        %v5545 = vpop.f32.mrb[0].mxu0
        %v5546 = vadd.f32 0.0, %v5545
        %v5547 = vpop.f32.mrb[0].mxu0
        %5548 = vmatprep.mubr.f32.mxu0 0.0
        %5549 = vmatmul.mubr.f32.gmra.mrb[0].mxu0 %v5363
        %v5550 = vpop.f32.mrb[0].mxu0
        %v5551 = vadd.f32 0.0, %v5550
        %v5552 = vpop.f32.mrb[0].mxu0
        %5553 = vmatprep.mubr.f32.mxu0 0.0
        %5554 = vmatmul.mubr.f32.gmra.mrb[0].mxu0 %v5366
        %v5555 = vpop.f32.mrb[0].mxu0
        %v5556 = vadd.f32 0.0, %v5555
        %v5557 = vpop.f32.mrb[0].mxu0
        %5558 = vmatprep.mubr.f32.mxu0 0.0
        %5559 = vmatmul.mubr.f32.gmra.mrb[0].mxu0 %v5369
        %v5560 = vpop.f32.mrb[0].mxu0
        %v5561 = vadd.f32 0.0, %v5560
        %v5562 = vpop.f32.mrb[0].mxu0
        %5563 = vmatprep.mubr.f32.mxu0 0.0
        %5564 = vmatmul.mubr.f32.gmra.mrb[0].mxu0 %v5372
        %v5565 = vpop.f32.mrb[0].mxu0
        %v5566 = vadd.f32 0.0, %v5565
        %v5567 = vpop.f32.mrb[0].mxu0
        %5568 = vmatprep.mubr.f32.mxu0 0.0
        %5569 = vmatmul.mubr.f32.gmra.mrb[0].mxu0 %v5375
        %v5570 = vpop.f32.mrb[0].mxu0
        %v5571 = vadd.f32 0.0, %v5570
        %v5572 = vpop.f32.mrb[0].mxu0
        %5573 = vmatprep.mubr.f32.mxu0 0.0
        %5574 = vmatmul.mubr.f32.gmra.mrb[0].mxu0 %v5378
        %v5575 = vpop.f32.mrb[0].mxu0
        %v5576 = vadd.f32 0.0, %v5575
        %v5577 = vpop.f32.mrb[0].mxu0
        %5578 = vmatprep.mubr.f32.mxu0 0.0
        %5579 = vmatmul.mubr.f32.gmra.mrb[0].mxu0 %v5381
        %v5580 = vpop.f32.mrb[0].mxu0
        %v5581 = vadd.f32 0.0, %v5580
        %v5582 = vpop.f32.mrb[0].mxu0
        %5583 = vmatprep.mubr.f32.mxu0 0.0
        %5584 = vmatmul.mubr.f32.gmra.mrb[0].mxu0 %v5384
        %v5585 = vpop.f32.mrb[0].mxu0
        %v5586 = vadd.f32 0.0, %v5585
        %v5587 = vpop.f32.mrb[0].mxu0
        %5588 = vmatprep.mubr.f32.mxu0 0.0
        %5589 = vmatmul.mubr.f32.gmra.mrb[0].mxu0 %v5387
        %v5590 = vpop.f32.mrb[0].mxu0
        %v5591 = vadd.f32 0.0, %v5590
        %v5592 = vpop.f32.mrb[0].mxu0
        %5593 = vmatprep.mubr.f32.mxu0 0.0
        %5594 = vmatmul.mubr.f32.gmra.mrb[0].mxu0 %v5390
        %v5595 = vpop.f32.mrb[0].mxu0
        %v5596 = vadd.f32 0.0, %v5595
        %v5597 = vpop.f32.mrb[0].mxu0
        %5598 = vmatprep.mubr.f32.mxu0 0.0
        %5599 = vmatmul.mubr.f32.gmra.mrb[0].mxu0 %v5393
        %v5600 = vpop.f32.mrb[0].mxu0
        %v5601 = vadd.f32 0.0, %v5600
        %v5602 = vpop.f32.mrb[0].mxu0
        %5603 = vmatprep.mubr.f32.mxu0 0.0
        %5604 = vmatmul.mubr.f32.gmra.mrb[0].mxu0 %v5396
        %v5605 = vpop.f32.mrb[0].mxu0
        %v5606 = vadd.f32 0.0, %v5605
        %v5607 = vpop.f32.mrb[0].mxu0
        %5608 = vmatprep.mubr.f32.mxu0 0.0
        %5609 = vmatmul.mubr.f32.gmra.mrb[0].mxu0 %v5399
        %v5610 = vpop.f32.mrb[0].mxu0
        %v5611 = vadd.f32 0.0, %v5610
        %v5612 = vpop.f32.mrb[0].mxu0
        %5613 = vmatprep.mubr.f32.mxu0 0.0
        %5614 = vmatmul.mubr.f32.gmra.mrb[0].mxu0 %v5402
        %v5615 = vpop.f32.mrb[0].mxu0
        %v5616 = vadd.f32 0.0, %v5615
        %v5617 = vpop.f32.mrb[0].mxu0
        %5618 = vmatprep.mubr.f32.mxu0 0.0
        %5619 = vmatmul.mubr.f32.gmra.mrb[0].mxu0 %v5405
        %v5620 = vpop.f32.mrb[0].mxu0
        %v5621 = vadd.f32 0.0, %v5620
        %v5622 = vpop.f32.mrb[0].mxu0
        %5623 = vmatprep.mubr.f32.mxu0 0.0
        %5624 = vmatmul.mubr.f32.gmra.mrb[0].mxu0 %v5408
        %v5625 = vpop.f32.mrb[0].mxu0
        %v5626 = vadd.f32 0.0, %v5625
        %v5627 = vpop.f32.mrb[0].mxu0
        %5628 = vmatprep.mubr.f32.mxu0 0.0
        %5629 = vmatmul.mubr.f32.gmra.mrb[0].mxu0 %v5411
        %v5630 = vpop.f32.mrb[0].mxu0
        %v5631 = vadd.f32 0.0, %v5630
        %v5632 = vpop.f32.mrb[0].mxu0
        %5633 = vmatprep.mubr.f32.mxu0 0.0
        %5634 = vmatmul.mubr.f32.gmra.mrb[0].mxu0 %v5414
        %v5635 = vpop.f32.mrb[0].mxu0
        %v5636 = vadd.f32 0.0, %v5635
        %v5637 = vpop.f32.mrb[0].mxu0
        %5638 = vmatprep.mubr.f32.mxu0 0.0
        %5639 = vmatmul.mubr.f32.gmra.mrb[0].mxu0 %v5417
        %v5640 = vpop.f32.mrb[0].mxu0
        %v5641 = vadd.f32 0.0, %v5640
        %v5642 = vpop.f32.mrb[0].mxu0
        %5643 = vdwg.mxu0
        %v5644 = vadd.f32 %v5253, %v5486
        %v5645 = vadd.f32 %v5254, %v5491
        %v5646 = vadd.f32 %v5255, %v5496
        %v5647 = vadd.f32 %v5256, %v5501
        %v5648 = vadd.f32 %v5257, %v5506
        %v5649 = vadd.f32 %v5258, %v5511
        %v5650 = vadd.f32 %v5259, %v5516
        %v5651 = vadd.f32 %v5260, %v5521
        %v5652 = vadd.f32 %v5261, %v5526
        %v5653 = vadd.f32 %v5262, %v5531
        %v5654 = vadd.f32 %v5263, %v5536
        %v5655 = vadd.f32 %v5264, %v5541
        %v5656 = vadd.f32 %v5265, %v5546
        %v5657 = vadd.f32 %v5266, %v5551
        %v5658 = vadd.f32 %v5267, %v5556
        %v5659 = vadd.f32 %v5268, %v5561
        %v5660 = vadd.f32 %v5269, %v5566
        %v5661 = vadd.f32 %v5270, %v5571
        %v5662 = vadd.f32 %v5271, %v5576
        %v5663 = vadd.f32 %v5272, %v5581
        %v5664 = vadd.f32 %v5273, %v5586
        %v5665 = vadd.f32 %v5274, %v5591
        %v5666 = vadd.f32 %v5275, %v5596
        %v5667 = vadd.f32 %v5276, %v5601
        %v5668 = vadd.f32 %v5277, %v5606
        %v5669 = vadd.f32 %v5278, %v5611
        %v5670 = vadd.f32 %v5279, %v5616
        %v5671 = vadd.f32 %v5280, %v5621
        %v5672 = vadd.f32 %v5281, %v5626
        %v5673 = vadd.f32 %v5282, %v5631
        %v5674 = vadd.f32 %v5283, %v5636
        %v5675 = vadd.f32 %v5284, %v5641
        %v5676 = vld [vmem:[%s5285 + $0x1] sm:$0xff]
        %v5677 = vld [vmem:[%s5285 + $0x9] sm:$0xff]
        %v5678 = vld [vmem:[%s5285 + $0x19] sm:$0xff]
        %v5679 = vld [vmem:[%s5285 + $0x21] sm:$0xff]
        %v5680 = vld [vmem:[%s5285 + $0x31] sm:$0xff]
        %v5681 = vld [vmem:[%s5285 + $0x39] sm:$0xff]
        %v5682 = vld [vmem:[%s5285 + $0x49] sm:$0xff]
        %v5683 = vld [vmem:[%s5285 + $0x51] sm:$0xff]
        %v5684 = vld [vmem:[%s5285 + $0x61] sm:$0xff]
        %v5685 = vld [vmem:[%s5285 + $0x69] sm:$0xff]
        %v5686 = vld [vmem:[%s5285 + $0x79] sm:$0xff]
        %v5687 = vld [vmem:[%s5285 + $0x81] sm:$0xff]
        %v5688 = vld [vmem:[%s5285 + $0x91] sm:$0xff]
        %v5689 = vld [vmem:[%s5285 + $0x99] sm:$0xff]
        %v5690 = vld [vmem:[%s5285 + $0xa9] sm:$0xff]
        %v5691 = vld [vmem:[%s5285 + $0xb1] sm:$0xff]
        %v5692 = vld [vmem:[%s5285 + $0xc1] sm:$0xff]
        %v5693 = vld [vmem:[%s5285 + $0xc9] sm:$0xff]
        %v5694 = vld [vmem:[%s5285 + $0xd9] sm:$0xff]
        %v5695 = vld [vmem:[%s5285 + $0xe1] sm:$0xff]
        %v5696 = vld [vmem:[%s5285 + $0xf1] sm:$0xff]
        %v5697 = vld [vmem:[%s5285 + $0xf9] sm:$0xff]
        %v5698 = vld [vmem:[%s5285 + $0x109] sm:$0xff]
        %v5699 = vld [vmem:[%s5285 + $0x111] sm:$0xff]
        %v5700 = vld [vmem:[%s5285 + $0x121] sm:$0xff]
        %v5701 = vld [vmem:[%s5285 + $0x129] sm:$0xff]
        %v5702 = vld [vmem:[%s5285 + $0x139] sm:$0xff]
        %v5703 = vld [vmem:[%s5285 + $0x141] sm:$0xff]
        %v5704 = vld [vmem:[%s5285 + $0x151] sm:$0xff]
        %v5705 = vld [vmem:[%s5285 + $0x159] sm:$0xff]
        %v5706 = vld [vmem:[%s5285 + $0x169] sm:$0xff]
        %v5707 = vld [vmem:[%s5285 + $0x171] sm:$0xff]
        %s5708 = scalar_lea.vmem %s10, 224
        %v5709 = vld [vmem:[%s5708] sm:$0xff]
        %v5710 = vld [vmem:[%s5708 + $0x8] sm:$0xff]
        %v5711 = vld [vmem:[%s5708 + $0x10] sm:$0xff]
        %v5712 = vld [vmem:[%s5708 + $0x18] sm:$0xff]
        %v5714 = vsel %vm2953, %v5676, 0
        %v5717 = vsel %vm2953, %v5677, 0
        %v5720 = vsel %vm2953, %v5678, 0
        %v5723 = vsel %vm2953, %v5679, 0
        %v5726 = vsel %vm2953, %v5680, 0
        %v5729 = vsel %vm2953, %v5681, 0
        %v5732 = vsel %vm2953, %v5682, 0
        %v5735 = vsel %vm2953, %v5683, 0
        %v5738 = vsel %vm2953, %v5684, 0
        %v5741 = vsel %vm2953, %v5685, 0
        %v5744 = vsel %vm2953, %v5686, 0
        %v5747 = vsel %vm2953, %v5687, 0
        %v5750 = vsel %vm2953, %v5688, 0
        %v5753 = vsel %vm2953, %v5689, 0
        %v5756 = vsel %vm2953, %v5690, 0
        %v5759 = vsel %vm2953, %v5691, 0
        %v5762 = vsel %vm2953, %v5692, 0
        %v5765 = vsel %vm2953, %v5693, 0
        %v5768 = vsel %vm2953, %v5694, 0
        %v5771 = vsel %vm2953, %v5695, 0
        %v5774 = vsel %vm2953, %v5696, 0
        %v5777 = vsel %vm2953, %v5697, 0
        %v5780 = vsel %vm2953, %v5698, 0
        %v5783 = vsel %vm2953, %v5699, 0
        %v5786 = vsel %vm2953, %v5700, 0
        %v5789 = vsel %vm2953, %v5701, 0
        %v5792 = vsel %vm2953, %v5702, 0
        %v5795 = vsel %vm2953, %v5703, 0
        %v5798 = vsel %vm2953, %v5704, 0
        %v5801 = vsel %vm2953, %v5705, 0
        %v5804 = vsel %vm2953, %v5706, 0
        %v5807 = vsel %vm2953, %v5707, 0
        %5809 = vmatprep.subr.mxu0 0.0
        %5810 = vmatpush1.msra.mxu0 %v5709
        %5811 = vmatprep.subr.mxu0 0.0
        %5812 = vmatpush1.msra.mxu0 %v5710
        %5813 = vmatprep.subr.mxu0 0.0
        %5814 = vmatpush1.msra.mxu0 %v5711
        %5815 = vmatprep.subr.mxu0 0.0
        %5816 = vmatpush1.msra.mxu0 %v5712
        %5817 = vmatprep.subr.mxu0 0.0
        %5818 = vmatpush1.msra.mxu0 0.0
        %5819 = vmatprep.subr.mxu0 0.0
        %5820 = vmatpush1.msra.mxu0 0.0
        %5821 = vmatprep.subr.mxu0 0.0
        %5822 = vmatpush1.msra.mxu0 0.0
        %5823 = vmatprep.subr.mxu0 0.0
        %5824 = vmatpush1.msra.mxu0 0.0
        %5825 = vmatprep.subr.mxu0 0.0
        %5826 = vmatpush1.msra.mxu0 0.0
        %5827 = vmatprep.subr.mxu0 0.0
        %5828 = vmatpush1.msra.mxu0 0.0
        %5829 = vmatprep.subr.mxu0 0.0
        %5830 = vmatpush1.msra.mxu0 0.0
        %5831 = vmatprep.subr.mxu0 0.0
        %5832 = vmatpush1.msra.mxu0 0.0
        %5833 = vmatprep.subr.mxu0 0.0
        %5834 = vmatpush1.msra.mxu0 0.0
        %5835 = vmatprep.subr.mxu0 0.0
        %5836 = vmatpush1.msra.mxu0 0.0
        %5837 = vmatprep.subr.mxu0 0.0
        %5838 = vmatpush1.msra.mxu0 0.0
        %5839 = vmatprep.subr.mxu0 0.0
        %5840 = vmatpush1.msra.mxu0 0.0
        %5841 = vmatprep.subr.mxu0 0.0
        %5842 = vmatpush1.msra.mxu0 0.0
        %5843 = vmatprep.subr.mxu0 0.0
        %5844 = vmatpush1.msra.mxu0 0.0
        %5845 = vmatprep.subr.mxu0 0.0
        %5846 = vmatpush1.msra.mxu0 0.0
        %5847 = vmatprep.subr.mxu0 0.0
        %5848 = vmatpush1.msra.mxu0 0.0
        %5849 = vmatprep.subr.mxu0 0.0
        %5850 = vmatpush1.msra.mxu0 0.0
        %5851 = vmatprep.subr.mxu0 0.0
        %5852 = vmatpush1.msra.mxu0 0.0
        %5853 = vmatprep.subr.mxu0 0.0
        %5854 = vmatpush1.msra.mxu0 0.0
        %5855 = vmatprep.subr.mxu0 0.0
        %5856 = vmatpush1.msra.mxu0 0.0
        %5857 = vmatprep.subr.mxu0 0.0
        %5858 = vmatpush1.msra.mxu0 0.0
        %5859 = vmatprep.subr.mxu0 0.0
        %5860 = vmatpush1.msra.mxu0 0.0
        %5861 = vmatprep.subr.mxu0 0.0
        %5862 = vmatpush1.msra.mxu0 0.0
        %5863 = vmatprep.subr.mxu0 0.0
        %5864 = vmatpush1.msra.mxu0 0.0
        %5865 = vmatprep.subr.mxu0 0.0
        %5866 = vmatpush1.msra.mxu0 0.0
        %5867 = vmatprep.subr.mxu0 0.0
        %5868 = vmatpush1.msra.mxu0 0.0
        %5869 = vmatprep.subr.mxu0 0.0
        %5870 = vmatpush1.msra.mxu0 0.0
        %5871 = vmatprep.subr.mxu0 0.0
        %5872 = vmatpush1.msra.mxu0 0.0
        %5873 = vmatprep.mubr.f32.mxu0 0.0
        %5874 = vmatmul.mubr.f32.gmra.mrb[0].mxu0 %v5714
        %v5875 = vpop.f32.mrb[0].mxu0
        %v5876 = vadd.f32 0.0, %v5875
        %v5877 = vpop.f32.mrb[0].mxu0
        %5878 = vmatprep.mubr.f32.mxu0 0.0
        %5879 = vmatmul.mubr.f32.gmra.mrb[0].mxu0 %v5717
        %v5880 = vpop.f32.mrb[0].mxu0
        %v5881 = vadd.f32 0.0, %v5880
        %v5882 = vpop.f32.mrb[0].mxu0
        %5883 = vmatprep.mubr.f32.mxu0 0.0
        %5884 = vmatmul.mubr.f32.gmra.mrb[0].mxu0 %v5720
        %v5885 = vpop.f32.mrb[0].mxu0
        %v5886 = vadd.f32 0.0, %v5885
        %v5887 = vpop.f32.mrb[0].mxu0
        %5888 = vmatprep.mubr.f32.mxu0 0.0
        %5889 = vmatmul.mubr.f32.gmra.mrb[0].mxu0 %v5723
        %v5890 = vpop.f32.mrb[0].mxu0
        %v5891 = vadd.f32 0.0, %v5890
        %v5892 = vpop.f32.mrb[0].mxu0
        %5893 = vmatprep.mubr.f32.mxu0 0.0
        %5894 = vmatmul.mubr.f32.gmra.mrb[0].mxu0 %v5726
        %v5895 = vpop.f32.mrb[0].mxu0
        %v5896 = vadd.f32 0.0, %v5895
        %v5897 = vpop.f32.mrb[0].mxu0
        %5898 = vmatprep.mubr.f32.mxu0 0.0
        %5899 = vmatmul.mubr.f32.gmra.mrb[0].mxu0 %v5729
        %v5900 = vpop.f32.mrb[0].mxu0
        %v5901 = vadd.f32 0.0, %v5900
        %v5902 = vpop.f32.mrb[0].mxu0
        %5903 = vmatprep.mubr.f32.mxu0 0.0
        %5904 = vmatmul.mubr.f32.gmra.mrb[0].mxu0 %v5732
        %v5905 = vpop.f32.mrb[0].mxu0
        %v5906 = vadd.f32 0.0, %v5905
        %v5907 = vpop.f32.mrb[0].mxu0
        %5908 = vmatprep.mubr.f32.mxu0 0.0
        %5909 = vmatmul.mubr.f32.gmra.mrb[0].mxu0 %v5735
        %v5910 = vpop.f32.mrb[0].mxu0
        %v5911 = vadd.f32 0.0, %v5910
        %v5912 = vpop.f32.mrb[0].mxu0
        %5913 = vmatprep.mubr.f32.mxu0 0.0
        %5914 = vmatmul.mubr.f32.gmra.mrb[0].mxu0 %v5738
        %v5915 = vpop.f32.mrb[0].mxu0
        %v5916 = vadd.f32 0.0, %v5915
        %v5917 = vpop.f32.mrb[0].mxu0
        %5918 = vmatprep.mubr.f32.mxu0 0.0
        %5919 = vmatmul.mubr.f32.gmra.mrb[0].mxu0 %v5741
        %v5920 = vpop.f32.mrb[0].mxu0
        %v5921 = vadd.f32 0.0, %v5920
        %v5922 = vpop.f32.mrb[0].mxu0
        %5923 = vmatprep.mubr.f32.mxu0 0.0
        %5924 = vmatmul.mubr.f32.gmra.mrb[0].mxu0 %v5744
        %v5925 = vpop.f32.mrb[0].mxu0
        %v5926 = vadd.f32 0.0, %v5925
        %v5927 = vpop.f32.mrb[0].mxu0
        %5928 = vmatprep.mubr.f32.mxu0 0.0
        %5929 = vmatmul.mubr.f32.gmra.mrb[0].mxu0 %v5747
        %v5930 = vpop.f32.mrb[0].mxu0
        %v5931 = vadd.f32 0.0, %v5930
        %v5932 = vpop.f32.mrb[0].mxu0
        %5933 = vmatprep.mubr.f32.mxu0 0.0
        %5934 = vmatmul.mubr.f32.gmra.mrb[0].mxu0 %v5750
        %v5935 = vpop.f32.mrb[0].mxu0
        %v5936 = vadd.f32 0.0, %v5935
        %v5937 = vpop.f32.mrb[0].mxu0
        %5938 = vmatprep.mubr.f32.mxu0 0.0
        %5939 = vmatmul.mubr.f32.gmra.mrb[0].mxu0 %v5753
        %v5940 = vpop.f32.mrb[0].mxu0
        %v5941 = vadd.f32 0.0, %v5940
        %v5942 = vpop.f32.mrb[0].mxu0
        %5943 = vmatprep.mubr.f32.mxu0 0.0
        %5944 = vmatmul.mubr.f32.gmra.mrb[0].mxu0 %v5756
        %v5945 = vpop.f32.mrb[0].mxu0
        %v5946 = vadd.f32 0.0, %v5945
        %v5947 = vpop.f32.mrb[0].mxu0
        %5948 = vmatprep.mubr.f32.mxu0 0.0
        %5949 = vmatmul.mubr.f32.gmra.mrb[0].mxu0 %v5759
        %v5950 = vpop.f32.mrb[0].mxu0
        %v5951 = vadd.f32 0.0, %v5950
        %v5952 = vpop.f32.mrb[0].mxu0
        %5953 = vmatprep.mubr.f32.mxu0 0.0
        %5954 = vmatmul.mubr.f32.gmra.mrb[0].mxu0 %v5762
        %v5955 = vpop.f32.mrb[0].mxu0
        %v5956 = vadd.f32 0.0, %v5955
        %v5957 = vpop.f32.mrb[0].mxu0
        %5958 = vmatprep.mubr.f32.mxu0 0.0
        %5959 = vmatmul.mubr.f32.gmra.mrb[0].mxu0 %v5765
        %v5960 = vpop.f32.mrb[0].mxu0
        %v5961 = vadd.f32 0.0, %v5960
        %v5962 = vpop.f32.mrb[0].mxu0
        %5963 = vmatprep.mubr.f32.mxu0 0.0
        %5964 = vmatmul.mubr.f32.gmra.mrb[0].mxu0 %v5768
        %v5965 = vpop.f32.mrb[0].mxu0
        %v5966 = vadd.f32 0.0, %v5965
        %v5967 = vpop.f32.mrb[0].mxu0
        %5968 = vmatprep.mubr.f32.mxu0 0.0
        %5969 = vmatmul.mubr.f32.gmra.mrb[0].mxu0 %v5771
        %v5970 = vpop.f32.mrb[0].mxu0
        %v5971 = vadd.f32 0.0, %v5970
        %v5972 = vpop.f32.mrb[0].mxu0
        %5973 = vmatprep.mubr.f32.mxu0 0.0
        %5974 = vmatmul.mubr.f32.gmra.mrb[0].mxu0 %v5774
        %v5975 = vpop.f32.mrb[0].mxu0
        %v5976 = vadd.f32 0.0, %v5975
        %v5977 = vpop.f32.mrb[0].mxu0
        %5978 = vmatprep.mubr.f32.mxu0 0.0
        %5979 = vmatmul.mubr.f32.gmra.mrb[0].mxu0 %v5777
        %v5980 = vpop.f32.mrb[0].mxu0
        %v5981 = vadd.f32 0.0, %v5980
        %v5982 = vpop.f32.mrb[0].mxu0
        %5983 = vmatprep.mubr.f32.mxu0 0.0
        %5984 = vmatmul.mubr.f32.gmra.mrb[0].mxu0 %v5780
        %v5985 = vpop.f32.mrb[0].mxu0
        %v5986 = vadd.f32 0.0, %v5985
        %v5987 = vpop.f32.mrb[0].mxu0
        %5988 = vmatprep.mubr.f32.mxu0 0.0
        %5989 = vmatmul.mubr.f32.gmra.mrb[0].mxu0 %v5783
        %v5990 = vpop.f32.mrb[0].mxu0
        %v5991 = vadd.f32 0.0, %v5990
        %v5992 = vpop.f32.mrb[0].mxu0
        %5993 = vmatprep.mubr.f32.mxu0 0.0
        %5994 = vmatmul.mubr.f32.gmra.mrb[0].mxu0 %v5786
        %v5995 = vpop.f32.mrb[0].mxu0
        %v5996 = vadd.f32 0.0, %v5995
        %v5997 = vpop.f32.mrb[0].mxu0
        %5998 = vmatprep.mubr.f32.mxu0 0.0
        %5999 = vmatmul.mubr.f32.gmra.mrb[0].mxu0 %v5789
        %v6000 = vpop.f32.mrb[0].mxu0
        %v6001 = vadd.f32 0.0, %v6000
        %v6002 = vpop.f32.mrb[0].mxu0
        %6003 = vmatprep.mubr.f32.mxu0 0.0
        %6004 = vmatmul.mubr.f32.gmra.mrb[0].mxu0 %v5792
        %v6005 = vpop.f32.mrb[0].mxu0
        %v6006 = vadd.f32 0.0, %v6005
        %v6007 = vpop.f32.mrb[0].mxu0
        %6008 = vmatprep.mubr.f32.mxu0 0.0
        %6009 = vmatmul.mubr.f32.gmra.mrb[0].mxu0 %v5795
        %v6010 = vpop.f32.mrb[0].mxu0
        %v6011 = vadd.f32 0.0, %v6010
        %v6012 = vpop.f32.mrb[0].mxu0
        %6013 = vmatprep.mubr.f32.mxu0 0.0
        %6014 = vmatmul.mubr.f32.gmra.mrb[0].mxu0 %v5798
        %v6015 = vpop.f32.mrb[0].mxu0
        %v6016 = vadd.f32 0.0, %v6015
        %v6017 = vpop.f32.mrb[0].mxu0
        %6018 = vmatprep.mubr.f32.mxu0 0.0
        %6019 = vmatmul.mubr.f32.gmra.mrb[0].mxu0 %v5801
        %v6020 = vpop.f32.mrb[0].mxu0
        %v6021 = vadd.f32 0.0, %v6020
        %v6022 = vpop.f32.mrb[0].mxu0
        %6023 = vmatprep.mubr.f32.mxu0 0.0
        %6024 = vmatmul.mubr.f32.gmra.mrb[0].mxu0 %v5804
        %v6025 = vpop.f32.mrb[0].mxu0
        %v6026 = vadd.f32 0.0, %v6025
        %v6027 = vpop.f32.mrb[0].mxu0
        %6028 = vmatprep.mubr.f32.mxu0 0.0
        %6029 = vmatmul.mubr.f32.gmra.mrb[0].mxu0 %v5807
        %v6030 = vpop.f32.mrb[0].mxu0
        %v6031 = vadd.f32 0.0, %v6030
        %v6032 = vpop.f32.mrb[0].mxu0
        %6033 = vdwg.mxu0
        %v6034 = vadd.f32 %v5644, %v5876
        %v6035 = vadd.f32 %v5645, %v5881
        %v6036 = vadd.f32 %v5646, %v5886
        %v6037 = vadd.f32 %v5647, %v5891
        %v6038 = vadd.f32 %v5648, %v5896
        %v6039 = vadd.f32 %v5649, %v5901
        %v6040 = vadd.f32 %v5650, %v5906
        %v6041 = vadd.f32 %v5651, %v5911
        %v6042 = vadd.f32 %v5652, %v5916
        %v6043 = vadd.f32 %v5653, %v5921
        %v6044 = vadd.f32 %v5654, %v5926
        %v6045 = vadd.f32 %v5655, %v5931
        %v6046 = vadd.f32 %v5656, %v5936
        %v6047 = vadd.f32 %v5657, %v5941
        %v6048 = vadd.f32 %v5658, %v5946
        %v6049 = vadd.f32 %v5659, %v5951
        %v6050 = vadd.f32 %v5660, %v5956
        %v6051 = vadd.f32 %v5661, %v5961
        %v6052 = vadd.f32 %v5662, %v5966
        %v6053 = vadd.f32 %v5663, %v5971
        %v6054 = vadd.f32 %v5664, %v5976
        %v6055 = vadd.f32 %v5665, %v5981
        %v6056 = vadd.f32 %v5666, %v5986
        %v6057 = vadd.f32 %v5667, %v5991
        %v6058 = vadd.f32 %v5668, %v5996
        %v6059 = vadd.f32 %v5669, %v6001
        %v6060 = vadd.f32 %v5670, %v6006
        %v6061 = vadd.f32 %v5671, %v6011
        %v6062 = vadd.f32 %v5672, %v6016
        %v6063 = vadd.f32 %v5673, %v6021
        %v6064 = vadd.f32 %v5674, %v6026
        %v6065 = vadd.f32 %v5675, %v6031
        %v6066 = vld [vmem:[%s5285 + $0x2] sm:$0xff]
        %v6067 = vld [vmem:[%s5285 + $0xa] sm:$0xff]
        %v6068 = vld [vmem:[%s5285 + $0x1a] sm:$0xff]
        %v6069 = vld [vmem:[%s5285 + $0x22] sm:$0xff]
        %v6070 = vld [vmem:[%s5285 + $0x32] sm:$0xff]
        %v6071 = vld [vmem:[%s5285 + $0x3a] sm:$0xff]
        %v6072 = vld [vmem:[%s5285 + $0x4a] sm:$0xff]
        %v6073 = vld [vmem:[%s5285 + $0x52] sm:$0xff]
        %v6074 = vld [vmem:[%s5285 + $0x62] sm:$0xff]
        %v6075 = vld [vmem:[%s5285 + $0x6a] sm:$0xff]
        %v6076 = vld [vmem:[%s5285 + $0x7a] sm:$0xff]
        %v6077 = vld [vmem:[%s5285 + $0x82] sm:$0xff]
        %v6078 = vld [vmem:[%s5285 + $0x92] sm:$0xff]
        %v6079 = vld [vmem:[%s5285 + $0x9a] sm:$0xff]
        %v6080 = vld [vmem:[%s5285 + $0xaa] sm:$0xff]
        %v6081 = vld [vmem:[%s5285 + $0xb2] sm:$0xff]
        %v6082 = vld [vmem:[%s5285 + $0xc2] sm:$0xff]
        %v6083 = vld [vmem:[%s5285 + $0xca] sm:$0xff]
        %v6084 = vld [vmem:[%s5285 + $0xda] sm:$0xff]
        %v6085 = vld [vmem:[%s5285 + $0xe2] sm:$0xff]
        %v6086 = vld [vmem:[%s5285 + $0xf2] sm:$0xff]
        %v6087 = vld [vmem:[%s5285 + $0xfa] sm:$0xff]
        %v6088 = vld [vmem:[%s5285 + $0x10a] sm:$0xff]
        %v6089 = vld [vmem:[%s5285 + $0x112] sm:$0xff]
        %v6090 = vld [vmem:[%s5285 + $0x122] sm:$0xff]
        %v6091 = vld [vmem:[%s5285 + $0x12a] sm:$0xff]
        %v6092 = vld [vmem:[%s5285 + $0x13a] sm:$0xff]
        %v6093 = vld [vmem:[%s5285 + $0x142] sm:$0xff]
        %v6094 = vld [vmem:[%s5285 + $0x152] sm:$0xff]
        %v6095 = vld [vmem:[%s5285 + $0x15a] sm:$0xff]
        %v6096 = vld [vmem:[%s5285 + $0x16a] sm:$0xff]
        %v6097 = vld [vmem:[%s5285 + $0x172] sm:$0xff]
        %s6098 = scalar_lea.vmem %s10, 256
        %v6099 = vld [vmem:[%s6098] sm:$0xff]
        %v6100 = vld [vmem:[%s6098 + $0x8] sm:$0xff]
        %v6101 = vld [vmem:[%s6098 + $0x10] sm:$0xff]
        %v6102 = vld [vmem:[%s6098 + $0x18] sm:$0xff]
        %v6104 = vsel %vm2953, %v6066, 0
        %v6107 = vsel %vm2953, %v6067, 0
        %v6110 = vsel %vm2953, %v6068, 0
        %v6113 = vsel %vm2953, %v6069, 0
        %v6116 = vsel %vm2953, %v6070, 0
        %v6119 = vsel %vm2953, %v6071, 0
        %v6122 = vsel %vm2953, %v6072, 0
        %v6125 = vsel %vm2953, %v6073, 0
        %v6128 = vsel %vm2953, %v6074, 0
        %v6131 = vsel %vm2953, %v6075, 0
        %v6134 = vsel %vm2953, %v6076, 0
        %v6137 = vsel %vm2953, %v6077, 0
        %v6140 = vsel %vm2953, %v6078, 0
        %v6143 = vsel %vm2953, %v6079, 0
        %v6146 = vsel %vm2953, %v6080, 0
        %v6149 = vsel %vm2953, %v6081, 0
        %v6152 = vsel %vm2953, %v6082, 0
        %v6155 = vsel %vm2953, %v6083, 0
        %v6158 = vsel %vm2953, %v6084, 0
        %v6161 = vsel %vm2953, %v6085, 0
        %v6164 = vsel %vm2953, %v6086, 0
        %v6167 = vsel %vm2953, %v6087, 0
        %v6170 = vsel %vm2953, %v6088, 0
        %v6173 = vsel %vm2953, %v6089, 0
        %v6176 = vsel %vm2953, %v6090, 0
        %v6179 = vsel %vm2953, %v6091, 0
        %v6182 = vsel %vm2953, %v6092, 0
        %v6185 = vsel %vm2953, %v6093, 0
        %v6188 = vsel %vm2953, %v6094, 0
        %v6191 = vsel %vm2953, %v6095, 0
        %v6194 = vsel %vm2953, %v6096, 0
        %v6197 = vsel %vm2953, %v6097, 0
        %6199 = vmatprep.subr.mxu0 0.0
        %6200 = vmatpush1.msra.mxu0 %v6099
        %6201 = vmatprep.subr.mxu0 0.0
        %6202 = vmatpush1.msra.mxu0 %v6100
        %6203 = vmatprep.subr.mxu0 0.0
        %6204 = vmatpush1.msra.mxu0 %v6101
        %6205 = vmatprep.subr.mxu0 0.0
        %6206 = vmatpush1.msra.mxu0 %v6102
        %6207 = vmatprep.subr.mxu0 0.0
        %6208 = vmatpush1.msra.mxu0 0.0
        %6209 = vmatprep.subr.mxu0 0.0
        %6210 = vmatpush1.msra.mxu0 0.0
        %6211 = vmatprep.subr.mxu0 0.0
        %6212 = vmatpush1.msra.mxu0 0.0
        %6213 = vmatprep.subr.mxu0 0.0
        %6214 = vmatpush1.msra.mxu0 0.0
        %6215 = vmatprep.subr.mxu0 0.0
        %6216 = vmatpush1.msra.mxu0 0.0
        %6217 = vmatprep.subr.mxu0 0.0
        %6218 = vmatpush1.msra.mxu0 0.0
        %6219 = vmatprep.subr.mxu0 0.0
        %6220 = vmatpush1.msra.mxu0 0.0
        %6221 = vmatprep.subr.mxu0 0.0
        %6222 = vmatpush1.msra.mxu0 0.0
        %6223 = vmatprep.subr.mxu0 0.0
        %6224 = vmatpush1.msra.mxu0 0.0
        %6225 = vmatprep.subr.mxu0 0.0
        %6226 = vmatpush1.msra.mxu0 0.0
        %6227 = vmatprep.subr.mxu0 0.0
        %6228 = vmatpush1.msra.mxu0 0.0
        %6229 = vmatprep.subr.mxu0 0.0
        %6230 = vmatpush1.msra.mxu0 0.0
        %6231 = vmatprep.subr.mxu0 0.0
        %6232 = vmatpush1.msra.mxu0 0.0
        %6233 = vmatprep.subr.mxu0 0.0
        %6234 = vmatpush1.msra.mxu0 0.0
        %6235 = vmatprep.subr.mxu0 0.0
        %6236 = vmatpush1.msra.mxu0 0.0
        %6237 = vmatprep.subr.mxu0 0.0
        %6238 = vmatpush1.msra.mxu0 0.0
        %6239 = vmatprep.subr.mxu0 0.0
        %6240 = vmatpush1.msra.mxu0 0.0
        %6241 = vmatprep.subr.mxu0 0.0
        %6242 = vmatpush1.msra.mxu0 0.0
        %6243 = vmatprep.subr.mxu0 0.0
        %6244 = vmatpush1.msra.mxu0 0.0
        %6245 = vmatprep.subr.mxu0 0.0
        %6246 = vmatpush1.msra.mxu0 0.0
        %6247 = vmatprep.subr.mxu0 0.0
        %6248 = vmatpush1.msra.mxu0 0.0
        %6249 = vmatprep.subr.mxu0 0.0
        %6250 = vmatpush1.msra.mxu0 0.0
        %6251 = vmatprep.subr.mxu0 0.0
        %6252 = vmatpush1.msra.mxu0 0.0
        %6253 = vmatprep.subr.mxu0 0.0
        %6254 = vmatpush1.msra.mxu0 0.0
        %6255 = vmatprep.subr.mxu0 0.0
        %6256 = vmatpush1.msra.mxu0 0.0
        %6257 = vmatprep.subr.mxu0 0.0
        %6258 = vmatpush1.msra.mxu0 0.0
        %6259 = vmatprep.subr.mxu0 0.0
        %6260 = vmatpush1.msra.mxu0 0.0
        %6261 = vmatprep.subr.mxu0 0.0
        %6262 = vmatpush1.msra.mxu0 0.0
        %6263 = vmatprep.mubr.f32.mxu0 0.0
        %6264 = vmatmul.mubr.f32.gmra.mrb[0].mxu0 %v6104
        %v6265 = vpop.f32.mrb[0].mxu0
        %v6266 = vadd.f32 0.0, %v6265
        %v6267 = vpop.f32.mrb[0].mxu0
        %6268 = vmatprep.mubr.f32.mxu0 0.0
        %6269 = vmatmul.mubr.f32.gmra.mrb[0].mxu0 %v6107
        %v6270 = vpop.f32.mrb[0].mxu0
        %v6271 = vadd.f32 0.0, %v6270
        %v6272 = vpop.f32.mrb[0].mxu0
        %6273 = vmatprep.mubr.f32.mxu0 0.0
        %6274 = vmatmul.mubr.f32.gmra.mrb[0].mxu0 %v6110
        %v6275 = vpop.f32.mrb[0].mxu0
        %v6276 = vadd.f32 0.0, %v6275
        %v6277 = vpop.f32.mrb[0].mxu0
        %6278 = vmatprep.mubr.f32.mxu0 0.0
        %6279 = vmatmul.mubr.f32.gmra.mrb[0].mxu0 %v6113
        %v6280 = vpop.f32.mrb[0].mxu0
        %v6281 = vadd.f32 0.0, %v6280
        %v6282 = vpop.f32.mrb[0].mxu0
        %6283 = vmatprep.mubr.f32.mxu0 0.0
        %6284 = vmatmul.mubr.f32.gmra.mrb[0].mxu0 %v6116
        %v6285 = vpop.f32.mrb[0].mxu0
        %v6286 = vadd.f32 0.0, %v6285
        %v6287 = vpop.f32.mrb[0].mxu0
        %6288 = vmatprep.mubr.f32.mxu0 0.0
        %6289 = vmatmul.mubr.f32.gmra.mrb[0].mxu0 %v6119
        %v6290 = vpop.f32.mrb[0].mxu0
        %v6291 = vadd.f32 0.0, %v6290
        %v6292 = vpop.f32.mrb[0].mxu0
        %6293 = vmatprep.mubr.f32.mxu0 0.0
        %6294 = vmatmul.mubr.f32.gmra.mrb[0].mxu0 %v6122
        %v6295 = vpop.f32.mrb[0].mxu0
        %v6296 = vadd.f32 0.0, %v6295
        %v6297 = vpop.f32.mrb[0].mxu0
        %6298 = vmatprep.mubr.f32.mxu0 0.0
        %6299 = vmatmul.mubr.f32.gmra.mrb[0].mxu0 %v6125
        %v6300 = vpop.f32.mrb[0].mxu0
        %v6301 = vadd.f32 0.0, %v6300
        %v6302 = vpop.f32.mrb[0].mxu0
        %6303 = vmatprep.mubr.f32.mxu0 0.0
        %6304 = vmatmul.mubr.f32.gmra.mrb[0].mxu0 %v6128
        %v6305 = vpop.f32.mrb[0].mxu0
        %v6306 = vadd.f32 0.0, %v6305
        %v6307 = vpop.f32.mrb[0].mxu0
        %6308 = vmatprep.mubr.f32.mxu0 0.0
        %6309 = vmatmul.mubr.f32.gmra.mrb[0].mxu0 %v6131
        %v6310 = vpop.f32.mrb[0].mxu0
        %v6311 = vadd.f32 0.0, %v6310
        %v6312 = vpop.f32.mrb[0].mxu0
        %6313 = vmatprep.mubr.f32.mxu0 0.0
        %6314 = vmatmul.mubr.f32.gmra.mrb[0].mxu0 %v6134
        %v6315 = vpop.f32.mrb[0].mxu0
        %v6316 = vadd.f32 0.0, %v6315
        %v6317 = vpop.f32.mrb[0].mxu0
        %6318 = vmatprep.mubr.f32.mxu0 0.0
        %6319 = vmatmul.mubr.f32.gmra.mrb[0].mxu0 %v6137
        %v6320 = vpop.f32.mrb[0].mxu0
        %v6321 = vadd.f32 0.0, %v6320
        %v6322 = vpop.f32.mrb[0].mxu0
        %6323 = vmatprep.mubr.f32.mxu0 0.0
        %6324 = vmatmul.mubr.f32.gmra.mrb[0].mxu0 %v6140
        %v6325 = vpop.f32.mrb[0].mxu0
        %v6326 = vadd.f32 0.0, %v6325
        %v6327 = vpop.f32.mrb[0].mxu0
        %6328 = vmatprep.mubr.f32.mxu0 0.0
        %6329 = vmatmul.mubr.f32.gmra.mrb[0].mxu0 %v6143
        %v6330 = vpop.f32.mrb[0].mxu0
        %v6331 = vadd.f32 0.0, %v6330
        %v6332 = vpop.f32.mrb[0].mxu0
        %6333 = vmatprep.mubr.f32.mxu0 0.0
        %6334 = vmatmul.mubr.f32.gmra.mrb[0].mxu0 %v6146
        %v6335 = vpop.f32.mrb[0].mxu0
        %v6336 = vadd.f32 0.0, %v6335
        %v6337 = vpop.f32.mrb[0].mxu0
        %6338 = vmatprep.mubr.f32.mxu0 0.0
        %6339 = vmatmul.mubr.f32.gmra.mrb[0].mxu0 %v6149
        %v6340 = vpop.f32.mrb[0].mxu0
        %v6341 = vadd.f32 0.0, %v6340
        %v6342 = vpop.f32.mrb[0].mxu0
        %6343 = vmatprep.mubr.f32.mxu0 0.0
        %6344 = vmatmul.mubr.f32.gmra.mrb[0].mxu0 %v6152
        %v6345 = vpop.f32.mrb[0].mxu0
        %v6346 = vadd.f32 0.0, %v6345
        %v6347 = vpop.f32.mrb[0].mxu0
        %6348 = vmatprep.mubr.f32.mxu0 0.0
        %6349 = vmatmul.mubr.f32.gmra.mrb[0].mxu0 %v6155
        %v6350 = vpop.f32.mrb[0].mxu0
        %v6351 = vadd.f32 0.0, %v6350
        %v6352 = vpop.f32.mrb[0].mxu0
        %6353 = vmatprep.mubr.f32.mxu0 0.0
        %6354 = vmatmul.mubr.f32.gmra.mrb[0].mxu0 %v6158
        %v6355 = vpop.f32.mrb[0].mxu0
        %v6356 = vadd.f32 0.0, %v6355
        %v6357 = vpop.f32.mrb[0].mxu0
        %6358 = vmatprep.mubr.f32.mxu0 0.0
        %6359 = vmatmul.mubr.f32.gmra.mrb[0].mxu0 %v6161
        %v6360 = vpop.f32.mrb[0].mxu0
        %v6361 = vadd.f32 0.0, %v6360
        %v6362 = vpop.f32.mrb[0].mxu0
        %6363 = vmatprep.mubr.f32.mxu0 0.0
        %6364 = vmatmul.mubr.f32.gmra.mrb[0].mxu0 %v6164
        %v6365 = vpop.f32.mrb[0].mxu0
        %v6366 = vadd.f32 0.0, %v6365
        %v6367 = vpop.f32.mrb[0].mxu0
        %6368 = vmatprep.mubr.f32.mxu0 0.0
        %6369 = vmatmul.mubr.f32.gmra.mrb[0].mxu0 %v6167
        %v6370 = vpop.f32.mrb[0].mxu0
        %v6371 = vadd.f32 0.0, %v6370
        %v6372 = vpop.f32.mrb[0].mxu0
        %6373 = vmatprep.mubr.f32.mxu0 0.0
        %6374 = vmatmul.mubr.f32.gmra.mrb[0].mxu0 %v6170
        %v6375 = vpop.f32.mrb[0].mxu0
        %v6376 = vadd.f32 0.0, %v6375
        %v6377 = vpop.f32.mrb[0].mxu0
        %6378 = vmatprep.mubr.f32.mxu0 0.0
        %6379 = vmatmul.mubr.f32.gmra.mrb[0].mxu0 %v6173
        %v6380 = vpop.f32.mrb[0].mxu0
        %v6381 = vadd.f32 0.0, %v6380
        %v6382 = vpop.f32.mrb[0].mxu0
        %6383 = vmatprep.mubr.f32.mxu0 0.0
        %6384 = vmatmul.mubr.f32.gmra.mrb[0].mxu0 %v6176
        %v6385 = vpop.f32.mrb[0].mxu0
        %v6386 = vadd.f32 0.0, %v6385
        %v6387 = vpop.f32.mrb[0].mxu0
        %6388 = vmatprep.mubr.f32.mxu0 0.0
        %6389 = vmatmul.mubr.f32.gmra.mrb[0].mxu0 %v6179
        %v6390 = vpop.f32.mrb[0].mxu0
        %v6391 = vadd.f32 0.0, %v6390
        %v6392 = vpop.f32.mrb[0].mxu0
        %6393 = vmatprep.mubr.f32.mxu0 0.0
        %6394 = vmatmul.mubr.f32.gmra.mrb[0].mxu0 %v6182
        %v6395 = vpop.f32.mrb[0].mxu0
        %v6396 = vadd.f32 0.0, %v6395
        %v6397 = vpop.f32.mrb[0].mxu0
        %6398 = vmatprep.mubr.f32.mxu0 0.0
        %6399 = vmatmul.mubr.f32.gmra.mrb[0].mxu0 %v6185
        %v6400 = vpop.f32.mrb[0].mxu0
        %v6401 = vadd.f32 0.0, %v6400
        %v6402 = vpop.f32.mrb[0].mxu0
        %6403 = vmatprep.mubr.f32.mxu0 0.0
        %6404 = vmatmul.mubr.f32.gmra.mrb[0].mxu0 %v6188
        %v6405 = vpop.f32.mrb[0].mxu0
        %v6406 = vadd.f32 0.0, %v6405
        %v6407 = vpop.f32.mrb[0].mxu0
        %6408 = vmatprep.mubr.f32.mxu0 0.0
        %6409 = vmatmul.mubr.f32.gmra.mrb[0].mxu0 %v6191
        %v6410 = vpop.f32.mrb[0].mxu0
        %v6411 = vadd.f32 0.0, %v6410
        %v6412 = vpop.f32.mrb[0].mxu0
        %6413 = vmatprep.mubr.f32.mxu0 0.0
        %6414 = vmatmul.mubr.f32.gmra.mrb[0].mxu0 %v6194
        %v6415 = vpop.f32.mrb[0].mxu0
        %v6416 = vadd.f32 0.0, %v6415
        %v6417 = vpop.f32.mrb[0].mxu0
        %6418 = vmatprep.mubr.f32.mxu0 0.0
        %6419 = vmatmul.mubr.f32.gmra.mrb[0].mxu0 %v6197
        %v6420 = vpop.f32.mrb[0].mxu0
        %v6421 = vadd.f32 0.0, %v6420
        %v6422 = vpop.f32.mrb[0].mxu0
        %6423 = vdwg.mxu0
        %v6424 = vadd.f32 %v6034, %v6266
        %v6425 = vadd.f32 %v6035, %v6271
        %v6426 = vadd.f32 %v6036, %v6276
        %v6427 = vadd.f32 %v6037, %v6281
        %v6428 = vadd.f32 %v6038, %v6286
        %v6429 = vadd.f32 %v6039, %v6291
        %v6430 = vadd.f32 %v6040, %v6296
        %v6431 = vadd.f32 %v6041, %v6301
        %v6432 = vadd.f32 %v6042, %v6306
        %v6433 = vadd.f32 %v6043, %v6311
        %v6434 = vadd.f32 %v6044, %v6316
        %v6435 = vadd.f32 %v6045, %v6321
        %v6436 = vadd.f32 %v6046, %v6326
        %v6437 = vadd.f32 %v6047, %v6331
        %v6438 = vadd.f32 %v6048, %v6336
        %v6439 = vadd.f32 %v6049, %v6341
        %v6440 = vadd.f32 %v6050, %v6346
        %v6441 = vadd.f32 %v6051, %v6351
        %v6442 = vadd.f32 %v6052, %v6356
        %v6443 = vadd.f32 %v6053, %v6361
        %v6444 = vadd.f32 %v6054, %v6366
        %v6445 = vadd.f32 %v6055, %v6371
        %v6446 = vadd.f32 %v6056, %v6376
        %v6447 = vadd.f32 %v6057, %v6381
        %v6448 = vadd.f32 %v6058, %v6386
        %v6449 = vadd.f32 %v6059, %v6391
        %v6450 = vadd.f32 %v6060, %v6396
        %v6451 = vadd.f32 %v6061, %v6401
        %v6452 = vadd.f32 %v6062, %v6406
        %v6453 = vadd.f32 %v6063, %v6411
        %v6454 = vadd.f32 %v6064, %v6416
        %v6455 = vadd.f32 %v6065, %v6421
        %v6456 = vld [vmem:[%s11] sm:$0x1]
        %v6458 = vlaneseq
        %v6459 = vshrl.u32 %v6458, 7
        %v6460 = vsub.s32 0, %v6459
        %v6461 = vrot.slane %v6456, %v6460
        %v6463 = vadd.f32 %v6424, %v6461
        %v6464 = vadd.f32 %v6425, %v6461
        %v6465 = vadd.f32 %v6426, %v6461
        %v6466 = vadd.f32 %v6427, %v6461
        %v6467 = vadd.f32 %v6428, %v6461
        %v6468 = vadd.f32 %v6429, %v6461
        %v6469 = vadd.f32 %v6430, %v6461
        %v6470 = vadd.f32 %v6431, %v6461
        %v6471 = vadd.f32 %v6432, %v6461
        %v6472 = vadd.f32 %v6433, %v6461
        %v6473 = vadd.f32 %v6434, %v6461
        %v6474 = vadd.f32 %v6435, %v6461
        %v6475 = vadd.f32 %v6436, %v6461
        %v6476 = vadd.f32 %v6437, %v6461
        %v6477 = vadd.f32 %v6438, %v6461
        %v6478 = vadd.f32 %v6439, %v6461
        %v6479 = vadd.f32 %v6440, %v6461
        %v6480 = vadd.f32 %v6441, %v6461
        %v6481 = vadd.f32 %v6442, %v6461
        %v6482 = vadd.f32 %v6443, %v6461
        %v6483 = vadd.f32 %v6444, %v6461
        %v6484 = vadd.f32 %v6445, %v6461
        %v6485 = vadd.f32 %v6446, %v6461
        %v6486 = vadd.f32 %v6447, %v6461
        %v6487 = vadd.f32 %v6448, %v6461
        %v6488 = vadd.f32 %v6449, %v6461
        %v6489 = vadd.f32 %v6450, %v6461
        %v6490 = vadd.f32 %v6451, %v6461
        %v6491 = vadd.f32 %v6452, %v6461
        %v6492 = vadd.f32 %v6453, %v6461
        %v6493 = vadd.f32 %v6454, %v6461
        %v6494 = vadd.f32 %v6455, %v6461
        %v6495 = vmax.f32 %v6463, 0.0
        %v6496 = vmax.f32 %v6464, 0.0
        %v6497 = vmax.f32 %v6465, 0.0
        %v6498 = vmax.f32 %v6466, 0.0
        %v6499 = vmax.f32 %v6467, 0.0
        %v6500 = vmax.f32 %v6468, 0.0
        %v6501 = vmax.f32 %v6469, 0.0
        %v6502 = vmax.f32 %v6470, 0.0
        %v6503 = vmax.f32 %v6471, 0.0
        %v6504 = vmax.f32 %v6472, 0.0
        %v6505 = vmax.f32 %v6473, 0.0
        %v6506 = vmax.f32 %v6474, 0.0
        %v6507 = vmax.f32 %v6475, 0.0
        %v6508 = vmax.f32 %v6476, 0.0
        %v6509 = vmax.f32 %v6477, 0.0
        %v6510 = vmax.f32 %v6478, 0.0
        %v6511 = vmax.f32 %v6479, 0.0
        %v6512 = vmax.f32 %v6480, 0.0
        %v6513 = vmax.f32 %v6481, 0.0
        %v6514 = vmax.f32 %v6482, 0.0
        %v6515 = vmax.f32 %v6483, 0.0
        %v6516 = vmax.f32 %v6484, 0.0
        %v6517 = vmax.f32 %v6485, 0.0
        %v6518 = vmax.f32 %v6486, 0.0
        %v6519 = vmax.f32 %v6487, 0.0
        %v6520 = vmax.f32 %v6488, 0.0
        %v6521 = vmax.f32 %v6489, 0.0
        %v6522 = vmax.f32 %v6490, 0.0
        %v6523 = vmax.f32 %v6491, 0.0
        %v6524 = vmax.f32 %v6492, 0.0
        %v6525 = vmax.f32 %v6493, 0.0
        %v6526 = vmax.f32 %v6494, 0.0
        %v6527 = vld [vmem:[%s12] sm:$0xf]
        %v6528 = vld [vmem:[%s13] sm:$0xf]
        %6530 = vset.pattern.permute.xlu0 0
        %6531 = vperm.xlu0 %6530, %v6528
        %v6532 = vpop.permute.xlu0 %6531
        %v6535 = vsel %vm2953, %v6527, 0
        %v6538 = vsel %vm2953, %v6495, 0
        %v6541 = vsel %vm2953, %v6496, 0
        %v6544 = vsel %vm2953, %v6497, 0
        %v6547 = vsel %vm2953, %v6498, 0
        %v6550 = vsel %vm2953, %v6499, 0
        %v6553 = vsel %vm2953, %v6500, 0
        %v6556 = vsel %vm2953, %v6501, 0
        %v6559 = vsel %vm2953, %v6502, 0
        %v6562 = vsel %vm2953, %v6503, 0
        %v6565 = vsel %vm2953, %v6504, 0
        %v6568 = vsel %vm2953, %v6505, 0
        %v6571 = vsel %vm2953, %v6506, 0
        %v6574 = vsel %vm2953, %v6507, 0
        %v6577 = vsel %vm2953, %v6508, 0
        %v6580 = vsel %vm2953, %v6509, 0
        %v6583 = vsel %vm2953, %v6510, 0
        %v6586 = vsel %vm2953, %v6511, 0
        %v6589 = vsel %vm2953, %v6512, 0
        %v6592 = vsel %vm2953, %v6513, 0
        %v6595 = vsel %vm2953, %v6514, 0
        %v6598 = vsel %vm2953, %v6515, 0
        %v6601 = vsel %vm2953, %v6516, 0
        %v6604 = vsel %vm2953, %v6517, 0
        %v6607 = vsel %vm2953, %v6518, 0
        %v6610 = vsel %vm2953, %v6519, 0
        %v6613 = vsel %vm2953, %v6520, 0
        %v6616 = vsel %vm2953, %v6521, 0
        %v6619 = vsel %vm2953, %v6522, 0
        %v6622 = vsel %vm2953, %v6523, 0
        %v6625 = vsel %vm2953, %v6524, 0
        %v6628 = vsel %vm2953, %v6525, 0
        %v6631 = vsel %vm2953, %v6526, 0
        %6633 = vmatprep.subr.mxu0 0.0
        %6634 = vmatpush1.xpose.msra.mxu0 %v6538
        %6635 = vmatprep.subr.mxu0 0.0
        %6636 = vmatpush1.xpose.msra.mxu0 %v6541
        %6637 = vmatprep.subr.mxu0 0.0
        %6638 = vmatpush1.xpose.msra.mxu0 %v6544
        %6639 = vmatprep.subr.mxu0 0.0
        %6640 = vmatpush1.xpose.msra.mxu0 %v6547
        %6641 = vmatprep.subr.mxu0 0.0
        %6642 = vmatpush1.xpose.msra.mxu0 %v6550
        %6643 = vmatprep.subr.mxu0 0.0
        %6644 = vmatpush1.xpose.msra.mxu0 %v6553
        %6645 = vmatprep.subr.mxu0 0.0
        %6646 = vmatpush1.xpose.msra.mxu0 %v6556
        %6647 = vmatprep.subr.mxu0 0.0
        %6648 = vmatpush1.xpose.msra.mxu0 %v6559
        %6649 = vmatprep.subr.mxu0 0.0
        %6650 = vmatpush1.xpose.msra.mxu0 %v6562
        %6651 = vmatprep.subr.mxu0 0.0
        %6652 = vmatpush1.xpose.msra.mxu0 %v6565
        %6653 = vmatprep.subr.mxu0 0.0
        %6654 = vmatpush1.xpose.msra.mxu0 %v6568
        %6655 = vmatprep.subr.mxu0 0.0
        %6656 = vmatpush1.xpose.msra.mxu0 %v6571
        %6657 = vmatprep.subr.mxu0 0.0
        %6658 = vmatpush1.xpose.msra.mxu0 %v6574
        %6659 = vmatprep.subr.mxu0 0.0
        %6660 = vmatpush1.xpose.msra.mxu0 %v6577
        %6661 = vmatprep.subr.mxu0 0.0
        %6662 = vmatpush1.xpose.msra.mxu0 %v6580
        %6663 = vmatprep.subr.mxu0 0.0
        %6664 = vmatpush1.xpose.msra.mxu0 %v6583
        %6665 = vmatprep.subr.mxu0 0.0
        %6666 = vmatpush1.xpose.msra.mxu0 %v6586
        %6667 = vmatprep.subr.mxu0 0.0
        %6668 = vmatpush1.xpose.msra.mxu0 %v6589
        %6669 = vmatprep.subr.mxu0 0.0
        %6670 = vmatpush1.xpose.msra.mxu0 %v6592
        %6671 = vmatprep.subr.mxu0 0.0
        %6672 = vmatpush1.xpose.msra.mxu0 %v6595
        %6673 = vmatprep.subr.mxu0 0.0
        %6674 = vmatpush1.xpose.msra.mxu0 %v6598
        %6675 = vmatprep.subr.mxu0 0.0
        %6676 = vmatpush1.xpose.msra.mxu0 %v6601
        %6677 = vmatprep.subr.mxu0 0.0
        %6678 = vmatpush1.xpose.msra.mxu0 %v6604
        %6679 = vmatprep.subr.mxu0 0.0
        %6680 = vmatpush1.xpose.msra.mxu0 %v6607
        %6681 = vmatprep.subr.mxu0 0.0
        %6682 = vmatpush1.xpose.msra.mxu0 %v6610
        %6683 = vmatprep.subr.mxu0 0.0
        %6684 = vmatpush1.xpose.msra.mxu0 %v6613
        %6685 = vmatprep.subr.mxu0 0.0
        %6686 = vmatpush1.xpose.msra.mxu0 %v6616
        %6687 = vmatprep.subr.mxu0 0.0
        %6688 = vmatpush1.xpose.msra.mxu0 %v6619
        %6689 = vmatprep.subr.mxu0 0.0
        %6690 = vmatpush1.xpose.msra.mxu0 %v6622
        %6691 = vmatprep.subr.mxu0 0.0
        %6692 = vmatpush1.xpose.msra.mxu0 %v6625
        %6693 = vmatprep.subr.mxu0 0.0
        %6694 = vmatpush1.xpose.msra.mxu0 %v6628
        %6695 = vmatprep.subr.mxu0 0.0
        %6696 = vmatpush1.xpose.msra.mxu0 %v6631
        %6697 = vmatprep.mubr.f32.mxu0 0.0
        %6698 = vmatmul.mubr.f32.gmra.mrb[0].mxu0 %v6535
        %v6699 = vpop.f32.mrb[0].mxu0
        %v6700 = vadd.f32 %v6532, %v6699
        %v6701 = vpop.f32.mrb[0].mxu0
        %v6702 = vadd.f32 %v6532, %v6701
        %6703 = vdwg.mxu0
        %v6704 = vsub.f32 0.0, %v6700
        %v6705 = vsub.f32 0.0, %v6702
        %v6706 = vmul.f32 %v6704, 1.442695
        %v6707 = vpow.pop %v6706
        %v6708 = vmul.f32 %v6705, 1.442695
        %v6709 = vpow.pop %v6708
        %v6710 = vadd.f32 %v6707, 1.0
        %v6711 = vadd.f32 %v6709, 1.0
        %v6712 = vrcp.pop %v6710
        %v6713 = vmul.f32 1.0, %v6712
        %v6714 = vrcp.pop %v6711
        %v6715 = vmul.f32 1.0, %v6714
        %v6718 = vcombine.low %v6713, %v6715
        %6720 = vst [vmem:[%s666] sm:$0xff] %v6718
        %p6721 = scmp.lt.s32.totalorder %s39, 1
        %s6722 = scalar_select %p6721, %s39, 1
        %s6723 = smul.addr %s6722, 2
        %s6724 = smul.addr %s6723, 4
        %s6725 = scalar_lea.vmem %s14, %s6724
        %s6726 = sand.u32 %s377, 1
        %s6727 = scalar_lea.sflag [#allocation5], %s6726
        %s6728 = sand.u32 %s377, 1
        %s6729 = scalar_lea.vmem [#allocation14], %s6728
        %s6730 = sand.u32 %s39, 1
        %s6731 = scalar_lea.sflag [#allocation16], %s6730
        %s6732 = sand.u32 %s403, 1
        %s6733 = scalar_lea.vmem [#allocation15], %s6732
        %s6734 = sand.u32 %s39, 1
        %s6735 = scalar_lea.sflag [#allocation16], %s6734
        %s6736 = sand.u32 %s429, 1
        %s6737 = scalar_lea.vmem [#allocation17], %s6736
        // Predicated region
        $region101: #{_lambda_.3} parent=75 // pred_check
          %p6738 = pneg %p361
        $region102: #{_lambda_.3} parent=75 // pred_check_branch
          %6740 = sbr.rel (%p6738) target = $region104
        $region103: #{_lambda_.3} parent=75 // pred_region
          _
        $region104: #{_lambda_.3} parent=75 // pred_fallthru
          _
        // Predicated region
        $region105: #{_lambda_.3} parent=75 // pred_check
          %p6741 = pneg %p387
        $region106: #{_lambda_.3} parent=75 // pred_check_branch
          %6743 = sbr.rel (%p6741) target = $region108
        $region107: #{_lambda_.3} parent=75 // pred_region
          %s6745 = ssub.s32 16, 16
          %6746 = vsyncadd %s6727, %s6745
          %s6747 = smul.addr %s39, 16
          %s6748 = scalar_lea.hbm %s15, %s6747
          %s6750 = sshll.u32 %s6729, 4
          %s6751 = int_to_ptr.vmem [resolvable:$true] %s6750
          %6753 = dma.vmem_to_hbm [thread:$0]  %s6751, 16, %s6748, %s6727
        $region108: #{_lambda_.3} parent=75 // pred_fallthru
          _
        // Predicated region
        $region109: #{_lambda_.3} parent=75 // pred_check
          %p6754 = pneg %p413
        $region110: #{_lambda_.3} parent=75 // pred_check_branch
          %6756 = sbr.rel (%p6754) target = $region112
        $region111: #{_lambda_.3} parent=75 // pred_region
          %s6758 = ssub.s32 16, 16
          %6759 = vsyncadd %s6731, %s6758
          %s6760 = smul.addr %s39, 16
          %s6761 = scalar_lea.hbm %s16, %s6760
          %s6763 = sshll.u32 %s6733, 4
          %s6764 = int_to_ptr.vmem [resolvable:$true] %s6763
          %6766 = dma.vmem_to_hbm [thread:$0]  %s6764, 16, %s6761, %s6731
        $region112: #{_lambda_.3} parent=75 // pred_fallthru
          _
        // Predicated region
        $region113: #{_lambda_.3} parent=75 // pred_check
          %p6767 = pneg %p439
        $region114: #{_lambda_.3} parent=75 // pred_check_branch
          %6769 = sbr.rel (%p6767) target = $region116
        $region115: #{_lambda_.3} parent=75 // pred_region
          %s6771 = ssub.s32 16, 16
          %6772 = vsyncadd %s6735, %s6771
          %s6773 = smul.addr %s39, 16
          %s6774 = scalar_lea.hbm %s17, %s6773
          %s6776 = sshll.u32 %s6737, 4
          %s6777 = int_to_ptr.vmem [resolvable:$true] %s6776
          %6779 = dma.vmem_to_hbm [thread:$0]  %s6777, 16, %s6774, %s6735
        $region116: #{_lambda_.3} parent=75 // pred_fallthru
          _
      $region76: #{_lambda_.3} parent=5 // pred_fallthru
        _
      %p6780 = scmp.le.s32.totalorder 2, %s34
      // Predicated region
      $region117: #{_lambda_.3} parent=5 // pred_check
        %p6781 = pneg %p6780
      $region118: #{_lambda_.3} parent=5 // pred_check_branch
        %6783 = sbr.rel (%p6781) target = $region120
      $region119: #{_lambda_.3} parent=5 // pred_region
        %s6784 = ssub.s32 %s34, 2
        // Predicated region
        $region121: #{_lambda_.3} parent=119 // pred_check
          %p6785 = pneg %p367
        $region122: #{_lambda_.3} parent=119 // pred_check_branch
          %6787 = sbr.rel (%p6785) target = $region124
        $region123: #{_lambda_.3} parent=119 // pred_region
          %p6788 = scmp.lt.s32.totalorder %s40, 1
          %s6789 = scalar_select %p6788, %s40, 1
          %s6790 = smul.addr %s6789, 2
          %s6791 = smul.addr %s6790, 4
          %s6792 = scalar_lea.vmem %s14, %s6791
        $region124: #{_lambda_.3} parent=119 // pred_fallthru
          _
        // Predicated region
        $region125: #{_lambda_.3} parent=119 // pred_check
          %p6793 = pneg %p393
        $region126: #{_lambda_.3} parent=119 // pred_check_branch
          %6795 = sbr.rel (%p6793) target = $region128
        $region127: #{_lambda_.3} parent=119 // pred_region
          %s6796 = sand.u32 %s378, 1
          %s6797 = scalar_lea.sflag [#allocation5], %s6796
          %s6798 = sand.u32 %s378, 1
          %s6799 = scalar_lea.vmem [#allocation14], %s6798
          %6800 = dma.done %s6797, 16
        $region128: #{_lambda_.3} parent=119 // pred_fallthru
          _
        // Predicated region
        $region129: #{_lambda_.3} parent=119 // pred_check
          %p6801 = pneg %p419
        $region130: #{_lambda_.3} parent=119 // pred_check_branch
          %6803 = sbr.rel (%p6801) target = $region132
        $region131: #{_lambda_.3} parent=119 // pred_region
          %s6804 = sand.u32 %s40, 1
          %s6805 = scalar_lea.sflag [#allocation16], %s6804
          %s6806 = sand.u32 %s404, 1
          %s6807 = scalar_lea.vmem [#allocation15], %s6806
          %6808 = dma.done %s6805, 16
        $region132: #{_lambda_.3} parent=119 // pred_fallthru
          _
        // Predicated region
        $region133: #{_lambda_.3} parent=119 // pred_check
          %p6809 = pneg %p445
        $region134: #{_lambda_.3} parent=119 // pred_check_branch
          %6811 = sbr.rel (%p6809) target = $region136
        $region135: #{_lambda_.3} parent=119 // pred_region
          %s6812 = sand.u32 %s40, 1
          %s6813 = scalar_lea.sflag [#allocation16], %s6812
          %s6814 = sand.u32 %s430, 1
          %s6815 = scalar_lea.vmem [#allocation17], %s6814
          %6816 = dma.done %s6813, 16
        $region136: #{_lambda_.3} parent=119 // pred_fallthru
          _
      $region120: #{_lambda_.3} parent=5 // pred_fallthru
        _
    $region6: #{_lambda_.3} parent=1 // loop_footer
      %s38 = sadd.s32 1, %s34
    $region7: #{_lambda_.3} parent=1 // loop_footer_branch
      %33 = sbr.rel target = $region3
    $region8: #{_lambda_.3} parent=1 // loop_exit
      _
    %6817 = vsyncpa [#allocation4], 1
    %s6818 = scalar_lea.sflag [#allocation4], 1
    %6819 = vsyncpa %s6818, 1
    %6820 = vsyncpa [#allocation7], 1
    %6821 = vsyncpa [#allocation10], 1
    %6822 = vsyncpa [#allocation13], 1
    %6823 = vsyncpa [#allocation5], 1
    %s6824 = scalar_lea.sflag [#allocation5], 1
    %6825 = vsyncpa %s6824, 1
    %6826 = vsyncpa [#allocation16], 1
    %s6827 = scalar_lea.sflag [#allocation16], 1
    %6828 = vsyncpa %s6827, 1

</llo_original>
